<compile_context>
chip_gen: v7x
topology: tpu7x:2x2x1
jax: 0.10.0
libtpu: 0.0.40
codegen_flags: <defaults>
</compile_context>

<pallas_src>
import jax
import jax.numpy as jnp
import numpy as np
from jax.experimental import pallas as pl
from jax.experimental.pallas import tpu as pltpu


def _make_kernel(Tc, Bp, Hp):
    """Fused LSTM kernel for one time chunk of Tc steps, padded batch Bp, padded hidden Hp."""

    def kernel(x_ref, wih0_ref, whh0_ref, b0_ref, wih1_ref, whh1_ref, b1_ref,
               wl_ref, bl_ref, o_ref,
               h1_ref, c1_ref, h2_ref, c2_ref, gx0, h2_all):
        # ---- initialize the recurrent state once (persists across grid steps) ----
        @pl.when(pl.program_id(0) == 0)
        def _():
            h1_ref[...] = jnp.zeros_like(h1_ref)
            c1_ref[...] = jnp.zeros_like(c1_ref)
            h2_ref[...] = jnp.zeros_like(h2_ref)
            c2_ref[...] = jnp.zeros_like(c2_ref)

        # ---- hoisted, time-independent work for this chunk ----------------------
        # Layer-0 input projection for all Tc steps: one batched MXU matmul with
        # the layer-0 bias folded in.
        gx0[...] = (jnp.dot(x_ref[...], wih0_ref[...],
                            preferred_element_type=jnp.float32)
                    + b0_ref[...])

        # Hoist only the small bias broadcast (JAX does not CSE broadcast_in_dim).
        b1 = jnp.broadcast_to(b1_ref[...], (Bp, 4 * Hp))

        def activate(gates, c_prev):
            # PyTorch gate order [i, f, g, o]; Hp-wide slices are full lane tiles.
            i = jax.nn.sigmoid(gates[:, 0 * Hp:1 * Hp])
            f = jax.nn.sigmoid(gates[:, 1 * Hp:2 * Hp])
            g = jnp.tanh(gates[:, 2 * Hp:3 * Hp])
            o = jax.nn.sigmoid(gates[:, 3 * Hp:4 * Hp])
            c_new = f * c_prev + i * g
            h_new = o * jnp.tanh(c_new)
            return h_new, c_new

        # ---- serial recurrence over the chunk (state carried in vregs) ----------
        def step(t, carry):
            h1, c1, h2, c2 = carry
            row = pl.multiple_of(t * Bp, Bp)          # sublane-aligned offset

            # Layer 0: only the h @ W_hh matmul remains on the serial path.
            # Weight refs are read here (not hoisted) to keep vreg pressure low.
            g0 = gx0[pl.ds(row, Bp), :] + jnp.dot(
                h1, whh0_ref[...], preferred_element_type=jnp.float32)
            h1n, c1n = activate(g0, c1)

            # Layer 1: two independent matmuls (no per-step concat on the
            # critical path); both pipeline through the MXU.
            g1 = (jnp.dot(h1n, wih1_ref[...], preferred_element_type=jnp.float32)
                  + jnp.dot(h2, whh1_ref[...], preferred_element_type=jnp.float32)
                  + b1)
            h2n, c2n = activate(g1, c2)

            h2_all[pl.ds(row, Bp), :] = h2n           # stash for the batched head
            return (h1n, c1n, h2n, c2n)

        carry0 = (h1_ref[...], c1_ref[...], h2_ref[...], c2_ref[...])
        h1, c1, h2, c2 = jax.lax.fori_loop(0, Tc, step, carry0,
                                           unroll=min(Tc, 8))

        # Persist state for the next time chunk.
        h1_ref[...] = h1
        c1_ref[...] = c1
        h2_ref[...] = h2
        c2_ref[...] = c2

        # ---- batched Linear + Sigmoid head: one matmul, one lane-dense store ----
        y = jax.nn.sigmoid(jnp.dot(h2_all[...], wl_ref[...],
                                   preferred_element_type=jnp.float32)
                           + bl_ref[...])
        o_ref[...] = y.astype(o_ref.dtype)

    return kernel


def _pad_gate_cols(w, H, Hp):
    """Pad a (..., 4H) tensor to (..., 4Hp), zero-padding within each gate block."""
    if Hp == H:
        return w
    lead = w.shape[:-1]
    w4 = w.reshape(lead + (4, H))
    w4 = jnp.pad(w4, [(0, 0)] * len(lead) + [(0, 0), (0, Hp - H)])
    return w4.reshape(lead + (4 * Hp,))


def _pad_rows(w, H, Hp):
    return w if Hp == H else jnp.pad(w, ((0, Hp - H), (0, 0)))


def lstm_forward(x, params, *, time_chunk=8):
    """x: (S, B, In) float32. params: dict of pre-transposed (unpadded) weights."""
    S, B, In = x.shape
    H = params["whh0"].shape[0]
    Out = params["wl"].shape[1]

    # Lane/sublane padding: H and Out to multiples of 128, batch to multiple of 8.
    Hp = ((H + 127) // 128) * 128
    Outp = ((Out + 127) // 128) * 128
    Bp = ((B + 7) // 8) * 8
    Tc = max(1, min(S, time_chunk))
    Sp = ((S + Tc - 1) // Tc) * Tc          # pad sequence to a whole number of chunks

    if (Sp, Bp) != (S, B):
        x = jnp.pad(x, ((0, Sp - S), (0, Bp - B), (0, 0)))
    x2d = x.reshape(Sp * Bp, In)

    # Weight prep (zero padding keeps padded h/c lanes at exactly 0 because the
    # padded g-gate columns are tanh(0)=0 and the state starts at 0).
    wih0 = _pad_gate_cols(params["wih0"], H, Hp)                     # (In, 4Hp)
    whh0 = _pad_gate_cols(_pad_rows(params["whh0"], H, Hp), H, Hp)   # (Hp, 4Hp)
    b0   = _pad_gate_cols(params["b0"], H, Hp)                       # (1, 4Hp)
    wih1 = _pad_gate_cols(_pad_rows(params["wih1"], H, Hp), H, Hp)   # (Hp, 4Hp)
    whh1 = _pad_gate_cols(_pad_rows(params["whh1"], H, Hp), H, Hp)   # (Hp, 4Hp)
    b1   = _pad_gate_cols(params["b1"], H, Hp)                       # (1, 4Hp)
    wl   = jnp.pad(params["wl"], ((0, Hp - H), (0, Outp - Out)))     # (Hp, Outp)
    bl   = jnp.pad(params["bl"], ((0, 0), (0, Outp - Out)))          # (1, Outp)

    kernel = _make_kernel(Tc, Bp, Hp)
    n_chunks = Sp // Tc

    def full(shape):
        return pl.BlockSpec(shape, lambda i: tuple(0 for _ in shape))

    # Explicit VMEM budget (with headroom) — default scoped limit is well below
    # physical on all chips and would trip first as sizes grow.
    f32 = 4
    weight_bytes = (In * 4 * Hp + 3 * Hp * 4 * Hp + 2 * 4 * Hp
                    + Hp * Outp + Outp) * f32
    io_bytes = (Tc * Bp * In + Tc * Bp * Outp) * f32 * 2       # double-buffered chunks
    scratch_bytes = (4 * Bp * Hp + Tc * Bp * 4 * Hp + Tc * Bp * Hp) * f32
    vmem_limit = max(32 * 1024 * 1024,
                     int(1.5 * (2 * weight_bytes + io_bytes + scratch_bytes)))

    out2d = pl.pallas_call(
        kernel,
        out_shape=jax.ShapeDtypeStruct((Sp * Bp, Outp), jnp.float32),
        grid_spec=pltpu.PrefetchScalarGridSpec(
            num_scalar_prefetch=0,
            grid=(n_chunks,),                       # sequential chunks over time
            in_specs=[
                pl.BlockSpec((Tc * Bp, In), lambda i: (i, 0)),   # x chunk
                full((In, 4 * Hp)),                 # W_ih layer0 (transposed)
                full((Hp, 4 * Hp)),                 # W_hh layer0
                full((1, 4 * Hp)),                  # b_ih0 + b_hh0
                full((Hp, 4 * Hp)),                 # W_ih layer1
                full((Hp, 4 * Hp)),                 # W_hh layer1
                full((1, 4 * Hp)),                  # b_ih1 + b_hh1
                full((Hp, Outp)),                   # Linear W (transposed, padded)
                full((1, Outp)),                    # Linear b (padded)
            ],
            out_specs=pl.BlockSpec((Tc * Bp, Outp), lambda i: (i, 0)),
            scratch_shapes=[
                pltpu.VMEM((Bp, Hp), jnp.float32),           # h1 (persistent)
                pltpu.VMEM((Bp, Hp), jnp.float32),           # c1
                pltpu.VMEM((Bp, Hp), jnp.float32),           # h2
                pltpu.VMEM((Bp, Hp), jnp.float32),           # c2
                pltpu.VMEM((Tc * Bp, 4 * Hp), jnp.float32),  # per-chunk x-projection
                pltpu.VMEM((Tc * Bp, Hp), jnp.float32),      # per-chunk h2 stash
            ],
        ),
        compiler_params=pltpu.CompilerParams(
            dimension_semantics=("arbitrary",),     # recurrence is sequential
            vmem_limit_bytes=vmem_limit,
        ),
    )(x2d, wih0, whh0, b0, wih1, whh1, b1, wl, bl)

    return out2d.reshape(Sp, Bp, Outp)[:S, :B, :Out]


# ----------------------- pure-JAX reference -----------------------
def lstm_ref(x, params):
    def layer(x_seq, wih, whh, b):
        H = whh.shape[0]
        B = x_seq.shape[1]

        def step(carry, xt):
            h, c = carry
            gates = xt @ wih + h @ whh + b
            i, f, g, o = jnp.split(gates, 4, axis=-1)
            i, f, o = jax.nn.sigmoid(i), jax.nn.sigmoid(f), jax.nn.sigmoid(o)
            g = jnp.tanh(g)
            c = f * c + i * g
            h = o * jnp.tanh(c)
            return (h, c), h

        init = (jnp.zeros((B, H), jnp.float32), jnp.zeros((B, H), jnp.float32))
        _, hs = jax.lax.scan(step, init, x_seq)
        return hs

    h = layer(x, params["wih0"], params["whh0"], params["b0"])
    h = layer(h, params["wih1"], params["whh1"], params["b1"])
    return jax.nn.sigmoid(h @ params["wl"] + params["bl"])


def init_params(key, input_size, hidden_size, output_size):
    """Deterministic PyTorch-style uniform(-1/sqrt(H), 1/sqrt(H)) init."""
    H = hidden_size
    k = 1.0 / np.sqrt(H)
    keys = jax.random.split(key, 12)
    u = lambda kk, shape: jax.random.uniform(kk, shape, jnp.float32, -k, k)
    # PyTorch weights are (4H, in); store transposed for x @ W.
    return {
        "wih0": u(keys[0], (input_size, 4 * H)),
        "whh0": u(keys[1], (H, 4 * H)),
        "b0":   (u(keys[2], (1, 4 * H)) + u(keys[3], (1, 4 * H))),  # b_ih + b_hh
        "wih1": u(keys[4], (H, 4 * H)),
        "whh1": u(keys[5], (H, 4 * H)),
        "b1":   (u(keys[6], (1, 4 * H)) + u(keys[7], (1, 4 * H))),
        "wl":   u(keys[8], (H, output_size)),
        "bl":   u(keys[9], (1, output_size)),
    }


if __name__ == "__main__":
    seq_len, batch, input_size, hidden_size, output_size = 8, 2, 16, 64, 8

    key = jax.random.PRNGKey(0)
    kx, kp = jax.random.split(key)
    x = jax.random.normal(kx, (seq_len, batch, input_size), jnp.float32)
    params = init_params(kp, input_size, hidden_size, output_size)

    out = jax.block_until_ready(lstm_forward(x, params))
    ref = jax.block_until_ready(lstm_ref(x, params))

    np.testing.assert_allclose(np.asarray(out), np.asarray(ref),
                               rtol=1e-4, atol=1e-4)
    assert out.shape == (seq_len, batch, output_size)

    print("KERNEL_OK")
</pallas_src>

<mosaic_0001>
module attributes {stable_mosaic.version = 11 : i64} {
  func.func @kernel(%arg0: i32, %arg1: memref<64x16xf32, #tpu.memory_space<vmem>>, %arg2: memref<16x512xf32, #tpu.memory_space<vmem>>, %arg3: memref<128x512xf32, #tpu.memory_space<vmem>>, %arg4: memref<1x512xf32, #tpu.memory_space<vmem>>, %arg5: memref<128x512xf32, #tpu.memory_space<vmem>>, %arg6: memref<128x512xf32, #tpu.memory_space<vmem>>, %arg7: memref<1x512xf32, #tpu.memory_space<vmem>>, %arg8: memref<128x128xf32, #tpu.memory_space<vmem>>, %arg9: memref<1x128xf32, #tpu.memory_space<vmem>>, %arg10: memref<64x128xf32, #tpu.memory_space<vmem>>, %arg11: memref<8x128xf32, #tpu.memory_space<vmem>>, %arg12: memref<8x128xf32, #tpu.memory_space<vmem>>, %arg13: memref<8x128xf32, #tpu.memory_space<vmem>>, %arg14: memref<8x128xf32, #tpu.memory_space<vmem>>, %arg15: memref<64x512xf32, #tpu.memory_space<vmem>>, %arg16: memref<64x128xf32, #tpu.memory_space<vmem>>) attributes {dimension_semantics = [#tpu.dimension_semantics<arbitrary>], iteration_bounds = array<i64: 1>, scalar_prefetch = 0 : i64, scratch_operands = 6 : i64, tpu.core_type = #tpu.core_type<tc>, window_params = [{transform_indices = @transform_0, window_bounds = array<i64: 64, 16>}, {pipeline_mode = #tpu.pipeline_mode<synchronous>, transform_indices = @transform_1, window_bounds = array<i64: 16, 512>}, {pipeline_mode = #tpu.pipeline_mode<synchronous>, transform_indices = @transform_2, window_bounds = array<i64: 128, 512>}, {pipeline_mode = #tpu.pipeline_mode<synchronous>, transform_indices = @transform_3, window_bounds = array<i64: 1, 512>}, {pipeline_mode = #tpu.pipeline_mode<synchronous>, transform_indices = @transform_4, window_bounds = array<i64: 128, 512>}, {pipeline_mode = #tpu.pipeline_mode<synchronous>, transform_indices = @transform_5, window_bounds = array<i64: 128, 512>}, {pipeline_mode = #tpu.pipeline_mode<synchronous>, transform_indices = @transform_6, window_bounds = array<i64: 1, 512>}, {pipeline_mode = #tpu.pipeline_mode<synchronous>, transform_indices = @transform_7, window_bounds = array<i64: 128, 128>}, {pipeline_mode = #tpu.pipeline_mode<synchronous>, transform_indices = @transform_8, window_bounds = array<i64: 1, 128>}, {transform_indices = @transform_9, window_bounds = array<i64: 64, 128>}]} {
    %c0_i32 = arith.constant 0 : i32
    %0 = arith.cmpi eq, %arg0, %c0_i32 : i32
    %1 = arith.extui %0 : i1 to i32
    %c0_i32_0 = arith.constant 0 : i32
    %2 = arith.cmpi ne, %1, %c0_i32_0 : i32
    scf.if %2 {
      %cst_181 = arith.constant 0.000000e+00 : f32
      %553 = vector.broadcast %cst_181 : f32 to vector<8x128xf32>
      %c0_182 = arith.constant 0 : index
      %c0_183 = arith.constant 0 : index
      %554 = vector.load %arg11[%c0_182, %c0_183] : memref<8x128xf32, #tpu.memory_space<vmem>>, vector<8x128xf32>
      tpu.vector_store %arg11[%c0_182, %c0_183], %553 {strides = array<i32>} : memref<8x128xf32, #tpu.memory_space<vmem>>, vector<8x128xf32>,
      %cst_184 = arith.constant 0.000000e+00 : f32
      %555 = vector.broadcast %cst_184 : f32 to vector<8x128xf32>
      %c0_185 = arith.constant 0 : index
      %c0_186 = arith.constant 0 : index
      %556 = vector.load %arg12[%c0_185, %c0_186] : memref<8x128xf32, #tpu.memory_space<vmem>>, vector<8x128xf32>
      tpu.vector_store %arg12[%c0_185, %c0_186], %555 {strides = array<i32>} : memref<8x128xf32, #tpu.memory_space<vmem>>, vector<8x128xf32>,
      %cst_187 = arith.constant 0.000000e+00 : f32
      %557 = vector.broadcast %cst_187 : f32 to vector<8x128xf32>
      %c0_188 = arith.constant 0 : index
      %c0_189 = arith.constant 0 : index
      %558 = vector.load %arg13[%c0_188, %c0_189] : memref<8x128xf32, #tpu.memory_space<vmem>>, vector<8x128xf32>
      tpu.vector_store %arg13[%c0_188, %c0_189], %557 {strides = array<i32>} : memref<8x128xf32, #tpu.memory_space<vmem>>, vector<8x128xf32>,
      %cst_190 = arith.constant 0.000000e+00 : f32
      %559 = vector.broadcast %cst_190 : f32 to vector<8x128xf32>
      %c0_191 = arith.constant 0 : index
      %c0_192 = arith.constant 0 : index
      %560 = vector.load %arg14[%c0_191, %c0_192] : memref<8x128xf32, #tpu.memory_space<vmem>>, vector<8x128xf32>
      tpu.vector_store %arg14[%c0_191, %c0_192], %559 {strides = array<i32>} : memref<8x128xf32, #tpu.memory_space<vmem>>, vector<8x128xf32>,
    } else {
    }
    %c0 = arith.constant 0 : index
    %c0_1 = arith.constant 0 : index
    %3 = vector.load %arg1[%c0, %c0_1] : memref<64x16xf32, #tpu.memory_space<vmem>>, vector<64x16xf32>
    %c0_2 = arith.constant 0 : index
    %c0_3 = arith.constant 0 : index
    %4 = vector.load %arg2[%c0_2, %c0_3] : memref<16x512xf32, #tpu.memory_space<vmem>>, vector<16x512xf32>
    %cst = arith.constant dense<0.000000e+00> : vector<64x512xf32>
    %5 = tpu.matmul %3, %4, %cst {dimension_numbers = #tpu.dot_dimension_numbers<[1], [0], [0], [1], [0, 0, 1, 1], [], []>} : vector<64x16xf32>, vector<16x512xf32>, vector<64x512xf32> -> vector<64x512xf32>
    %c0_4 = arith.constant 0 : index
    %c0_5 = arith.constant 0 : index
    %6 = vector.load %arg4[%c0_4, %c0_5] : memref<1x512xf32, #tpu.memory_space<vmem>>, vector<1x512xf32>
    %7 = vector.broadcast %6 : vector<1x512xf32> to vector<64x512xf32>
    %8 = arith.addf %5, %7 : vector<64x512xf32>
    %c0_6 = arith.constant 0 : index
    %c0_7 = arith.constant 0 : index
    %9 = vector.load %arg15[%c0_6, %c0_7] : memref<64x512xf32, #tpu.memory_space<vmem>>, vector<64x512xf32>
    tpu.vector_store %arg15[%c0_6, %c0_7], %8 {strides = array<i32>} : memref<64x512xf32, #tpu.memory_space<vmem>>, vector<64x512xf32>,
    %c0_8 = arith.constant 0 : index
    %c0_9 = arith.constant 0 : index
    %10 = vector.load %arg7[%c0_8, %c0_9] : memref<1x512xf32, #tpu.memory_space<vmem>>, vector<1x512xf32>
    %11 = vector.shape_cast %10 : vector<1x512xf32> to vector<1x512xf32>
    %12 = vector.broadcast %11 : vector<1x512xf32> to vector<8x512xf32>
    %c0_10 = arith.constant 0 : index
    %c0_11 = arith.constant 0 : index
    %13 = vector.load %arg11[%c0_10, %c0_11] : memref<8x128xf32, #tpu.memory_space<vmem>>, vector<8x128xf32>
    %c0_12 = arith.constant 0 : index
    %c0_13 = arith.constant 0 : index
    %14 = vector.load %arg12[%c0_12, %c0_13] : memref<8x128xf32, #tpu.memory_space<vmem>>, vector<8x128xf32>
    %c0_14 = arith.constant 0 : index
    %c0_15 = arith.constant 0 : index
    %15 = vector.load %arg13[%c0_14, %c0_15] : memref<8x128xf32, #tpu.memory_space<vmem>>, vector<8x128xf32>
    %c0_16 = arith.constant 0 : index
    %c0_17 = arith.constant 0 : index
    %16 = vector.load %arg14[%c0_16, %c0_17] : memref<8x128xf32, #tpu.memory_space<vmem>>, vector<8x128xf32>
    %c0_i32_18 = arith.constant 0 : i32
    %c8_i32 = arith.constant 8 : i32
    %17 = arith.muli %c0_i32_18, %c8_i32 : i32
    %18 = tpu.assume_multiple %17, 8 : i32
    %19 = arith.index_cast %18 : i32 to index
    %c0_19 = arith.constant 0 : index
    %20 = vector.load %arg15[%19, %c0_19] : memref<64x512xf32, #tpu.memory_space<vmem>>, vector<8x512xf32>
    %c0_20 = arith.constant 0 : index
    %c0_21 = arith.constant 0 : index
    %21 = vector.load %arg3[%c0_20, %c0_21] : memref<128x512xf32, #tpu.memory_space<vmem>>, vector<128x512xf32>
    %cst_22 = arith.constant dense<0.000000e+00> : vector<8x512xf32>
    %22 = tpu.matmul %13, %21, %cst_22 {dimension_numbers = #tpu.dot_dimension_numbers<[1], [0], [0], [1], [0, 0, 1, 1], [], []>} : vector<8x128xf32>, vector<128x512xf32>, vector<8x512xf32> -> vector<8x512xf32>
    %23 = arith.addf %20, %22 : vector<8x512xf32>
    %24 = vector.extract_strided_slice %23 {offsets = [0, 0], sizes = [8, 128], strides = [1, 1]} : vector<8x512xf32> to vector<8x128xf32>
    %25 = arith.negf %24 : vector<8x128xf32>
    %26 = math.exp %25 : vector<8x128xf32>
    %cst_23 = arith.constant 1.000000e+00 : f32
    %27 = vector.broadcast %cst_23 : f32 to vector<8x128xf32>
    %28 = arith.addf %27, %26 : vector<8x128xf32>
    %29 = arith.divf %27, %28 : vector<8x128xf32>
    %30 = vector.extract_strided_slice %23 {offsets = [0, 128], sizes = [8, 128], strides = [1, 1]} : vector<8x512xf32> to vector<8x128xf32>
    %31 = arith.negf %30 : vector<8x128xf32>
    %32 = math.exp %31 : vector<8x128xf32>
    %cst_24 = arith.constant 1.000000e+00 : f32
    %33 = vector.broadcast %cst_24 : f32 to vector<8x128xf32>
    %34 = arith.addf %33, %32 : vector<8x128xf32>
    %35 = arith.divf %33, %34 : vector<8x128xf32>
    %36 = vector.extract_strided_slice %23 {offsets = [0, 256], sizes = [8, 128], strides = [1, 1]} : vector<8x512xf32> to vector<8x128xf32>
    %37 = math.tanh %36 : vector<8x128xf32>
    %38 = vector.extract_strided_slice %23 {offsets = [0, 384], sizes = [8, 128], strides = [1, 1]} : vector<8x512xf32> to vector<8x128xf32>
    %39 = arith.negf %38 : vector<8x128xf32>
    %40 = math.exp %39 : vector<8x128xf32>
    %cst_25 = arith.constant 1.000000e+00 : f32
    %41 = vector.broadcast %cst_25 : f32 to vector<8x128xf32>
    %42 = arith.addf %41, %40 : vector<8x128xf32>
    %43 = arith.divf %41, %42 : vector<8x128xf32>
    %44 = arith.mulf %35, %14 : vector<8x128xf32>
    %45 = arith.mulf %29, %37 : vector<8x128xf32>
    %46 = arith.addf %44, %45 : vector<8x128xf32>
    %47 = math.tanh %46 : vector<8x128xf32>
    %48 = arith.mulf %43, %47 : vector<8x128xf32>
    %c0_26 = arith.constant 0 : index
    %c0_27 = arith.constant 0 : index
    %49 = vector.load %arg5[%c0_26, %c0_27] : memref<128x512xf32, #tpu.memory_space<vmem>>, vector<128x512xf32>
    %cst_28 = arith.constant dense<0.000000e+00> : vector<8x512xf32>
    %50 = tpu.matmul %48, %49, %cst_28 {dimension_numbers = #tpu.dot_dimension_numbers<[1], [0], [0], [1], [0, 0, 1, 1], [], []>} : vector<8x128xf32>, vector<128x512xf32>, vector<8x512xf32> -> vector<8x512xf32>
    %c0_29 = arith.constant 0 : index
    %c0_30 = arith.constant 0 : index
    %51 = vector.load %arg6[%c0_29, %c0_30] : memref<128x512xf32, #tpu.memory_space<vmem>>, vector<128x512xf32>
    %cst_31 = arith.constant dense<0.000000e+00> : vector<8x512xf32>
    %52 = tpu.matmul %15, %51, %cst_31 {dimension_numbers = #tpu.dot_dimension_numbers<[1], [0], [0], [1], [0, 0, 1, 1], [], []>} : vector<8x128xf32>, vector<128x512xf32>, vector<8x512xf32> -> vector<8x512xf32>
    %53 = arith.addf %50, %52 : vector<8x512xf32>
    %54 = arith.addf %53, %12 : vector<8x512xf32>
    %55 = vector.extract_strided_slice %54 {offsets = [0, 0], sizes = [8, 128], strides = [1, 1]} : vector<8x512xf32> to vector<8x128xf32>
    %56 = arith.negf %55 : vector<8x128xf32>
    %57 = math.exp %56 : vector<8x128xf32>
    %cst_32 = arith.constant 1.000000e+00 : f32
    %58 = vector.broadcast %cst_32 : f32 to vector<8x128xf32>
    %59 = arith.addf %58, %57 : vector<8x128xf32>
    %60 = arith.divf %58, %59 : vector<8x128xf32>
    %61 = vector.extract_strided_slice %54 {offsets = [0, 128], sizes = [8, 128], strides = [1, 1]} : vector<8x512xf32> to vector<8x128xf32>
    %62 = arith.negf %61 : vector<8x128xf32>
    %63 = math.exp %62 : vector<8x128xf32>
    %cst_33 = arith.constant 1.000000e+00 : f32
    %64 = vector.broadcast %cst_33 : f32 to vector<8x128xf32>
    %65 = arith.addf %64, %63 : vector<8x128xf32>
    %66 = arith.divf %64, %65 : vector<8x128xf32>
    %67 = vector.extract_strided_slice %54 {offsets = [0, 256], sizes = [8, 128], strides = [1, 1]} : vector<8x512xf32> to vector<8x128xf32>
    %68 = math.tanh %67 : vector<8x128xf32>
    %69 = vector.extract_strided_slice %54 {offsets = [0, 384], sizes = [8, 128], strides = [1, 1]} : vector<8x512xf32> to vector<8x128xf32>
    %70 = arith.negf %69 : vector<8x128xf32>
    %71 = math.exp %70 : vector<8x128xf32>
    %cst_34 = arith.constant 1.000000e+00 : f32
    %72 = vector.broadcast %cst_34 : f32 to vector<8x128xf32>
    %73 = arith.addf %72, %71 : vector<8x128xf32>
    %74 = arith.divf %72, %73 : vector<8x128xf32>
    %75 = arith.mulf %66, %16 : vector<8x128xf32>
    %76 = arith.mulf %60, %68 : vector<8x128xf32>
    %77 = arith.addf %75, %76 : vector<8x128xf32>
    %78 = math.tanh %77 : vector<8x128xf32>
    %79 = arith.mulf %74, %78 : vector<8x128xf32>
    %80 = arith.index_cast %18 : i32 to index
    %c0_35 = arith.constant 0 : index
    %81 = vector.load %arg16[%80, %c0_35] : memref<64x128xf32, #tpu.memory_space<vmem>>, vector<8x128xf32>
    tpu.vector_store %arg16[%80, %c0_35], %79 {strides = array<i32>} : memref<64x128xf32, #tpu.memory_space<vmem>>, vector<8x128xf32>,
    %c1_i32 = arith.constant 1 : i32
    %c8_i32_36 = arith.constant 8 : i32
    %82 = arith.muli %c1_i32, %c8_i32_36 : i32
    %83 = tpu.assume_multiple %82, 8 : i32
    %84 = arith.index_cast %83 : i32 to index
    %c0_37 = arith.constant 0 : index
    %85 = vector.load %arg15[%84, %c0_37] : memref<64x512xf32, #tpu.memory_space<vmem>>, vector<8x512xf32>
    %c0_38 = arith.constant 0 : index
    %c0_39 = arith.constant 0 : index
    %86 = vector.load %arg3[%c0_38, %c0_39] : memref<128x512xf32, #tpu.memory_space<vmem>>, vector<128x512xf32>
    %cst_40 = arith.constant dense<0.000000e+00> : vector<8x512xf32>
    %87 = tpu.matmul %48, %86, %cst_40 {dimension_numbers = #tpu.dot_dimension_numbers<[1], [0], [0], [1], [0, 0, 1, 1], [], []>} : vector<8x128xf32>, vector<128x512xf32>, vector<8x512xf32> -> vector<8x512xf32>
    %88 = arith.addf %85, %87 : vector<8x512xf32>
    %89 = vector.extract_strided_slice %88 {offsets = [0, 0], sizes = [8, 128], strides = [1, 1]} : vector<8x512xf32> to vector<8x128xf32>
    %90 = arith.negf %89 : vector<8x128xf32>
    %91 = math.exp %90 : vector<8x128xf32>
    %cst_41 = arith.constant 1.000000e+00 : f32
    %92 = vector.broadcast %cst_41 : f32 to vector<8x128xf32>
    %93 = arith.addf %92, %91 : vector<8x128xf32>
    %94 = arith.divf %92, %93 : vector<8x128xf32>
    %95 = vector.extract_strided_slice %88 {offsets = [0, 128], sizes = [8, 128], strides = [1, 1]} : vector<8x512xf32> to vector<8x128xf32>
    %96 = arith.negf %95 : vector<8x128xf32>
    %97 = math.exp %96 : vector<8x128xf32>
    %cst_42 = arith.constant 1.000000e+00 : f32
    %98 = vector.broadcast %cst_42 : f32 to vector<8x128xf32>
    %99 = arith.addf %98, %97 : vector<8x128xf32>
    %100 = arith.divf %98, %99 : vector<8x128xf32>
    %101 = vector.extract_strided_slice %88 {offsets = [0, 256], sizes = [8, 128], strides = [1, 1]} : vector<8x512xf32> to vector<8x128xf32>
    %102 = math.tanh %101 : vector<8x128xf32>
    %103 = vector.extract_strided_slice %88 {offsets = [0, 384], sizes = [8, 128], strides = [1, 1]} : vector<8x512xf32> to vector<8x128xf32>
    %104 = arith.negf %103 : vector<8x128xf32>
    %105 = math.exp %104 : vector<8x128xf32>
    %cst_43 = arith.constant 1.000000e+00 : f32
    %106 = vector.broadcast %cst_43 : f32 to vector<8x128xf32>
    %107 = arith.addf %106, %105 : vector<8x128xf32>
    %108 = arith.divf %106, %107 : vector<8x128xf32>
    %109 = arith.mulf %100, %46 : vector<8x128xf32>
    %110 = arith.mulf %94, %102 : vector<8x128xf32>
    %111 = arith.addf %109, %110 : vector<8x128xf32>
    %112 = math.tanh %111 : vector<8x128xf32>
    %113 = arith.mulf %108, %112 : vector<8x128xf32>
    %c0_44 = arith.constant 0 : index
    %c0_45 = arith.constant 0 : index
    %114 = vector.load %arg5[%c0_44, %c0_45] : memref<128x512xf32, #tpu.memory_space<vmem>>, vector<128x512xf32>
    %cst_46 = arith.constant dense<0.000000e+00> : vector<8x512xf32>
    %115 = tpu.matmul %113, %114, %cst_46 {dimension_numbers = #tpu.dot_dimension_numbers<[1], [0], [0], [1], [0, 0, 1, 1], [], []>} : vector<8x128xf32>, vector<128x512xf32>, vector<8x512xf32> -> vector<8x512xf32>
    %c0_47 = arith.constant 0 : index
    %c0_48 = arith.constant 0 : index
    %116 = vector.load %arg6[%c0_47, %c0_48] : memref<128x512xf32, #tpu.memory_space<vmem>>, vector<128x512xf32>
    %cst_49 = arith.constant dense<0.000000e+00> : vector<8x512xf32>
    %117 = tpu.matmul %79, %116, %cst_49 {dimension_numbers = #tpu.dot_dimension_numbers<[1], [0], [0], [1], [0, 0, 1, 1], [], []>} : vector<8x128xf32>, vector<128x512xf32>, vector<8x512xf32> -> vector<8x512xf32>
    %118 = arith.addf %115, %117 : vector<8x512xf32>
    %119 = arith.addf %118, %12 : vector<8x512xf32>
    %120 = vector.extract_strided_slice %119 {offsets = [0, 0], sizes = [8, 128], strides = [1, 1]} : vector<8x512xf32> to vector<8x128xf32>
    %121 = arith.negf %120 : vector<8x128xf32>
    %122 = math.exp %121 : vector<8x128xf32>
    %cst_50 = arith.constant 1.000000e+00 : f32
    %123 = vector.broadcast %cst_50 : f32 to vector<8x128xf32>
    %124 = arith.addf %123, %122 : vector<8x128xf32>
    %125 = arith.divf %123, %124 : vector<8x128xf32>
    %126 = vector.extract_strided_slice %119 {offsets = [0, 128], sizes = [8, 128], strides = [1, 1]} : vector<8x512xf32> to vector<8x128xf32>
    %127 = arith.negf %126 : vector<8x128xf32>
    %128 = math.exp %127 : vector<8x128xf32>
    %cst_51 = arith.constant 1.000000e+00 : f32
    %129 = vector.broadcast %cst_51 : f32 to vector<8x128xf32>
    %130 = arith.addf %129, %128 : vector<8x128xf32>
    %131 = arith.divf %129, %130 : vector<8x128xf32>
    %132 = vector.extract_strided_slice %119 {offsets = [0, 256], sizes = [8, 128], strides = [1, 1]} : vector<8x512xf32> to vector<8x128xf32>
    %133 = math.tanh %132 : vector<8x128xf32>
    %134 = vector.extract_strided_slice %119 {offsets = [0, 384], sizes = [8, 128], strides = [1, 1]} : vector<8x512xf32> to vector<8x128xf32>
    %135 = arith.negf %134 : vector<8x128xf32>
    %136 = math.exp %135 : vector<8x128xf32>
    %cst_52 = arith.constant 1.000000e+00 : f32
    %137 = vector.broadcast %cst_52 : f32 to vector<8x128xf32>
    %138 = arith.addf %137, %136 : vector<8x128xf32>
    %139 = arith.divf %137, %138 : vector<8x128xf32>
    %140 = arith.mulf %131, %77 : vector<8x128xf32>
    %141 = arith.mulf %125, %133 : vector<8x128xf32>
    %142 = arith.addf %140, %141 : vector<8x128xf32>
    %143 = math.tanh %142 : vector<8x128xf32>
    %144 = arith.mulf %139, %143 : vector<8x128xf32>
    %145 = arith.index_cast %83 : i32 to index
    %c0_53 = arith.constant 0 : index
    %146 = vector.load %arg16[%145, %c0_53] : memref<64x128xf32, #tpu.memory_space<vmem>>, vector<8x128xf32>
    tpu.vector_store %arg16[%145, %c0_53], %144 {strides = array<i32>} : memref<64x128xf32, #tpu.memory_space<vmem>>, vector<8x128xf32>,
    %c2_i32 = arith.constant 2 : i32
    %c8_i32_54 = arith.constant 8 : i32
    %147 = arith.muli %c2_i32, %c8_i32_54 : i32
    %148 = tpu.assume_multiple %147, 8 : i32
    %149 = arith.index_cast %148 : i32 to index
    %c0_55 = arith.constant 0 : index
    %150 = vector.load %arg15[%149, %c0_55] : memref<64x512xf32, #tpu.memory_space<vmem>>, vector<8x512xf32>
    %c0_56 = arith.constant 0 : index
    %c0_57 = arith.constant 0 : index
    %151 = vector.load %arg3[%c0_56, %c0_57] : memref<128x512xf32, #tpu.memory_space<vmem>>, vector<128x512xf32>
    %cst_58 = arith.constant dense<0.000000e+00> : vector<8x512xf32>
    %152 = tpu.matmul %113, %151, %cst_58 {dimension_numbers = #tpu.dot_dimension_numbers<[1], [0], [0], [1], [0, 0, 1, 1], [], []>} : vector<8x128xf32>, vector<128x512xf32>, vector<8x512xf32> -> vector<8x512xf32>
    %153 = arith.addf %150, %152 : vector<8x512xf32>
    %154 = vector.extract_strided_slice %153 {offsets = [0, 0], sizes = [8, 128], strides = [1, 1]} : vector<8x512xf32> to vector<8x128xf32>
    %155 = arith.negf %154 : vector<8x128xf32>
    %156 = math.exp %155 : vector<8x128xf32>
    %cst_59 = arith.constant 1.000000e+00 : f32
    %157 = vector.broadcast %cst_59 : f32 to vector<8x128xf32>
    %158 = arith.addf %157, %156 : vector<8x128xf32>
    %159 = arith.divf %157, %158 : vector<8x128xf32>
    %160 = vector.extract_strided_slice %153 {offsets = [0, 128], sizes = [8, 128], strides = [1, 1]} : vector<8x512xf32> to vector<8x128xf32>
    %161 = arith.negf %160 : vector<8x128xf32>
    %162 = math.exp %161 : vector<8x128xf32>
    %cst_60 = arith.constant 1.000000e+00 : f32
    %163 = vector.broadcast %cst_60 : f32 to vector<8x128xf32>
    %164 = arith.addf %163, %162 : vector<8x128xf32>
    %165 = arith.divf %163, %164 : vector<8x128xf32>
    %166 = vector.extract_strided_slice %153 {offsets = [0, 256], sizes = [8, 128], strides = [1, 1]} : vector<8x512xf32> to vector<8x128xf32>
    %167 = math.tanh %166 : vector<8x128xf32>
    %168 = vector.extract_strided_slice %153 {offsets = [0, 384], sizes = [8, 128], strides = [1, 1]} : vector<8x512xf32> to vector<8x128xf32>
    %169 = arith.negf %168 : vector<8x128xf32>
    %170 = math.exp %169 : vector<8x128xf32>
    %cst_61 = arith.constant 1.000000e+00 : f32
    %171 = vector.broadcast %cst_61 : f32 to vector<8x128xf32>
    %172 = arith.addf %171, %170 : vector<8x128xf32>
    %173 = arith.divf %171, %172 : vector<8x128xf32>
    %174 = arith.mulf %165, %111 : vector<8x128xf32>
    %175 = arith.mulf %159, %167 : vector<8x128xf32>
    %176 = arith.addf %174, %175 : vector<8x128xf32>
    %177 = math.tanh %176 : vector<8x128xf32>
    %178 = arith.mulf %173, %177 : vector<8x128xf32>
    %c0_62 = arith.constant 0 : index
    %c0_63 = arith.constant 0 : index
    %179 = vector.load %arg5[%c0_62, %c0_63] : memref<128x512xf32, #tpu.memory_space<vmem>>, vector<128x512xf32>
    %cst_64 = arith.constant dense<0.000000e+00> : vector<8x512xf32>
    %180 = tpu.matmul %178, %179, %cst_64 {dimension_numbers = #tpu.dot_dimension_numbers<[1], [0], [0], [1], [0, 0, 1, 1], [], []>} : vector<8x128xf32>, vector<128x512xf32>, vector<8x512xf32> -> vector<8x512xf32>
    %c0_65 = arith.constant 0 : index
    %c0_66 = arith.constant 0 : index
    %181 = vector.load %arg6[%c0_65, %c0_66] : memref<128x512xf32, #tpu.memory_space<vmem>>, vector<128x512xf32>
    %cst_67 = arith.constant dense<0.000000e+00> : vector<8x512xf32>
    %182 = tpu.matmul %144, %181, %cst_67 {dimension_numbers = #tpu.dot_dimension_numbers<[1], [0], [0], [1], [0, 0, 1, 1], [], []>} : vector<8x128xf32>, vector<128x512xf32>, vector<8x512xf32> -> vector<8x512xf32>
    %183 = arith.addf %180, %182 : vector<8x512xf32>
    %184 = arith.addf %183, %12 : vector<8x512xf32>
    %185 = vector.extract_strided_slice %184 {offsets = [0, 0], sizes = [8, 128], strides = [1, 1]} : vector<8x512xf32> to vector<8x128xf32>
    %186 = arith.negf %185 : vector<8x128xf32>
    %187 = math.exp %186 : vector<8x128xf32>
    %cst_68 = arith.constant 1.000000e+00 : f32
    %188 = vector.broadcast %cst_68 : f32 to vector<8x128xf32>
    %189 = arith.addf %188, %187 : vector<8x128xf32>
    %190 = arith.divf %188, %189 : vector<8x128xf32>
    %191 = vector.extract_strided_slice %184 {offsets = [0, 128], sizes = [8, 128], strides = [1, 1]} : vector<8x512xf32> to vector<8x128xf32>
    %192 = arith.negf %191 : vector<8x128xf32>
    %193 = math.exp %192 : vector<8x128xf32>
    %cst_69 = arith.constant 1.000000e+00 : f32
    %194 = vector.broadcast %cst_69 : f32 to vector<8x128xf32>
    %195 = arith.addf %194, %193 : vector<8x128xf32>
    %196 = arith.divf %194, %195 : vector<8x128xf32>
    %197 = vector.extract_strided_slice %184 {offsets = [0, 256], sizes = [8, 128], strides = [1, 1]} : vector<8x512xf32> to vector<8x128xf32>
    %198 = math.tanh %197 : vector<8x128xf32>
    %199 = vector.extract_strided_slice %184 {offsets = [0, 384], sizes = [8, 128], strides = [1, 1]} : vector<8x512xf32> to vector<8x128xf32>
    %200 = arith.negf %199 : vector<8x128xf32>
    %201 = math.exp %200 : vector<8x128xf32>
    %cst_70 = arith.constant 1.000000e+00 : f32
    %202 = vector.broadcast %cst_70 : f32 to vector<8x128xf32>
    %203 = arith.addf %202, %201 : vector<8x128xf32>
    %204 = arith.divf %202, %203 : vector<8x128xf32>
    %205 = arith.mulf %196, %142 : vector<8x128xf32>
    %206 = arith.mulf %190, %198 : vector<8x128xf32>
    %207 = arith.addf %205, %206 : vector<8x128xf32>
    %208 = math.tanh %207 : vector<8x128xf32>
    %209 = arith.mulf %204, %208 : vector<8x128xf32>
    %210 = arith.index_cast %148 : i32 to index
    %c0_71 = arith.constant 0 : index
    %211 = vector.load %arg16[%210, %c0_71] : memref<64x128xf32, #tpu.memory_space<vmem>>, vector<8x128xf32>
    tpu.vector_store %arg16[%210, %c0_71], %209 {strides = array<i32>} : memref<64x128xf32, #tpu.memory_space<vmem>>, vector<8x128xf32>,
    %c3_i32 = arith.constant 3 : i32
    %c8_i32_72 = arith.constant 8 : i32
    %212 = arith.muli %c3_i32, %c8_i32_72 : i32
    %213 = tpu.assume_multiple %212, 8 : i32
    %214 = arith.index_cast %213 : i32 to index
    %c0_73 = arith.constant 0 : index
    %215 = vector.load %arg15[%214, %c0_73] : memref<64x512xf32, #tpu.memory_space<vmem>>, vector<8x512xf32>
    %c0_74 = arith.constant 0 : index
    %c0_75 = arith.constant 0 : index
    %216 = vector.load %arg3[%c0_74, %c0_75] : memref<128x512xf32, #tpu.memory_space<vmem>>, vector<128x512xf32>
    %cst_76 = arith.constant dense<0.000000e+00> : vector<8x512xf32>
    %217 = tpu.matmul %178, %216, %cst_76 {dimension_numbers = #tpu.dot_dimension_numbers<[1], [0], [0], [1], [0, 0, 1, 1], [], []>} : vector<8x128xf32>, vector<128x512xf32>, vector<8x512xf32> -> vector<8x512xf32>
    %218 = arith.addf %215, %217 : vector<8x512xf32>
    %219 = vector.extract_strided_slice %218 {offsets = [0, 0], sizes = [8, 128], strides = [1, 1]} : vector<8x512xf32> to vector<8x128xf32>
    %220 = arith.negf %219 : vector<8x128xf32>
    %221 = math.exp %220 : vector<8x128xf32>
    %cst_77 = arith.constant 1.000000e+00 : f32
    %222 = vector.broadcast %cst_77 : f32 to vector<8x128xf32>
    %223 = arith.addf %222, %221 : vector<8x128xf32>
    %224 = arith.divf %222, %223 : vector<8x128xf32>
    %225 = vector.extract_strided_slice %218 {offsets = [0, 128], sizes = [8, 128], strides = [1, 1]} : vector<8x512xf32> to vector<8x128xf32>
    %226 = arith.negf %225 : vector<8x128xf32>
    %227 = math.exp %226 : vector<8x128xf32>
    %cst_78 = arith.constant 1.000000e+00 : f32
    %228 = vector.broadcast %cst_78 : f32 to vector<8x128xf32>
    %229 = arith.addf %228, %227 : vector<8x128xf32>
    %230 = arith.divf %228, %229 : vector<8x128xf32>
    %231 = vector.extract_strided_slice %218 {offsets = [0, 256], sizes = [8, 128], strides = [1, 1]} : vector<8x512xf32> to vector<8x128xf32>
    %232 = math.tanh %231 : vector<8x128xf32>
    %233 = vector.extract_strided_slice %218 {offsets = [0, 384], sizes = [8, 128], strides = [1, 1]} : vector<8x512xf32> to vector<8x128xf32>
    %234 = arith.negf %233 : vector<8x128xf32>
    %235 = math.exp %234 : vector<8x128xf32>
    %cst_79 = arith.constant 1.000000e+00 : f32
    %236 = vector.broadcast %cst_79 : f32 to vector<8x128xf32>
    %237 = arith.addf %236, %235 : vector<8x128xf32>
    %238 = arith.divf %236, %237 : vector<8x128xf32>
    %239 = arith.mulf %230, %176 : vector<8x128xf32>
    %240 = arith.mulf %224, %232 : vector<8x128xf32>
    %241 = arith.addf %239, %240 : vector<8x128xf32>
    %242 = math.tanh %241 : vector<8x128xf32>
    %243 = arith.mulf %238, %242 : vector<8x128xf32>
    %c0_80 = arith.constant 0 : index
    %c0_81 = arith.constant 0 : index
    %244 = vector.load %arg5[%c0_80, %c0_81] : memref<128x512xf32, #tpu.memory_space<vmem>>, vector<128x512xf32>
    %cst_82 = arith.constant dense<0.000000e+00> : vector<8x512xf32>
    %245 = tpu.matmul %243, %244, %cst_82 {dimension_numbers = #tpu.dot_dimension_numbers<[1], [0], [0], [1], [0, 0, 1, 1], [], []>} : vector<8x128xf32>, vector<128x512xf32>, vector<8x512xf32> -> vector<8x512xf32>
    %c0_83 = arith.constant 0 : index
    %c0_84 = arith.constant 0 : index
    %246 = vector.load %arg6[%c0_83, %c0_84] : memref<128x512xf32, #tpu.memory_space<vmem>>, vector<128x512xf32>
    %cst_85 = arith.constant dense<0.000000e+00> : vector<8x512xf32>
    %247 = tpu.matmul %209, %246, %cst_85 {dimension_numbers = #tpu.dot_dimension_numbers<[1], [0], [0], [1], [0, 0, 1, 1], [], []>} : vector<8x128xf32>, vector<128x512xf32>, vector<8x512xf32> -> vector<8x512xf32>
    %248 = arith.addf %245, %247 : vector<8x512xf32>
    %249 = arith.addf %248, %12 : vector<8x512xf32>
    %250 = vector.extract_strided_slice %249 {offsets = [0, 0], sizes = [8, 128], strides = [1, 1]} : vector<8x512xf32> to vector<8x128xf32>
    %251 = arith.negf %250 : vector<8x128xf32>
    %252 = math.exp %251 : vector<8x128xf32>
    %cst_86 = arith.constant 1.000000e+00 : f32
    %253 = vector.broadcast %cst_86 : f32 to vector<8x128xf32>
    %254 = arith.addf %253, %252 : vector<8x128xf32>
    %255 = arith.divf %253, %254 : vector<8x128xf32>
    %256 = vector.extract_strided_slice %249 {offsets = [0, 128], sizes = [8, 128], strides = [1, 1]} : vector<8x512xf32> to vector<8x128xf32>
    %257 = arith.negf %256 : vector<8x128xf32>
    %258 = math.exp %257 : vector<8x128xf32>
    %cst_87 = arith.constant 1.000000e+00 : f32
    %259 = vector.broadcast %cst_87 : f32 to vector<8x128xf32>
    %260 = arith.addf %259, %258 : vector<8x128xf32>
    %261 = arith.divf %259, %260 : vector<8x128xf32>
    %262 = vector.extract_strided_slice %249 {offsets = [0, 256], sizes = [8, 128], strides = [1, 1]} : vector<8x512xf32> to vector<8x128xf32>
    %263 = math.tanh %262 : vector<8x128xf32>
    %264 = vector.extract_strided_slice %249 {offsets = [0, 384], sizes = [8, 128], strides = [1, 1]} : vector<8x512xf32> to vector<8x128xf32>
    %265 = arith.negf %264 : vector<8x128xf32>
    %266 = math.exp %265 : vector<8x128xf32>
    %cst_88 = arith.constant 1.000000e+00 : f32
    %267 = vector.broadcast %cst_88 : f32 to vector<8x128xf32>
    %268 = arith.addf %267, %266 : vector<8x128xf32>
    %269 = arith.divf %267, %268 : vector<8x128xf32>
    %270 = arith.mulf %261, %207 : vector<8x128xf32>
    %271 = arith.mulf %255, %263 : vector<8x128xf32>
    %272 = arith.addf %270, %271 : vector<8x128xf32>
    %273 = math.tanh %272 : vector<8x128xf32>
    %274 = arith.mulf %269, %273 : vector<8x128xf32>
    %275 = arith.index_cast %213 : i32 to index
    %c0_89 = arith.constant 0 : index
    %276 = vector.load %arg16[%275, %c0_89] : memref<64x128xf32, #tpu.memory_space<vmem>>, vector<8x128xf32>
    tpu.vector_store %arg16[%275, %c0_89], %274 {strides = array<i32>} : memref<64x128xf32, #tpu.memory_space<vmem>>, vector<8x128xf32>,
    %c4_i32 = arith.constant 4 : i32
    %c8_i32_90 = arith.constant 8 : i32
    %277 = arith.muli %c4_i32, %c8_i32_90 : i32
    %278 = tpu.assume_multiple %277, 8 : i32
    %279 = arith.index_cast %278 : i32 to index
    %c0_91 = arith.constant 0 : index
    %280 = vector.load %arg15[%279, %c0_91] : memref<64x512xf32, #tpu.memory_space<vmem>>, vector<8x512xf32>
    %c0_92 = arith.constant 0 : index
    %c0_93 = arith.constant 0 : index
    %281 = vector.load %arg3[%c0_92, %c0_93] : memref<128x512xf32, #tpu.memory_space<vmem>>, vector<128x512xf32>
    %cst_94 = arith.constant dense<0.000000e+00> : vector<8x512xf32>
    %282 = tpu.matmul %243, %281, %cst_94 {dimension_numbers = #tpu.dot_dimension_numbers<[1], [0], [0], [1], [0, 0, 1, 1], [], []>} : vector<8x128xf32>, vector<128x512xf32>, vector<8x512xf32> -> vector<8x512xf32>
    %283 = arith.addf %280, %282 : vector<8x512xf32>
    %284 = vector.extract_strided_slice %283 {offsets = [0, 0], sizes = [8, 128], strides = [1, 1]} : vector<8x512xf32> to vector<8x128xf32>
    %285 = arith.negf %284 : vector<8x128xf32>
    %286 = math.exp %285 : vector<8x128xf32>
    %cst_95 = arith.constant 1.000000e+00 : f32
    %287 = vector.broadcast %cst_95 : f32 to vector<8x128xf32>
    %288 = arith.addf %287, %286 : vector<8x128xf32>
    %289 = arith.divf %287, %288 : vector<8x128xf32>
    %290 = vector.extract_strided_slice %283 {offsets = [0, 128], sizes = [8, 128], strides = [1, 1]} : vector<8x512xf32> to vector<8x128xf32>
    %291 = arith.negf %290 : vector<8x128xf32>
    %292 = math.exp %291 : vector<8x128xf32>
    %cst_96 = arith.constant 1.000000e+00 : f32
    %293 = vector.broadcast %cst_96 : f32 to vector<8x128xf32>
    %294 = arith.addf %293, %292 : vector<8x128xf32>
    %295 = arith.divf %293, %294 : vector<8x128xf32>
    %296 = vector.extract_strided_slice %283 {offsets = [0, 256], sizes = [8, 128], strides = [1, 1]} : vector<8x512xf32> to vector<8x128xf32>
    %297 = math.tanh %296 : vector<8x128xf32>
    %298 = vector.extract_strided_slice %283 {offsets = [0, 384], sizes = [8, 128], strides = [1, 1]} : vector<8x512xf32> to vector<8x128xf32>
    %299 = arith.negf %298 : vector<8x128xf32>
    %300 = math.exp %299 : vector<8x128xf32>
    %cst_97 = arith.constant 1.000000e+00 : f32
    %301 = vector.broadcast %cst_97 : f32 to vector<8x128xf32>
    %302 = arith.addf %301, %300 : vector<8x128xf32>
    %303 = arith.divf %301, %302 : vector<8x128xf32>
    %304 = arith.mulf %295, %241 : vector<8x128xf32>
    %305 = arith.mulf %289, %297 : vector<8x128xf32>
    %306 = arith.addf %304, %305 : vector<8x128xf32>
    %307 = math.tanh %306 : vector<8x128xf32>
    %308 = arith.mulf %303, %307 : vector<8x128xf32>
    %c0_98 = arith.constant 0 : index
    %c0_99 = arith.constant 0 : index
    %309 = vector.load %arg5[%c0_98, %c0_99] : memref<128x512xf32, #tpu.memory_space<vmem>>, vector<128x512xf32>
    %cst_100 = arith.constant dense<0.000000e+00> : vector<8x512xf32>
    %310 = tpu.matmul %308, %309, %cst_100 {dimension_numbers = #tpu.dot_dimension_numbers<[1], [0], [0], [1], [0, 0, 1, 1], [], []>} : vector<8x128xf32>, vector<128x512xf32>, vector<8x512xf32> -> vector<8x512xf32>
    %c0_101 = arith.constant 0 : index
    %c0_102 = arith.constant 0 : index
    %311 = vector.load %arg6[%c0_101, %c0_102] : memref<128x512xf32, #tpu.memory_space<vmem>>, vector<128x512xf32>
    %cst_103 = arith.constant dense<0.000000e+00> : vector<8x512xf32>
    %312 = tpu.matmul %274, %311, %cst_103 {dimension_numbers = #tpu.dot_dimension_numbers<[1], [0], [0], [1], [0, 0, 1, 1], [], []>} : vector<8x128xf32>, vector<128x512xf32>, vector<8x512xf32> -> vector<8x512xf32>
    %313 = arith.addf %310, %312 : vector<8x512xf32>
    %314 = arith.addf %313, %12 : vector<8x512xf32>
    %315 = vector.extract_strided_slice %314 {offsets = [0, 0], sizes = [8, 128], strides = [1, 1]} : vector<8x512xf32> to vector<8x128xf32>
    %316 = arith.negf %315 : vector<8x128xf32>
    %317 = math.exp %316 : vector<8x128xf32>
    %cst_104 = arith.constant 1.000000e+00 : f32
    %318 = vector.broadcast %cst_104 : f32 to vector<8x128xf32>
    %319 = arith.addf %318, %317 : vector<8x128xf32>
    %320 = arith.divf %318, %319 : vector<8x128xf32>
    %321 = vector.extract_strided_slice %314 {offsets = [0, 128], sizes = [8, 128], strides = [1, 1]} : vector<8x512xf32> to vector<8x128xf32>
    %322 = arith.negf %321 : vector<8x128xf32>
    %323 = math.exp %322 : vector<8x128xf32>
    %cst_105 = arith.constant 1.000000e+00 : f32
    %324 = vector.broadcast %cst_105 : f32 to vector<8x128xf32>
    %325 = arith.addf %324, %323 : vector<8x128xf32>
    %326 = arith.divf %324, %325 : vector<8x128xf32>
    %327 = vector.extract_strided_slice %314 {offsets = [0, 256], sizes = [8, 128], strides = [1, 1]} : vector<8x512xf32> to vector<8x128xf32>
    %328 = math.tanh %327 : vector<8x128xf32>
    %329 = vector.extract_strided_slice %314 {offsets = [0, 384], sizes = [8, 128], strides = [1, 1]} : vector<8x512xf32> to vector<8x128xf32>
    %330 = arith.negf %329 : vector<8x128xf32>
    %331 = math.exp %330 : vector<8x128xf32>
    %cst_106 = arith.constant 1.000000e+00 : f32
    %332 = vector.broadcast %cst_106 : f32 to vector<8x128xf32>
    %333 = arith.addf %332, %331 : vector<8x128xf32>
    %334 = arith.divf %332, %333 : vector<8x128xf32>
    %335 = arith.mulf %326, %272 : vector<8x128xf32>
    %336 = arith.mulf %320, %328 : vector<8x128xf32>
    %337 = arith.addf %335, %336 : vector<8x128xf32>
    %338 = math.tanh %337 : vector<8x128xf32>
    %339 = arith.mulf %334, %338 : vector<8x128xf32>
    %340 = arith.index_cast %278 : i32 to index
    %c0_107 = arith.constant 0 : index
    %341 = vector.load %arg16[%340, %c0_107] : memref<64x128xf32, #tpu.memory_space<vmem>>, vector<8x128xf32>
    tpu.vector_store %arg16[%340, %c0_107], %339 {strides = array<i32>} : memref<64x128xf32, #tpu.memory_space<vmem>>, vector<8x128xf32>,
    %c5_i32 = arith.constant 5 : i32
    %c8_i32_108 = arith.constant 8 : i32
    %342 = arith.muli %c5_i32, %c8_i32_108 : i32
    %343 = tpu.assume_multiple %342, 8 : i32
    %344 = arith.index_cast %343 : i32 to index
    %c0_109 = arith.constant 0 : index
    %345 = vector.load %arg15[%344, %c0_109] : memref<64x512xf32, #tpu.memory_space<vmem>>, vector<8x512xf32>
    %c0_110 = arith.constant 0 : index
    %c0_111 = arith.constant 0 : index
    %346 = vector.load %arg3[%c0_110, %c0_111] : memref<128x512xf32, #tpu.memory_space<vmem>>, vector<128x512xf32>
    %cst_112 = arith.constant dense<0.000000e+00> : vector<8x512xf32>
    %347 = tpu.matmul %308, %346, %cst_112 {dimension_numbers = #tpu.dot_dimension_numbers<[1], [0], [0], [1], [0, 0, 1, 1], [], []>} : vector<8x128xf32>, vector<128x512xf32>, vector<8x512xf32> -> vector<8x512xf32>
    %348 = arith.addf %345, %347 : vector<8x512xf32>
    %349 = vector.extract_strided_slice %348 {offsets = [0, 0], sizes = [8, 128], strides = [1, 1]} : vector<8x512xf32> to vector<8x128xf32>
    %350 = arith.negf %349 : vector<8x128xf32>
    %351 = math.exp %350 : vector<8x128xf32>
    %cst_113 = arith.constant 1.000000e+00 : f32
    %352 = vector.broadcast %cst_113 : f32 to vector<8x128xf32>
    %353 = arith.addf %352, %351 : vector<8x128xf32>
    %354 = arith.divf %352, %353 : vector<8x128xf32>
    %355 = vector.extract_strided_slice %348 {offsets = [0, 128], sizes = [8, 128], strides = [1, 1]} : vector<8x512xf32> to vector<8x128xf32>
    %356 = arith.negf %355 : vector<8x128xf32>
    %357 = math.exp %356 : vector<8x128xf32>
    %cst_114 = arith.constant 1.000000e+00 : f32
    %358 = vector.broadcast %cst_114 : f32 to vector<8x128xf32>
    %359 = arith.addf %358, %357 : vector<8x128xf32>
    %360 = arith.divf %358, %359 : vector<8x128xf32>
    %361 = vector.extract_strided_slice %348 {offsets = [0, 256], sizes = [8, 128], strides = [1, 1]} : vector<8x512xf32> to vector<8x128xf32>
    %362 = math.tanh %361 : vector<8x128xf32>
    %363 = vector.extract_strided_slice %348 {offsets = [0, 384], sizes = [8, 128], strides = [1, 1]} : vector<8x512xf32> to vector<8x128xf32>
    %364 = arith.negf %363 : vector<8x128xf32>
    %365 = math.exp %364 : vector<8x128xf32>
    %cst_115 = arith.constant 1.000000e+00 : f32
    %366 = vector.broadcast %cst_115 : f32 to vector<8x128xf32>
    %367 = arith.addf %366, %365 : vector<8x128xf32>
    %368 = arith.divf %366, %367 : vector<8x128xf32>
    %369 = arith.mulf %360, %306 : vector<8x128xf32>
    %370 = arith.mulf %354, %362 : vector<8x128xf32>
    %371 = arith.addf %369, %370 : vector<8x128xf32>
    %372 = math.tanh %371 : vector<8x128xf32>
    %373 = arith.mulf %368, %372 : vector<8x128xf32>
    %c0_116 = arith.constant 0 : index
    %c0_117 = arith.constant 0 : index
    %374 = vector.load %arg5[%c0_116, %c0_117] : memref<128x512xf32, #tpu.memory_space<vmem>>, vector<128x512xf32>
    %cst_118 = arith.constant dense<0.000000e+00> : vector<8x512xf32>
    %375 = tpu.matmul %373, %374, %cst_118 {dimension_numbers = #tpu.dot_dimension_numbers<[1], [0], [0], [1], [0, 0, 1, 1], [], []>} : vector<8x128xf32>, vector<128x512xf32>, vector<8x512xf32> -> vector<8x512xf32>
    %c0_119 = arith.constant 0 : index
    %c0_120 = arith.constant 0 : index
    %376 = vector.load %arg6[%c0_119, %c0_120] : memref<128x512xf32, #tpu.memory_space<vmem>>, vector<128x512xf32>
    %cst_121 = arith.constant dense<0.000000e+00> : vector<8x512xf32>
    %377 = tpu.matmul %339, %376, %cst_121 {dimension_numbers = #tpu.dot_dimension_numbers<[1], [0], [0], [1], [0, 0, 1, 1], [], []>} : vector<8x128xf32>, vector<128x512xf32>, vector<8x512xf32> -> vector<8x512xf32>
    %378 = arith.addf %375, %377 : vector<8x512xf32>
    %379 = arith.addf %378, %12 : vector<8x512xf32>
    %380 = vector.extract_strided_slice %379 {offsets = [0, 0], sizes = [8, 128], strides = [1, 1]} : vector<8x512xf32> to vector<8x128xf32>
    %381 = arith.negf %380 : vector<8x128xf32>
    %382 = math.exp %381 : vector<8x128xf32>
    %cst_122 = arith.constant 1.000000e+00 : f32
    %383 = vector.broadcast %cst_122 : f32 to vector<8x128xf32>
    %384 = arith.addf %383, %382 : vector<8x128xf32>
    %385 = arith.divf %383, %384 : vector<8x128xf32>
    %386 = vector.extract_strided_slice %379 {offsets = [0, 128], sizes = [8, 128], strides = [1, 1]} : vector<8x512xf32> to vector<8x128xf32>
    %387 = arith.negf %386 : vector<8x128xf32>
    %388 = math.exp %387 : vector<8x128xf32>
    %cst_123 = arith.constant 1.000000e+00 : f32
    %389 = vector.broadcast %cst_123 : f32 to vector<8x128xf32>
    %390 = arith.addf %389, %388 : vector<8x128xf32>
    %391 = arith.divf %389, %390 : vector<8x128xf32>
    %392 = vector.extract_strided_slice %379 {offsets = [0, 256], sizes = [8, 128], strides = [1, 1]} : vector<8x512xf32> to vector<8x128xf32>
    %393 = math.tanh %392 : vector<8x128xf32>
    %394 = vector.extract_strided_slice %379 {offsets = [0, 384], sizes = [8, 128], strides = [1, 1]} : vector<8x512xf32> to vector<8x128xf32>
    %395 = arith.negf %394 : vector<8x128xf32>
    %396 = math.exp %395 : vector<8x128xf32>
    %cst_124 = arith.constant 1.000000e+00 : f32
    %397 = vector.broadcast %cst_124 : f32 to vector<8x128xf32>
    %398 = arith.addf %397, %396 : vector<8x128xf32>
    %399 = arith.divf %397, %398 : vector<8x128xf32>
    %400 = arith.mulf %391, %337 : vector<8x128xf32>
    %401 = arith.mulf %385, %393 : vector<8x128xf32>
    %402 = arith.addf %400, %401 : vector<8x128xf32>
    %403 = math.tanh %402 : vector<8x128xf32>
    %404 = arith.mulf %399, %403 : vector<8x128xf32>
    %405 = arith.index_cast %343 : i32 to index
    %c0_125 = arith.constant 0 : index
    %406 = vector.load %arg16[%405, %c0_125] : memref<64x128xf32, #tpu.memory_space<vmem>>, vector<8x128xf32>
    tpu.vector_store %arg16[%405, %c0_125], %404 {strides = array<i32>} : memref<64x128xf32, #tpu.memory_space<vmem>>, vector<8x128xf32>,
    %c6_i32 = arith.constant 6 : i32
    %c8_i32_126 = arith.constant 8 : i32
    %407 = arith.muli %c6_i32, %c8_i32_126 : i32
    %408 = tpu.assume_multiple %407, 8 : i32
    %409 = arith.index_cast %408 : i32 to index
    %c0_127 = arith.constant 0 : index
    %410 = vector.load %arg15[%409, %c0_127] : memref<64x512xf32, #tpu.memory_space<vmem>>, vector<8x512xf32>
    %c0_128 = arith.constant 0 : index
    %c0_129 = arith.constant 0 : index
    %411 = vector.load %arg3[%c0_128, %c0_129] : memref<128x512xf32, #tpu.memory_space<vmem>>, vector<128x512xf32>
    %cst_130 = arith.constant dense<0.000000e+00> : vector<8x512xf32>
    %412 = tpu.matmul %373, %411, %cst_130 {dimension_numbers = #tpu.dot_dimension_numbers<[1], [0], [0], [1], [0, 0, 1, 1], [], []>} : vector<8x128xf32>, vector<128x512xf32>, vector<8x512xf32> -> vector<8x512xf32>
    %413 = arith.addf %410, %412 : vector<8x512xf32>
    %414 = vector.extract_strided_slice %413 {offsets = [0, 0], sizes = [8, 128], strides = [1, 1]} : vector<8x512xf32> to vector<8x128xf32>
    %415 = arith.negf %414 : vector<8x128xf32>
    %416 = math.exp %415 : vector<8x128xf32>
    %cst_131 = arith.constant 1.000000e+00 : f32
    %417 = vector.broadcast %cst_131 : f32 to vector<8x128xf32>
    %418 = arith.addf %417, %416 : vector<8x128xf32>
    %419 = arith.divf %417, %418 : vector<8x128xf32>
    %420 = vector.extract_strided_slice %413 {offsets = [0, 128], sizes = [8, 128], strides = [1, 1]} : vector<8x512xf32> to vector<8x128xf32>
    %421 = arith.negf %420 : vector<8x128xf32>
    %422 = math.exp %421 : vector<8x128xf32>
    %cst_132 = arith.constant 1.000000e+00 : f32
    %423 = vector.broadcast %cst_132 : f32 to vector<8x128xf32>
    %424 = arith.addf %423, %422 : vector<8x128xf32>
    %425 = arith.divf %423, %424 : vector<8x128xf32>
    %426 = vector.extract_strided_slice %413 {offsets = [0, 256], sizes = [8, 128], strides = [1, 1]} : vector<8x512xf32> to vector<8x128xf32>
    %427 = math.tanh %426 : vector<8x128xf32>
    %428 = vector.extract_strided_slice %413 {offsets = [0, 384], sizes = [8, 128], strides = [1, 1]} : vector<8x512xf32> to vector<8x128xf32>
    %429 = arith.negf %428 : vector<8x128xf32>
    %430 = math.exp %429 : vector<8x128xf32>
    %cst_133 = arith.constant 1.000000e+00 : f32
    %431 = vector.broadcast %cst_133 : f32 to vector<8x128xf32>
    %432 = arith.addf %431, %430 : vector<8x128xf32>
    %433 = arith.divf %431, %432 : vector<8x128xf32>
    %434 = arith.mulf %425, %371 : vector<8x128xf32>
    %435 = arith.mulf %419, %427 : vector<8x128xf32>
    %436 = arith.addf %434, %435 : vector<8x128xf32>
    %437 = math.tanh %436 : vector<8x128xf32>
    %438 = arith.mulf %433, %437 : vector<8x128xf32>
    %c0_134 = arith.constant 0 : index
    %c0_135 = arith.constant 0 : index
    %439 = vector.load %arg5[%c0_134, %c0_135] : memref<128x512xf32, #tpu.memory_space<vmem>>, vector<128x512xf32>
    %cst_136 = arith.constant dense<0.000000e+00> : vector<8x512xf32>
    %440 = tpu.matmul %438, %439, %cst_136 {dimension_numbers = #tpu.dot_dimension_numbers<[1], [0], [0], [1], [0, 0, 1, 1], [], []>} : vector<8x128xf32>, vector<128x512xf32>, vector<8x512xf32> -> vector<8x512xf32>
    %c0_137 = arith.constant 0 : index
    %c0_138 = arith.constant 0 : index
    %441 = vector.load %arg6[%c0_137, %c0_138] : memref<128x512xf32, #tpu.memory_space<vmem>>, vector<128x512xf32>
    %cst_139 = arith.constant dense<0.000000e+00> : vector<8x512xf32>
    %442 = tpu.matmul %404, %441, %cst_139 {dimension_numbers = #tpu.dot_dimension_numbers<[1], [0], [0], [1], [0, 0, 1, 1], [], []>} : vector<8x128xf32>, vector<128x512xf32>, vector<8x512xf32> -> vector<8x512xf32>
    %443 = arith.addf %440, %442 : vector<8x512xf32>
    %444 = arith.addf %443, %12 : vector<8x512xf32>
    %445 = vector.extract_strided_slice %444 {offsets = [0, 0], sizes = [8, 128], strides = [1, 1]} : vector<8x512xf32> to vector<8x128xf32>
    %446 = arith.negf %445 : vector<8x128xf32>
    %447 = math.exp %446 : vector<8x128xf32>
    %cst_140 = arith.constant 1.000000e+00 : f32
    %448 = vector.broadcast %cst_140 : f32 to vector<8x128xf32>
    %449 = arith.addf %448, %447 : vector<8x128xf32>
    %450 = arith.divf %448, %449 : vector<8x128xf32>
    %451 = vector.extract_strided_slice %444 {offsets = [0, 128], sizes = [8, 128], strides = [1, 1]} : vector<8x512xf32> to vector<8x128xf32>
    %452 = arith.negf %451 : vector<8x128xf32>
    %453 = math.exp %452 : vector<8x128xf32>
    %cst_141 = arith.constant 1.000000e+00 : f32
    %454 = vector.broadcast %cst_141 : f32 to vector<8x128xf32>
    %455 = arith.addf %454, %453 : vector<8x128xf32>
    %456 = arith.divf %454, %455 : vector<8x128xf32>
    %457 = vector.extract_strided_slice %444 {offsets = [0, 256], sizes = [8, 128], strides = [1, 1]} : vector<8x512xf32> to vector<8x128xf32>
    %458 = math.tanh %457 : vector<8x128xf32>
    %459 = vector.extract_strided_slice %444 {offsets = [0, 384], sizes = [8, 128], strides = [1, 1]} : vector<8x512xf32> to vector<8x128xf32>
    %460 = arith.negf %459 : vector<8x128xf32>
    %461 = math.exp %460 : vector<8x128xf32>
    %cst_142 = arith.constant 1.000000e+00 : f32
    %462 = vector.broadcast %cst_142 : f32 to vector<8x128xf32>
    %463 = arith.addf %462, %461 : vector<8x128xf32>
    %464 = arith.divf %462, %463 : vector<8x128xf32>
    %465 = arith.mulf %456, %402 : vector<8x128xf32>
    %466 = arith.mulf %450, %458 : vector<8x128xf32>
    %467 = arith.addf %465, %466 : vector<8x128xf32>
    %468 = math.tanh %467 : vector<8x128xf32>
    %469 = arith.mulf %464, %468 : vector<8x128xf32>
    %470 = arith.index_cast %408 : i32 to index
    %c0_143 = arith.constant 0 : index
    %471 = vector.load %arg16[%470, %c0_143] : memref<64x128xf32, #tpu.memory_space<vmem>>, vector<8x128xf32>
    tpu.vector_store %arg16[%470, %c0_143], %469 {strides = array<i32>} : memref<64x128xf32, #tpu.memory_space<vmem>>, vector<8x128xf32>,
    %c7_i32 = arith.constant 7 : i32
    %c8_i32_144 = arith.constant 8 : i32
    %472 = arith.muli %c7_i32, %c8_i32_144 : i32
    %473 = tpu.assume_multiple %472, 8 : i32
    %474 = arith.index_cast %473 : i32 to index
    %c0_145 = arith.constant 0 : index
    %475 = vector.load %arg15[%474, %c0_145] : memref<64x512xf32, #tpu.memory_space<vmem>>, vector<8x512xf32>
    %c0_146 = arith.constant 0 : index
    %c0_147 = arith.constant 0 : index
    %476 = vector.load %arg3[%c0_146, %c0_147] : memref<128x512xf32, #tpu.memory_space<vmem>>, vector<128x512xf32>
    %cst_148 = arith.constant dense<0.000000e+00> : vector<8x512xf32>
    %477 = tpu.matmul %438, %476, %cst_148 {dimension_numbers = #tpu.dot_dimension_numbers<[1], [0], [0], [1], [0, 0, 1, 1], [], []>} : vector<8x128xf32>, vector<128x512xf32>, vector<8x512xf32> -> vector<8x512xf32>
    %478 = arith.addf %475, %477 : vector<8x512xf32>
    %479 = vector.extract_strided_slice %478 {offsets = [0, 0], sizes = [8, 128], strides = [1, 1]} : vector<8x512xf32> to vector<8x128xf32>
    %480 = arith.negf %479 : vector<8x128xf32>
    %481 = math.exp %480 : vector<8x128xf32>
    %cst_149 = arith.constant 1.000000e+00 : f32
    %482 = vector.broadcast %cst_149 : f32 to vector<8x128xf32>
    %483 = arith.addf %482, %481 : vector<8x128xf32>
    %484 = arith.divf %482, %483 : vector<8x128xf32>
    %485 = vector.extract_strided_slice %478 {offsets = [0, 128], sizes = [8, 128], strides = [1, 1]} : vector<8x512xf32> to vector<8x128xf32>
    %486 = arith.negf %485 : vector<8x128xf32>
    %487 = math.exp %486 : vector<8x128xf32>
    %cst_150 = arith.constant 1.000000e+00 : f32
    %488 = vector.broadcast %cst_150 : f32 to vector<8x128xf32>
    %489 = arith.addf %488, %487 : vector<8x128xf32>
    %490 = arith.divf %488, %489 : vector<8x128xf32>
    %491 = vector.extract_strided_slice %478 {offsets = [0, 256], sizes = [8, 128], strides = [1, 1]} : vector<8x512xf32> to vector<8x128xf32>
    %492 = math.tanh %491 : vector<8x128xf32>
    %493 = vector.extract_strided_slice %478 {offsets = [0, 384], sizes = [8, 128], strides = [1, 1]} : vector<8x512xf32> to vector<8x128xf32>
    %494 = arith.negf %493 : vector<8x128xf32>
    %495 = math.exp %494 : vector<8x128xf32>
    %cst_151 = arith.constant 1.000000e+00 : f32
    %496 = vector.broadcast %cst_151 : f32 to vector<8x128xf32>
    %497 = arith.addf %496, %495 : vector<8x128xf32>
    %498 = arith.divf %496, %497 : vector<8x128xf32>
    %499 = arith.mulf %490, %436 : vector<8x128xf32>
    %500 = arith.mulf %484, %492 : vector<8x128xf32>
    %501 = arith.addf %499, %500 : vector<8x128xf32>
    %502 = math.tanh %501 : vector<8x128xf32>
    %503 = arith.mulf %498, %502 : vector<8x128xf32>
    %c0_152 = arith.constant 0 : index
    %c0_153 = arith.constant 0 : index
    %504 = vector.load %arg5[%c0_152, %c0_153] : memref<128x512xf32, #tpu.memory_space<vmem>>, vector<128x512xf32>
    %cst_154 = arith.constant dense<0.000000e+00> : vector<8x512xf32>
    %505 = tpu.matmul %503, %504, %cst_154 {dimension_numbers = #tpu.dot_dimension_numbers<[1], [0], [0], [1], [0, 0, 1, 1], [], []>} : vector<8x128xf32>, vector<128x512xf32>, vector<8x512xf32> -> vector<8x512xf32>
    %c0_155 = arith.constant 0 : index
    %c0_156 = arith.constant 0 : index
    %506 = vector.load %arg6[%c0_155, %c0_156] : memref<128x512xf32, #tpu.memory_space<vmem>>, vector<128x512xf32>
    %cst_157 = arith.constant dense<0.000000e+00> : vector<8x512xf32>
    %507 = tpu.matmul %469, %506, %cst_157 {dimension_numbers = #tpu.dot_dimension_numbers<[1], [0], [0], [1], [0, 0, 1, 1], [], []>} : vector<8x128xf32>, vector<128x512xf32>, vector<8x512xf32> -> vector<8x512xf32>
    %508 = arith.addf %505, %507 : vector<8x512xf32>
    %509 = arith.addf %508, %12 : vector<8x512xf32>
    %510 = vector.extract_strided_slice %509 {offsets = [0, 0], sizes = [8, 128], strides = [1, 1]} : vector<8x512xf32> to vector<8x128xf32>
    %511 = arith.negf %510 : vector<8x128xf32>
    %512 = math.exp %511 : vector<8x128xf32>
    %cst_158 = arith.constant 1.000000e+00 : f32
    %513 = vector.broadcast %cst_158 : f32 to vector<8x128xf32>
    %514 = arith.addf %513, %512 : vector<8x128xf32>
    %515 = arith.divf %513, %514 : vector<8x128xf32>
    %516 = vector.extract_strided_slice %509 {offsets = [0, 128], sizes = [8, 128], strides = [1, 1]} : vector<8x512xf32> to vector<8x128xf32>
    %517 = arith.negf %516 : vector<8x128xf32>
    %518 = math.exp %517 : vector<8x128xf32>
    %cst_159 = arith.constant 1.000000e+00 : f32
    %519 = vector.broadcast %cst_159 : f32 to vector<8x128xf32>
    %520 = arith.addf %519, %518 : vector<8x128xf32>
    %521 = arith.divf %519, %520 : vector<8x128xf32>
    %522 = vector.extract_strided_slice %509 {offsets = [0, 256], sizes = [8, 128], strides = [1, 1]} : vector<8x512xf32> to vector<8x128xf32>
    %523 = math.tanh %522 : vector<8x128xf32>
    %524 = vector.extract_strided_slice %509 {offsets = [0, 384], sizes = [8, 128], strides = [1, 1]} : vector<8x512xf32> to vector<8x128xf32>
    %525 = arith.negf %524 : vector<8x128xf32>
    %526 = math.exp %525 : vector<8x128xf32>
    %cst_160 = arith.constant 1.000000e+00 : f32
    %527 = vector.broadcast %cst_160 : f32 to vector<8x128xf32>
    %528 = arith.addf %527, %526 : vector<8x128xf32>
    %529 = arith.divf %527, %528 : vector<8x128xf32>
    %530 = arith.mulf %521, %467 : vector<8x128xf32>
    %531 = arith.mulf %515, %523 : vector<8x128xf32>
    %532 = arith.addf %530, %531 : vector<8x128xf32>
    %533 = math.tanh %532 : vector<8x128xf32>
    %534 = arith.mulf %529, %533 : vector<8x128xf32>
    %535 = arith.index_cast %473 : i32 to index
    %c0_161 = arith.constant 0 : index
    %536 = vector.load %arg16[%535, %c0_161] : memref<64x128xf32, #tpu.memory_space<vmem>>, vector<8x128xf32>
    tpu.vector_store %arg16[%535, %c0_161], %534 {strides = array<i32>} : memref<64x128xf32, #tpu.memory_space<vmem>>, vector<8x128xf32>,
    %c8_i32_162 = arith.constant 8 : i32
    %c0_163 = arith.constant 0 : index
    %c0_164 = arith.constant 0 : index
    %537 = vector.load %arg11[%c0_163, %c0_164] : memref<8x128xf32, #tpu.memory_space<vmem>>, vector<8x128xf32>
    tpu.vector_store %arg11[%c0_163, %c0_164], %503 {strides = array<i32>} : memref<8x128xf32, #tpu.memory_space<vmem>>, vector<8x128xf32>,
    %c0_165 = arith.constant 0 : index
    %c0_166 = arith.constant 0 : index
    %538 = vector.load %arg12[%c0_165, %c0_166] : memref<8x128xf32, #tpu.memory_space<vmem>>, vector<8x128xf32>
    tpu.vector_store %arg12[%c0_165, %c0_166], %501 {strides = array<i32>} : memref<8x128xf32, #tpu.memory_space<vmem>>, vector<8x128xf32>,
    %c0_167 = arith.constant 0 : index
    %c0_168 = arith.constant 0 : index
    %539 = vector.load %arg13[%c0_167, %c0_168] : memref<8x128xf32, #tpu.memory_space<vmem>>, vector<8x128xf32>
    tpu.vector_store %arg13[%c0_167, %c0_168], %534 {strides = array<i32>} : memref<8x128xf32, #tpu.memory_space<vmem>>, vector<8x128xf32>,
    %c0_169 = arith.constant 0 : index
    %c0_170 = arith.constant 0 : index
    %540 = vector.load %arg14[%c0_169, %c0_170] : memref<8x128xf32, #tpu.memory_space<vmem>>, vector<8x128xf32>
    tpu.vector_store %arg14[%c0_169, %c0_170], %532 {strides = array<i32>} : memref<8x128xf32, #tpu.memory_space<vmem>>, vector<8x128xf32>,
    %c0_171 = arith.constant 0 : index
    %c0_172 = arith.constant 0 : index
    %541 = vector.load %arg16[%c0_171, %c0_172] : memref<64x128xf32, #tpu.memory_space<vmem>>, vector<64x128xf32>
    %c0_173 = arith.constant 0 : index
    %c0_174 = arith.constant 0 : index
    %542 = vector.load %arg8[%c0_173, %c0_174] : memref<128x128xf32, #tpu.memory_space<vmem>>, vector<128x128xf32>
    %cst_175 = arith.constant dense<0.000000e+00> : vector<64x128xf32>
    %543 = tpu.matmul %541, %542, %cst_175 {dimension_numbers = #tpu.dot_dimension_numbers<[1], [0], [0], [1], [0, 0, 1, 1], [], []>} : vector<64x128xf32>, vector<128x128xf32>, vector<64x128xf32> -> vector<64x128xf32>
    %c0_176 = arith.constant 0 : index
    %c0_177 = arith.constant 0 : index
    %544 = vector.load %arg9[%c0_176, %c0_177] : memref<1x128xf32, #tpu.memory_space<vmem>>, vector<1x128xf32>
    %545 = vector.broadcast %544 : vector<1x128xf32> to vector<64x128xf32>
    %546 = arith.addf %543, %545 : vector<64x128xf32>
    %547 = arith.negf %546 : vector<64x128xf32>
    %548 = math.exp %547 : vector<64x128xf32>
    %cst_178 = arith.constant 1.000000e+00 : f32
    %549 = vector.broadcast %cst_178 : f32 to vector<64x128xf32>
    %550 = arith.addf %549, %548 : vector<64x128xf32>
    %551 = arith.divf %549, %550 : vector<64x128xf32>
    %c0_179 = arith.constant 0 : index
    %c0_180 = arith.constant 0 : index
    %552 = vector.load %arg10[%c0_179, %c0_180] : memref<64x128xf32, #tpu.memory_space<vmem>>, vector<64x128xf32>
    tpu.vector_store %arg10[%c0_179, %c0_180], %551 {strides = array<i32>} : memref<64x128xf32, #tpu.memory_space<vmem>>, vector<64x128xf32>,
    return
  }
  func.func @transform_0(%arg0: i32) -> (i32, i32) {
    %c0_i32 = arith.constant 0 : i32
    %c0_i32_0 = arith.constant 0 : i32
    return %arg0, %c0_i32 : i32, i32
  }
  func.func @transform_1(%arg0: i32) -> (i32, i32) {
    %c0_i32 = arith.constant 0 : i32
    %c0_i32_0 = arith.constant 0 : i32
    %c0_i32_1 = arith.constant 0 : i32
    return %c0_i32, %c0_i32_0 : i32, i32
  }
  func.func @transform_2(%arg0: i32) -> (i32, i32) {
    %c0_i32 = arith.constant 0 : i32
    %c0_i32_0 = arith.constant 0 : i32
    %c0_i32_1 = arith.constant 0 : i32
    return %c0_i32, %c0_i32_0 : i32, i32
  }
  func.func @transform_3(%arg0: i32) -> (i32, i32) {
    %c0_i32 = arith.constant 0 : i32
    %c0_i32_0 = arith.constant 0 : i32
    %c0_i32_1 = arith.constant 0 : i32
    return %c0_i32, %c0_i32_0 : i32, i32
  }
  func.func @transform_4(%arg0: i32) -> (i32, i32) {
    %c0_i32 = arith.constant 0 : i32
    %c0_i32_0 = arith.constant 0 : i32
    %c0_i32_1 = arith.constant 0 : i32
    return %c0_i32, %c0_i32_0 : i32, i32
  }
  func.func @transform_5(%arg0: i32) -> (i32, i32) {
    %c0_i32 = arith.constant 0 : i32
    %c0_i32_0 = arith.constant 0 : i32
    %c0_i32_1 = arith.constant 0 : i32
    return %c0_i32, %c0_i32_0 : i32, i32
  }
  func.func @transform_6(%arg0: i32) -> (i32, i32) {
    %c0_i32 = arith.constant 0 : i32
    %c0_i32_0 = arith.constant 0 : i32
    %c0_i32_1 = arith.constant 0 : i32
    return %c0_i32, %c0_i32_0 : i32, i32
  }
  func.func @transform_7(%arg0: i32) -> (i32, i32) {
    %c0_i32 = arith.constant 0 : i32
    %c0_i32_0 = arith.constant 0 : i32
    %c0_i32_1 = arith.constant 0 : i32
    return %c0_i32, %c0_i32_0 : i32, i32
  }
  func.func @transform_8(%arg0: i32) -> (i32, i32) {
    %c0_i32 = arith.constant 0 : i32
    %c0_i32_0 = arith.constant 0 : i32
    %c0_i32_1 = arith.constant 0 : i32
    return %c0_i32, %c0_i32_0 : i32, i32
  }
  func.func @transform_9(%arg0: i32) -> (i32, i32) {
    %c0_i32 = arith.constant 0 : i32
    %c0_i32_0 = arith.constant 0 : i32
    return %arg0, %c0_i32 : i32, i32
  }
}

</mosaic_0001>

<llo_original>
// kernel: tpu_custom_call.1
$region0: #{tpu_custom_call.1}
  #allocation0 [shape = 'u32[]', space=smem, size = 0x4, offset = 0x4, fixed_abs, tag = 'smem constant byte address 0x4 - core index']
  #allocation1 [shape = 'u32[144,128]{1,0:T(1,128)}', space=vmem, size = 0x12000, scoped, tag = 'internal scratch']
  #allocation2 [shape = 'f32[8,128]{1,0:T(8,128)}', space=vmem, size = 0x1000, scoped, tag = 'scratch operand']
  #allocation3 [shape = 'f32[8,128]{1,0:T(8,128)}', space=vmem, size = 0x1000, scoped, tag = 'scratch operand']
  #allocation4 [shape = 'f32[8,128]{1,0:T(8,128)}', space=vmem, size = 0x1000, scoped, tag = 'scratch operand']
  #allocation5 [shape = 'f32[8,128]{1,0:T(8,128)}', space=vmem, size = 0x1000, scoped, tag = 'scratch operand']
  #allocation6 [shape = 'f32[64,512]{1,0:T(8,128)}', space=vmem, size = 0x20000, scoped, tag = 'scratch operand']
  #allocation7 [shape = 'f32[64,128]{1,0:T(8,128)}', space=vmem, size = 0x8000, scoped, tag = 'scratch operand']
  %s0 = inlined_call_operand.vmem [shape: f32[64,16], index: 0, kind: input, shape index: {}]
  %s1 = inlined_call_operand.vmem [shape: f32[16,512], index: 1, kind: input, shape index: {}]
  %s2 = inlined_call_operand.hbm [shape: f32[128,512], index: 2, kind: input, shape index: {}]
  %s3 = inlined_call_operand.vmem [shape: f32[1,512], index: 3, kind: input, shape index: {}]
  %s4 = inlined_call_operand.hbm [shape: f32[128,512], index: 4, kind: input, shape index: {}]
  %s5 = inlined_call_operand.hbm [shape: f32[128,512], index: 5, kind: input, shape index: {}]
  %s6 = inlined_call_operand.vmem [shape: f32[1,512], index: 6, kind: input, shape index: {}]
  %s7 = inlined_call_operand.hbm [shape: f32[128,128], index: 7, kind: input, shape index: {}]
  %s8 = inlined_call_operand.vmem [shape: f32[1,128], index: 8, kind: input, shape index: {}]
  %s9 = inlined_call_operand.hbm [shape: f32[64,128], index: 9, kind: output, shape index: {}]
  %s10 = sld [smem:[#allocation0]]
  $region66: #{tpu_custom_call.1} parent=0
    _
  %s12 = ssub.s32 1, %s10
  %s13 = scalar_select 0, %s12, %s10
  $region1: #{tpu_custom_call.1} parent=0
    #allocation8 [shape = 'u8[262144]{0}', space=vmem, size = 0x40000, scoped, tag = 'input window, operand 2, single buffered']
    #allocation9 [shape = 's32[1]{0}', space=sflag, size = 0x4, scoped, tag = 'scoped memory for tpu_custom_call.1']
    #allocation10 [shape = 's32[1]{0}', space=sflag, size = 0x4, scoped, tag = 'scoped memory for tpu_custom_call.1']
    #allocation11 [shape = 'u8[262144]{0}', space=vmem, size = 0x40000, scoped, tag = 'input window, operand 4, single buffered']
    #allocation12 [shape = 's32[1]{0}', space=sflag, size = 0x4, scoped, tag = 'scoped memory for tpu_custom_call.1']
    #allocation13 [shape = 'u8[262144]{0}', space=vmem, size = 0x40000, scoped, tag = 'input window, operand 5, single buffered']
    #allocation14 [shape = 'u8[65536]{0}', space=vmem, size = 0x10000, scoped, tag = 'input window, operand 7, single buffered']
    #allocation15 [shape = 's32[1]{0}', space=sflag, size = 0x4, scoped, tag = 'scoped memory for tpu_custom_call.1']
    #allocation16 [shape = 'u8[32768]{0}', space=vmem, size = 0x8000, scoped, tag = 'output window, operand 0, single buffered']
    %14 = vsyncpa [#allocation9], 0
    %15 = vsyncpa [#allocation12], 0
    %16 = vsyncpa [#allocation15], 0
    %17 = vsyncpa [#allocation10], 0
    // Predicated region
    $region2: #{tpu_custom_call.1} parent=1 // pred_check
      _
    $region3: #{tpu_custom_call.1} parent=1 // pred_check_branch
      %19 = sbr.rel (0) target = $region5
    $region4: #{tpu_custom_call.1} parent=1 // pred_region
      _
    $region5: #{tpu_custom_call.1} parent=1 // pred_fallthru
      _
    // Predicated region
    $region6: #{tpu_custom_call.1} parent=1 // pred_check
      _
    $region7: #{tpu_custom_call.1} parent=1 // pred_check_branch
      %21 = sbr.rel (0) target = $region9
    $region8: #{tpu_custom_call.1} parent=1 // pred_region
      _
    $region9: #{tpu_custom_call.1} parent=1 // pred_fallthru
      _
    // Predicated region
    $region10: #{tpu_custom_call.1} parent=1 // pred_check
      _
    $region11: #{tpu_custom_call.1} parent=1 // pred_check_branch
      %23 = sbr.rel (0) target = $region13
    $region12: #{tpu_custom_call.1} parent=1 // pred_region
      %s25 = ssub.s32 8192, 8192
      %26 = vsyncadd [#allocation9], %s25
      %s27 = sshll.u32 [#allocation8], 4
      %s28 = int_to_ptr.vmem [resolvable:$true] %s27
      %33 = dma.hbm_to_vmem [thread:$0]  %s2, 8192, %s28, [#allocation9], 512, 512, 32
    $region13: #{tpu_custom_call.1} parent=1 // pred_fallthru
      _
    // Predicated region
    $region14: #{tpu_custom_call.1} parent=1 // pred_check
      _
    $region15: #{tpu_custom_call.1} parent=1 // pred_check_branch
      %35 = sbr.rel (0) target = $region17
    $region16: #{tpu_custom_call.1} parent=1 // pred_region
      _
    $region17: #{tpu_custom_call.1} parent=1 // pred_fallthru
      _
    // Predicated region
    $region18: #{tpu_custom_call.1} parent=1 // pred_check
      _
    $region19: #{tpu_custom_call.1} parent=1 // pred_check_branch
      %37 = sbr.rel (0) target = $region21
    $region20: #{tpu_custom_call.1} parent=1 // pred_region
      %s39 = ssub.s32 8192, 8192
      %40 = vsyncadd [#allocation12], %s39
      %s41 = sshll.u32 [#allocation11], 4
      %s42 = int_to_ptr.vmem [resolvable:$true] %s41
      %47 = dma.hbm_to_vmem [thread:$0]  %s4, 8192, %s42, [#allocation12], 512, 512, 32
    $region21: #{tpu_custom_call.1} parent=1 // pred_fallthru
      _
    // Predicated region
    $region22: #{tpu_custom_call.1} parent=1 // pred_check
      _
    $region23: #{tpu_custom_call.1} parent=1 // pred_check_branch
      %49 = sbr.rel (0) target = $region25
    $region24: #{tpu_custom_call.1} parent=1 // pred_region
      %s51 = ssub.s32 8192, 8192
      %52 = vsyncadd [#allocation12], %s51
      %s53 = sshll.u32 [#allocation13], 4
      %s54 = int_to_ptr.vmem [resolvable:$true] %s53
      %59 = dma.hbm_to_vmem [thread:$0]  %s5, 8192, %s54, [#allocation12], 512, 512, 32
    $region25: #{tpu_custom_call.1} parent=1 // pred_fallthru
      _
    // Predicated region
    $region26: #{tpu_custom_call.1} parent=1 // pred_check
      _
    $region27: #{tpu_custom_call.1} parent=1 // pred_check_branch
      %61 = sbr.rel (0) target = $region29
    $region28: #{tpu_custom_call.1} parent=1 // pred_region
      _
    $region29: #{tpu_custom_call.1} parent=1 // pred_fallthru
      _
    // Predicated region
    $region30: #{tpu_custom_call.1} parent=1 // pred_check
      _
    $region31: #{tpu_custom_call.1} parent=1 // pred_check_branch
      %63 = sbr.rel (0) target = $region33
    $region32: #{tpu_custom_call.1} parent=1 // pred_region
      %s65 = ssub.s32 2048, 2048
      %66 = vsyncadd [#allocation15], %s65
      %s67 = sshll.u32 [#allocation14], 4
      %s68 = int_to_ptr.vmem [resolvable:$true] %s67
      %73 = dma.hbm_to_vmem [thread:$0]  %s7, 2048, %s68, [#allocation15], 128, 128, 8
    $region33: #{tpu_custom_call.1} parent=1 // pred_fallthru
      _
    // Predicated region
    $region34: #{tpu_custom_call.1} parent=1 // pred_check
      _
    $region35: #{tpu_custom_call.1} parent=1 // pred_check_branch
      %75 = sbr.rel (0) target = $region37
    $region36: #{tpu_custom_call.1} parent=1 // pred_region
      _
    $region37: #{tpu_custom_call.1} parent=1 // pred_fallthru
      _
    // Predicated region
    $region38: #{tpu_custom_call.1} parent=1 // pred_check
      _
    $region39: #{tpu_custom_call.1} parent=1 // pred_check_branch
      %77 = sbr.rel (0) target = $region41
    $region40: #{tpu_custom_call.1} parent=1 // pred_region
      %78 = dma.done [#allocation9], 8192
    $region41: #{tpu_custom_call.1} parent=1 // pred_fallthru
      _
    // Predicated region
    $region42: #{tpu_custom_call.1} parent=1 // pred_check
      _
    $region43: #{tpu_custom_call.1} parent=1 // pred_check_branch
      %80 = sbr.rel (0) target = $region45
    $region44: #{tpu_custom_call.1} parent=1 // pred_region
      %81 = dma.done [#allocation12], 8192
    $region45: #{tpu_custom_call.1} parent=1 // pred_fallthru
      _
    // Predicated region
    $region46: #{tpu_custom_call.1} parent=1 // pred_check
      _
    $region47: #{tpu_custom_call.1} parent=1 // pred_check_branch
      %83 = sbr.rel (0) target = $region49
    $region48: #{tpu_custom_call.1} parent=1 // pred_region
      %84 = dma.done [#allocation12], 8192
    $region49: #{tpu_custom_call.1} parent=1 // pred_fallthru
      _
    // Predicated region
    $region50: #{tpu_custom_call.1} parent=1 // pred_check
      _
    $region51: #{tpu_custom_call.1} parent=1 // pred_check_branch
      %86 = sbr.rel (0) target = $region53
    $region52: #{tpu_custom_call.1} parent=1 // pred_region
      %87 = dma.done [#allocation15], 2048
    $region53: #{tpu_custom_call.1} parent=1 // pred_fallthru
      _
    %p88 = scmp.eq.s32.totalorder 0, 0
    // Predicated region
    $region54: #{tpu_custom_call.1} parent=1 // pred_check
      %p89 = pneg %p88
    $region55: #{tpu_custom_call.1} parent=1 // pred_check_branch
      %91 = sbr.rel (%p89) target = $region57
    $region56: #{tpu_custom_call.1} parent=1 // pred_region
      %92 = vst [vmem:[#allocation2] sm:$0xff] 0.0
      %93 = vst [vmem:[#allocation3] sm:$0xff] 0.0
      %94 = vst [vmem:[#allocation4] sm:$0xff] 0.0
      %95 = vst [vmem:[#allocation5] sm:$0xff] 0.0
    $region57: #{tpu_custom_call.1} parent=1 // pred_fallthru
      _
    %v96 = vld [vmem:[%s0] sm:$0xff]
    %v97 = vld [vmem:[%s0 + $0x8] sm:$0xff]
    %v98 = vld [vmem:[%s0 + $0x10] sm:$0xff]
    %v99 = vld [vmem:[%s0 + $0x18] sm:$0xff]
    %v100 = vld [vmem:[%s0 + $0x20] sm:$0xff]
    %v101 = vld [vmem:[%s0 + $0x28] sm:$0xff]
    %v102 = vld [vmem:[%s0 + $0x30] sm:$0xff]
    %v103 = vld [vmem:[%s0 + $0x38] sm:$0xff]
    %v104 = vld [vmem:[%s1] sm:$0xff]
    %v105 = vld [vmem:[%s1 + $0x8] sm:$0xff]
    %v106 = vld [vmem:[%s1 + $0x10] sm:$0xff]
    %v107 = vld [vmem:[%s1 + $0x18] sm:$0xff]
    %v108 = vld [vmem:[%s1 + $0x20] sm:$0xff]
    %v109 = vld [vmem:[%s1 + $0x28] sm:$0xff]
    %v110 = vld [vmem:[%s1 + $0x30] sm:$0xff]
    %v111 = vld [vmem:[%s1 + $0x38] sm:$0xff]
    %v112 = vld [vmem:[%s3] sm:$0xf]
    %v114 = vlaneseq
    %v115 = vshrl.u32 %v114, 7
    %v116 = vsub.s32 0, %v115
    %v117 = vrot.slane %v112, %v116
    %v118 = vlaneseq
    %v119 = vshrl.u32 %v118, 7
    %v120 = vsub.s32 1, %v119
    %v121 = vrot.slane %v112, %v120
    %v122 = vlaneseq
    %v123 = vshrl.u32 %v122, 7
    %v124 = vsub.s32 2, %v123
    %v125 = vrot.slane %v112, %v124
    %v126 = vlaneseq
    %v127 = vshrl.u32 %v126, 7
    %v128 = vsub.s32 3, %v127
    %v129 = vrot.slane %v112, %v128
    %vm134 = vcmask 130048
    %v136 = vsel %vm134, %v96, 0
    %v139 = vsel %vm134, %v97, 0
    %v142 = vsel %vm134, %v98, 0
    %v145 = vsel %vm134, %v99, 0
    %v148 = vsel %vm134, %v100, 0
    %v151 = vsel %vm134, %v101, 0
    %v154 = vsel %vm134, %v102, 0
    %v157 = vsel %vm134, %v103, 0
    %159 = vmatprep.subr.mxu0 %v105
    %160 = vmatpush1.msra.mxu0 %v104
    %161 = vmatprep.subr.mxu0 %v109
    %162 = vmatpush1.msra.mxu0 %v108
    %163 = vmatprep.subr.mxu0 0.0
    %164 = vmatpush1.msra.mxu0 0.0
    %165 = vmatprep.subr.mxu0 0.0
    %166 = vmatpush1.msra.mxu0 0.0
    %167 = vmatprep.subr.mxu0 0.0
    %168 = vmatpush1.msra.mxu0 0.0
    %169 = vmatprep.subr.mxu0 0.0
    %170 = vmatpush1.msra.mxu0 0.0
    %171 = vmatprep.subr.mxu0 0.0
    %172 = vmatpush1.msra.mxu0 0.0
    %173 = vmatprep.subr.mxu0 0.0
    %174 = vmatpush1.msra.mxu0 0.0
    %175 = vmatprep.subr.mxu0 0.0
    %176 = vmatpush1.msra.mxu0 0.0
    %177 = vmatprep.subr.mxu0 0.0
    %178 = vmatpush1.msra.mxu0 0.0
    %179 = vmatprep.subr.mxu0 0.0
    %180 = vmatpush1.msra.mxu0 0.0
    %181 = vmatprep.subr.mxu0 0.0
    %182 = vmatpush1.msra.mxu0 0.0
    %183 = vmatprep.subr.mxu0 0.0
    %184 = vmatpush1.msra.mxu0 0.0
    %185 = vmatprep.subr.mxu0 0.0
    %186 = vmatpush1.msra.mxu0 0.0
    %187 = vmatprep.subr.mxu0 0.0
    %188 = vmatpush1.msra.mxu0 0.0
    %189 = vmatprep.subr.mxu0 0.0
    %190 = vmatpush1.msra.mxu0 0.0
    %191 = vmatprep.subr.mxu0 0.0
    %192 = vmatpush1.msra.mxu0 0.0
    %193 = vmatprep.subr.mxu0 0.0
    %194 = vmatpush1.msra.mxu0 0.0
    %195 = vmatprep.subr.mxu0 0.0
    %196 = vmatpush1.msra.mxu0 0.0
    %197 = vmatprep.subr.mxu0 0.0
    %198 = vmatpush1.msra.mxu0 0.0
    %199 = vmatprep.subr.mxu0 0.0
    %200 = vmatpush1.msra.mxu0 0.0
    %201 = vmatprep.subr.mxu0 0.0
    %202 = vmatpush1.msra.mxu0 0.0
    %203 = vmatprep.subr.mxu0 0.0
    %204 = vmatpush1.msra.mxu0 0.0
    %205 = vmatprep.subr.mxu0 0.0
    %206 = vmatpush1.msra.mxu0 0.0
    %207 = vmatprep.subr.mxu0 0.0
    %208 = vmatpush1.msra.mxu0 0.0
    %209 = vmatprep.subr.mxu0 0.0
    %210 = vmatpush1.msra.mxu0 0.0
    %211 = vmatprep.subr.mxu0 0.0
    %212 = vmatpush1.msra.mxu0 0.0
    %213 = vmatprep.subr.mxu0 0.0
    %214 = vmatpush1.msra.mxu0 0.0
    %215 = vmatprep.subr.mxu0 0.0
    %216 = vmatpush1.msra.mxu0 0.0
    %217 = vmatprep.subr.mxu0 0.0
    %218 = vmatpush1.msra.mxu0 0.0
    %219 = vmatprep.subr.mxu0 0.0
    %220 = vmatpush1.msra.mxu0 0.0
    %221 = vmatprep.subr.mxu0 0.0
    %222 = vmatpush1.msra.mxu0 0.0
    %223 = vmatprep.mubr.f32.mxu0 0.0
    %224 = vmatmul.mubr.f32.gmra.mrb[0].mxu0 %v136
    %v225 = vpop.f32.mrb[0].mxu0
    %v226 = vadd.f32 %v117, %v225
    %v227 = vpop.f32.mrb[0].mxu0
    %v228 = vadd.f32 %v121, %v227
    %229 = vmatprep.mubr.f32.mxu0 0.0
    %230 = vmatmul.mubr.f32.gmra.mrb[0].mxu0 %v139
    %v231 = vpop.f32.mrb[0].mxu0
    %v232 = vadd.f32 %v117, %v231
    %v233 = vpop.f32.mrb[0].mxu0
    %v234 = vadd.f32 %v121, %v233
    %235 = vmatprep.mubr.f32.mxu0 0.0
    %236 = vmatmul.mubr.f32.gmra.mrb[0].mxu0 %v142
    %v237 = vpop.f32.mrb[0].mxu0
    %v238 = vadd.f32 %v117, %v237
    %v239 = vpop.f32.mrb[0].mxu0
    %v240 = vadd.f32 %v121, %v239
    %241 = vmatprep.mubr.f32.mxu0 0.0
    %242 = vmatmul.mubr.f32.gmra.mrb[0].mxu0 %v145
    %v243 = vpop.f32.mrb[0].mxu0
    %v244 = vadd.f32 %v117, %v243
    %v245 = vpop.f32.mrb[0].mxu0
    %v246 = vadd.f32 %v121, %v245
    %247 = vmatprep.mubr.f32.mxu0 0.0
    %248 = vmatmul.mubr.f32.gmra.mrb[0].mxu0 %v148
    %v249 = vpop.f32.mrb[0].mxu0
    %v250 = vadd.f32 %v117, %v249
    %v251 = vpop.f32.mrb[0].mxu0
    %v252 = vadd.f32 %v121, %v251
    %253 = vmatprep.mubr.f32.mxu0 0.0
    %254 = vmatmul.mubr.f32.gmra.mrb[0].mxu0 %v151
    %v255 = vpop.f32.mrb[0].mxu0
    %v256 = vadd.f32 %v117, %v255
    %v257 = vpop.f32.mrb[0].mxu0
    %v258 = vadd.f32 %v121, %v257
    %259 = vmatprep.mubr.f32.mxu0 0.0
    %260 = vmatmul.mubr.f32.gmra.mrb[0].mxu0 %v154
    %v261 = vpop.f32.mrb[0].mxu0
    %v262 = vadd.f32 %v117, %v261
    %v263 = vpop.f32.mrb[0].mxu0
    %v264 = vadd.f32 %v121, %v263
    %265 = vmatprep.mubr.f32.mxu0 0.0
    %266 = vmatmul.mubr.f32.gmra.mrb[0].mxu0 %v157
    %v267 = vpop.f32.mrb[0].mxu0
    %v268 = vadd.f32 %v117, %v267
    %v269 = vpop.f32.mrb[0].mxu0
    %v270 = vadd.f32 %v121, %v269
    %271 = vdwg.mxu0
    %272 = vmatprep.subr.mxu0 %v107
    %273 = vmatpush1.msra.mxu0 %v106
    %274 = vmatprep.subr.mxu0 %v111
    %275 = vmatpush1.msra.mxu0 %v110
    %276 = vmatprep.subr.mxu0 0.0
    %277 = vmatpush1.msra.mxu0 0.0
    %278 = vmatprep.subr.mxu0 0.0
    %279 = vmatpush1.msra.mxu0 0.0
    %280 = vmatprep.subr.mxu0 0.0
    %281 = vmatpush1.msra.mxu0 0.0
    %282 = vmatprep.subr.mxu0 0.0
    %283 = vmatpush1.msra.mxu0 0.0
    %284 = vmatprep.subr.mxu0 0.0
    %285 = vmatpush1.msra.mxu0 0.0
    %286 = vmatprep.subr.mxu0 0.0
    %287 = vmatpush1.msra.mxu0 0.0
    %288 = vmatprep.subr.mxu0 0.0
    %289 = vmatpush1.msra.mxu0 0.0
    %290 = vmatprep.subr.mxu0 0.0
    %291 = vmatpush1.msra.mxu0 0.0
    %292 = vmatprep.subr.mxu0 0.0
    %293 = vmatpush1.msra.mxu0 0.0
    %294 = vmatprep.subr.mxu0 0.0
    %295 = vmatpush1.msra.mxu0 0.0
    %296 = vmatprep.subr.mxu0 0.0
    %297 = vmatpush1.msra.mxu0 0.0
    %298 = vmatprep.subr.mxu0 0.0
    %299 = vmatpush1.msra.mxu0 0.0
    %300 = vmatprep.subr.mxu0 0.0
    %301 = vmatpush1.msra.mxu0 0.0
    %302 = vmatprep.subr.mxu0 0.0
    %303 = vmatpush1.msra.mxu0 0.0
    %304 = vmatprep.subr.mxu0 0.0
    %305 = vmatpush1.msra.mxu0 0.0
    %306 = vmatprep.subr.mxu0 0.0
    %307 = vmatpush1.msra.mxu0 0.0
    %308 = vmatprep.subr.mxu0 0.0
    %309 = vmatpush1.msra.mxu0 0.0
    %310 = vmatprep.subr.mxu0 0.0
    %311 = vmatpush1.msra.mxu0 0.0
    %312 = vmatprep.subr.mxu0 0.0
    %313 = vmatpush1.msra.mxu0 0.0
    %314 = vmatprep.subr.mxu0 0.0
    %315 = vmatpush1.msra.mxu0 0.0
    %316 = vmatprep.subr.mxu0 0.0
    %317 = vmatpush1.msra.mxu0 0.0
    %318 = vmatprep.subr.mxu0 0.0
    %319 = vmatpush1.msra.mxu0 0.0
    %320 = vmatprep.subr.mxu0 0.0
    %321 = vmatpush1.msra.mxu0 0.0
    %322 = vmatprep.subr.mxu0 0.0
    %323 = vmatpush1.msra.mxu0 0.0
    %324 = vmatprep.subr.mxu0 0.0
    %325 = vmatpush1.msra.mxu0 0.0
    %326 = vmatprep.subr.mxu0 0.0
    %327 = vmatpush1.msra.mxu0 0.0
    %328 = vmatprep.subr.mxu0 0.0
    %329 = vmatpush1.msra.mxu0 0.0
    %330 = vmatprep.subr.mxu0 0.0
    %331 = vmatpush1.msra.mxu0 0.0
    %332 = vmatprep.subr.mxu0 0.0
    %333 = vmatpush1.msra.mxu0 0.0
    %334 = vmatprep.subr.mxu0 0.0
    %335 = vmatpush1.msra.mxu0 0.0
    %336 = vmatprep.mubr.f32.mxu0 0.0
    %337 = vmatmul.mubr.f32.gmra.mrb[0].mxu0 %v136
    %v338 = vpop.f32.mrb[0].mxu0
    %v339 = vadd.f32 %v125, %v338
    %v340 = vpop.f32.mrb[0].mxu0
    %v341 = vadd.f32 %v129, %v340
    %342 = vmatprep.mubr.f32.mxu0 0.0
    %343 = vmatmul.mubr.f32.gmra.mrb[0].mxu0 %v139
    %v344 = vpop.f32.mrb[0].mxu0
    %v345 = vadd.f32 %v125, %v344
    %v346 = vpop.f32.mrb[0].mxu0
    %v347 = vadd.f32 %v129, %v346
    %348 = vmatprep.mubr.f32.mxu0 0.0
    %349 = vmatmul.mubr.f32.gmra.mrb[0].mxu0 %v142
    %v350 = vpop.f32.mrb[0].mxu0
    %v351 = vadd.f32 %v125, %v350
    %v352 = vpop.f32.mrb[0].mxu0
    %v353 = vadd.f32 %v129, %v352
    %354 = vmatprep.mubr.f32.mxu0 0.0
    %355 = vmatmul.mubr.f32.gmra.mrb[0].mxu0 %v145
    %v356 = vpop.f32.mrb[0].mxu0
    %v357 = vadd.f32 %v125, %v356
    %v358 = vpop.f32.mrb[0].mxu0
    %v359 = vadd.f32 %v129, %v358
    %360 = vmatprep.mubr.f32.mxu0 0.0
    %361 = vmatmul.mubr.f32.gmra.mrb[0].mxu0 %v148
    %v362 = vpop.f32.mrb[0].mxu0
    %v363 = vadd.f32 %v125, %v362
    %v364 = vpop.f32.mrb[0].mxu0
    %v365 = vadd.f32 %v129, %v364
    %366 = vmatprep.mubr.f32.mxu0 0.0
    %367 = vmatmul.mubr.f32.gmra.mrb[0].mxu0 %v151
    %v368 = vpop.f32.mrb[0].mxu0
    %v369 = vadd.f32 %v125, %v368
    %v370 = vpop.f32.mrb[0].mxu0
    %v371 = vadd.f32 %v129, %v370
    %372 = vmatprep.mubr.f32.mxu0 0.0
    %373 = vmatmul.mubr.f32.gmra.mrb[0].mxu0 %v154
    %v374 = vpop.f32.mrb[0].mxu0
    %v375 = vadd.f32 %v125, %v374
    %v376 = vpop.f32.mrb[0].mxu0
    %v377 = vadd.f32 %v129, %v376
    %378 = vmatprep.mubr.f32.mxu0 0.0
    %379 = vmatmul.mubr.f32.gmra.mrb[0].mxu0 %v157
    %v380 = vpop.f32.mrb[0].mxu0
    %v381 = vadd.f32 %v125, %v380
    %v382 = vpop.f32.mrb[0].mxu0
    %v383 = vadd.f32 %v129, %v382
    %384 = vdwg.mxu0
    %385 = vst [vmem:[#allocation6] sm:$0xff] %v226
    %386 = vst [vmem:[#allocation6 + $0x8] sm:$0xff] %v228
    %387 = vst [vmem:[#allocation6 + $0x10] sm:$0xff] %v339
    %388 = vst [vmem:[#allocation6 + $0x18] sm:$0xff] %v341
    %389 = vst [vmem:[#allocation6 + $0x20] sm:$0xff] %v232
    %390 = vst [vmem:[#allocation6 + $0x28] sm:$0xff] %v234
    %391 = vst [vmem:[#allocation6 + $0x30] sm:$0xff] %v345
    %392 = vst [vmem:[#allocation6 + $0x38] sm:$0xff] %v347
    %393 = vst [vmem:[#allocation6 + $0x40] sm:$0xff] %v238
    %394 = vst [vmem:[#allocation6 + $0x48] sm:$0xff] %v240
    %395 = vst [vmem:[#allocation6 + $0x50] sm:$0xff] %v351
    %396 = vst [vmem:[#allocation6 + $0x58] sm:$0xff] %v353
    %397 = vst [vmem:[#allocation6 + $0x60] sm:$0xff] %v244
    %398 = vst [vmem:[#allocation6 + $0x68] sm:$0xff] %v246
    %399 = vst [vmem:[#allocation6 + $0x70] sm:$0xff] %v357
    %400 = vst [vmem:[#allocation6 + $0x78] sm:$0xff] %v359
    %401 = vst [vmem:[#allocation6 + $0x80] sm:$0xff] %v250
    %402 = vst [vmem:[#allocation6 + $0x88] sm:$0xff] %v252
    %403 = vst [vmem:[#allocation6 + $0x90] sm:$0xff] %v363
    %404 = vst [vmem:[#allocation6 + $0x98] sm:$0xff] %v365
    %405 = vst [vmem:[#allocation6 + $0xa0] sm:$0xff] %v256
    %406 = vst [vmem:[#allocation6 + $0xa8] sm:$0xff] %v258
    %407 = vst [vmem:[#allocation6 + $0xb0] sm:$0xff] %v369
    %408 = vst [vmem:[#allocation6 + $0xb8] sm:$0xff] %v371
    %409 = vst [vmem:[#allocation6 + $0xc0] sm:$0xff] %v262
    %410 = vst [vmem:[#allocation6 + $0xc8] sm:$0xff] %v264
    %411 = vst [vmem:[#allocation6 + $0xd0] sm:$0xff] %v375
    %412 = vst [vmem:[#allocation6 + $0xd8] sm:$0xff] %v377
    %413 = vst [vmem:[#allocation6 + $0xe0] sm:$0xff] %v268
    %414 = vst [vmem:[#allocation6 + $0xe8] sm:$0xff] %v270
    %415 = vst [vmem:[#allocation6 + $0xf0] sm:$0xff] %v381
    %416 = vst [vmem:[#allocation6 + $0xf8] sm:$0xff] %v383
    %v417 = vld [vmem:[%s6] sm:$0xf]
    %v419 = vlaneseq
    %v420 = vshrl.u32 %v419, 7
    %v421 = vsub.s32 0, %v420
    %v422 = vrot.slane %v417, %v421
    %v423 = vlaneseq
    %v424 = vshrl.u32 %v423, 7
    %v425 = vsub.s32 1, %v424
    %v426 = vrot.slane %v417, %v425
    %v427 = vlaneseq
    %v428 = vshrl.u32 %v427, 7
    %v429 = vsub.s32 2, %v428
    %v430 = vrot.slane %v417, %v429
    %v431 = vlaneseq
    %v432 = vshrl.u32 %v431, 7
    %v433 = vsub.s32 3, %v432
    %v434 = vrot.slane %v417, %v433
    %v439 = vld [vmem:[#allocation2] sm:$0xff]
    %v440 = vld [vmem:[#allocation3] sm:$0xff]
    %v441 = vld [vmem:[#allocation4] sm:$0xff]
    %v442 = vld [vmem:[#allocation5] sm:$0xff]
    %s443 = smul.u32 0, 4
    %s444 = smul.addr %s443, 8
    %s445 = scalar_lea.vmem [#allocation6], %s444
    %v446 = vld [vmem:[%s445] sm:$0xff]
    %v447 = vld [vmem:[%s445 + $0x8] sm:$0xff]
    %v448 = vld [vmem:[%s445 + $0x10] sm:$0xff]
    %v449 = vld [vmem:[%s445 + $0x18] sm:$0xff]
    %v450 = vld [vmem:[#allocation8] sm:$0xff]
    %v451 = vld [vmem:[#allocation8 + $0x8] sm:$0xff]
    %v452 = vld [vmem:[#allocation8 + $0x10] sm:$0xff]
    %v453 = vld [vmem:[#allocation8 + $0x18] sm:$0xff]
    %v454 = vld [vmem:[#allocation8 + $0x20] sm:$0xff]
    %v455 = vld [vmem:[#allocation8 + $0x28] sm:$0xff]
    %v456 = vld [vmem:[#allocation8 + $0x30] sm:$0xff]
    %v457 = vld [vmem:[#allocation8 + $0x38] sm:$0xff]
    %v458 = vld [vmem:[#allocation8 + $0x40] sm:$0xff]
    %v459 = vld [vmem:[#allocation8 + $0x48] sm:$0xff]
    %v460 = vld [vmem:[#allocation8 + $0x50] sm:$0xff]
    %v461 = vld [vmem:[#allocation8 + $0x58] sm:$0xff]
    %v462 = vld [vmem:[#allocation8 + $0x60] sm:$0xff]
    %v463 = vld [vmem:[#allocation8 + $0x68] sm:$0xff]
    %v464 = vld [vmem:[#allocation8 + $0x70] sm:$0xff]
    %v465 = vld [vmem:[#allocation8 + $0x78] sm:$0xff]
    %v466 = vld [vmem:[#allocation8 + $0x80] sm:$0xff]
    %v467 = vld [vmem:[#allocation8 + $0x88] sm:$0xff]
    %v468 = vld [vmem:[#allocation8 + $0x90] sm:$0xff]
    %v469 = vld [vmem:[#allocation8 + $0x98] sm:$0xff]
    %v470 = vld [vmem:[#allocation8 + $0xa0] sm:$0xff]
    %v471 = vld [vmem:[#allocation8 + $0xa8] sm:$0xff]
    %v472 = vld [vmem:[#allocation8 + $0xb0] sm:$0xff]
    %v473 = vld [vmem:[#allocation8 + $0xb8] sm:$0xff]
    %v474 = vld [vmem:[#allocation8 + $0xc0] sm:$0xff]
    %v475 = vld [vmem:[#allocation8 + $0xc8] sm:$0xff]
    %v476 = vld [vmem:[#allocation8 + $0xd0] sm:$0xff]
    %v477 = vld [vmem:[#allocation8 + $0xd8] sm:$0xff]
    %v478 = vld [vmem:[#allocation8 + $0xe0] sm:$0xff]
    %v479 = vld [vmem:[#allocation8 + $0xe8] sm:$0xff]
    %v480 = vld [vmem:[#allocation8 + $0xf0] sm:$0xff]
    %v481 = vld [vmem:[#allocation8 + $0xf8] sm:$0xff]
    %v482 = vld [vmem:[#allocation8 + $0x100] sm:$0xff]
    %v483 = vld [vmem:[#allocation8 + $0x108] sm:$0xff]
    %v484 = vld [vmem:[#allocation8 + $0x110] sm:$0xff]
    %v485 = vld [vmem:[#allocation8 + $0x118] sm:$0xff]
    %v486 = vld [vmem:[#allocation8 + $0x120] sm:$0xff]
    %v487 = vld [vmem:[#allocation8 + $0x128] sm:$0xff]
    %v488 = vld [vmem:[#allocation8 + $0x130] sm:$0xff]
    %v489 = vld [vmem:[#allocation8 + $0x138] sm:$0xff]
    %v490 = vld [vmem:[#allocation8 + $0x140] sm:$0xff]
    %v491 = vld [vmem:[#allocation8 + $0x148] sm:$0xff]
    %v492 = vld [vmem:[#allocation8 + $0x150] sm:$0xff]
    %v493 = vld [vmem:[#allocation8 + $0x158] sm:$0xff]
    %v494 = vld [vmem:[#allocation8 + $0x160] sm:$0xff]
    %v495 = vld [vmem:[#allocation8 + $0x168] sm:$0xff]
    %v496 = vld [vmem:[#allocation8 + $0x170] sm:$0xff]
    %v497 = vld [vmem:[#allocation8 + $0x178] sm:$0xff]
    %v498 = vld [vmem:[#allocation8 + $0x180] sm:$0xff]
    %v499 = vld [vmem:[#allocation8 + $0x188] sm:$0xff]
    %v500 = vld [vmem:[#allocation8 + $0x190] sm:$0xff]
    %v501 = vld [vmem:[#allocation8 + $0x198] sm:$0xff]
    %v502 = vld [vmem:[#allocation8 + $0x1a0] sm:$0xff]
    %v503 = vld [vmem:[#allocation8 + $0x1a8] sm:$0xff]
    %v504 = vld [vmem:[#allocation8 + $0x1b0] sm:$0xff]
    %v505 = vld [vmem:[#allocation8 + $0x1b8] sm:$0xff]
    %v506 = vld [vmem:[#allocation8 + $0x1c0] sm:$0xff]
    %v507 = vld [vmem:[#allocation8 + $0x1c8] sm:$0xff]
    %v508 = vld [vmem:[#allocation8 + $0x1d0] sm:$0xff]
    %v509 = vld [vmem:[#allocation8 + $0x1d8] sm:$0xff]
    %v510 = vld [vmem:[#allocation8 + $0x1e0] sm:$0xff]
    %v511 = vld [vmem:[#allocation8 + $0x1e8] sm:$0xff]
    %v512 = vld [vmem:[#allocation8 + $0x1f0] sm:$0xff]
    %v513 = vld [vmem:[#allocation8 + $0x1f8] sm:$0xff]
    %514 = vmatprep.subr.mxu0 %v451
    %515 = vmatpush1.msra.mxu0 %v450
    %516 = vmatprep.subr.mxu0 %v455
    %517 = vmatpush1.msra.mxu0 %v454
    %518 = vmatprep.subr.mxu0 %v459
    %519 = vmatpush1.msra.mxu0 %v458
    %520 = vmatprep.subr.mxu0 %v463
    %521 = vmatpush1.msra.mxu0 %v462
    %522 = vmatprep.subr.mxu0 %v467
    %523 = vmatpush1.msra.mxu0 %v466
    %524 = vmatprep.subr.mxu0 %v471
    %525 = vmatpush1.msra.mxu0 %v470
    %526 = vmatprep.subr.mxu0 %v475
    %527 = vmatpush1.msra.mxu0 %v474
    %528 = vmatprep.subr.mxu0 %v479
    %529 = vmatpush1.msra.mxu0 %v478
    %530 = vmatprep.subr.mxu0 %v483
    %531 = vmatpush1.msra.mxu0 %v482
    %532 = vmatprep.subr.mxu0 %v487
    %533 = vmatpush1.msra.mxu0 %v486
    %534 = vmatprep.subr.mxu0 %v491
    %535 = vmatpush1.msra.mxu0 %v490
    %536 = vmatprep.subr.mxu0 %v495
    %537 = vmatpush1.msra.mxu0 %v494
    %538 = vmatprep.subr.mxu0 %v499
    %539 = vmatpush1.msra.mxu0 %v498
    %540 = vmatprep.subr.mxu0 %v503
    %541 = vmatpush1.msra.mxu0 %v502
    %542 = vmatprep.subr.mxu0 %v507
    %543 = vmatpush1.msra.mxu0 %v506
    %544 = vmatprep.subr.mxu0 %v511
    %545 = vmatpush1.msra.mxu0 %v510
    %546 = vmatprep.subr.mxu0 0.0
    %547 = vmatpush1.msra.mxu0 0.0
    %548 = vmatprep.subr.mxu0 0.0
    %549 = vmatpush1.msra.mxu0 0.0
    %550 = vmatprep.subr.mxu0 0.0
    %551 = vmatpush1.msra.mxu0 0.0
    %552 = vmatprep.subr.mxu0 0.0
    %553 = vmatpush1.msra.mxu0 0.0
    %554 = vmatprep.subr.mxu0 0.0
    %555 = vmatpush1.msra.mxu0 0.0
    %556 = vmatprep.subr.mxu0 0.0
    %557 = vmatpush1.msra.mxu0 0.0
    %558 = vmatprep.subr.mxu0 0.0
    %559 = vmatpush1.msra.mxu0 0.0
    %560 = vmatprep.subr.mxu0 0.0
    %561 = vmatpush1.msra.mxu0 0.0
    %562 = vmatprep.subr.mxu0 0.0
    %563 = vmatpush1.msra.mxu0 0.0
    %564 = vmatprep.subr.mxu0 0.0
    %565 = vmatpush1.msra.mxu0 0.0
    %566 = vmatprep.subr.mxu0 0.0
    %567 = vmatpush1.msra.mxu0 0.0
    %568 = vmatprep.subr.mxu0 0.0
    %569 = vmatpush1.msra.mxu0 0.0
    %570 = vmatprep.subr.mxu0 0.0
    %571 = vmatpush1.msra.mxu0 0.0
    %572 = vmatprep.subr.mxu0 0.0
    %573 = vmatpush1.msra.mxu0 0.0
    %574 = vmatprep.subr.mxu0 0.0
    %575 = vmatpush1.msra.mxu0 0.0
    %576 = vmatprep.subr.mxu0 0.0
    %577 = vmatpush1.msra.mxu0 0.0
    %578 = vmatprep.mubr.f32.mxu0 0.0
    %579 = vmatmul.mubr.f32.gmra.mrb[0].mxu0 %v439
    %v580 = vpop.f32.mrb[0].mxu0
    %v581 = vadd.f32 0.0, %v580
    %v582 = vpop.f32.mrb[0].mxu0
    %v583 = vadd.f32 0.0, %v582
    %584 = vdwg.mxu0
    %585 = vmatprep.subr.mxu0 %v453
    %586 = vmatpush1.msra.mxu0 %v452
    %587 = vmatprep.subr.mxu0 %v457
    %588 = vmatpush1.msra.mxu0 %v456
    %589 = vmatprep.subr.mxu0 %v461
    %590 = vmatpush1.msra.mxu0 %v460
    %591 = vmatprep.subr.mxu0 %v465
    %592 = vmatpush1.msra.mxu0 %v464
    %593 = vmatprep.subr.mxu0 %v469
    %594 = vmatpush1.msra.mxu0 %v468
    %595 = vmatprep.subr.mxu0 %v473
    %596 = vmatpush1.msra.mxu0 %v472
    %597 = vmatprep.subr.mxu0 %v477
    %598 = vmatpush1.msra.mxu0 %v476
    %599 = vmatprep.subr.mxu0 %v481
    %600 = vmatpush1.msra.mxu0 %v480
    %601 = vmatprep.subr.mxu0 %v485
    %602 = vmatpush1.msra.mxu0 %v484
    %603 = vmatprep.subr.mxu0 %v489
    %604 = vmatpush1.msra.mxu0 %v488
    %605 = vmatprep.subr.mxu0 %v493
    %606 = vmatpush1.msra.mxu0 %v492
    %607 = vmatprep.subr.mxu0 %v497
    %608 = vmatpush1.msra.mxu0 %v496
    %609 = vmatprep.subr.mxu0 %v501
    %610 = vmatpush1.msra.mxu0 %v500
    %611 = vmatprep.subr.mxu0 %v505
    %612 = vmatpush1.msra.mxu0 %v504
    %613 = vmatprep.subr.mxu0 %v509
    %614 = vmatpush1.msra.mxu0 %v508
    %615 = vmatprep.subr.mxu0 %v513
    %616 = vmatpush1.msra.mxu0 %v512
    %617 = vmatprep.subr.mxu0 0.0
    %618 = vmatpush1.msra.mxu0 0.0
    %619 = vmatprep.subr.mxu0 0.0
    %620 = vmatpush1.msra.mxu0 0.0
    %621 = vmatprep.subr.mxu0 0.0
    %622 = vmatpush1.msra.mxu0 0.0
    %623 = vmatprep.subr.mxu0 0.0
    %624 = vmatpush1.msra.mxu0 0.0
    %625 = vmatprep.subr.mxu0 0.0
    %626 = vmatpush1.msra.mxu0 0.0
    %627 = vmatprep.subr.mxu0 0.0
    %628 = vmatpush1.msra.mxu0 0.0
    %629 = vmatprep.subr.mxu0 0.0
    %630 = vmatpush1.msra.mxu0 0.0
    %631 = vmatprep.subr.mxu0 0.0
    %632 = vmatpush1.msra.mxu0 0.0
    %633 = vmatprep.subr.mxu0 0.0
    %634 = vmatpush1.msra.mxu0 0.0
    %635 = vmatprep.subr.mxu0 0.0
    %636 = vmatpush1.msra.mxu0 0.0
    %637 = vmatprep.subr.mxu0 0.0
    %638 = vmatpush1.msra.mxu0 0.0
    %639 = vmatprep.subr.mxu0 0.0
    %640 = vmatpush1.msra.mxu0 0.0
    %641 = vmatprep.subr.mxu0 0.0
    %642 = vmatpush1.msra.mxu0 0.0
    %643 = vmatprep.subr.mxu0 0.0
    %644 = vmatpush1.msra.mxu0 0.0
    %645 = vmatprep.subr.mxu0 0.0
    %646 = vmatpush1.msra.mxu0 0.0
    %647 = vmatprep.subr.mxu0 0.0
    %648 = vmatpush1.msra.mxu0 0.0
    %649 = vmatprep.mubr.f32.mxu0 0.0
    %650 = vmatmul.mubr.f32.gmra.mrb[0].mxu0 %v439
    %v651 = vpop.f32.mrb[0].mxu0
    %v652 = vadd.f32 0.0, %v651
    %v653 = vpop.f32.mrb[0].mxu0
    %v654 = vadd.f32 0.0, %v653
    %655 = vdwg.mxu0
    %v656 = vadd.f32 %v446, %v581
    %v657 = vadd.f32 %v447, %v583
    %v658 = vadd.f32 %v448, %v652
    %v659 = vadd.f32 %v449, %v654
    %v660 = vxor.u32 %v656, 2147483648
    %v661 = vmul.f32 %v660, 1.442695
    %v662 = vpow.pop %v661
    %v663 = vadd.f32 %v662, 1.0
    %v664 = vrcp.pop %v663
    %v665 = vmul.f32 1.0, %v664
    %v666 = vxor.u32 %v657, 2147483648
    %v667 = vmul.f32 %v666, 1.442695
    %v668 = vpow.pop %v667
    %v669 = vadd.f32 %v668, 1.0
    %v670 = vrcp.pop %v669
    %v671 = vmul.f32 1.0, %v670
    %v672 = vtanh.pop %v658
    %v673 = vxor.u32 %v659, 2147483648
    %v674 = vmul.f32 %v673, 1.442695
    %v675 = vpow.pop %v674
    %v676 = vadd.f32 %v675, 1.0
    %v677 = vrcp.pop %v676
    %v678 = vmul.f32 1.0, %v677
    %v679 = vmul.f32 %v671, %v440
    %v680 = vmul.f32 %v665, %v672
    %v681 = vadd.f32 %v679, %v680
    %v682 = vtanh.pop %v681
    %v683 = vmul.f32 %v678, %v682
    %v684 = vld [vmem:[#allocation11] sm:$0xff]
    %v685 = vld [vmem:[#allocation11 + $0x8] sm:$0xff]
    %v686 = vld [vmem:[#allocation11 + $0x10] sm:$0xff]
    %v687 = vld [vmem:[#allocation11 + $0x18] sm:$0xff]
    %v688 = vld [vmem:[#allocation11 + $0x20] sm:$0xff]
    %v689 = vld [vmem:[#allocation11 + $0x28] sm:$0xff]
    %v690 = vld [vmem:[#allocation11 + $0x30] sm:$0xff]
    %v691 = vld [vmem:[#allocation11 + $0x38] sm:$0xff]
    %v692 = vld [vmem:[#allocation11 + $0x40] sm:$0xff]
    %v693 = vld [vmem:[#allocation11 + $0x48] sm:$0xff]
    %v694 = vld [vmem:[#allocation11 + $0x50] sm:$0xff]
    %v695 = vld [vmem:[#allocation11 + $0x58] sm:$0xff]
    %v696 = vld [vmem:[#allocation11 + $0x60] sm:$0xff]
    %v697 = vld [vmem:[#allocation11 + $0x68] sm:$0xff]
    %v698 = vld [vmem:[#allocation11 + $0x70] sm:$0xff]
    %v699 = vld [vmem:[#allocation11 + $0x78] sm:$0xff]
    %v700 = vld [vmem:[#allocation11 + $0x80] sm:$0xff]
    %v701 = vld [vmem:[#allocation11 + $0x88] sm:$0xff]
    %v702 = vld [vmem:[#allocation11 + $0x90] sm:$0xff]
    %v703 = vld [vmem:[#allocation11 + $0x98] sm:$0xff]
    %v704 = vld [vmem:[#allocation11 + $0xa0] sm:$0xff]
    %v705 = vld [vmem:[#allocation11 + $0xa8] sm:$0xff]
    %v706 = vld [vmem:[#allocation11 + $0xb0] sm:$0xff]
    %v707 = vld [vmem:[#allocation11 + $0xb8] sm:$0xff]
    %v708 = vld [vmem:[#allocation11 + $0xc0] sm:$0xff]
    %v709 = vld [vmem:[#allocation11 + $0xc8] sm:$0xff]
    %v710 = vld [vmem:[#allocation11 + $0xd0] sm:$0xff]
    %v711 = vld [vmem:[#allocation11 + $0xd8] sm:$0xff]
    %v712 = vld [vmem:[#allocation11 + $0xe0] sm:$0xff]
    %v713 = vld [vmem:[#allocation11 + $0xe8] sm:$0xff]
    %v714 = vld [vmem:[#allocation11 + $0xf0] sm:$0xff]
    %v715 = vld [vmem:[#allocation11 + $0xf8] sm:$0xff]
    %v716 = vld [vmem:[#allocation11 + $0x100] sm:$0xff]
    %v717 = vld [vmem:[#allocation11 + $0x108] sm:$0xff]
    %v718 = vld [vmem:[#allocation11 + $0x110] sm:$0xff]
    %v719 = vld [vmem:[#allocation11 + $0x118] sm:$0xff]
    %v720 = vld [vmem:[#allocation11 + $0x120] sm:$0xff]
    %v721 = vld [vmem:[#allocation11 + $0x128] sm:$0xff]
    %v722 = vld [vmem:[#allocation11 + $0x130] sm:$0xff]
    %v723 = vld [vmem:[#allocation11 + $0x138] sm:$0xff]
    %v724 = vld [vmem:[#allocation11 + $0x140] sm:$0xff]
    %v725 = vld [vmem:[#allocation11 + $0x148] sm:$0xff]
    %v726 = vld [vmem:[#allocation11 + $0x150] sm:$0xff]
    %v727 = vld [vmem:[#allocation11 + $0x158] sm:$0xff]
    %v728 = vld [vmem:[#allocation11 + $0x160] sm:$0xff]
    %v729 = vld [vmem:[#allocation11 + $0x168] sm:$0xff]
    %v730 = vld [vmem:[#allocation11 + $0x170] sm:$0xff]
    %v731 = vld [vmem:[#allocation11 + $0x178] sm:$0xff]
    %v732 = vld [vmem:[#allocation11 + $0x180] sm:$0xff]
    %v733 = vld [vmem:[#allocation11 + $0x188] sm:$0xff]
    %v734 = vld [vmem:[#allocation11 + $0x190] sm:$0xff]
    %v735 = vld [vmem:[#allocation11 + $0x198] sm:$0xff]
    %v736 = vld [vmem:[#allocation11 + $0x1a0] sm:$0xff]
    %v737 = vld [vmem:[#allocation11 + $0x1a8] sm:$0xff]
    %v738 = vld [vmem:[#allocation11 + $0x1b0] sm:$0xff]
    %v739 = vld [vmem:[#allocation11 + $0x1b8] sm:$0xff]
    %v740 = vld [vmem:[#allocation11 + $0x1c0] sm:$0xff]
    %v741 = vld [vmem:[#allocation11 + $0x1c8] sm:$0xff]
    %v742 = vld [vmem:[#allocation11 + $0x1d0] sm:$0xff]
    %v743 = vld [vmem:[#allocation11 + $0x1d8] sm:$0xff]
    %v744 = vld [vmem:[#allocation11 + $0x1e0] sm:$0xff]
    %v745 = vld [vmem:[#allocation11 + $0x1e8] sm:$0xff]
    %v746 = vld [vmem:[#allocation11 + $0x1f0] sm:$0xff]
    %v747 = vld [vmem:[#allocation11 + $0x1f8] sm:$0xff]
    %v748 = vld [vmem:[#allocation13] sm:$0xff]
    %v749 = vld [vmem:[#allocation13 + $0x8] sm:$0xff]
    %v750 = vld [vmem:[#allocation13 + $0x10] sm:$0xff]
    %v751 = vld [vmem:[#allocation13 + $0x18] sm:$0xff]
    %v752 = vld [vmem:[#allocation13 + $0x20] sm:$0xff]
    %v753 = vld [vmem:[#allocation13 + $0x28] sm:$0xff]
    %v754 = vld [vmem:[#allocation13 + $0x30] sm:$0xff]
    %v755 = vld [vmem:[#allocation13 + $0x38] sm:$0xff]
    %v756 = vld [vmem:[#allocation13 + $0x40] sm:$0xff]
    %v757 = vld [vmem:[#allocation13 + $0x48] sm:$0xff]
    %v758 = vld [vmem:[#allocation13 + $0x50] sm:$0xff]
    %v759 = vld [vmem:[#allocation13 + $0x58] sm:$0xff]
    %v760 = vld [vmem:[#allocation13 + $0x60] sm:$0xff]
    %v761 = vld [vmem:[#allocation13 + $0x68] sm:$0xff]
    %v762 = vld [vmem:[#allocation13 + $0x70] sm:$0xff]
    %v763 = vld [vmem:[#allocation13 + $0x78] sm:$0xff]
    %v764 = vld [vmem:[#allocation13 + $0x80] sm:$0xff]
    %v765 = vld [vmem:[#allocation13 + $0x88] sm:$0xff]
    %v766 = vld [vmem:[#allocation13 + $0x90] sm:$0xff]
    %v767 = vld [vmem:[#allocation13 + $0x98] sm:$0xff]
    %v768 = vld [vmem:[#allocation13 + $0xa0] sm:$0xff]
    %v769 = vld [vmem:[#allocation13 + $0xa8] sm:$0xff]
    %v770 = vld [vmem:[#allocation13 + $0xb0] sm:$0xff]
    %v771 = vld [vmem:[#allocation13 + $0xb8] sm:$0xff]
    %v772 = vld [vmem:[#allocation13 + $0xc0] sm:$0xff]
    %v773 = vld [vmem:[#allocation13 + $0xc8] sm:$0xff]
    %v774 = vld [vmem:[#allocation13 + $0xd0] sm:$0xff]
    %v775 = vld [vmem:[#allocation13 + $0xd8] sm:$0xff]
    %v776 = vld [vmem:[#allocation13 + $0xe0] sm:$0xff]
    %v777 = vld [vmem:[#allocation13 + $0xe8] sm:$0xff]
    %v778 = vld [vmem:[#allocation13 + $0xf0] sm:$0xff]
    %v779 = vld [vmem:[#allocation13 + $0xf8] sm:$0xff]
    %v780 = vld [vmem:[#allocation13 + $0x100] sm:$0xff]
    %v781 = vld [vmem:[#allocation13 + $0x108] sm:$0xff]
    %v782 = vld [vmem:[#allocation13 + $0x110] sm:$0xff]
    %v783 = vld [vmem:[#allocation13 + $0x118] sm:$0xff]
    %v784 = vld [vmem:[#allocation13 + $0x120] sm:$0xff]
    %v785 = vld [vmem:[#allocation13 + $0x128] sm:$0xff]
    %v786 = vld [vmem:[#allocation13 + $0x130] sm:$0xff]
    %v787 = vld [vmem:[#allocation13 + $0x138] sm:$0xff]
    %v788 = vld [vmem:[#allocation13 + $0x140] sm:$0xff]
    %v789 = vld [vmem:[#allocation13 + $0x148] sm:$0xff]
    %v790 = vld [vmem:[#allocation13 + $0x150] sm:$0xff]
    %v791 = vld [vmem:[#allocation13 + $0x158] sm:$0xff]
    %v792 = vld [vmem:[#allocation13 + $0x160] sm:$0xff]
    %v793 = vld [vmem:[#allocation13 + $0x168] sm:$0xff]
    %v794 = vld [vmem:[#allocation13 + $0x170] sm:$0xff]
    %v795 = vld [vmem:[#allocation13 + $0x178] sm:$0xff]
    %v796 = vld [vmem:[#allocation13 + $0x180] sm:$0xff]
    %v797 = vld [vmem:[#allocation13 + $0x188] sm:$0xff]
    %v798 = vld [vmem:[#allocation13 + $0x190] sm:$0xff]
    %v799 = vld [vmem:[#allocation13 + $0x198] sm:$0xff]
    %v800 = vld [vmem:[#allocation13 + $0x1a0] sm:$0xff]
    %v801 = vld [vmem:[#allocation13 + $0x1a8] sm:$0xff]
    %v802 = vld [vmem:[#allocation13 + $0x1b0] sm:$0xff]
    %v803 = vld [vmem:[#allocation13 + $0x1b8] sm:$0xff]
    %v804 = vld [vmem:[#allocation13 + $0x1c0] sm:$0xff]
    %v805 = vld [vmem:[#allocation13 + $0x1c8] sm:$0xff]
    %v806 = vld [vmem:[#allocation13 + $0x1d0] sm:$0xff]
    %v807 = vld [vmem:[#allocation13 + $0x1d8] sm:$0xff]
    %v808 = vld [vmem:[#allocation13 + $0x1e0] sm:$0xff]
    %v809 = vld [vmem:[#allocation13 + $0x1e8] sm:$0xff]
    %v810 = vld [vmem:[#allocation13 + $0x1f0] sm:$0xff]
    %v811 = vld [vmem:[#allocation13 + $0x1f8] sm:$0xff]
    %812 = vmatprep.subr.mxu0 %v749
    %813 = vmatpush1.msra.mxu0 %v748
    %814 = vmatprep.subr.mxu0 %v753
    %815 = vmatpush1.msra.mxu0 %v752
    %816 = vmatprep.subr.mxu0 %v757
    %817 = vmatpush1.msra.mxu0 %v756
    %818 = vmatprep.subr.mxu0 %v761
    %819 = vmatpush1.msra.mxu0 %v760
    %820 = vmatprep.subr.mxu0 %v765
    %821 = vmatpush1.msra.mxu0 %v764
    %822 = vmatprep.subr.mxu0 %v769
    %823 = vmatpush1.msra.mxu0 %v768
    %824 = vmatprep.subr.mxu0 %v773
    %825 = vmatpush1.msra.mxu0 %v772
    %826 = vmatprep.subr.mxu0 %v777
    %827 = vmatpush1.msra.mxu0 %v776
    %828 = vmatprep.subr.mxu0 %v781
    %829 = vmatpush1.msra.mxu0 %v780
    %830 = vmatprep.subr.mxu0 %v785
    %831 = vmatpush1.msra.mxu0 %v784
    %832 = vmatprep.subr.mxu0 %v789
    %833 = vmatpush1.msra.mxu0 %v788
    %834 = vmatprep.subr.mxu0 %v793
    %835 = vmatpush1.msra.mxu0 %v792
    %836 = vmatprep.subr.mxu0 %v797
    %837 = vmatpush1.msra.mxu0 %v796
    %838 = vmatprep.subr.mxu0 %v801
    %839 = vmatpush1.msra.mxu0 %v800
    %840 = vmatprep.subr.mxu0 %v805
    %841 = vmatpush1.msra.mxu0 %v804
    %842 = vmatprep.subr.mxu0 %v809
    %843 = vmatpush1.msra.mxu0 %v808
    %844 = vmatprep.subr.mxu0 0.0
    %845 = vmatpush1.msra.mxu0 0.0
    %846 = vmatprep.subr.mxu0 0.0
    %847 = vmatpush1.msra.mxu0 0.0
    %848 = vmatprep.subr.mxu0 0.0
    %849 = vmatpush1.msra.mxu0 0.0
    %850 = vmatprep.subr.mxu0 0.0
    %851 = vmatpush1.msra.mxu0 0.0
    %852 = vmatprep.subr.mxu0 0.0
    %853 = vmatpush1.msra.mxu0 0.0
    %854 = vmatprep.subr.mxu0 0.0
    %855 = vmatpush1.msra.mxu0 0.0
    %856 = vmatprep.subr.mxu0 0.0
    %857 = vmatpush1.msra.mxu0 0.0
    %858 = vmatprep.subr.mxu0 0.0
    %859 = vmatpush1.msra.mxu0 0.0
    %860 = vmatprep.subr.mxu0 0.0
    %861 = vmatpush1.msra.mxu0 0.0
    %862 = vmatprep.subr.mxu0 0.0
    %863 = vmatpush1.msra.mxu0 0.0
    %864 = vmatprep.subr.mxu0 0.0
    %865 = vmatpush1.msra.mxu0 0.0
    %866 = vmatprep.subr.mxu0 0.0
    %867 = vmatpush1.msra.mxu0 0.0
    %868 = vmatprep.subr.mxu0 0.0
    %869 = vmatpush1.msra.mxu0 0.0
    %870 = vmatprep.subr.mxu0 0.0
    %871 = vmatpush1.msra.mxu0 0.0
    %872 = vmatprep.subr.mxu0 0.0
    %873 = vmatpush1.msra.mxu0 0.0
    %874 = vmatprep.subr.mxu0 0.0
    %875 = vmatpush1.msra.mxu0 0.0
    %876 = vmatprep.mubr.f32.mxu0 0.0
    %877 = vmatmul.mubr.f32.gmra.mrb[0].mxu0 %v441
    %v878 = vpop.f32.mrb[0].mxu0
    %v879 = vadd.f32 0.0, %v878
    %v880 = vpop.f32.mrb[0].mxu0
    %v881 = vadd.f32 0.0, %v880
    %882 = vdwg.mxu0
    %883 = vmatprep.subr.mxu0 %v751
    %884 = vmatpush1.msra.mxu0 %v750
    %885 = vmatprep.subr.mxu0 %v755
    %886 = vmatpush1.msra.mxu0 %v754
    %887 = vmatprep.subr.mxu0 %v759
    %888 = vmatpush1.msra.mxu0 %v758
    %889 = vmatprep.subr.mxu0 %v763
    %890 = vmatpush1.msra.mxu0 %v762
    %891 = vmatprep.subr.mxu0 %v767
    %892 = vmatpush1.msra.mxu0 %v766
    %893 = vmatprep.subr.mxu0 %v771
    %894 = vmatpush1.msra.mxu0 %v770
    %895 = vmatprep.subr.mxu0 %v775
    %896 = vmatpush1.msra.mxu0 %v774
    %897 = vmatprep.subr.mxu0 %v779
    %898 = vmatpush1.msra.mxu0 %v778
    %899 = vmatprep.subr.mxu0 %v783
    %900 = vmatpush1.msra.mxu0 %v782
    %901 = vmatprep.subr.mxu0 %v787
    %902 = vmatpush1.msra.mxu0 %v786
    %903 = vmatprep.subr.mxu0 %v791
    %904 = vmatpush1.msra.mxu0 %v790
    %905 = vmatprep.subr.mxu0 %v795
    %906 = vmatpush1.msra.mxu0 %v794
    %907 = vmatprep.subr.mxu0 %v799
    %908 = vmatpush1.msra.mxu0 %v798
    %909 = vmatprep.subr.mxu0 %v803
    %910 = vmatpush1.msra.mxu0 %v802
    %911 = vmatprep.subr.mxu0 %v807
    %912 = vmatpush1.msra.mxu0 %v806
    %913 = vmatprep.subr.mxu0 %v811
    %914 = vmatpush1.msra.mxu0 %v810
    %915 = vmatprep.subr.mxu0 0.0
    %916 = vmatpush1.msra.mxu0 0.0
    %917 = vmatprep.subr.mxu0 0.0
    %918 = vmatpush1.msra.mxu0 0.0
    %919 = vmatprep.subr.mxu0 0.0
    %920 = vmatpush1.msra.mxu0 0.0
    %921 = vmatprep.subr.mxu0 0.0
    %922 = vmatpush1.msra.mxu0 0.0
    %923 = vmatprep.subr.mxu0 0.0
    %924 = vmatpush1.msra.mxu0 0.0
    %925 = vmatprep.subr.mxu0 0.0
    %926 = vmatpush1.msra.mxu0 0.0
    %927 = vmatprep.subr.mxu0 0.0
    %928 = vmatpush1.msra.mxu0 0.0
    %929 = vmatprep.subr.mxu0 0.0
    %930 = vmatpush1.msra.mxu0 0.0
    %931 = vmatprep.subr.mxu0 0.0
    %932 = vmatpush1.msra.mxu0 0.0
    %933 = vmatprep.subr.mxu0 0.0
    %934 = vmatpush1.msra.mxu0 0.0
    %935 = vmatprep.subr.mxu0 0.0
    %936 = vmatpush1.msra.mxu0 0.0
    %937 = vmatprep.subr.mxu0 0.0
    %938 = vmatpush1.msra.mxu0 0.0
    %939 = vmatprep.subr.mxu0 0.0
    %940 = vmatpush1.msra.mxu0 0.0
    %941 = vmatprep.subr.mxu0 0.0
    %942 = vmatpush1.msra.mxu0 0.0
    %943 = vmatprep.subr.mxu0 0.0
    %944 = vmatpush1.msra.mxu0 0.0
    %945 = vmatprep.subr.mxu0 0.0
    %946 = vmatpush1.msra.mxu0 0.0
    %947 = vmatprep.mubr.f32.mxu0 0.0
    %948 = vmatmul.mubr.f32.gmra.mrb[0].mxu0 %v441
    %v949 = vpop.f32.mrb[0].mxu0
    %v950 = vadd.f32 0.0, %v949
    %v951 = vpop.f32.mrb[0].mxu0
    %v952 = vadd.f32 0.0, %v951
    %953 = vdwg.mxu0
    %954 = vmatprep.subr.mxu0 %v685
    %955 = vmatpush1.msra.mxu0 %v684
    %956 = vmatprep.subr.mxu0 %v689
    %957 = vmatpush1.msra.mxu0 %v688
    %958 = vmatprep.subr.mxu0 %v693
    %959 = vmatpush1.msra.mxu0 %v692
    %960 = vmatprep.subr.mxu0 %v697
    %961 = vmatpush1.msra.mxu0 %v696
    %962 = vmatprep.subr.mxu0 %v701
    %963 = vmatpush1.msra.mxu0 %v700
    %964 = vmatprep.subr.mxu0 %v705
    %965 = vmatpush1.msra.mxu0 %v704
    %966 = vmatprep.subr.mxu0 %v709
    %967 = vmatpush1.msra.mxu0 %v708
    %968 = vmatprep.subr.mxu0 %v713
    %969 = vmatpush1.msra.mxu0 %v712
    %970 = vmatprep.subr.mxu0 %v717
    %971 = vmatpush1.msra.mxu0 %v716
    %972 = vmatprep.subr.mxu0 %v721
    %973 = vmatpush1.msra.mxu0 %v720
    %974 = vmatprep.subr.mxu0 %v725
    %975 = vmatpush1.msra.mxu0 %v724
    %976 = vmatprep.subr.mxu0 %v729
    %977 = vmatpush1.msra.mxu0 %v728
    %978 = vmatprep.subr.mxu0 %v733
    %979 = vmatpush1.msra.mxu0 %v732
    %980 = vmatprep.subr.mxu0 %v737
    %981 = vmatpush1.msra.mxu0 %v736
    %982 = vmatprep.subr.mxu0 %v741
    %983 = vmatpush1.msra.mxu0 %v740
    %984 = vmatprep.subr.mxu0 %v745
    %985 = vmatpush1.msra.mxu0 %v744
    %986 = vmatprep.subr.mxu0 0.0
    %987 = vmatpush1.msra.mxu0 0.0
    %988 = vmatprep.subr.mxu0 0.0
    %989 = vmatpush1.msra.mxu0 0.0
    %990 = vmatprep.subr.mxu0 0.0
    %991 = vmatpush1.msra.mxu0 0.0
    %992 = vmatprep.subr.mxu0 0.0
    %993 = vmatpush1.msra.mxu0 0.0
    %994 = vmatprep.subr.mxu0 0.0
    %995 = vmatpush1.msra.mxu0 0.0
    %996 = vmatprep.subr.mxu0 0.0
    %997 = vmatpush1.msra.mxu0 0.0
    %998 = vmatprep.subr.mxu0 0.0
    %999 = vmatpush1.msra.mxu0 0.0
    %1000 = vmatprep.subr.mxu0 0.0
    %1001 = vmatpush1.msra.mxu0 0.0
    %1002 = vmatprep.subr.mxu0 0.0
    %1003 = vmatpush1.msra.mxu0 0.0
    %1004 = vmatprep.subr.mxu0 0.0
    %1005 = vmatpush1.msra.mxu0 0.0
    %1006 = vmatprep.subr.mxu0 0.0
    %1007 = vmatpush1.msra.mxu0 0.0
    %1008 = vmatprep.subr.mxu0 0.0
    %1009 = vmatpush1.msra.mxu0 0.0
    %1010 = vmatprep.subr.mxu0 0.0
    %1011 = vmatpush1.msra.mxu0 0.0
    %1012 = vmatprep.subr.mxu0 0.0
    %1013 = vmatpush1.msra.mxu0 0.0
    %1014 = vmatprep.subr.mxu0 0.0
    %1015 = vmatpush1.msra.mxu0 0.0
    %1016 = vmatprep.subr.mxu0 0.0
    %1017 = vmatpush1.msra.mxu0 0.0
    %1018 = vmatprep.mubr.f32.mxu0 0.0
    %1019 = vmatmul.mubr.f32.gmra.mrb[0].mxu0 %v683
    %v1020 = vpop.f32.mrb[0].mxu0
    %v1021 = vadd.f32 %v879, %v1020
    %v1022 = vpop.f32.mrb[0].mxu0
    %v1023 = vadd.f32 %v881, %v1022
    %1024 = vdwg.mxu0
    %1025 = vmatprep.subr.mxu0 %v687
    %1026 = vmatpush1.msra.mxu0 %v686
    %1027 = vmatprep.subr.mxu0 %v691
    %1028 = vmatpush1.msra.mxu0 %v690
    %1029 = vmatprep.subr.mxu0 %v695
    %1030 = vmatpush1.msra.mxu0 %v694
    %1031 = vmatprep.subr.mxu0 %v699
    %1032 = vmatpush1.msra.mxu0 %v698
    %1033 = vmatprep.subr.mxu0 %v703
    %1034 = vmatpush1.msra.mxu0 %v702
    %1035 = vmatprep.subr.mxu0 %v707
    %1036 = vmatpush1.msra.mxu0 %v706
    %1037 = vmatprep.subr.mxu0 %v711
    %1038 = vmatpush1.msra.mxu0 %v710
    %1039 = vmatprep.subr.mxu0 %v715
    %1040 = vmatpush1.msra.mxu0 %v714
    %1041 = vmatprep.subr.mxu0 %v719
    %1042 = vmatpush1.msra.mxu0 %v718
    %1043 = vmatprep.subr.mxu0 %v723
    %1044 = vmatpush1.msra.mxu0 %v722
    %1045 = vmatprep.subr.mxu0 %v727
    %1046 = vmatpush1.msra.mxu0 %v726
    %1047 = vmatprep.subr.mxu0 %v731
    %1048 = vmatpush1.msra.mxu0 %v730
    %1049 = vmatprep.subr.mxu0 %v735
    %1050 = vmatpush1.msra.mxu0 %v734
    %1051 = vmatprep.subr.mxu0 %v739
    %1052 = vmatpush1.msra.mxu0 %v738
    %1053 = vmatprep.subr.mxu0 %v743
    %1054 = vmatpush1.msra.mxu0 %v742
    %1055 = vmatprep.subr.mxu0 %v747
    %1056 = vmatpush1.msra.mxu0 %v746
    %1057 = vmatprep.subr.mxu0 0.0
    %1058 = vmatpush1.msra.mxu0 0.0
    %1059 = vmatprep.subr.mxu0 0.0
    %1060 = vmatpush1.msra.mxu0 0.0
    %1061 = vmatprep.subr.mxu0 0.0
    %1062 = vmatpush1.msra.mxu0 0.0
    %1063 = vmatprep.subr.mxu0 0.0
    %1064 = vmatpush1.msra.mxu0 0.0
    %1065 = vmatprep.subr.mxu0 0.0
    %1066 = vmatpush1.msra.mxu0 0.0
    %1067 = vmatprep.subr.mxu0 0.0
    %1068 = vmatpush1.msra.mxu0 0.0
    %1069 = vmatprep.subr.mxu0 0.0
    %1070 = vmatpush1.msra.mxu0 0.0
    %1071 = vmatprep.subr.mxu0 0.0
    %1072 = vmatpush1.msra.mxu0 0.0
    %1073 = vmatprep.subr.mxu0 0.0
    %1074 = vmatpush1.msra.mxu0 0.0
    %1075 = vmatprep.subr.mxu0 0.0
    %1076 = vmatpush1.msra.mxu0 0.0
    %1077 = vmatprep.subr.mxu0 0.0
    %1078 = vmatpush1.msra.mxu0 0.0
    %1079 = vmatprep.subr.mxu0 0.0
    %1080 = vmatpush1.msra.mxu0 0.0
    %1081 = vmatprep.subr.mxu0 0.0
    %1082 = vmatpush1.msra.mxu0 0.0
    %1083 = vmatprep.subr.mxu0 0.0
    %1084 = vmatpush1.msra.mxu0 0.0
    %1085 = vmatprep.subr.mxu0 0.0
    %1086 = vmatpush1.msra.mxu0 0.0
    %1087 = vmatprep.subr.mxu0 0.0
    %1088 = vmatpush1.msra.mxu0 0.0
    %1089 = vmatprep.mubr.f32.mxu0 0.0
    %1090 = vmatmul.mubr.f32.gmra.mrb[0].mxu0 %v683
    %v1091 = vpop.f32.mrb[0].mxu0
    %v1092 = vadd.f32 %v950, %v1091
    %v1093 = vpop.f32.mrb[0].mxu0
    %v1094 = vadd.f32 %v952, %v1093
    %1095 = vdwg.mxu0
    %v1096 = vadd.f32 %v1021, %v422
    %v1097 = vadd.f32 %v1023, %v426
    %v1098 = vadd.f32 %v1092, %v430
    %v1099 = vadd.f32 %v1094, %v434
    %v1100 = vxor.u32 %v1096, 2147483648
    %v1101 = vmul.f32 %v1100, 1.442695
    %v1102 = vpow.pop %v1101
    %v1103 = vadd.f32 %v1102, 1.0
    %v1104 = vrcp.pop %v1103
    %v1105 = vmul.f32 1.0, %v1104
    %v1106 = vxor.u32 %v1097, 2147483648
    %v1107 = vmul.f32 %v1106, 1.442695
    %v1108 = vpow.pop %v1107
    %v1109 = vadd.f32 %v1108, 1.0
    %v1110 = vrcp.pop %v1109
    %v1111 = vmul.f32 1.0, %v1110
    %v1112 = vtanh.pop %v1098
    %v1113 = vxor.u32 %v1099, 2147483648
    %v1114 = vmul.f32 %v1113, 1.442695
    %v1115 = vpow.pop %v1114
    %v1116 = vadd.f32 %v1115, 1.0
    %v1117 = vrcp.pop %v1116
    %v1118 = vmul.f32 1.0, %v1117
    %v1119 = vmul.f32 %v1111, %v442
    %v1120 = vmul.f32 %v1105, %v1112
    %v1121 = vadd.f32 %v1119, %v1120
    %v1122 = vtanh.pop %v1121
    %v1123 = vmul.f32 %v1118, %v1122
    %1124 = vst [vmem:[#allocation7] sm:$0xff] %v1123
    %s1125 = smul.u32 1, 4
    %s1126 = smul.addr %s1125, 8
    %s1127 = scalar_lea.vmem [#allocation6], %s1126
    %v1128 = vld [vmem:[%s1127] sm:$0xff]
    %v1129 = vld [vmem:[%s1127 + $0x8] sm:$0xff]
    %v1130 = vld [vmem:[%s1127 + $0x10] sm:$0xff]
    %v1131 = vld [vmem:[%s1127 + $0x18] sm:$0xff]
    %v1132 = vld [vmem:[#allocation8] sm:$0xff]
    %v1133 = vld [vmem:[#allocation8 + $0x8] sm:$0xff]
    %v1134 = vld [vmem:[#allocation8 + $0x10] sm:$0xff]
    %v1135 = vld [vmem:[#allocation8 + $0x18] sm:$0xff]
    %v1136 = vld [vmem:[#allocation8 + $0x20] sm:$0xff]
    %v1137 = vld [vmem:[#allocation8 + $0x28] sm:$0xff]
    %v1138 = vld [vmem:[#allocation8 + $0x30] sm:$0xff]
    %v1139 = vld [vmem:[#allocation8 + $0x38] sm:$0xff]
    %v1140 = vld [vmem:[#allocation8 + $0x40] sm:$0xff]
    %v1141 = vld [vmem:[#allocation8 + $0x48] sm:$0xff]
    %v1142 = vld [vmem:[#allocation8 + $0x50] sm:$0xff]
    %v1143 = vld [vmem:[#allocation8 + $0x58] sm:$0xff]
    %v1144 = vld [vmem:[#allocation8 + $0x60] sm:$0xff]
    %v1145 = vld [vmem:[#allocation8 + $0x68] sm:$0xff]
    %v1146 = vld [vmem:[#allocation8 + $0x70] sm:$0xff]
    %v1147 = vld [vmem:[#allocation8 + $0x78] sm:$0xff]
    %v1148 = vld [vmem:[#allocation8 + $0x80] sm:$0xff]
    %v1149 = vld [vmem:[#allocation8 + $0x88] sm:$0xff]
    %v1150 = vld [vmem:[#allocation8 + $0x90] sm:$0xff]
    %v1151 = vld [vmem:[#allocation8 + $0x98] sm:$0xff]
    %v1152 = vld [vmem:[#allocation8 + $0xa0] sm:$0xff]
    %v1153 = vld [vmem:[#allocation8 + $0xa8] sm:$0xff]
    %v1154 = vld [vmem:[#allocation8 + $0xb0] sm:$0xff]
    %v1155 = vld [vmem:[#allocation8 + $0xb8] sm:$0xff]
    %v1156 = vld [vmem:[#allocation8 + $0xc0] sm:$0xff]
    %v1157 = vld [vmem:[#allocation8 + $0xc8] sm:$0xff]
    %v1158 = vld [vmem:[#allocation8 + $0xd0] sm:$0xff]
    %v1159 = vld [vmem:[#allocation8 + $0xd8] sm:$0xff]
    %v1160 = vld [vmem:[#allocation8 + $0xe0] sm:$0xff]
    %v1161 = vld [vmem:[#allocation8 + $0xe8] sm:$0xff]
    %v1162 = vld [vmem:[#allocation8 + $0xf0] sm:$0xff]
    %v1163 = vld [vmem:[#allocation8 + $0xf8] sm:$0xff]
    %v1164 = vld [vmem:[#allocation8 + $0x100] sm:$0xff]
    %v1165 = vld [vmem:[#allocation8 + $0x108] sm:$0xff]
    %v1166 = vld [vmem:[#allocation8 + $0x110] sm:$0xff]
    %v1167 = vld [vmem:[#allocation8 + $0x118] sm:$0xff]
    %v1168 = vld [vmem:[#allocation8 + $0x120] sm:$0xff]
    %v1169 = vld [vmem:[#allocation8 + $0x128] sm:$0xff]
    %v1170 = vld [vmem:[#allocation8 + $0x130] sm:$0xff]
    %v1171 = vld [vmem:[#allocation8 + $0x138] sm:$0xff]
    %v1172 = vld [vmem:[#allocation8 + $0x140] sm:$0xff]
    %v1173 = vld [vmem:[#allocation8 + $0x148] sm:$0xff]
    %v1174 = vld [vmem:[#allocation8 + $0x150] sm:$0xff]
    %v1175 = vld [vmem:[#allocation8 + $0x158] sm:$0xff]
    %v1176 = vld [vmem:[#allocation8 + $0x160] sm:$0xff]
    %v1177 = vld [vmem:[#allocation8 + $0x168] sm:$0xff]
    %v1178 = vld [vmem:[#allocation8 + $0x170] sm:$0xff]
    %v1179 = vld [vmem:[#allocation8 + $0x178] sm:$0xff]
    %v1180 = vld [vmem:[#allocation8 + $0x180] sm:$0xff]
    %v1181 = vld [vmem:[#allocation8 + $0x188] sm:$0xff]
    %v1182 = vld [vmem:[#allocation8 + $0x190] sm:$0xff]
    %v1183 = vld [vmem:[#allocation8 + $0x198] sm:$0xff]
    %v1184 = vld [vmem:[#allocation8 + $0x1a0] sm:$0xff]
    %v1185 = vld [vmem:[#allocation8 + $0x1a8] sm:$0xff]
    %v1186 = vld [vmem:[#allocation8 + $0x1b0] sm:$0xff]
    %v1187 = vld [vmem:[#allocation8 + $0x1b8] sm:$0xff]
    %v1188 = vld [vmem:[#allocation8 + $0x1c0] sm:$0xff]
    %v1189 = vld [vmem:[#allocation8 + $0x1c8] sm:$0xff]
    %v1190 = vld [vmem:[#allocation8 + $0x1d0] sm:$0xff]
    %v1191 = vld [vmem:[#allocation8 + $0x1d8] sm:$0xff]
    %v1192 = vld [vmem:[#allocation8 + $0x1e0] sm:$0xff]
    %v1193 = vld [vmem:[#allocation8 + $0x1e8] sm:$0xff]
    %v1194 = vld [vmem:[#allocation8 + $0x1f0] sm:$0xff]
    %v1195 = vld [vmem:[#allocation8 + $0x1f8] sm:$0xff]
    %1196 = vmatprep.subr.mxu0 %v1133
    %1197 = vmatpush1.msra.mxu0 %v1132
    %1198 = vmatprep.subr.mxu0 %v1137
    %1199 = vmatpush1.msra.mxu0 %v1136
    %1200 = vmatprep.subr.mxu0 %v1141
    %1201 = vmatpush1.msra.mxu0 %v1140
    %1202 = vmatprep.subr.mxu0 %v1145
    %1203 = vmatpush1.msra.mxu0 %v1144
    %1204 = vmatprep.subr.mxu0 %v1149
    %1205 = vmatpush1.msra.mxu0 %v1148
    %1206 = vmatprep.subr.mxu0 %v1153
    %1207 = vmatpush1.msra.mxu0 %v1152
    %1208 = vmatprep.subr.mxu0 %v1157
    %1209 = vmatpush1.msra.mxu0 %v1156
    %1210 = vmatprep.subr.mxu0 %v1161
    %1211 = vmatpush1.msra.mxu0 %v1160
    %1212 = vmatprep.subr.mxu0 %v1165
    %1213 = vmatpush1.msra.mxu0 %v1164
    %1214 = vmatprep.subr.mxu0 %v1169
    %1215 = vmatpush1.msra.mxu0 %v1168
    %1216 = vmatprep.subr.mxu0 %v1173
    %1217 = vmatpush1.msra.mxu0 %v1172
    %1218 = vmatprep.subr.mxu0 %v1177
    %1219 = vmatpush1.msra.mxu0 %v1176
    %1220 = vmatprep.subr.mxu0 %v1181
    %1221 = vmatpush1.msra.mxu0 %v1180
    %1222 = vmatprep.subr.mxu0 %v1185
    %1223 = vmatpush1.msra.mxu0 %v1184
    %1224 = vmatprep.subr.mxu0 %v1189
    %1225 = vmatpush1.msra.mxu0 %v1188
    %1226 = vmatprep.subr.mxu0 %v1193
    %1227 = vmatpush1.msra.mxu0 %v1192
    %1228 = vmatprep.subr.mxu0 0.0
    %1229 = vmatpush1.msra.mxu0 0.0
    %1230 = vmatprep.subr.mxu0 0.0
    %1231 = vmatpush1.msra.mxu0 0.0
    %1232 = vmatprep.subr.mxu0 0.0
    %1233 = vmatpush1.msra.mxu0 0.0
    %1234 = vmatprep.subr.mxu0 0.0
    %1235 = vmatpush1.msra.mxu0 0.0
    %1236 = vmatprep.subr.mxu0 0.0
    %1237 = vmatpush1.msra.mxu0 0.0
    %1238 = vmatprep.subr.mxu0 0.0
    %1239 = vmatpush1.msra.mxu0 0.0
    %1240 = vmatprep.subr.mxu0 0.0
    %1241 = vmatpush1.msra.mxu0 0.0
    %1242 = vmatprep.subr.mxu0 0.0
    %1243 = vmatpush1.msra.mxu0 0.0
    %1244 = vmatprep.subr.mxu0 0.0
    %1245 = vmatpush1.msra.mxu0 0.0
    %1246 = vmatprep.subr.mxu0 0.0
    %1247 = vmatpush1.msra.mxu0 0.0
    %1248 = vmatprep.subr.mxu0 0.0
    %1249 = vmatpush1.msra.mxu0 0.0
    %1250 = vmatprep.subr.mxu0 0.0
    %1251 = vmatpush1.msra.mxu0 0.0
    %1252 = vmatprep.subr.mxu0 0.0
    %1253 = vmatpush1.msra.mxu0 0.0
    %1254 = vmatprep.subr.mxu0 0.0
    %1255 = vmatpush1.msra.mxu0 0.0
    %1256 = vmatprep.subr.mxu0 0.0
    %1257 = vmatpush1.msra.mxu0 0.0
    %1258 = vmatprep.subr.mxu0 0.0
    %1259 = vmatpush1.msra.mxu0 0.0
    %1260 = vmatprep.mubr.f32.mxu0 0.0
    %1261 = vmatmul.mubr.f32.gmra.mrb[0].mxu0 %v683
    %v1262 = vpop.f32.mrb[0].mxu0
    %v1263 = vadd.f32 0.0, %v1262
    %v1264 = vpop.f32.mrb[0].mxu0
    %v1265 = vadd.f32 0.0, %v1264
    %1266 = vdwg.mxu0
    %1267 = vmatprep.subr.mxu0 %v1135
    %1268 = vmatpush1.msra.mxu0 %v1134
    %1269 = vmatprep.subr.mxu0 %v1139
    %1270 = vmatpush1.msra.mxu0 %v1138
    %1271 = vmatprep.subr.mxu0 %v1143
    %1272 = vmatpush1.msra.mxu0 %v1142
    %1273 = vmatprep.subr.mxu0 %v1147
    %1274 = vmatpush1.msra.mxu0 %v1146
    %1275 = vmatprep.subr.mxu0 %v1151
    %1276 = vmatpush1.msra.mxu0 %v1150
    %1277 = vmatprep.subr.mxu0 %v1155
    %1278 = vmatpush1.msra.mxu0 %v1154
    %1279 = vmatprep.subr.mxu0 %v1159
    %1280 = vmatpush1.msra.mxu0 %v1158
    %1281 = vmatprep.subr.mxu0 %v1163
    %1282 = vmatpush1.msra.mxu0 %v1162
    %1283 = vmatprep.subr.mxu0 %v1167
    %1284 = vmatpush1.msra.mxu0 %v1166
    %1285 = vmatprep.subr.mxu0 %v1171
    %1286 = vmatpush1.msra.mxu0 %v1170
    %1287 = vmatprep.subr.mxu0 %v1175
    %1288 = vmatpush1.msra.mxu0 %v1174
    %1289 = vmatprep.subr.mxu0 %v1179
    %1290 = vmatpush1.msra.mxu0 %v1178
    %1291 = vmatprep.subr.mxu0 %v1183
    %1292 = vmatpush1.msra.mxu0 %v1182
    %1293 = vmatprep.subr.mxu0 %v1187
    %1294 = vmatpush1.msra.mxu0 %v1186
    %1295 = vmatprep.subr.mxu0 %v1191
    %1296 = vmatpush1.msra.mxu0 %v1190
    %1297 = vmatprep.subr.mxu0 %v1195
    %1298 = vmatpush1.msra.mxu0 %v1194
    %1299 = vmatprep.subr.mxu0 0.0
    %1300 = vmatpush1.msra.mxu0 0.0
    %1301 = vmatprep.subr.mxu0 0.0
    %1302 = vmatpush1.msra.mxu0 0.0
    %1303 = vmatprep.subr.mxu0 0.0
    %1304 = vmatpush1.msra.mxu0 0.0
    %1305 = vmatprep.subr.mxu0 0.0
    %1306 = vmatpush1.msra.mxu0 0.0
    %1307 = vmatprep.subr.mxu0 0.0
    %1308 = vmatpush1.msra.mxu0 0.0
    %1309 = vmatprep.subr.mxu0 0.0
    %1310 = vmatpush1.msra.mxu0 0.0
    %1311 = vmatprep.subr.mxu0 0.0
    %1312 = vmatpush1.msra.mxu0 0.0
    %1313 = vmatprep.subr.mxu0 0.0
    %1314 = vmatpush1.msra.mxu0 0.0
    %1315 = vmatprep.subr.mxu0 0.0
    %1316 = vmatpush1.msra.mxu0 0.0
    %1317 = vmatprep.subr.mxu0 0.0
    %1318 = vmatpush1.msra.mxu0 0.0
    %1319 = vmatprep.subr.mxu0 0.0
    %1320 = vmatpush1.msra.mxu0 0.0
    %1321 = vmatprep.subr.mxu0 0.0
    %1322 = vmatpush1.msra.mxu0 0.0
    %1323 = vmatprep.subr.mxu0 0.0
    %1324 = vmatpush1.msra.mxu0 0.0
    %1325 = vmatprep.subr.mxu0 0.0
    %1326 = vmatpush1.msra.mxu0 0.0
    %1327 = vmatprep.subr.mxu0 0.0
    %1328 = vmatpush1.msra.mxu0 0.0
    %1329 = vmatprep.subr.mxu0 0.0
    %1330 = vmatpush1.msra.mxu0 0.0
    %1331 = vmatprep.mubr.f32.mxu0 0.0
    %1332 = vmatmul.mubr.f32.gmra.mrb[0].mxu0 %v683
    %v1333 = vpop.f32.mrb[0].mxu0
    %v1334 = vadd.f32 0.0, %v1333
    %v1335 = vpop.f32.mrb[0].mxu0
    %v1336 = vadd.f32 0.0, %v1335
    %1337 = vdwg.mxu0
    %v1338 = vadd.f32 %v1128, %v1263
    %v1339 = vadd.f32 %v1129, %v1265
    %v1340 = vadd.f32 %v1130, %v1334
    %v1341 = vadd.f32 %v1131, %v1336
    %v1342 = vxor.u32 %v1338, 2147483648
    %v1343 = vmul.f32 %v1342, 1.442695
    %v1344 = vpow.pop %v1343
    %v1345 = vadd.f32 %v1344, 1.0
    %v1346 = vrcp.pop %v1345
    %v1347 = vmul.f32 1.0, %v1346
    %v1348 = vxor.u32 %v1339, 2147483648
    %v1349 = vmul.f32 %v1348, 1.442695
    %v1350 = vpow.pop %v1349
    %v1351 = vadd.f32 %v1350, 1.0
    %v1352 = vrcp.pop %v1351
    %v1353 = vmul.f32 1.0, %v1352
    %v1354 = vtanh.pop %v1340
    %v1355 = vxor.u32 %v1341, 2147483648
    %v1356 = vmul.f32 %v1355, 1.442695
    %v1357 = vpow.pop %v1356
    %v1358 = vadd.f32 %v1357, 1.0
    %v1359 = vrcp.pop %v1358
    %v1360 = vmul.f32 1.0, %v1359
    %v1361 = vmul.f32 %v1353, %v681
    %v1362 = vmul.f32 %v1347, %v1354
    %v1363 = vadd.f32 %v1361, %v1362
    %v1364 = vtanh.pop %v1363
    %v1365 = vmul.f32 %v1360, %v1364
    %v1366 = vld [vmem:[#allocation11] sm:$0xff]
    %v1367 = vld [vmem:[#allocation11 + $0x8] sm:$0xff]
    %v1368 = vld [vmem:[#allocation11 + $0x10] sm:$0xff]
    %v1369 = vld [vmem:[#allocation11 + $0x18] sm:$0xff]
    %v1370 = vld [vmem:[#allocation11 + $0x20] sm:$0xff]
    %v1371 = vld [vmem:[#allocation11 + $0x28] sm:$0xff]
    %v1372 = vld [vmem:[#allocation11 + $0x30] sm:$0xff]
    %v1373 = vld [vmem:[#allocation11 + $0x38] sm:$0xff]
    %v1374 = vld [vmem:[#allocation11 + $0x40] sm:$0xff]
    %v1375 = vld [vmem:[#allocation11 + $0x48] sm:$0xff]
    %v1376 = vld [vmem:[#allocation11 + $0x50] sm:$0xff]
    %v1377 = vld [vmem:[#allocation11 + $0x58] sm:$0xff]
    %v1378 = vld [vmem:[#allocation11 + $0x60] sm:$0xff]
    %v1379 = vld [vmem:[#allocation11 + $0x68] sm:$0xff]
    %v1380 = vld [vmem:[#allocation11 + $0x70] sm:$0xff]
    %v1381 = vld [vmem:[#allocation11 + $0x78] sm:$0xff]
    %v1382 = vld [vmem:[#allocation11 + $0x80] sm:$0xff]
    %v1383 = vld [vmem:[#allocation11 + $0x88] sm:$0xff]
    %v1384 = vld [vmem:[#allocation11 + $0x90] sm:$0xff]
    %v1385 = vld [vmem:[#allocation11 + $0x98] sm:$0xff]
    %v1386 = vld [vmem:[#allocation11 + $0xa0] sm:$0xff]
    %v1387 = vld [vmem:[#allocation11 + $0xa8] sm:$0xff]
    %v1388 = vld [vmem:[#allocation11 + $0xb0] sm:$0xff]
    %v1389 = vld [vmem:[#allocation11 + $0xb8] sm:$0xff]
    %v1390 = vld [vmem:[#allocation11 + $0xc0] sm:$0xff]
    %v1391 = vld [vmem:[#allocation11 + $0xc8] sm:$0xff]
    %v1392 = vld [vmem:[#allocation11 + $0xd0] sm:$0xff]
    %v1393 = vld [vmem:[#allocation11 + $0xd8] sm:$0xff]
    %v1394 = vld [vmem:[#allocation11 + $0xe0] sm:$0xff]
    %v1395 = vld [vmem:[#allocation11 + $0xe8] sm:$0xff]
    %v1396 = vld [vmem:[#allocation11 + $0xf0] sm:$0xff]
    %v1397 = vld [vmem:[#allocation11 + $0xf8] sm:$0xff]
    %v1398 = vld [vmem:[#allocation11 + $0x100] sm:$0xff]
    %v1399 = vld [vmem:[#allocation11 + $0x108] sm:$0xff]
    %v1400 = vld [vmem:[#allocation11 + $0x110] sm:$0xff]
    %v1401 = vld [vmem:[#allocation11 + $0x118] sm:$0xff]
    %v1402 = vld [vmem:[#allocation11 + $0x120] sm:$0xff]
    %v1403 = vld [vmem:[#allocation11 + $0x128] sm:$0xff]
    %v1404 = vld [vmem:[#allocation11 + $0x130] sm:$0xff]
    %v1405 = vld [vmem:[#allocation11 + $0x138] sm:$0xff]
    %v1406 = vld [vmem:[#allocation11 + $0x140] sm:$0xff]
    %v1407 = vld [vmem:[#allocation11 + $0x148] sm:$0xff]
    %v1408 = vld [vmem:[#allocation11 + $0x150] sm:$0xff]
    %v1409 = vld [vmem:[#allocation11 + $0x158] sm:$0xff]
    %v1410 = vld [vmem:[#allocation11 + $0x160] sm:$0xff]
    %v1411 = vld [vmem:[#allocation11 + $0x168] sm:$0xff]
    %v1412 = vld [vmem:[#allocation11 + $0x170] sm:$0xff]
    %v1413 = vld [vmem:[#allocation11 + $0x178] sm:$0xff]
    %v1414 = vld [vmem:[#allocation11 + $0x180] sm:$0xff]
    %v1415 = vld [vmem:[#allocation11 + $0x188] sm:$0xff]
    %v1416 = vld [vmem:[#allocation11 + $0x190] sm:$0xff]
    %v1417 = vld [vmem:[#allocation11 + $0x198] sm:$0xff]
    %v1418 = vld [vmem:[#allocation11 + $0x1a0] sm:$0xff]
    %v1419 = vld [vmem:[#allocation11 + $0x1a8] sm:$0xff]
    %v1420 = vld [vmem:[#allocation11 + $0x1b0] sm:$0xff]
    %v1421 = vld [vmem:[#allocation11 + $0x1b8] sm:$0xff]
    %v1422 = vld [vmem:[#allocation11 + $0x1c0] sm:$0xff]
    %v1423 = vld [vmem:[#allocation11 + $0x1c8] sm:$0xff]
    %v1424 = vld [vmem:[#allocation11 + $0x1d0] sm:$0xff]
    %v1425 = vld [vmem:[#allocation11 + $0x1d8] sm:$0xff]
    %v1426 = vld [vmem:[#allocation11 + $0x1e0] sm:$0xff]
    %v1427 = vld [vmem:[#allocation11 + $0x1e8] sm:$0xff]
    %v1428 = vld [vmem:[#allocation11 + $0x1f0] sm:$0xff]
    %v1429 = vld [vmem:[#allocation11 + $0x1f8] sm:$0xff]
    %v1430 = vld [vmem:[#allocation13] sm:$0xff]
    %v1431 = vld [vmem:[#allocation13 + $0x8] sm:$0xff]
    %v1432 = vld [vmem:[#allocation13 + $0x10] sm:$0xff]
    %v1433 = vld [vmem:[#allocation13 + $0x18] sm:$0xff]
    %v1434 = vld [vmem:[#allocation13 + $0x20] sm:$0xff]
    %v1435 = vld [vmem:[#allocation13 + $0x28] sm:$0xff]
    %v1436 = vld [vmem:[#allocation13 + $0x30] sm:$0xff]
    %v1437 = vld [vmem:[#allocation13 + $0x38] sm:$0xff]
    %v1438 = vld [vmem:[#allocation13 + $0x40] sm:$0xff]
    %v1439 = vld [vmem:[#allocation13 + $0x48] sm:$0xff]
    %v1440 = vld [vmem:[#allocation13 + $0x50] sm:$0xff]
    %v1441 = vld [vmem:[#allocation13 + $0x58] sm:$0xff]
    %v1442 = vld [vmem:[#allocation13 + $0x60] sm:$0xff]
    %v1443 = vld [vmem:[#allocation13 + $0x68] sm:$0xff]
    %v1444 = vld [vmem:[#allocation13 + $0x70] sm:$0xff]
    %v1445 = vld [vmem:[#allocation13 + $0x78] sm:$0xff]
    %v1446 = vld [vmem:[#allocation13 + $0x80] sm:$0xff]
    %v1447 = vld [vmem:[#allocation13 + $0x88] sm:$0xff]
    %v1448 = vld [vmem:[#allocation13 + $0x90] sm:$0xff]
    %v1449 = vld [vmem:[#allocation13 + $0x98] sm:$0xff]
    %v1450 = vld [vmem:[#allocation13 + $0xa0] sm:$0xff]
    %v1451 = vld [vmem:[#allocation13 + $0xa8] sm:$0xff]
    %v1452 = vld [vmem:[#allocation13 + $0xb0] sm:$0xff]
    %v1453 = vld [vmem:[#allocation13 + $0xb8] sm:$0xff]
    %v1454 = vld [vmem:[#allocation13 + $0xc0] sm:$0xff]
    %v1455 = vld [vmem:[#allocation13 + $0xc8] sm:$0xff]
    %v1456 = vld [vmem:[#allocation13 + $0xd0] sm:$0xff]
    %v1457 = vld [vmem:[#allocation13 + $0xd8] sm:$0xff]
    %v1458 = vld [vmem:[#allocation13 + $0xe0] sm:$0xff]
    %v1459 = vld [vmem:[#allocation13 + $0xe8] sm:$0xff]
    %v1460 = vld [vmem:[#allocation13 + $0xf0] sm:$0xff]
    %v1461 = vld [vmem:[#allocation13 + $0xf8] sm:$0xff]
    %v1462 = vld [vmem:[#allocation13 + $0x100] sm:$0xff]
    %v1463 = vld [vmem:[#allocation13 + $0x108] sm:$0xff]
    %v1464 = vld [vmem:[#allocation13 + $0x110] sm:$0xff]
    %v1465 = vld [vmem:[#allocation13 + $0x118] sm:$0xff]
    %v1466 = vld [vmem:[#allocation13 + $0x120] sm:$0xff]
    %v1467 = vld [vmem:[#allocation13 + $0x128] sm:$0xff]
    %v1468 = vld [vmem:[#allocation13 + $0x130] sm:$0xff]
    %v1469 = vld [vmem:[#allocation13 + $0x138] sm:$0xff]
    %v1470 = vld [vmem:[#allocation13 + $0x140] sm:$0xff]
    %v1471 = vld [vmem:[#allocation13 + $0x148] sm:$0xff]
    %v1472 = vld [vmem:[#allocation13 + $0x150] sm:$0xff]
    %v1473 = vld [vmem:[#allocation13 + $0x158] sm:$0xff]
    %v1474 = vld [vmem:[#allocation13 + $0x160] sm:$0xff]
    %v1475 = vld [vmem:[#allocation13 + $0x168] sm:$0xff]
    %v1476 = vld [vmem:[#allocation13 + $0x170] sm:$0xff]
    %v1477 = vld [vmem:[#allocation13 + $0x178] sm:$0xff]
    %v1478 = vld [vmem:[#allocation13 + $0x180] sm:$0xff]
    %v1479 = vld [vmem:[#allocation13 + $0x188] sm:$0xff]
    %v1480 = vld [vmem:[#allocation13 + $0x190] sm:$0xff]
    %v1481 = vld [vmem:[#allocation13 + $0x198] sm:$0xff]
    %v1482 = vld [vmem:[#allocation13 + $0x1a0] sm:$0xff]
    %v1483 = vld [vmem:[#allocation13 + $0x1a8] sm:$0xff]
    %v1484 = vld [vmem:[#allocation13 + $0x1b0] sm:$0xff]
    %v1485 = vld [vmem:[#allocation13 + $0x1b8] sm:$0xff]
    %v1486 = vld [vmem:[#allocation13 + $0x1c0] sm:$0xff]
    %v1487 = vld [vmem:[#allocation13 + $0x1c8] sm:$0xff]
    %v1488 = vld [vmem:[#allocation13 + $0x1d0] sm:$0xff]
    %v1489 = vld [vmem:[#allocation13 + $0x1d8] sm:$0xff]
    %v1490 = vld [vmem:[#allocation13 + $0x1e0] sm:$0xff]
    %v1491 = vld [vmem:[#allocation13 + $0x1e8] sm:$0xff]
    %v1492 = vld [vmem:[#allocation13 + $0x1f0] sm:$0xff]
    %v1493 = vld [vmem:[#allocation13 + $0x1f8] sm:$0xff]
    %1494 = vmatprep.subr.mxu0 %v1431
    %1495 = vmatpush1.msra.mxu0 %v1430
    %1496 = vmatprep.subr.mxu0 %v1435
    %1497 = vmatpush1.msra.mxu0 %v1434
    %1498 = vmatprep.subr.mxu0 %v1439
    %1499 = vmatpush1.msra.mxu0 %v1438
    %1500 = vmatprep.subr.mxu0 %v1443
    %1501 = vmatpush1.msra.mxu0 %v1442
    %1502 = vmatprep.subr.mxu0 %v1447
    %1503 = vmatpush1.msra.mxu0 %v1446
    %1504 = vmatprep.subr.mxu0 %v1451
    %1505 = vmatpush1.msra.mxu0 %v1450
    %1506 = vmatprep.subr.mxu0 %v1455
    %1507 = vmatpush1.msra.mxu0 %v1454
    %1508 = vmatprep.subr.mxu0 %v1459
    %1509 = vmatpush1.msra.mxu0 %v1458
    %1510 = vmatprep.subr.mxu0 %v1463
    %1511 = vmatpush1.msra.mxu0 %v1462
    %1512 = vmatprep.subr.mxu0 %v1467
    %1513 = vmatpush1.msra.mxu0 %v1466
    %1514 = vmatprep.subr.mxu0 %v1471
    %1515 = vmatpush1.msra.mxu0 %v1470
    %1516 = vmatprep.subr.mxu0 %v1475
    %1517 = vmatpush1.msra.mxu0 %v1474
    %1518 = vmatprep.subr.mxu0 %v1479
    %1519 = vmatpush1.msra.mxu0 %v1478
    %1520 = vmatprep.subr.mxu0 %v1483
    %1521 = vmatpush1.msra.mxu0 %v1482
    %1522 = vmatprep.subr.mxu0 %v1487
    %1523 = vmatpush1.msra.mxu0 %v1486
    %1524 = vmatprep.subr.mxu0 %v1491
    %1525 = vmatpush1.msra.mxu0 %v1490
    %1526 = vmatprep.subr.mxu0 0.0
    %1527 = vmatpush1.msra.mxu0 0.0
    %1528 = vmatprep.subr.mxu0 0.0
    %1529 = vmatpush1.msra.mxu0 0.0
    %1530 = vmatprep.subr.mxu0 0.0
    %1531 = vmatpush1.msra.mxu0 0.0
    %1532 = vmatprep.subr.mxu0 0.0
    %1533 = vmatpush1.msra.mxu0 0.0
    %1534 = vmatprep.subr.mxu0 0.0
    %1535 = vmatpush1.msra.mxu0 0.0
    %1536 = vmatprep.subr.mxu0 0.0
    %1537 = vmatpush1.msra.mxu0 0.0
    %1538 = vmatprep.subr.mxu0 0.0
    %1539 = vmatpush1.msra.mxu0 0.0
    %1540 = vmatprep.subr.mxu0 0.0
    %1541 = vmatpush1.msra.mxu0 0.0
    %1542 = vmatprep.subr.mxu0 0.0
    %1543 = vmatpush1.msra.mxu0 0.0
    %1544 = vmatprep.subr.mxu0 0.0
    %1545 = vmatpush1.msra.mxu0 0.0
    %1546 = vmatprep.subr.mxu0 0.0
    %1547 = vmatpush1.msra.mxu0 0.0
    %1548 = vmatprep.subr.mxu0 0.0
    %1549 = vmatpush1.msra.mxu0 0.0
    %1550 = vmatprep.subr.mxu0 0.0
    %1551 = vmatpush1.msra.mxu0 0.0
    %1552 = vmatprep.subr.mxu0 0.0
    %1553 = vmatpush1.msra.mxu0 0.0
    %1554 = vmatprep.subr.mxu0 0.0
    %1555 = vmatpush1.msra.mxu0 0.0
    %1556 = vmatprep.subr.mxu0 0.0
    %1557 = vmatpush1.msra.mxu0 0.0
    %1558 = vmatprep.mubr.f32.mxu0 0.0
    %1559 = vmatmul.mubr.f32.gmra.mrb[0].mxu0 %v1123
    %v1560 = vpop.f32.mrb[0].mxu0
    %v1561 = vadd.f32 0.0, %v1560
    %v1562 = vpop.f32.mrb[0].mxu0
    %v1563 = vadd.f32 0.0, %v1562
    %1564 = vdwg.mxu0
    %1565 = vmatprep.subr.mxu0 %v1433
    %1566 = vmatpush1.msra.mxu0 %v1432
    %1567 = vmatprep.subr.mxu0 %v1437
    %1568 = vmatpush1.msra.mxu0 %v1436
    %1569 = vmatprep.subr.mxu0 %v1441
    %1570 = vmatpush1.msra.mxu0 %v1440
    %1571 = vmatprep.subr.mxu0 %v1445
    %1572 = vmatpush1.msra.mxu0 %v1444
    %1573 = vmatprep.subr.mxu0 %v1449
    %1574 = vmatpush1.msra.mxu0 %v1448
    %1575 = vmatprep.subr.mxu0 %v1453
    %1576 = vmatpush1.msra.mxu0 %v1452
    %1577 = vmatprep.subr.mxu0 %v1457
    %1578 = vmatpush1.msra.mxu0 %v1456
    %1579 = vmatprep.subr.mxu0 %v1461
    %1580 = vmatpush1.msra.mxu0 %v1460
    %1581 = vmatprep.subr.mxu0 %v1465
    %1582 = vmatpush1.msra.mxu0 %v1464
    %1583 = vmatprep.subr.mxu0 %v1469
    %1584 = vmatpush1.msra.mxu0 %v1468
    %1585 = vmatprep.subr.mxu0 %v1473
    %1586 = vmatpush1.msra.mxu0 %v1472
    %1587 = vmatprep.subr.mxu0 %v1477
    %1588 = vmatpush1.msra.mxu0 %v1476
    %1589 = vmatprep.subr.mxu0 %v1481
    %1590 = vmatpush1.msra.mxu0 %v1480
    %1591 = vmatprep.subr.mxu0 %v1485
    %1592 = vmatpush1.msra.mxu0 %v1484
    %1593 = vmatprep.subr.mxu0 %v1489
    %1594 = vmatpush1.msra.mxu0 %v1488
    %1595 = vmatprep.subr.mxu0 %v1493
    %1596 = vmatpush1.msra.mxu0 %v1492
    %1597 = vmatprep.subr.mxu0 0.0
    %1598 = vmatpush1.msra.mxu0 0.0
    %1599 = vmatprep.subr.mxu0 0.0
    %1600 = vmatpush1.msra.mxu0 0.0
    %1601 = vmatprep.subr.mxu0 0.0
    %1602 = vmatpush1.msra.mxu0 0.0
    %1603 = vmatprep.subr.mxu0 0.0
    %1604 = vmatpush1.msra.mxu0 0.0
    %1605 = vmatprep.subr.mxu0 0.0
    %1606 = vmatpush1.msra.mxu0 0.0
    %1607 = vmatprep.subr.mxu0 0.0
    %1608 = vmatpush1.msra.mxu0 0.0
    %1609 = vmatprep.subr.mxu0 0.0
    %1610 = vmatpush1.msra.mxu0 0.0
    %1611 = vmatprep.subr.mxu0 0.0
    %1612 = vmatpush1.msra.mxu0 0.0
    %1613 = vmatprep.subr.mxu0 0.0
    %1614 = vmatpush1.msra.mxu0 0.0
    %1615 = vmatprep.subr.mxu0 0.0
    %1616 = vmatpush1.msra.mxu0 0.0
    %1617 = vmatprep.subr.mxu0 0.0
    %1618 = vmatpush1.msra.mxu0 0.0
    %1619 = vmatprep.subr.mxu0 0.0
    %1620 = vmatpush1.msra.mxu0 0.0
    %1621 = vmatprep.subr.mxu0 0.0
    %1622 = vmatpush1.msra.mxu0 0.0
    %1623 = vmatprep.subr.mxu0 0.0
    %1624 = vmatpush1.msra.mxu0 0.0
    %1625 = vmatprep.subr.mxu0 0.0
    %1626 = vmatpush1.msra.mxu0 0.0
    %1627 = vmatprep.subr.mxu0 0.0
    %1628 = vmatpush1.msra.mxu0 0.0
    %1629 = vmatprep.mubr.f32.mxu0 0.0
    %1630 = vmatmul.mubr.f32.gmra.mrb[0].mxu0 %v1123
    %v1631 = vpop.f32.mrb[0].mxu0
    %v1632 = vadd.f32 0.0, %v1631
    %v1633 = vpop.f32.mrb[0].mxu0
    %v1634 = vadd.f32 0.0, %v1633
    %1635 = vdwg.mxu0
    %1636 = vmatprep.subr.mxu0 %v1367
    %1637 = vmatpush1.msra.mxu0 %v1366
    %1638 = vmatprep.subr.mxu0 %v1371
    %1639 = vmatpush1.msra.mxu0 %v1370
    %1640 = vmatprep.subr.mxu0 %v1375
    %1641 = vmatpush1.msra.mxu0 %v1374
    %1642 = vmatprep.subr.mxu0 %v1379
    %1643 = vmatpush1.msra.mxu0 %v1378
    %1644 = vmatprep.subr.mxu0 %v1383
    %1645 = vmatpush1.msra.mxu0 %v1382
    %1646 = vmatprep.subr.mxu0 %v1387
    %1647 = vmatpush1.msra.mxu0 %v1386
    %1648 = vmatprep.subr.mxu0 %v1391
    %1649 = vmatpush1.msra.mxu0 %v1390
    %1650 = vmatprep.subr.mxu0 %v1395
    %1651 = vmatpush1.msra.mxu0 %v1394
    %1652 = vmatprep.subr.mxu0 %v1399
    %1653 = vmatpush1.msra.mxu0 %v1398
    %1654 = vmatprep.subr.mxu0 %v1403
    %1655 = vmatpush1.msra.mxu0 %v1402
    %1656 = vmatprep.subr.mxu0 %v1407
    %1657 = vmatpush1.msra.mxu0 %v1406
    %1658 = vmatprep.subr.mxu0 %v1411
    %1659 = vmatpush1.msra.mxu0 %v1410
    %1660 = vmatprep.subr.mxu0 %v1415
    %1661 = vmatpush1.msra.mxu0 %v1414
    %1662 = vmatprep.subr.mxu0 %v1419
    %1663 = vmatpush1.msra.mxu0 %v1418
    %1664 = vmatprep.subr.mxu0 %v1423
    %1665 = vmatpush1.msra.mxu0 %v1422
    %1666 = vmatprep.subr.mxu0 %v1427
    %1667 = vmatpush1.msra.mxu0 %v1426
    %1668 = vmatprep.subr.mxu0 0.0
    %1669 = vmatpush1.msra.mxu0 0.0
    %1670 = vmatprep.subr.mxu0 0.0
    %1671 = vmatpush1.msra.mxu0 0.0
    %1672 = vmatprep.subr.mxu0 0.0
    %1673 = vmatpush1.msra.mxu0 0.0
    %1674 = vmatprep.subr.mxu0 0.0
    %1675 = vmatpush1.msra.mxu0 0.0
    %1676 = vmatprep.subr.mxu0 0.0
    %1677 = vmatpush1.msra.mxu0 0.0
    %1678 = vmatprep.subr.mxu0 0.0
    %1679 = vmatpush1.msra.mxu0 0.0
    %1680 = vmatprep.subr.mxu0 0.0
    %1681 = vmatpush1.msra.mxu0 0.0
    %1682 = vmatprep.subr.mxu0 0.0
    %1683 = vmatpush1.msra.mxu0 0.0
    %1684 = vmatprep.subr.mxu0 0.0
    %1685 = vmatpush1.msra.mxu0 0.0
    %1686 = vmatprep.subr.mxu0 0.0
    %1687 = vmatpush1.msra.mxu0 0.0
    %1688 = vmatprep.subr.mxu0 0.0
    %1689 = vmatpush1.msra.mxu0 0.0
    %1690 = vmatprep.subr.mxu0 0.0
    %1691 = vmatpush1.msra.mxu0 0.0
    %1692 = vmatprep.subr.mxu0 0.0
    %1693 = vmatpush1.msra.mxu0 0.0
    %1694 = vmatprep.subr.mxu0 0.0
    %1695 = vmatpush1.msra.mxu0 0.0
    %1696 = vmatprep.subr.mxu0 0.0
    %1697 = vmatpush1.msra.mxu0 0.0
    %1698 = vmatprep.subr.mxu0 0.0
    %1699 = vmatpush1.msra.mxu0 0.0
    %1700 = vmatprep.mubr.f32.mxu0 0.0
    %1701 = vmatmul.mubr.f32.gmra.mrb[0].mxu0 %v1365
    %v1702 = vpop.f32.mrb[0].mxu0
    %v1703 = vadd.f32 %v1561, %v1702
    %v1704 = vpop.f32.mrb[0].mxu0
    %v1705 = vadd.f32 %v1563, %v1704
    %1706 = vdwg.mxu0
    %1707 = vmatprep.subr.mxu0 %v1369
    %1708 = vmatpush1.msra.mxu0 %v1368
    %1709 = vmatprep.subr.mxu0 %v1373
    %1710 = vmatpush1.msra.mxu0 %v1372
    %1711 = vmatprep.subr.mxu0 %v1377
    %1712 = vmatpush1.msra.mxu0 %v1376
    %1713 = vmatprep.subr.mxu0 %v1381
    %1714 = vmatpush1.msra.mxu0 %v1380
    %1715 = vmatprep.subr.mxu0 %v1385
    %1716 = vmatpush1.msra.mxu0 %v1384
    %1717 = vmatprep.subr.mxu0 %v1389
    %1718 = vmatpush1.msra.mxu0 %v1388
    %1719 = vmatprep.subr.mxu0 %v1393
    %1720 = vmatpush1.msra.mxu0 %v1392
    %1721 = vmatprep.subr.mxu0 %v1397
    %1722 = vmatpush1.msra.mxu0 %v1396
    %1723 = vmatprep.subr.mxu0 %v1401
    %1724 = vmatpush1.msra.mxu0 %v1400
    %1725 = vmatprep.subr.mxu0 %v1405
    %1726 = vmatpush1.msra.mxu0 %v1404
    %1727 = vmatprep.subr.mxu0 %v1409
    %1728 = vmatpush1.msra.mxu0 %v1408
    %1729 = vmatprep.subr.mxu0 %v1413
    %1730 = vmatpush1.msra.mxu0 %v1412
    %1731 = vmatprep.subr.mxu0 %v1417
    %1732 = vmatpush1.msra.mxu0 %v1416
    %1733 = vmatprep.subr.mxu0 %v1421
    %1734 = vmatpush1.msra.mxu0 %v1420
    %1735 = vmatprep.subr.mxu0 %v1425
    %1736 = vmatpush1.msra.mxu0 %v1424
    %1737 = vmatprep.subr.mxu0 %v1429
    %1738 = vmatpush1.msra.mxu0 %v1428
    %1739 = vmatprep.subr.mxu0 0.0
    %1740 = vmatpush1.msra.mxu0 0.0
    %1741 = vmatprep.subr.mxu0 0.0
    %1742 = vmatpush1.msra.mxu0 0.0
    %1743 = vmatprep.subr.mxu0 0.0
    %1744 = vmatpush1.msra.mxu0 0.0
    %1745 = vmatprep.subr.mxu0 0.0
    %1746 = vmatpush1.msra.mxu0 0.0
    %1747 = vmatprep.subr.mxu0 0.0
    %1748 = vmatpush1.msra.mxu0 0.0
    %1749 = vmatprep.subr.mxu0 0.0
    %1750 = vmatpush1.msra.mxu0 0.0
    %1751 = vmatprep.subr.mxu0 0.0
    %1752 = vmatpush1.msra.mxu0 0.0
    %1753 = vmatprep.subr.mxu0 0.0
    %1754 = vmatpush1.msra.mxu0 0.0
    %1755 = vmatprep.subr.mxu0 0.0
    %1756 = vmatpush1.msra.mxu0 0.0
    %1757 = vmatprep.subr.mxu0 0.0
    %1758 = vmatpush1.msra.mxu0 0.0
    %1759 = vmatprep.subr.mxu0 0.0
    %1760 = vmatpush1.msra.mxu0 0.0
    %1761 = vmatprep.subr.mxu0 0.0
    %1762 = vmatpush1.msra.mxu0 0.0
    %1763 = vmatprep.subr.mxu0 0.0
    %1764 = vmatpush1.msra.mxu0 0.0
    %1765 = vmatprep.subr.mxu0 0.0
    %1766 = vmatpush1.msra.mxu0 0.0
    %1767 = vmatprep.subr.mxu0 0.0
    %1768 = vmatpush1.msra.mxu0 0.0
    %1769 = vmatprep.subr.mxu0 0.0
    %1770 = vmatpush1.msra.mxu0 0.0
    %1771 = vmatprep.mubr.f32.mxu0 0.0
    %1772 = vmatmul.mubr.f32.gmra.mrb[0].mxu0 %v1365
    %v1773 = vpop.f32.mrb[0].mxu0
    %v1774 = vadd.f32 %v1632, %v1773
    %v1775 = vpop.f32.mrb[0].mxu0
    %v1776 = vadd.f32 %v1634, %v1775
    %1777 = vdwg.mxu0
    %v1778 = vadd.f32 %v1703, %v422
    %v1779 = vadd.f32 %v1705, %v426
    %v1780 = vadd.f32 %v1774, %v430
    %v1781 = vadd.f32 %v1776, %v434
    %v1782 = vxor.u32 %v1778, 2147483648
    %v1783 = vmul.f32 %v1782, 1.442695
    %v1784 = vpow.pop %v1783
    %v1785 = vadd.f32 %v1784, 1.0
    %v1786 = vrcp.pop %v1785
    %v1787 = vmul.f32 1.0, %v1786
    %v1788 = vxor.u32 %v1779, 2147483648
    %v1789 = vmul.f32 %v1788, 1.442695
    %v1790 = vpow.pop %v1789
    %v1791 = vadd.f32 %v1790, 1.0
    %v1792 = vrcp.pop %v1791
    %v1793 = vmul.f32 1.0, %v1792
    %v1794 = vtanh.pop %v1780
    %v1795 = vxor.u32 %v1781, 2147483648
    %v1796 = vmul.f32 %v1795, 1.442695
    %v1797 = vpow.pop %v1796
    %v1798 = vadd.f32 %v1797, 1.0
    %v1799 = vrcp.pop %v1798
    %v1800 = vmul.f32 1.0, %v1799
    %v1801 = vmul.f32 %v1793, %v1121
    %v1802 = vmul.f32 %v1787, %v1794
    %v1803 = vadd.f32 %v1801, %v1802
    %v1804 = vtanh.pop %v1803
    %v1805 = vmul.f32 %v1800, %v1804
    %s1806 = scalar_lea.vmem [#allocation7], 8
    %1807 = vst [vmem:[%s1806] sm:$0xff] %v1805
    %s1808 = smul.u32 2, 4
    %s1809 = smul.addr %s1808, 8
    %s1810 = scalar_lea.vmem [#allocation6], %s1809
    %v1811 = vld [vmem:[%s1810] sm:$0xff]
    %v1812 = vld [vmem:[%s1810 + $0x8] sm:$0xff]
    %v1813 = vld [vmem:[%s1810 + $0x10] sm:$0xff]
    %v1814 = vld [vmem:[%s1810 + $0x18] sm:$0xff]
    %v1815 = vld [vmem:[#allocation8] sm:$0xff]
    %v1816 = vld [vmem:[#allocation8 + $0x8] sm:$0xff]
    %v1817 = vld [vmem:[#allocation8 + $0x10] sm:$0xff]
    %v1818 = vld [vmem:[#allocation8 + $0x18] sm:$0xff]
    %v1819 = vld [vmem:[#allocation8 + $0x20] sm:$0xff]
    %v1820 = vld [vmem:[#allocation8 + $0x28] sm:$0xff]
    %v1821 = vld [vmem:[#allocation8 + $0x30] sm:$0xff]
    %v1822 = vld [vmem:[#allocation8 + $0x38] sm:$0xff]
    %v1823 = vld [vmem:[#allocation8 + $0x40] sm:$0xff]
    %v1824 = vld [vmem:[#allocation8 + $0x48] sm:$0xff]
    %v1825 = vld [vmem:[#allocation8 + $0x50] sm:$0xff]
    %v1826 = vld [vmem:[#allocation8 + $0x58] sm:$0xff]
    %v1827 = vld [vmem:[#allocation8 + $0x60] sm:$0xff]
    %v1828 = vld [vmem:[#allocation8 + $0x68] sm:$0xff]
    %v1829 = vld [vmem:[#allocation8 + $0x70] sm:$0xff]
    %v1830 = vld [vmem:[#allocation8 + $0x78] sm:$0xff]
    %v1831 = vld [vmem:[#allocation8 + $0x80] sm:$0xff]
    %v1832 = vld [vmem:[#allocation8 + $0x88] sm:$0xff]
    %v1833 = vld [vmem:[#allocation8 + $0x90] sm:$0xff]
    %v1834 = vld [vmem:[#allocation8 + $0x98] sm:$0xff]
    %v1835 = vld [vmem:[#allocation8 + $0xa0] sm:$0xff]
    %v1836 = vld [vmem:[#allocation8 + $0xa8] sm:$0xff]
    %v1837 = vld [vmem:[#allocation8 + $0xb0] sm:$0xff]
    %v1838 = vld [vmem:[#allocation8 + $0xb8] sm:$0xff]
    %v1839 = vld [vmem:[#allocation8 + $0xc0] sm:$0xff]
    %v1840 = vld [vmem:[#allocation8 + $0xc8] sm:$0xff]
    %v1841 = vld [vmem:[#allocation8 + $0xd0] sm:$0xff]
    %v1842 = vld [vmem:[#allocation8 + $0xd8] sm:$0xff]
    %v1843 = vld [vmem:[#allocation8 + $0xe0] sm:$0xff]
    %v1844 = vld [vmem:[#allocation8 + $0xe8] sm:$0xff]
    %v1845 = vld [vmem:[#allocation8 + $0xf0] sm:$0xff]
    %v1846 = vld [vmem:[#allocation8 + $0xf8] sm:$0xff]
    %v1847 = vld [vmem:[#allocation8 + $0x100] sm:$0xff]
    %v1848 = vld [vmem:[#allocation8 + $0x108] sm:$0xff]
    %v1849 = vld [vmem:[#allocation8 + $0x110] sm:$0xff]
    %v1850 = vld [vmem:[#allocation8 + $0x118] sm:$0xff]
    %v1851 = vld [vmem:[#allocation8 + $0x120] sm:$0xff]
    %v1852 = vld [vmem:[#allocation8 + $0x128] sm:$0xff]
    %v1853 = vld [vmem:[#allocation8 + $0x130] sm:$0xff]
    %v1854 = vld [vmem:[#allocation8 + $0x138] sm:$0xff]
    %v1855 = vld [vmem:[#allocation8 + $0x140] sm:$0xff]
    %v1856 = vld [vmem:[#allocation8 + $0x148] sm:$0xff]
    %v1857 = vld [vmem:[#allocation8 + $0x150] sm:$0xff]
    %v1858 = vld [vmem:[#allocation8 + $0x158] sm:$0xff]
    %v1859 = vld [vmem:[#allocation8 + $0x160] sm:$0xff]
    %v1860 = vld [vmem:[#allocation8 + $0x168] sm:$0xff]
    %v1861 = vld [vmem:[#allocation8 + $0x170] sm:$0xff]
    %v1862 = vld [vmem:[#allocation8 + $0x178] sm:$0xff]
    %v1863 = vld [vmem:[#allocation8 + $0x180] sm:$0xff]
    %v1864 = vld [vmem:[#allocation8 + $0x188] sm:$0xff]
    %v1865 = vld [vmem:[#allocation8 + $0x190] sm:$0xff]
    %v1866 = vld [vmem:[#allocation8 + $0x198] sm:$0xff]
    %v1867 = vld [vmem:[#allocation8 + $0x1a0] sm:$0xff]
    %v1868 = vld [vmem:[#allocation8 + $0x1a8] sm:$0xff]
    %v1869 = vld [vmem:[#allocation8 + $0x1b0] sm:$0xff]
    %v1870 = vld [vmem:[#allocation8 + $0x1b8] sm:$0xff]
    %v1871 = vld [vmem:[#allocation8 + $0x1c0] sm:$0xff]
    %v1872 = vld [vmem:[#allocation8 + $0x1c8] sm:$0xff]
    %v1873 = vld [vmem:[#allocation8 + $0x1d0] sm:$0xff]
    %v1874 = vld [vmem:[#allocation8 + $0x1d8] sm:$0xff]
    %v1875 = vld [vmem:[#allocation8 + $0x1e0] sm:$0xff]
    %v1876 = vld [vmem:[#allocation8 + $0x1e8] sm:$0xff]
    %v1877 = vld [vmem:[#allocation8 + $0x1f0] sm:$0xff]
    %v1878 = vld [vmem:[#allocation8 + $0x1f8] sm:$0xff]
    %1879 = vmatprep.subr.mxu0 %v1816
    %1880 = vmatpush1.msra.mxu0 %v1815
    %1881 = vmatprep.subr.mxu0 %v1820
    %1882 = vmatpush1.msra.mxu0 %v1819
    %1883 = vmatprep.subr.mxu0 %v1824
    %1884 = vmatpush1.msra.mxu0 %v1823
    %1885 = vmatprep.subr.mxu0 %v1828
    %1886 = vmatpush1.msra.mxu0 %v1827
    %1887 = vmatprep.subr.mxu0 %v1832
    %1888 = vmatpush1.msra.mxu0 %v1831
    %1889 = vmatprep.subr.mxu0 %v1836
    %1890 = vmatpush1.msra.mxu0 %v1835
    %1891 = vmatprep.subr.mxu0 %v1840
    %1892 = vmatpush1.msra.mxu0 %v1839
    %1893 = vmatprep.subr.mxu0 %v1844
    %1894 = vmatpush1.msra.mxu0 %v1843
    %1895 = vmatprep.subr.mxu0 %v1848
    %1896 = vmatpush1.msra.mxu0 %v1847
    %1897 = vmatprep.subr.mxu0 %v1852
    %1898 = vmatpush1.msra.mxu0 %v1851
    %1899 = vmatprep.subr.mxu0 %v1856
    %1900 = vmatpush1.msra.mxu0 %v1855
    %1901 = vmatprep.subr.mxu0 %v1860
    %1902 = vmatpush1.msra.mxu0 %v1859
    %1903 = vmatprep.subr.mxu0 %v1864
    %1904 = vmatpush1.msra.mxu0 %v1863
    %1905 = vmatprep.subr.mxu0 %v1868
    %1906 = vmatpush1.msra.mxu0 %v1867
    %1907 = vmatprep.subr.mxu0 %v1872
    %1908 = vmatpush1.msra.mxu0 %v1871
    %1909 = vmatprep.subr.mxu0 %v1876
    %1910 = vmatpush1.msra.mxu0 %v1875
    %1911 = vmatprep.subr.mxu0 0.0
    %1912 = vmatpush1.msra.mxu0 0.0
    %1913 = vmatprep.subr.mxu0 0.0
    %1914 = vmatpush1.msra.mxu0 0.0
    %1915 = vmatprep.subr.mxu0 0.0
    %1916 = vmatpush1.msra.mxu0 0.0
    %1917 = vmatprep.subr.mxu0 0.0
    %1918 = vmatpush1.msra.mxu0 0.0
    %1919 = vmatprep.subr.mxu0 0.0
    %1920 = vmatpush1.msra.mxu0 0.0
    %1921 = vmatprep.subr.mxu0 0.0
    %1922 = vmatpush1.msra.mxu0 0.0
    %1923 = vmatprep.subr.mxu0 0.0
    %1924 = vmatpush1.msra.mxu0 0.0
    %1925 = vmatprep.subr.mxu0 0.0
    %1926 = vmatpush1.msra.mxu0 0.0
    %1927 = vmatprep.subr.mxu0 0.0
    %1928 = vmatpush1.msra.mxu0 0.0
    %1929 = vmatprep.subr.mxu0 0.0
    %1930 = vmatpush1.msra.mxu0 0.0
    %1931 = vmatprep.subr.mxu0 0.0
    %1932 = vmatpush1.msra.mxu0 0.0
    %1933 = vmatprep.subr.mxu0 0.0
    %1934 = vmatpush1.msra.mxu0 0.0
    %1935 = vmatprep.subr.mxu0 0.0
    %1936 = vmatpush1.msra.mxu0 0.0
    %1937 = vmatprep.subr.mxu0 0.0
    %1938 = vmatpush1.msra.mxu0 0.0
    %1939 = vmatprep.subr.mxu0 0.0
    %1940 = vmatpush1.msra.mxu0 0.0
    %1941 = vmatprep.subr.mxu0 0.0
    %1942 = vmatpush1.msra.mxu0 0.0
    %1943 = vmatprep.mubr.f32.mxu0 0.0
    %1944 = vmatmul.mubr.f32.gmra.mrb[0].mxu0 %v1365
    %v1945 = vpop.f32.mrb[0].mxu0
    %v1946 = vadd.f32 0.0, %v1945
    %v1947 = vpop.f32.mrb[0].mxu0
    %v1948 = vadd.f32 0.0, %v1947
    %1949 = vdwg.mxu0
    %1950 = vmatprep.subr.mxu0 %v1818
    %1951 = vmatpush1.msra.mxu0 %v1817
    %1952 = vmatprep.subr.mxu0 %v1822
    %1953 = vmatpush1.msra.mxu0 %v1821
    %1954 = vmatprep.subr.mxu0 %v1826
    %1955 = vmatpush1.msra.mxu0 %v1825
    %1956 = vmatprep.subr.mxu0 %v1830
    %1957 = vmatpush1.msra.mxu0 %v1829
    %1958 = vmatprep.subr.mxu0 %v1834
    %1959 = vmatpush1.msra.mxu0 %v1833
    %1960 = vmatprep.subr.mxu0 %v1838
    %1961 = vmatpush1.msra.mxu0 %v1837
    %1962 = vmatprep.subr.mxu0 %v1842
    %1963 = vmatpush1.msra.mxu0 %v1841
    %1964 = vmatprep.subr.mxu0 %v1846
    %1965 = vmatpush1.msra.mxu0 %v1845
    %1966 = vmatprep.subr.mxu0 %v1850
    %1967 = vmatpush1.msra.mxu0 %v1849
    %1968 = vmatprep.subr.mxu0 %v1854
    %1969 = vmatpush1.msra.mxu0 %v1853
    %1970 = vmatprep.subr.mxu0 %v1858
    %1971 = vmatpush1.msra.mxu0 %v1857
    %1972 = vmatprep.subr.mxu0 %v1862
    %1973 = vmatpush1.msra.mxu0 %v1861
    %1974 = vmatprep.subr.mxu0 %v1866
    %1975 = vmatpush1.msra.mxu0 %v1865
    %1976 = vmatprep.subr.mxu0 %v1870
    %1977 = vmatpush1.msra.mxu0 %v1869
    %1978 = vmatprep.subr.mxu0 %v1874
    %1979 = vmatpush1.msra.mxu0 %v1873
    %1980 = vmatprep.subr.mxu0 %v1878
    %1981 = vmatpush1.msra.mxu0 %v1877
    %1982 = vmatprep.subr.mxu0 0.0
    %1983 = vmatpush1.msra.mxu0 0.0
    %1984 = vmatprep.subr.mxu0 0.0
    %1985 = vmatpush1.msra.mxu0 0.0
    %1986 = vmatprep.subr.mxu0 0.0
    %1987 = vmatpush1.msra.mxu0 0.0
    %1988 = vmatprep.subr.mxu0 0.0
    %1989 = vmatpush1.msra.mxu0 0.0
    %1990 = vmatprep.subr.mxu0 0.0
    %1991 = vmatpush1.msra.mxu0 0.0
    %1992 = vmatprep.subr.mxu0 0.0
    %1993 = vmatpush1.msra.mxu0 0.0
    %1994 = vmatprep.subr.mxu0 0.0
    %1995 = vmatpush1.msra.mxu0 0.0
    %1996 = vmatprep.subr.mxu0 0.0
    %1997 = vmatpush1.msra.mxu0 0.0
    %1998 = vmatprep.subr.mxu0 0.0
    %1999 = vmatpush1.msra.mxu0 0.0
    %2000 = vmatprep.subr.mxu0 0.0
    %2001 = vmatpush1.msra.mxu0 0.0
    %2002 = vmatprep.subr.mxu0 0.0
    %2003 = vmatpush1.msra.mxu0 0.0
    %2004 = vmatprep.subr.mxu0 0.0
    %2005 = vmatpush1.msra.mxu0 0.0
    %2006 = vmatprep.subr.mxu0 0.0
    %2007 = vmatpush1.msra.mxu0 0.0
    %2008 = vmatprep.subr.mxu0 0.0
    %2009 = vmatpush1.msra.mxu0 0.0
    %2010 = vmatprep.subr.mxu0 0.0
    %2011 = vmatpush1.msra.mxu0 0.0
    %2012 = vmatprep.subr.mxu0 0.0
    %2013 = vmatpush1.msra.mxu0 0.0
    %2014 = vmatprep.mubr.f32.mxu0 0.0
    %2015 = vmatmul.mubr.f32.gmra.mrb[0].mxu0 %v1365
    %v2016 = vpop.f32.mrb[0].mxu0
    %v2017 = vadd.f32 0.0, %v2016
    %v2018 = vpop.f32.mrb[0].mxu0
    %v2019 = vadd.f32 0.0, %v2018
    %2020 = vdwg.mxu0
    %v2021 = vadd.f32 %v1811, %v1946
    %v2022 = vadd.f32 %v1812, %v1948
    %v2023 = vadd.f32 %v1813, %v2017
    %v2024 = vadd.f32 %v1814, %v2019
    %v2025 = vxor.u32 %v2021, 2147483648
    %v2026 = vmul.f32 %v2025, 1.442695
    %v2027 = vpow.pop %v2026
    %v2028 = vadd.f32 %v2027, 1.0
    %v2029 = vrcp.pop %v2028
    %v2030 = vmul.f32 1.0, %v2029
    %v2031 = vxor.u32 %v2022, 2147483648
    %v2032 = vmul.f32 %v2031, 1.442695
    %v2033 = vpow.pop %v2032
    %v2034 = vadd.f32 %v2033, 1.0
    %v2035 = vrcp.pop %v2034
    %v2036 = vmul.f32 1.0, %v2035
    %v2037 = vtanh.pop %v2023
    %v2038 = vxor.u32 %v2024, 2147483648
    %v2039 = vmul.f32 %v2038, 1.442695
    %v2040 = vpow.pop %v2039
    %v2041 = vadd.f32 %v2040, 1.0
    %v2042 = vrcp.pop %v2041
    %v2043 = vmul.f32 1.0, %v2042
    %v2044 = vmul.f32 %v2036, %v1363
    %v2045 = vmul.f32 %v2030, %v2037
    %v2046 = vadd.f32 %v2044, %v2045
    %v2047 = vtanh.pop %v2046
    %v2048 = vmul.f32 %v2043, %v2047
    %v2049 = vld [vmem:[#allocation11] sm:$0xff]
    %v2050 = vld [vmem:[#allocation11 + $0x8] sm:$0xff]
    %v2051 = vld [vmem:[#allocation11 + $0x10] sm:$0xff]
    %v2052 = vld [vmem:[#allocation11 + $0x18] sm:$0xff]
    %v2053 = vld [vmem:[#allocation11 + $0x20] sm:$0xff]
    %v2054 = vld [vmem:[#allocation11 + $0x28] sm:$0xff]
    %v2055 = vld [vmem:[#allocation11 + $0x30] sm:$0xff]
    %v2056 = vld [vmem:[#allocation11 + $0x38] sm:$0xff]
    %v2057 = vld [vmem:[#allocation11 + $0x40] sm:$0xff]
    %v2058 = vld [vmem:[#allocation11 + $0x48] sm:$0xff]
    %v2059 = vld [vmem:[#allocation11 + $0x50] sm:$0xff]
    %v2060 = vld [vmem:[#allocation11 + $0x58] sm:$0xff]
    %v2061 = vld [vmem:[#allocation11 + $0x60] sm:$0xff]
    %v2062 = vld [vmem:[#allocation11 + $0x68] sm:$0xff]
    %v2063 = vld [vmem:[#allocation11 + $0x70] sm:$0xff]
    %v2064 = vld [vmem:[#allocation11 + $0x78] sm:$0xff]
    %v2065 = vld [vmem:[#allocation11 + $0x80] sm:$0xff]
    %v2066 = vld [vmem:[#allocation11 + $0x88] sm:$0xff]
    %v2067 = vld [vmem:[#allocation11 + $0x90] sm:$0xff]
    %v2068 = vld [vmem:[#allocation11 + $0x98] sm:$0xff]
    %v2069 = vld [vmem:[#allocation11 + $0xa0] sm:$0xff]
    %v2070 = vld [vmem:[#allocation11 + $0xa8] sm:$0xff]
    %v2071 = vld [vmem:[#allocation11 + $0xb0] sm:$0xff]
    %v2072 = vld [vmem:[#allocation11 + $0xb8] sm:$0xff]
    %v2073 = vld [vmem:[#allocation11 + $0xc0] sm:$0xff]
    %v2074 = vld [vmem:[#allocation11 + $0xc8] sm:$0xff]
    %v2075 = vld [vmem:[#allocation11 + $0xd0] sm:$0xff]
    %v2076 = vld [vmem:[#allocation11 + $0xd8] sm:$0xff]
    %v2077 = vld [vmem:[#allocation11 + $0xe0] sm:$0xff]
    %v2078 = vld [vmem:[#allocation11 + $0xe8] sm:$0xff]
    %v2079 = vld [vmem:[#allocation11 + $0xf0] sm:$0xff]
    %v2080 = vld [vmem:[#allocation11 + $0xf8] sm:$0xff]
    %v2081 = vld [vmem:[#allocation11 + $0x100] sm:$0xff]
    %v2082 = vld [vmem:[#allocation11 + $0x108] sm:$0xff]
    %v2083 = vld [vmem:[#allocation11 + $0x110] sm:$0xff]
    %v2084 = vld [vmem:[#allocation11 + $0x118] sm:$0xff]
    %v2085 = vld [vmem:[#allocation11 + $0x120] sm:$0xff]
    %v2086 = vld [vmem:[#allocation11 + $0x128] sm:$0xff]
    %v2087 = vld [vmem:[#allocation11 + $0x130] sm:$0xff]
    %v2088 = vld [vmem:[#allocation11 + $0x138] sm:$0xff]
    %v2089 = vld [vmem:[#allocation11 + $0x140] sm:$0xff]
    %v2090 = vld [vmem:[#allocation11 + $0x148] sm:$0xff]
    %v2091 = vld [vmem:[#allocation11 + $0x150] sm:$0xff]
    %v2092 = vld [vmem:[#allocation11 + $0x158] sm:$0xff]
    %v2093 = vld [vmem:[#allocation11 + $0x160] sm:$0xff]
    %v2094 = vld [vmem:[#allocation11 + $0x168] sm:$0xff]
    %v2095 = vld [vmem:[#allocation11 + $0x170] sm:$0xff]
    %v2096 = vld [vmem:[#allocation11 + $0x178] sm:$0xff]
    %v2097 = vld [vmem:[#allocation11 + $0x180] sm:$0xff]
    %v2098 = vld [vmem:[#allocation11 + $0x188] sm:$0xff]
    %v2099 = vld [vmem:[#allocation11 + $0x190] sm:$0xff]
    %v2100 = vld [vmem:[#allocation11 + $0x198] sm:$0xff]
    %v2101 = vld [vmem:[#allocation11 + $0x1a0] sm:$0xff]
    %v2102 = vld [vmem:[#allocation11 + $0x1a8] sm:$0xff]
    %v2103 = vld [vmem:[#allocation11 + $0x1b0] sm:$0xff]
    %v2104 = vld [vmem:[#allocation11 + $0x1b8] sm:$0xff]
    %v2105 = vld [vmem:[#allocation11 + $0x1c0] sm:$0xff]
    %v2106 = vld [vmem:[#allocation11 + $0x1c8] sm:$0xff]
    %v2107 = vld [vmem:[#allocation11 + $0x1d0] sm:$0xff]
    %v2108 = vld [vmem:[#allocation11 + $0x1d8] sm:$0xff]
    %v2109 = vld [vmem:[#allocation11 + $0x1e0] sm:$0xff]
    %v2110 = vld [vmem:[#allocation11 + $0x1e8] sm:$0xff]
    %v2111 = vld [vmem:[#allocation11 + $0x1f0] sm:$0xff]
    %v2112 = vld [vmem:[#allocation11 + $0x1f8] sm:$0xff]
    %v2113 = vld [vmem:[#allocation13] sm:$0xff]
    %v2114 = vld [vmem:[#allocation13 + $0x8] sm:$0xff]
    %v2115 = vld [vmem:[#allocation13 + $0x10] sm:$0xff]
    %v2116 = vld [vmem:[#allocation13 + $0x18] sm:$0xff]
    %v2117 = vld [vmem:[#allocation13 + $0x20] sm:$0xff]
    %v2118 = vld [vmem:[#allocation13 + $0x28] sm:$0xff]
    %v2119 = vld [vmem:[#allocation13 + $0x30] sm:$0xff]
    %v2120 = vld [vmem:[#allocation13 + $0x38] sm:$0xff]
    %v2121 = vld [vmem:[#allocation13 + $0x40] sm:$0xff]
    %v2122 = vld [vmem:[#allocation13 + $0x48] sm:$0xff]
    %v2123 = vld [vmem:[#allocation13 + $0x50] sm:$0xff]
    %v2124 = vld [vmem:[#allocation13 + $0x58] sm:$0xff]
    %v2125 = vld [vmem:[#allocation13 + $0x60] sm:$0xff]
    %v2126 = vld [vmem:[#allocation13 + $0x68] sm:$0xff]
    %v2127 = vld [vmem:[#allocation13 + $0x70] sm:$0xff]
    %v2128 = vld [vmem:[#allocation13 + $0x78] sm:$0xff]
    %v2129 = vld [vmem:[#allocation13 + $0x80] sm:$0xff]
    %v2130 = vld [vmem:[#allocation13 + $0x88] sm:$0xff]
    %v2131 = vld [vmem:[#allocation13 + $0x90] sm:$0xff]
    %v2132 = vld [vmem:[#allocation13 + $0x98] sm:$0xff]
    %v2133 = vld [vmem:[#allocation13 + $0xa0] sm:$0xff]
    %v2134 = vld [vmem:[#allocation13 + $0xa8] sm:$0xff]
    %v2135 = vld [vmem:[#allocation13 + $0xb0] sm:$0xff]
    %v2136 = vld [vmem:[#allocation13 + $0xb8] sm:$0xff]
    %v2137 = vld [vmem:[#allocation13 + $0xc0] sm:$0xff]
    %v2138 = vld [vmem:[#allocation13 + $0xc8] sm:$0xff]
    %v2139 = vld [vmem:[#allocation13 + $0xd0] sm:$0xff]
    %v2140 = vld [vmem:[#allocation13 + $0xd8] sm:$0xff]
    %v2141 = vld [vmem:[#allocation13 + $0xe0] sm:$0xff]
    %v2142 = vld [vmem:[#allocation13 + $0xe8] sm:$0xff]
    %v2143 = vld [vmem:[#allocation13 + $0xf0] sm:$0xff]
    %v2144 = vld [vmem:[#allocation13 + $0xf8] sm:$0xff]
    %v2145 = vld [vmem:[#allocation13 + $0x100] sm:$0xff]
    %v2146 = vld [vmem:[#allocation13 + $0x108] sm:$0xff]
    %v2147 = vld [vmem:[#allocation13 + $0x110] sm:$0xff]
    %v2148 = vld [vmem:[#allocation13 + $0x118] sm:$0xff]
    %v2149 = vld [vmem:[#allocation13 + $0x120] sm:$0xff]
    %v2150 = vld [vmem:[#allocation13 + $0x128] sm:$0xff]
    %v2151 = vld [vmem:[#allocation13 + $0x130] sm:$0xff]
    %v2152 = vld [vmem:[#allocation13 + $0x138] sm:$0xff]
    %v2153 = vld [vmem:[#allocation13 + $0x140] sm:$0xff]
    %v2154 = vld [vmem:[#allocation13 + $0x148] sm:$0xff]
    %v2155 = vld [vmem:[#allocation13 + $0x150] sm:$0xff]
    %v2156 = vld [vmem:[#allocation13 + $0x158] sm:$0xff]
    %v2157 = vld [vmem:[#allocation13 + $0x160] sm:$0xff]
    %v2158 = vld [vmem:[#allocation13 + $0x168] sm:$0xff]
    %v2159 = vld [vmem:[#allocation13 + $0x170] sm:$0xff]
    %v2160 = vld [vmem:[#allocation13 + $0x178] sm:$0xff]
    %v2161 = vld [vmem:[#allocation13 + $0x180] sm:$0xff]
    %v2162 = vld [vmem:[#allocation13 + $0x188] sm:$0xff]
    %v2163 = vld [vmem:[#allocation13 + $0x190] sm:$0xff]
    %v2164 = vld [vmem:[#allocation13 + $0x198] sm:$0xff]
    %v2165 = vld [vmem:[#allocation13 + $0x1a0] sm:$0xff]
    %v2166 = vld [vmem:[#allocation13 + $0x1a8] sm:$0xff]
    %v2167 = vld [vmem:[#allocation13 + $0x1b0] sm:$0xff]
    %v2168 = vld [vmem:[#allocation13 + $0x1b8] sm:$0xff]
    %v2169 = vld [vmem:[#allocation13 + $0x1c0] sm:$0xff]
    %v2170 = vld [vmem:[#allocation13 + $0x1c8] sm:$0xff]
    %v2171 = vld [vmem:[#allocation13 + $0x1d0] sm:$0xff]
    %v2172 = vld [vmem:[#allocation13 + $0x1d8] sm:$0xff]
    %v2173 = vld [vmem:[#allocation13 + $0x1e0] sm:$0xff]
    %v2174 = vld [vmem:[#allocation13 + $0x1e8] sm:$0xff]
    %v2175 = vld [vmem:[#allocation13 + $0x1f0] sm:$0xff]
    %v2176 = vld [vmem:[#allocation13 + $0x1f8] sm:$0xff]
    %2177 = vmatprep.subr.mxu0 %v2114
    %2178 = vmatpush1.msra.mxu0 %v2113
    %2179 = vmatprep.subr.mxu0 %v2118
    %2180 = vmatpush1.msra.mxu0 %v2117
    %2181 = vmatprep.subr.mxu0 %v2122
    %2182 = vmatpush1.msra.mxu0 %v2121
    %2183 = vmatprep.subr.mxu0 %v2126
    %2184 = vmatpush1.msra.mxu0 %v2125
    %2185 = vmatprep.subr.mxu0 %v2130
    %2186 = vmatpush1.msra.mxu0 %v2129
    %2187 = vmatprep.subr.mxu0 %v2134
    %2188 = vmatpush1.msra.mxu0 %v2133
    %2189 = vmatprep.subr.mxu0 %v2138
    %2190 = vmatpush1.msra.mxu0 %v2137
    %2191 = vmatprep.subr.mxu0 %v2142
    %2192 = vmatpush1.msra.mxu0 %v2141
    %2193 = vmatprep.subr.mxu0 %v2146
    %2194 = vmatpush1.msra.mxu0 %v2145
    %2195 = vmatprep.subr.mxu0 %v2150
    %2196 = vmatpush1.msra.mxu0 %v2149
    %2197 = vmatprep.subr.mxu0 %v2154
    %2198 = vmatpush1.msra.mxu0 %v2153
    %2199 = vmatprep.subr.mxu0 %v2158
    %2200 = vmatpush1.msra.mxu0 %v2157
    %2201 = vmatprep.subr.mxu0 %v2162
    %2202 = vmatpush1.msra.mxu0 %v2161
    %2203 = vmatprep.subr.mxu0 %v2166
    %2204 = vmatpush1.msra.mxu0 %v2165
    %2205 = vmatprep.subr.mxu0 %v2170
    %2206 = vmatpush1.msra.mxu0 %v2169
    %2207 = vmatprep.subr.mxu0 %v2174
    %2208 = vmatpush1.msra.mxu0 %v2173
    %2209 = vmatprep.subr.mxu0 0.0
    %2210 = vmatpush1.msra.mxu0 0.0
    %2211 = vmatprep.subr.mxu0 0.0
    %2212 = vmatpush1.msra.mxu0 0.0
    %2213 = vmatprep.subr.mxu0 0.0
    %2214 = vmatpush1.msra.mxu0 0.0
    %2215 = vmatprep.subr.mxu0 0.0
    %2216 = vmatpush1.msra.mxu0 0.0
    %2217 = vmatprep.subr.mxu0 0.0
    %2218 = vmatpush1.msra.mxu0 0.0
    %2219 = vmatprep.subr.mxu0 0.0
    %2220 = vmatpush1.msra.mxu0 0.0
    %2221 = vmatprep.subr.mxu0 0.0
    %2222 = vmatpush1.msra.mxu0 0.0
    %2223 = vmatprep.subr.mxu0 0.0
    %2224 = vmatpush1.msra.mxu0 0.0
    %2225 = vmatprep.subr.mxu0 0.0
    %2226 = vmatpush1.msra.mxu0 0.0
    %2227 = vmatprep.subr.mxu0 0.0
    %2228 = vmatpush1.msra.mxu0 0.0
    %2229 = vmatprep.subr.mxu0 0.0
    %2230 = vmatpush1.msra.mxu0 0.0
    %2231 = vmatprep.subr.mxu0 0.0
    %2232 = vmatpush1.msra.mxu0 0.0
    %2233 = vmatprep.subr.mxu0 0.0
    %2234 = vmatpush1.msra.mxu0 0.0
    %2235 = vmatprep.subr.mxu0 0.0
    %2236 = vmatpush1.msra.mxu0 0.0
    %2237 = vmatprep.subr.mxu0 0.0
    %2238 = vmatpush1.msra.mxu0 0.0
    %2239 = vmatprep.subr.mxu0 0.0
    %2240 = vmatpush1.msra.mxu0 0.0
    %2241 = vmatprep.mubr.f32.mxu0 0.0
    %2242 = vmatmul.mubr.f32.gmra.mrb[0].mxu0 %v1805
    %v2243 = vpop.f32.mrb[0].mxu0
    %v2244 = vadd.f32 0.0, %v2243
    %v2245 = vpop.f32.mrb[0].mxu0
    %v2246 = vadd.f32 0.0, %v2245
    %2247 = vdwg.mxu0
    %2248 = vmatprep.subr.mxu0 %v2116
    %2249 = vmatpush1.msra.mxu0 %v2115
    %2250 = vmatprep.subr.mxu0 %v2120
    %2251 = vmatpush1.msra.mxu0 %v2119
    %2252 = vmatprep.subr.mxu0 %v2124
    %2253 = vmatpush1.msra.mxu0 %v2123
    %2254 = vmatprep.subr.mxu0 %v2128
    %2255 = vmatpush1.msra.mxu0 %v2127
    %2256 = vmatprep.subr.mxu0 %v2132
    %2257 = vmatpush1.msra.mxu0 %v2131
    %2258 = vmatprep.subr.mxu0 %v2136
    %2259 = vmatpush1.msra.mxu0 %v2135
    %2260 = vmatprep.subr.mxu0 %v2140
    %2261 = vmatpush1.msra.mxu0 %v2139
    %2262 = vmatprep.subr.mxu0 %v2144
    %2263 = vmatpush1.msra.mxu0 %v2143
    %2264 = vmatprep.subr.mxu0 %v2148
    %2265 = vmatpush1.msra.mxu0 %v2147
    %2266 = vmatprep.subr.mxu0 %v2152
    %2267 = vmatpush1.msra.mxu0 %v2151
    %2268 = vmatprep.subr.mxu0 %v2156
    %2269 = vmatpush1.msra.mxu0 %v2155
    %2270 = vmatprep.subr.mxu0 %v2160
    %2271 = vmatpush1.msra.mxu0 %v2159
    %2272 = vmatprep.subr.mxu0 %v2164
    %2273 = vmatpush1.msra.mxu0 %v2163
    %2274 = vmatprep.subr.mxu0 %v2168
    %2275 = vmatpush1.msra.mxu0 %v2167
    %2276 = vmatprep.subr.mxu0 %v2172
    %2277 = vmatpush1.msra.mxu0 %v2171
    %2278 = vmatprep.subr.mxu0 %v2176
    %2279 = vmatpush1.msra.mxu0 %v2175
    %2280 = vmatprep.subr.mxu0 0.0
    %2281 = vmatpush1.msra.mxu0 0.0
    %2282 = vmatprep.subr.mxu0 0.0
    %2283 = vmatpush1.msra.mxu0 0.0
    %2284 = vmatprep.subr.mxu0 0.0
    %2285 = vmatpush1.msra.mxu0 0.0
    %2286 = vmatprep.subr.mxu0 0.0
    %2287 = vmatpush1.msra.mxu0 0.0
    %2288 = vmatprep.subr.mxu0 0.0
    %2289 = vmatpush1.msra.mxu0 0.0
    %2290 = vmatprep.subr.mxu0 0.0
    %2291 = vmatpush1.msra.mxu0 0.0
    %2292 = vmatprep.subr.mxu0 0.0
    %2293 = vmatpush1.msra.mxu0 0.0
    %2294 = vmatprep.subr.mxu0 0.0
    %2295 = vmatpush1.msra.mxu0 0.0
    %2296 = vmatprep.subr.mxu0 0.0
    %2297 = vmatpush1.msra.mxu0 0.0
    %2298 = vmatprep.subr.mxu0 0.0
    %2299 = vmatpush1.msra.mxu0 0.0
    %2300 = vmatprep.subr.mxu0 0.0
    %2301 = vmatpush1.msra.mxu0 0.0
    %2302 = vmatprep.subr.mxu0 0.0
    %2303 = vmatpush1.msra.mxu0 0.0
    %2304 = vmatprep.subr.mxu0 0.0
    %2305 = vmatpush1.msra.mxu0 0.0
    %2306 = vmatprep.subr.mxu0 0.0
    %2307 = vmatpush1.msra.mxu0 0.0
    %2308 = vmatprep.subr.mxu0 0.0
    %2309 = vmatpush1.msra.mxu0 0.0
    %2310 = vmatprep.subr.mxu0 0.0
    %2311 = vmatpush1.msra.mxu0 0.0
    %2312 = vmatprep.mubr.f32.mxu0 0.0
    %2313 = vmatmul.mubr.f32.gmra.mrb[0].mxu0 %v1805
    %v2314 = vpop.f32.mrb[0].mxu0
    %v2315 = vadd.f32 0.0, %v2314
    %v2316 = vpop.f32.mrb[0].mxu0
    %v2317 = vadd.f32 0.0, %v2316
    %2318 = vdwg.mxu0
    %2319 = vmatprep.subr.mxu0 %v2050
    %2320 = vmatpush1.msra.mxu0 %v2049
    %2321 = vmatprep.subr.mxu0 %v2054
    %2322 = vmatpush1.msra.mxu0 %v2053
    %2323 = vmatprep.subr.mxu0 %v2058
    %2324 = vmatpush1.msra.mxu0 %v2057
    %2325 = vmatprep.subr.mxu0 %v2062
    %2326 = vmatpush1.msra.mxu0 %v2061
    %2327 = vmatprep.subr.mxu0 %v2066
    %2328 = vmatpush1.msra.mxu0 %v2065
    %2329 = vmatprep.subr.mxu0 %v2070
    %2330 = vmatpush1.msra.mxu0 %v2069
    %2331 = vmatprep.subr.mxu0 %v2074
    %2332 = vmatpush1.msra.mxu0 %v2073
    %2333 = vmatprep.subr.mxu0 %v2078
    %2334 = vmatpush1.msra.mxu0 %v2077
    %2335 = vmatprep.subr.mxu0 %v2082
    %2336 = vmatpush1.msra.mxu0 %v2081
    %2337 = vmatprep.subr.mxu0 %v2086
    %2338 = vmatpush1.msra.mxu0 %v2085
    %2339 = vmatprep.subr.mxu0 %v2090
    %2340 = vmatpush1.msra.mxu0 %v2089
    %2341 = vmatprep.subr.mxu0 %v2094
    %2342 = vmatpush1.msra.mxu0 %v2093
    %2343 = vmatprep.subr.mxu0 %v2098
    %2344 = vmatpush1.msra.mxu0 %v2097
    %2345 = vmatprep.subr.mxu0 %v2102
    %2346 = vmatpush1.msra.mxu0 %v2101
    %2347 = vmatprep.subr.mxu0 %v2106
    %2348 = vmatpush1.msra.mxu0 %v2105
    %2349 = vmatprep.subr.mxu0 %v2110
    %2350 = vmatpush1.msra.mxu0 %v2109
    %2351 = vmatprep.subr.mxu0 0.0
    %2352 = vmatpush1.msra.mxu0 0.0
    %2353 = vmatprep.subr.mxu0 0.0
    %2354 = vmatpush1.msra.mxu0 0.0
    %2355 = vmatprep.subr.mxu0 0.0
    %2356 = vmatpush1.msra.mxu0 0.0
    %2357 = vmatprep.subr.mxu0 0.0
    %2358 = vmatpush1.msra.mxu0 0.0
    %2359 = vmatprep.subr.mxu0 0.0
    %2360 = vmatpush1.msra.mxu0 0.0
    %2361 = vmatprep.subr.mxu0 0.0
    %2362 = vmatpush1.msra.mxu0 0.0
    %2363 = vmatprep.subr.mxu0 0.0
    %2364 = vmatpush1.msra.mxu0 0.0
    %2365 = vmatprep.subr.mxu0 0.0
    %2366 = vmatpush1.msra.mxu0 0.0
    %2367 = vmatprep.subr.mxu0 0.0
    %2368 = vmatpush1.msra.mxu0 0.0
    %2369 = vmatprep.subr.mxu0 0.0
    %2370 = vmatpush1.msra.mxu0 0.0
    %2371 = vmatprep.subr.mxu0 0.0
    %2372 = vmatpush1.msra.mxu0 0.0
    %2373 = vmatprep.subr.mxu0 0.0
    %2374 = vmatpush1.msra.mxu0 0.0
    %2375 = vmatprep.subr.mxu0 0.0
    %2376 = vmatpush1.msra.mxu0 0.0
    %2377 = vmatprep.subr.mxu0 0.0
    %2378 = vmatpush1.msra.mxu0 0.0
    %2379 = vmatprep.subr.mxu0 0.0
    %2380 = vmatpush1.msra.mxu0 0.0
    %2381 = vmatprep.subr.mxu0 0.0
    %2382 = vmatpush1.msra.mxu0 0.0
    %2383 = vmatprep.mubr.f32.mxu0 0.0
    %2384 = vmatmul.mubr.f32.gmra.mrb[0].mxu0 %v2048
    %v2385 = vpop.f32.mrb[0].mxu0
    %v2386 = vadd.f32 %v2244, %v2385
    %v2387 = vpop.f32.mrb[0].mxu0
    %v2388 = vadd.f32 %v2246, %v2387
    %2389 = vdwg.mxu0
    %2390 = vmatprep.subr.mxu0 %v2052
    %2391 = vmatpush1.msra.mxu0 %v2051
    %2392 = vmatprep.subr.mxu0 %v2056
    %2393 = vmatpush1.msra.mxu0 %v2055
    %2394 = vmatprep.subr.mxu0 %v2060
    %2395 = vmatpush1.msra.mxu0 %v2059
    %2396 = vmatprep.subr.mxu0 %v2064
    %2397 = vmatpush1.msra.mxu0 %v2063
    %2398 = vmatprep.subr.mxu0 %v2068
    %2399 = vmatpush1.msra.mxu0 %v2067
    %2400 = vmatprep.subr.mxu0 %v2072
    %2401 = vmatpush1.msra.mxu0 %v2071
    %2402 = vmatprep.subr.mxu0 %v2076
    %2403 = vmatpush1.msra.mxu0 %v2075
    %2404 = vmatprep.subr.mxu0 %v2080
    %2405 = vmatpush1.msra.mxu0 %v2079
    %2406 = vmatprep.subr.mxu0 %v2084
    %2407 = vmatpush1.msra.mxu0 %v2083
    %2408 = vmatprep.subr.mxu0 %v2088
    %2409 = vmatpush1.msra.mxu0 %v2087
    %2410 = vmatprep.subr.mxu0 %v2092
    %2411 = vmatpush1.msra.mxu0 %v2091
    %2412 = vmatprep.subr.mxu0 %v2096
    %2413 = vmatpush1.msra.mxu0 %v2095
    %2414 = vmatprep.subr.mxu0 %v2100
    %2415 = vmatpush1.msra.mxu0 %v2099
    %2416 = vmatprep.subr.mxu0 %v2104
    %2417 = vmatpush1.msra.mxu0 %v2103
    %2418 = vmatprep.subr.mxu0 %v2108
    %2419 = vmatpush1.msra.mxu0 %v2107
    %2420 = vmatprep.subr.mxu0 %v2112
    %2421 = vmatpush1.msra.mxu0 %v2111
    %2422 = vmatprep.subr.mxu0 0.0
    %2423 = vmatpush1.msra.mxu0 0.0
    %2424 = vmatprep.subr.mxu0 0.0
    %2425 = vmatpush1.msra.mxu0 0.0
    %2426 = vmatprep.subr.mxu0 0.0
    %2427 = vmatpush1.msra.mxu0 0.0
    %2428 = vmatprep.subr.mxu0 0.0
    %2429 = vmatpush1.msra.mxu0 0.0
    %2430 = vmatprep.subr.mxu0 0.0
    %2431 = vmatpush1.msra.mxu0 0.0
    %2432 = vmatprep.subr.mxu0 0.0
    %2433 = vmatpush1.msra.mxu0 0.0
    %2434 = vmatprep.subr.mxu0 0.0
    %2435 = vmatpush1.msra.mxu0 0.0
    %2436 = vmatprep.subr.mxu0 0.0
    %2437 = vmatpush1.msra.mxu0 0.0
    %2438 = vmatprep.subr.mxu0 0.0
    %2439 = vmatpush1.msra.mxu0 0.0
    %2440 = vmatprep.subr.mxu0 0.0
    %2441 = vmatpush1.msra.mxu0 0.0
    %2442 = vmatprep.subr.mxu0 0.0
    %2443 = vmatpush1.msra.mxu0 0.0
    %2444 = vmatprep.subr.mxu0 0.0
    %2445 = vmatpush1.msra.mxu0 0.0
    %2446 = vmatprep.subr.mxu0 0.0
    %2447 = vmatpush1.msra.mxu0 0.0
    %2448 = vmatprep.subr.mxu0 0.0
    %2449 = vmatpush1.msra.mxu0 0.0
    %2450 = vmatprep.subr.mxu0 0.0
    %2451 = vmatpush1.msra.mxu0 0.0
    %2452 = vmatprep.subr.mxu0 0.0
    %2453 = vmatpush1.msra.mxu0 0.0
    %2454 = vmatprep.mubr.f32.mxu0 0.0
    %2455 = vmatmul.mubr.f32.gmra.mrb[0].mxu0 %v2048
    %v2456 = vpop.f32.mrb[0].mxu0
    %v2457 = vadd.f32 %v2315, %v2456
    %v2458 = vpop.f32.mrb[0].mxu0
    %v2459 = vadd.f32 %v2317, %v2458
    %2460 = vdwg.mxu0
    %v2461 = vadd.f32 %v2386, %v422
    %v2462 = vadd.f32 %v2388, %v426
    %v2463 = vadd.f32 %v2457, %v430
    %v2464 = vadd.f32 %v2459, %v434
    %v2465 = vxor.u32 %v2461, 2147483648
    %v2466 = vmul.f32 %v2465, 1.442695
    %v2467 = vpow.pop %v2466
    %v2468 = vadd.f32 %v2467, 1.0
    %v2469 = vrcp.pop %v2468
    %v2470 = vmul.f32 1.0, %v2469
    %v2471 = vxor.u32 %v2462, 2147483648
    %v2472 = vmul.f32 %v2471, 1.442695
    %v2473 = vpow.pop %v2472
    %v2474 = vadd.f32 %v2473, 1.0
    %v2475 = vrcp.pop %v2474
    %v2476 = vmul.f32 1.0, %v2475
    %v2477 = vtanh.pop %v2463
    %v2478 = vxor.u32 %v2464, 2147483648
    %v2479 = vmul.f32 %v2478, 1.442695
    %v2480 = vpow.pop %v2479
    %v2481 = vadd.f32 %v2480, 1.0
    %v2482 = vrcp.pop %v2481
    %v2483 = vmul.f32 1.0, %v2482
    %v2484 = vmul.f32 %v2476, %v1803
    %v2485 = vmul.f32 %v2470, %v2477
    %v2486 = vadd.f32 %v2484, %v2485
    %v2487 = vtanh.pop %v2486
    %v2488 = vmul.f32 %v2483, %v2487
    %s2489 = scalar_lea.vmem [#allocation7], 16
    %2490 = vst [vmem:[%s2489] sm:$0xff] %v2488
    %s2491 = smul.u32 3, 4
    %s2492 = smul.addr %s2491, 8
    %s2493 = scalar_lea.vmem [#allocation6], %s2492
    %v2494 = vld [vmem:[%s2493] sm:$0xff]
    %v2495 = vld [vmem:[%s2493 + $0x8] sm:$0xff]
    %v2496 = vld [vmem:[%s2493 + $0x10] sm:$0xff]
    %v2497 = vld [vmem:[%s2493 + $0x18] sm:$0xff]
    %v2498 = vld [vmem:[#allocation8] sm:$0xff]
    %v2499 = vld [vmem:[#allocation8 + $0x8] sm:$0xff]
    %v2500 = vld [vmem:[#allocation8 + $0x10] sm:$0xff]
    %v2501 = vld [vmem:[#allocation8 + $0x18] sm:$0xff]
    %v2502 = vld [vmem:[#allocation8 + $0x20] sm:$0xff]
    %v2503 = vld [vmem:[#allocation8 + $0x28] sm:$0xff]
    %v2504 = vld [vmem:[#allocation8 + $0x30] sm:$0xff]
    %v2505 = vld [vmem:[#allocation8 + $0x38] sm:$0xff]
    %v2506 = vld [vmem:[#allocation8 + $0x40] sm:$0xff]
    %v2507 = vld [vmem:[#allocation8 + $0x48] sm:$0xff]
    %v2508 = vld [vmem:[#allocation8 + $0x50] sm:$0xff]
    %v2509 = vld [vmem:[#allocation8 + $0x58] sm:$0xff]
    %v2510 = vld [vmem:[#allocation8 + $0x60] sm:$0xff]
    %v2511 = vld [vmem:[#allocation8 + $0x68] sm:$0xff]
    %v2512 = vld [vmem:[#allocation8 + $0x70] sm:$0xff]
    %v2513 = vld [vmem:[#allocation8 + $0x78] sm:$0xff]
    %v2514 = vld [vmem:[#allocation8 + $0x80] sm:$0xff]
    %v2515 = vld [vmem:[#allocation8 + $0x88] sm:$0xff]
    %v2516 = vld [vmem:[#allocation8 + $0x90] sm:$0xff]
    %v2517 = vld [vmem:[#allocation8 + $0x98] sm:$0xff]
    %v2518 = vld [vmem:[#allocation8 + $0xa0] sm:$0xff]
    %v2519 = vld [vmem:[#allocation8 + $0xa8] sm:$0xff]
    %v2520 = vld [vmem:[#allocation8 + $0xb0] sm:$0xff]
    %v2521 = vld [vmem:[#allocation8 + $0xb8] sm:$0xff]
    %v2522 = vld [vmem:[#allocation8 + $0xc0] sm:$0xff]
    %v2523 = vld [vmem:[#allocation8 + $0xc8] sm:$0xff]
    %v2524 = vld [vmem:[#allocation8 + $0xd0] sm:$0xff]
    %v2525 = vld [vmem:[#allocation8 + $0xd8] sm:$0xff]
    %v2526 = vld [vmem:[#allocation8 + $0xe0] sm:$0xff]
    %v2527 = vld [vmem:[#allocation8 + $0xe8] sm:$0xff]
    %v2528 = vld [vmem:[#allocation8 + $0xf0] sm:$0xff]
    %v2529 = vld [vmem:[#allocation8 + $0xf8] sm:$0xff]
    %v2530 = vld [vmem:[#allocation8 + $0x100] sm:$0xff]
    %v2531 = vld [vmem:[#allocation8 + $0x108] sm:$0xff]
    %v2532 = vld [vmem:[#allocation8 + $0x110] sm:$0xff]
    %v2533 = vld [vmem:[#allocation8 + $0x118] sm:$0xff]
    %v2534 = vld [vmem:[#allocation8 + $0x120] sm:$0xff]
    %v2535 = vld [vmem:[#allocation8 + $0x128] sm:$0xff]
    %v2536 = vld [vmem:[#allocation8 + $0x130] sm:$0xff]
    %v2537 = vld [vmem:[#allocation8 + $0x138] sm:$0xff]
    %v2538 = vld [vmem:[#allocation8 + $0x140] sm:$0xff]
    %v2539 = vld [vmem:[#allocation8 + $0x148] sm:$0xff]
    %v2540 = vld [vmem:[#allocation8 + $0x150] sm:$0xff]
    %v2541 = vld [vmem:[#allocation8 + $0x158] sm:$0xff]
    %v2542 = vld [vmem:[#allocation8 + $0x160] sm:$0xff]
    %v2543 = vld [vmem:[#allocation8 + $0x168] sm:$0xff]
    %v2544 = vld [vmem:[#allocation8 + $0x170] sm:$0xff]
    %v2545 = vld [vmem:[#allocation8 + $0x178] sm:$0xff]
    %v2546 = vld [vmem:[#allocation8 + $0x180] sm:$0xff]
    %v2547 = vld [vmem:[#allocation8 + $0x188] sm:$0xff]
    %v2548 = vld [vmem:[#allocation8 + $0x190] sm:$0xff]
    %v2549 = vld [vmem:[#allocation8 + $0x198] sm:$0xff]
    %v2550 = vld [vmem:[#allocation8 + $0x1a0] sm:$0xff]
    %v2551 = vld [vmem:[#allocation8 + $0x1a8] sm:$0xff]
    %v2552 = vld [vmem:[#allocation8 + $0x1b0] sm:$0xff]
    %v2553 = vld [vmem:[#allocation8 + $0x1b8] sm:$0xff]
    %v2554 = vld [vmem:[#allocation8 + $0x1c0] sm:$0xff]
    %v2555 = vld [vmem:[#allocation8 + $0x1c8] sm:$0xff]
    %v2556 = vld [vmem:[#allocation8 + $0x1d0] sm:$0xff]
    %v2557 = vld [vmem:[#allocation8 + $0x1d8] sm:$0xff]
    %v2558 = vld [vmem:[#allocation8 + $0x1e0] sm:$0xff]
    %v2559 = vld [vmem:[#allocation8 + $0x1e8] sm:$0xff]
    %v2560 = vld [vmem:[#allocation8 + $0x1f0] sm:$0xff]
    %v2561 = vld [vmem:[#allocation8 + $0x1f8] sm:$0xff]
    %2562 = vmatprep.subr.mxu0 %v2499
    %2563 = vmatpush1.msra.mxu0 %v2498
    %2564 = vmatprep.subr.mxu0 %v2503
    %2565 = vmatpush1.msra.mxu0 %v2502
    %2566 = vmatprep.subr.mxu0 %v2507
    %2567 = vmatpush1.msra.mxu0 %v2506
    %2568 = vmatprep.subr.mxu0 %v2511
    %2569 = vmatpush1.msra.mxu0 %v2510
    %2570 = vmatprep.subr.mxu0 %v2515
    %2571 = vmatpush1.msra.mxu0 %v2514
    %2572 = vmatprep.subr.mxu0 %v2519
    %2573 = vmatpush1.msra.mxu0 %v2518
    %2574 = vmatprep.subr.mxu0 %v2523
    %2575 = vmatpush1.msra.mxu0 %v2522
    %2576 = vmatprep.subr.mxu0 %v2527
    %2577 = vmatpush1.msra.mxu0 %v2526
    %2578 = vmatprep.subr.mxu0 %v2531
    %2579 = vmatpush1.msra.mxu0 %v2530
    %2580 = vmatprep.subr.mxu0 %v2535
    %2581 = vmatpush1.msra.mxu0 %v2534
    %2582 = vmatprep.subr.mxu0 %v2539
    %2583 = vmatpush1.msra.mxu0 %v2538
    %2584 = vmatprep.subr.mxu0 %v2543
    %2585 = vmatpush1.msra.mxu0 %v2542
    %2586 = vmatprep.subr.mxu0 %v2547
    %2587 = vmatpush1.msra.mxu0 %v2546
    %2588 = vmatprep.subr.mxu0 %v2551
    %2589 = vmatpush1.msra.mxu0 %v2550
    %2590 = vmatprep.subr.mxu0 %v2555
    %2591 = vmatpush1.msra.mxu0 %v2554
    %2592 = vmatprep.subr.mxu0 %v2559
    %2593 = vmatpush1.msra.mxu0 %v2558
    %2594 = vmatprep.subr.mxu0 0.0
    %2595 = vmatpush1.msra.mxu0 0.0
    %2596 = vmatprep.subr.mxu0 0.0
    %2597 = vmatpush1.msra.mxu0 0.0
    %2598 = vmatprep.subr.mxu0 0.0
    %2599 = vmatpush1.msra.mxu0 0.0
    %2600 = vmatprep.subr.mxu0 0.0
    %2601 = vmatpush1.msra.mxu0 0.0
    %2602 = vmatprep.subr.mxu0 0.0
    %2603 = vmatpush1.msra.mxu0 0.0
    %2604 = vmatprep.subr.mxu0 0.0
    %2605 = vmatpush1.msra.mxu0 0.0
    %2606 = vmatprep.subr.mxu0 0.0
    %2607 = vmatpush1.msra.mxu0 0.0
    %2608 = vmatprep.subr.mxu0 0.0
    %2609 = vmatpush1.msra.mxu0 0.0
    %2610 = vmatprep.subr.mxu0 0.0
    %2611 = vmatpush1.msra.mxu0 0.0
    %2612 = vmatprep.subr.mxu0 0.0
    %2613 = vmatpush1.msra.mxu0 0.0
    %2614 = vmatprep.subr.mxu0 0.0
    %2615 = vmatpush1.msra.mxu0 0.0
    %2616 = vmatprep.subr.mxu0 0.0
    %2617 = vmatpush1.msra.mxu0 0.0
    %2618 = vmatprep.subr.mxu0 0.0
    %2619 = vmatpush1.msra.mxu0 0.0
    %2620 = vmatprep.subr.mxu0 0.0
    %2621 = vmatpush1.msra.mxu0 0.0
    %2622 = vmatprep.subr.mxu0 0.0
    %2623 = vmatpush1.msra.mxu0 0.0
    %2624 = vmatprep.subr.mxu0 0.0
    %2625 = vmatpush1.msra.mxu0 0.0
    %2626 = vmatprep.mubr.f32.mxu0 0.0
    %2627 = vmatmul.mubr.f32.gmra.mrb[0].mxu0 %v2048
    %v2628 = vpop.f32.mrb[0].mxu0
    %v2629 = vadd.f32 0.0, %v2628
    %v2630 = vpop.f32.mrb[0].mxu0
    %v2631 = vadd.f32 0.0, %v2630
    %2632 = vdwg.mxu0
    %2633 = vmatprep.subr.mxu0 %v2501
    %2634 = vmatpush1.msra.mxu0 %v2500
    %2635 = vmatprep.subr.mxu0 %v2505
    %2636 = vmatpush1.msra.mxu0 %v2504
    %2637 = vmatprep.subr.mxu0 %v2509
    %2638 = vmatpush1.msra.mxu0 %v2508
    %2639 = vmatprep.subr.mxu0 %v2513
    %2640 = vmatpush1.msra.mxu0 %v2512
    %2641 = vmatprep.subr.mxu0 %v2517
    %2642 = vmatpush1.msra.mxu0 %v2516
    %2643 = vmatprep.subr.mxu0 %v2521
    %2644 = vmatpush1.msra.mxu0 %v2520
    %2645 = vmatprep.subr.mxu0 %v2525
    %2646 = vmatpush1.msra.mxu0 %v2524
    %2647 = vmatprep.subr.mxu0 %v2529
    %2648 = vmatpush1.msra.mxu0 %v2528
    %2649 = vmatprep.subr.mxu0 %v2533
    %2650 = vmatpush1.msra.mxu0 %v2532
    %2651 = vmatprep.subr.mxu0 %v2537
    %2652 = vmatpush1.msra.mxu0 %v2536
    %2653 = vmatprep.subr.mxu0 %v2541
    %2654 = vmatpush1.msra.mxu0 %v2540
    %2655 = vmatprep.subr.mxu0 %v2545
    %2656 = vmatpush1.msra.mxu0 %v2544
    %2657 = vmatprep.subr.mxu0 %v2549
    %2658 = vmatpush1.msra.mxu0 %v2548
    %2659 = vmatprep.subr.mxu0 %v2553
    %2660 = vmatpush1.msra.mxu0 %v2552
    %2661 = vmatprep.subr.mxu0 %v2557
    %2662 = vmatpush1.msra.mxu0 %v2556
    %2663 = vmatprep.subr.mxu0 %v2561
    %2664 = vmatpush1.msra.mxu0 %v2560
    %2665 = vmatprep.subr.mxu0 0.0
    %2666 = vmatpush1.msra.mxu0 0.0
    %2667 = vmatprep.subr.mxu0 0.0
    %2668 = vmatpush1.msra.mxu0 0.0
    %2669 = vmatprep.subr.mxu0 0.0
    %2670 = vmatpush1.msra.mxu0 0.0
    %2671 = vmatprep.subr.mxu0 0.0
    %2672 = vmatpush1.msra.mxu0 0.0
    %2673 = vmatprep.subr.mxu0 0.0
    %2674 = vmatpush1.msra.mxu0 0.0
    %2675 = vmatprep.subr.mxu0 0.0
    %2676 = vmatpush1.msra.mxu0 0.0
    %2677 = vmatprep.subr.mxu0 0.0
    %2678 = vmatpush1.msra.mxu0 0.0
    %2679 = vmatprep.subr.mxu0 0.0
    %2680 = vmatpush1.msra.mxu0 0.0
    %2681 = vmatprep.subr.mxu0 0.0
    %2682 = vmatpush1.msra.mxu0 0.0
    %2683 = vmatprep.subr.mxu0 0.0
    %2684 = vmatpush1.msra.mxu0 0.0
    %2685 = vmatprep.subr.mxu0 0.0
    %2686 = vmatpush1.msra.mxu0 0.0
    %2687 = vmatprep.subr.mxu0 0.0
    %2688 = vmatpush1.msra.mxu0 0.0
    %2689 = vmatprep.subr.mxu0 0.0
    %2690 = vmatpush1.msra.mxu0 0.0
    %2691 = vmatprep.subr.mxu0 0.0
    %2692 = vmatpush1.msra.mxu0 0.0
    %2693 = vmatprep.subr.mxu0 0.0
    %2694 = vmatpush1.msra.mxu0 0.0
    %2695 = vmatprep.subr.mxu0 0.0
    %2696 = vmatpush1.msra.mxu0 0.0
    %2697 = vmatprep.mubr.f32.mxu0 0.0
    %2698 = vmatmul.mubr.f32.gmra.mrb[0].mxu0 %v2048
    %v2699 = vpop.f32.mrb[0].mxu0
    %v2700 = vadd.f32 0.0, %v2699
    %v2701 = vpop.f32.mrb[0].mxu0
    %v2702 = vadd.f32 0.0, %v2701
    %2703 = vdwg.mxu0
    %v2704 = vadd.f32 %v2494, %v2629
    %v2705 = vadd.f32 %v2495, %v2631
    %v2706 = vadd.f32 %v2496, %v2700
    %v2707 = vadd.f32 %v2497, %v2702
    %v2708 = vxor.u32 %v2704, 2147483648
    %v2709 = vmul.f32 %v2708, 1.442695
    %v2710 = vpow.pop %v2709
    %v2711 = vadd.f32 %v2710, 1.0
    %v2712 = vrcp.pop %v2711
    %v2713 = vmul.f32 1.0, %v2712
    %v2714 = vxor.u32 %v2705, 2147483648
    %v2715 = vmul.f32 %v2714, 1.442695
    %v2716 = vpow.pop %v2715
    %v2717 = vadd.f32 %v2716, 1.0
    %v2718 = vrcp.pop %v2717
    %v2719 = vmul.f32 1.0, %v2718
    %v2720 = vtanh.pop %v2706
    %v2721 = vxor.u32 %v2707, 2147483648
    %v2722 = vmul.f32 %v2721, 1.442695
    %v2723 = vpow.pop %v2722
    %v2724 = vadd.f32 %v2723, 1.0
    %v2725 = vrcp.pop %v2724
    %v2726 = vmul.f32 1.0, %v2725
    %v2727 = vmul.f32 %v2719, %v2046
    %v2728 = vmul.f32 %v2713, %v2720
    %v2729 = vadd.f32 %v2727, %v2728
    %v2730 = vtanh.pop %v2729
    %v2731 = vmul.f32 %v2726, %v2730
    %v2732 = vld [vmem:[#allocation11] sm:$0xff]
    %v2733 = vld [vmem:[#allocation11 + $0x8] sm:$0xff]
    %v2734 = vld [vmem:[#allocation11 + $0x10] sm:$0xff]
    %v2735 = vld [vmem:[#allocation11 + $0x18] sm:$0xff]
    %v2736 = vld [vmem:[#allocation11 + $0x20] sm:$0xff]
    %v2737 = vld [vmem:[#allocation11 + $0x28] sm:$0xff]
    %v2738 = vld [vmem:[#allocation11 + $0x30] sm:$0xff]
    %v2739 = vld [vmem:[#allocation11 + $0x38] sm:$0xff]
    %v2740 = vld [vmem:[#allocation11 + $0x40] sm:$0xff]
    %v2741 = vld [vmem:[#allocation11 + $0x48] sm:$0xff]
    %v2742 = vld [vmem:[#allocation11 + $0x50] sm:$0xff]
    %v2743 = vld [vmem:[#allocation11 + $0x58] sm:$0xff]
    %v2744 = vld [vmem:[#allocation11 + $0x60] sm:$0xff]
    %v2745 = vld [vmem:[#allocation11 + $0x68] sm:$0xff]
    %v2746 = vld [vmem:[#allocation11 + $0x70] sm:$0xff]
    %v2747 = vld [vmem:[#allocation11 + $0x78] sm:$0xff]
    %v2748 = vld [vmem:[#allocation11 + $0x80] sm:$0xff]
    %v2749 = vld [vmem:[#allocation11 + $0x88] sm:$0xff]
    %v2750 = vld [vmem:[#allocation11 + $0x90] sm:$0xff]
    %v2751 = vld [vmem:[#allocation11 + $0x98] sm:$0xff]
    %v2752 = vld [vmem:[#allocation11 + $0xa0] sm:$0xff]
    %v2753 = vld [vmem:[#allocation11 + $0xa8] sm:$0xff]
    %v2754 = vld [vmem:[#allocation11 + $0xb0] sm:$0xff]
    %v2755 = vld [vmem:[#allocation11 + $0xb8] sm:$0xff]
    %v2756 = vld [vmem:[#allocation11 + $0xc0] sm:$0xff]
    %v2757 = vld [vmem:[#allocation11 + $0xc8] sm:$0xff]
    %v2758 = vld [vmem:[#allocation11 + $0xd0] sm:$0xff]
    %v2759 = vld [vmem:[#allocation11 + $0xd8] sm:$0xff]
    %v2760 = vld [vmem:[#allocation11 + $0xe0] sm:$0xff]
    %v2761 = vld [vmem:[#allocation11 + $0xe8] sm:$0xff]
    %v2762 = vld [vmem:[#allocation11 + $0xf0] sm:$0xff]
    %v2763 = vld [vmem:[#allocation11 + $0xf8] sm:$0xff]
    %v2764 = vld [vmem:[#allocation11 + $0x100] sm:$0xff]
    %v2765 = vld [vmem:[#allocation11 + $0x108] sm:$0xff]
    %v2766 = vld [vmem:[#allocation11 + $0x110] sm:$0xff]
    %v2767 = vld [vmem:[#allocation11 + $0x118] sm:$0xff]
    %v2768 = vld [vmem:[#allocation11 + $0x120] sm:$0xff]
    %v2769 = vld [vmem:[#allocation11 + $0x128] sm:$0xff]
    %v2770 = vld [vmem:[#allocation11 + $0x130] sm:$0xff]
    %v2771 = vld [vmem:[#allocation11 + $0x138] sm:$0xff]
    %v2772 = vld [vmem:[#allocation11 + $0x140] sm:$0xff]
    %v2773 = vld [vmem:[#allocation11 + $0x148] sm:$0xff]
    %v2774 = vld [vmem:[#allocation11 + $0x150] sm:$0xff]
    %v2775 = vld [vmem:[#allocation11 + $0x158] sm:$0xff]
    %v2776 = vld [vmem:[#allocation11 + $0x160] sm:$0xff]
    %v2777 = vld [vmem:[#allocation11 + $0x168] sm:$0xff]
    %v2778 = vld [vmem:[#allocation11 + $0x170] sm:$0xff]
    %v2779 = vld [vmem:[#allocation11 + $0x178] sm:$0xff]
    %v2780 = vld [vmem:[#allocation11 + $0x180] sm:$0xff]
    %v2781 = vld [vmem:[#allocation11 + $0x188] sm:$0xff]
    %v2782 = vld [vmem:[#allocation11 + $0x190] sm:$0xff]
    %v2783 = vld [vmem:[#allocation11 + $0x198] sm:$0xff]
    %v2784 = vld [vmem:[#allocation11 + $0x1a0] sm:$0xff]
    %v2785 = vld [vmem:[#allocation11 + $0x1a8] sm:$0xff]
    %v2786 = vld [vmem:[#allocation11 + $0x1b0] sm:$0xff]
    %v2787 = vld [vmem:[#allocation11 + $0x1b8] sm:$0xff]
    %v2788 = vld [vmem:[#allocation11 + $0x1c0] sm:$0xff]
    %v2789 = vld [vmem:[#allocation11 + $0x1c8] sm:$0xff]
    %v2790 = vld [vmem:[#allocation11 + $0x1d0] sm:$0xff]
    %v2791 = vld [vmem:[#allocation11 + $0x1d8] sm:$0xff]
    %v2792 = vld [vmem:[#allocation11 + $0x1e0] sm:$0xff]
    %v2793 = vld [vmem:[#allocation11 + $0x1e8] sm:$0xff]
    %v2794 = vld [vmem:[#allocation11 + $0x1f0] sm:$0xff]
    %v2795 = vld [vmem:[#allocation11 + $0x1f8] sm:$0xff]
    %v2796 = vld [vmem:[#allocation13] sm:$0xff]
    %v2797 = vld [vmem:[#allocation13 + $0x8] sm:$0xff]
    %v2798 = vld [vmem:[#allocation13 + $0x10] sm:$0xff]
    %v2799 = vld [vmem:[#allocation13 + $0x18] sm:$0xff]
    %v2800 = vld [vmem:[#allocation13 + $0x20] sm:$0xff]
    %v2801 = vld [vmem:[#allocation13 + $0x28] sm:$0xff]
    %v2802 = vld [vmem:[#allocation13 + $0x30] sm:$0xff]
    %v2803 = vld [vmem:[#allocation13 + $0x38] sm:$0xff]
    %v2804 = vld [vmem:[#allocation13 + $0x40] sm:$0xff]
    %v2805 = vld [vmem:[#allocation13 + $0x48] sm:$0xff]
    %v2806 = vld [vmem:[#allocation13 + $0x50] sm:$0xff]
    %v2807 = vld [vmem:[#allocation13 + $0x58] sm:$0xff]
    %v2808 = vld [vmem:[#allocation13 + $0x60] sm:$0xff]
    %v2809 = vld [vmem:[#allocation13 + $0x68] sm:$0xff]
    %v2810 = vld [vmem:[#allocation13 + $0x70] sm:$0xff]
    %v2811 = vld [vmem:[#allocation13 + $0x78] sm:$0xff]
    %v2812 = vld [vmem:[#allocation13 + $0x80] sm:$0xff]
    %v2813 = vld [vmem:[#allocation13 + $0x88] sm:$0xff]
    %v2814 = vld [vmem:[#allocation13 + $0x90] sm:$0xff]
    %v2815 = vld [vmem:[#allocation13 + $0x98] sm:$0xff]
    %v2816 = vld [vmem:[#allocation13 + $0xa0] sm:$0xff]
    %v2817 = vld [vmem:[#allocation13 + $0xa8] sm:$0xff]
    %v2818 = vld [vmem:[#allocation13 + $0xb0] sm:$0xff]
    %v2819 = vld [vmem:[#allocation13 + $0xb8] sm:$0xff]
    %v2820 = vld [vmem:[#allocation13 + $0xc0] sm:$0xff]
    %v2821 = vld [vmem:[#allocation13 + $0xc8] sm:$0xff]
    %v2822 = vld [vmem:[#allocation13 + $0xd0] sm:$0xff]
    %v2823 = vld [vmem:[#allocation13 + $0xd8] sm:$0xff]
    %v2824 = vld [vmem:[#allocation13 + $0xe0] sm:$0xff]
    %v2825 = vld [vmem:[#allocation13 + $0xe8] sm:$0xff]
    %v2826 = vld [vmem:[#allocation13 + $0xf0] sm:$0xff]
    %v2827 = vld [vmem:[#allocation13 + $0xf8] sm:$0xff]
    %v2828 = vld [vmem:[#allocation13 + $0x100] sm:$0xff]
    %v2829 = vld [vmem:[#allocation13 + $0x108] sm:$0xff]
    %v2830 = vld [vmem:[#allocation13 + $0x110] sm:$0xff]
    %v2831 = vld [vmem:[#allocation13 + $0x118] sm:$0xff]
    %v2832 = vld [vmem:[#allocation13 + $0x120] sm:$0xff]
    %v2833 = vld [vmem:[#allocation13 + $0x128] sm:$0xff]
    %v2834 = vld [vmem:[#allocation13 + $0x130] sm:$0xff]
    %v2835 = vld [vmem:[#allocation13 + $0x138] sm:$0xff]
    %v2836 = vld [vmem:[#allocation13 + $0x140] sm:$0xff]
    %v2837 = vld [vmem:[#allocation13 + $0x148] sm:$0xff]
    %v2838 = vld [vmem:[#allocation13 + $0x150] sm:$0xff]
    %v2839 = vld [vmem:[#allocation13 + $0x158] sm:$0xff]
    %v2840 = vld [vmem:[#allocation13 + $0x160] sm:$0xff]
    %v2841 = vld [vmem:[#allocation13 + $0x168] sm:$0xff]
    %v2842 = vld [vmem:[#allocation13 + $0x170] sm:$0xff]
    %v2843 = vld [vmem:[#allocation13 + $0x178] sm:$0xff]
    %v2844 = vld [vmem:[#allocation13 + $0x180] sm:$0xff]
    %v2845 = vld [vmem:[#allocation13 + $0x188] sm:$0xff]
    %v2846 = vld [vmem:[#allocation13 + $0x190] sm:$0xff]
    %v2847 = vld [vmem:[#allocation13 + $0x198] sm:$0xff]
    %v2848 = vld [vmem:[#allocation13 + $0x1a0] sm:$0xff]
    %v2849 = vld [vmem:[#allocation13 + $0x1a8] sm:$0xff]
    %v2850 = vld [vmem:[#allocation13 + $0x1b0] sm:$0xff]
    %v2851 = vld [vmem:[#allocation13 + $0x1b8] sm:$0xff]
    %v2852 = vld [vmem:[#allocation13 + $0x1c0] sm:$0xff]
    %v2853 = vld [vmem:[#allocation13 + $0x1c8] sm:$0xff]
    %v2854 = vld [vmem:[#allocation13 + $0x1d0] sm:$0xff]
    %v2855 = vld [vmem:[#allocation13 + $0x1d8] sm:$0xff]
    %v2856 = vld [vmem:[#allocation13 + $0x1e0] sm:$0xff]
    %v2857 = vld [vmem:[#allocation13 + $0x1e8] sm:$0xff]
    %v2858 = vld [vmem:[#allocation13 + $0x1f0] sm:$0xff]
    %v2859 = vld [vmem:[#allocation13 + $0x1f8] sm:$0xff]
    %2860 = vmatprep.subr.mxu0 %v2797
    %2861 = vmatpush1.msra.mxu0 %v2796
    %2862 = vmatprep.subr.mxu0 %v2801
    %2863 = vmatpush1.msra.mxu0 %v2800
    %2864 = vmatprep.subr.mxu0 %v2805
    %2865 = vmatpush1.msra.mxu0 %v2804
    %2866 = vmatprep.subr.mxu0 %v2809
    %2867 = vmatpush1.msra.mxu0 %v2808
    %2868 = vmatprep.subr.mxu0 %v2813
    %2869 = vmatpush1.msra.mxu0 %v2812
    %2870 = vmatprep.subr.mxu0 %v2817
    %2871 = vmatpush1.msra.mxu0 %v2816
    %2872 = vmatprep.subr.mxu0 %v2821
    %2873 = vmatpush1.msra.mxu0 %v2820
    %2874 = vmatprep.subr.mxu0 %v2825
    %2875 = vmatpush1.msra.mxu0 %v2824
    %2876 = vmatprep.subr.mxu0 %v2829
    %2877 = vmatpush1.msra.mxu0 %v2828
    %2878 = vmatprep.subr.mxu0 %v2833
    %2879 = vmatpush1.msra.mxu0 %v2832
    %2880 = vmatprep.subr.mxu0 %v2837
    %2881 = vmatpush1.msra.mxu0 %v2836
    %2882 = vmatprep.subr.mxu0 %v2841
    %2883 = vmatpush1.msra.mxu0 %v2840
    %2884 = vmatprep.subr.mxu0 %v2845
    %2885 = vmatpush1.msra.mxu0 %v2844
    %2886 = vmatprep.subr.mxu0 %v2849
    %2887 = vmatpush1.msra.mxu0 %v2848
    %2888 = vmatprep.subr.mxu0 %v2853
    %2889 = vmatpush1.msra.mxu0 %v2852
    %2890 = vmatprep.subr.mxu0 %v2857
    %2891 = vmatpush1.msra.mxu0 %v2856
    %2892 = vmatprep.subr.mxu0 0.0
    %2893 = vmatpush1.msra.mxu0 0.0
    %2894 = vmatprep.subr.mxu0 0.0
    %2895 = vmatpush1.msra.mxu0 0.0
    %2896 = vmatprep.subr.mxu0 0.0
    %2897 = vmatpush1.msra.mxu0 0.0
    %2898 = vmatprep.subr.mxu0 0.0
    %2899 = vmatpush1.msra.mxu0 0.0
    %2900 = vmatprep.subr.mxu0 0.0
    %2901 = vmatpush1.msra.mxu0 0.0
    %2902 = vmatprep.subr.mxu0 0.0
    %2903 = vmatpush1.msra.mxu0 0.0
    %2904 = vmatprep.subr.mxu0 0.0
    %2905 = vmatpush1.msra.mxu0 0.0
    %2906 = vmatprep.subr.mxu0 0.0
    %2907 = vmatpush1.msra.mxu0 0.0
    %2908 = vmatprep.subr.mxu0 0.0
    %2909 = vmatpush1.msra.mxu0 0.0
    %2910 = vmatprep.subr.mxu0 0.0
    %2911 = vmatpush1.msra.mxu0 0.0
    %2912 = vmatprep.subr.mxu0 0.0
    %2913 = vmatpush1.msra.mxu0 0.0
    %2914 = vmatprep.subr.mxu0 0.0
    %2915 = vmatpush1.msra.mxu0 0.0
    %2916 = vmatprep.subr.mxu0 0.0
    %2917 = vmatpush1.msra.mxu0 0.0
    %2918 = vmatprep.subr.mxu0 0.0
    %2919 = vmatpush1.msra.mxu0 0.0
    %2920 = vmatprep.subr.mxu0 0.0
    %2921 = vmatpush1.msra.mxu0 0.0
    %2922 = vmatprep.subr.mxu0 0.0
    %2923 = vmatpush1.msra.mxu0 0.0
    %2924 = vmatprep.mubr.f32.mxu0 0.0
    %2925 = vmatmul.mubr.f32.gmra.mrb[0].mxu0 %v2488
    %v2926 = vpop.f32.mrb[0].mxu0
    %v2927 = vadd.f32 0.0, %v2926
    %v2928 = vpop.f32.mrb[0].mxu0
    %v2929 = vadd.f32 0.0, %v2928
    %2930 = vdwg.mxu0
    %2931 = vmatprep.subr.mxu0 %v2799
    %2932 = vmatpush1.msra.mxu0 %v2798
    %2933 = vmatprep.subr.mxu0 %v2803
    %2934 = vmatpush1.msra.mxu0 %v2802
    %2935 = vmatprep.subr.mxu0 %v2807
    %2936 = vmatpush1.msra.mxu0 %v2806
    %2937 = vmatprep.subr.mxu0 %v2811
    %2938 = vmatpush1.msra.mxu0 %v2810
    %2939 = vmatprep.subr.mxu0 %v2815
    %2940 = vmatpush1.msra.mxu0 %v2814
    %2941 = vmatprep.subr.mxu0 %v2819
    %2942 = vmatpush1.msra.mxu0 %v2818
    %2943 = vmatprep.subr.mxu0 %v2823
    %2944 = vmatpush1.msra.mxu0 %v2822
    %2945 = vmatprep.subr.mxu0 %v2827
    %2946 = vmatpush1.msra.mxu0 %v2826
    %2947 = vmatprep.subr.mxu0 %v2831
    %2948 = vmatpush1.msra.mxu0 %v2830
    %2949 = vmatprep.subr.mxu0 %v2835
    %2950 = vmatpush1.msra.mxu0 %v2834
    %2951 = vmatprep.subr.mxu0 %v2839
    %2952 = vmatpush1.msra.mxu0 %v2838
    %2953 = vmatprep.subr.mxu0 %v2843
    %2954 = vmatpush1.msra.mxu0 %v2842
    %2955 = vmatprep.subr.mxu0 %v2847
    %2956 = vmatpush1.msra.mxu0 %v2846
    %2957 = vmatprep.subr.mxu0 %v2851
    %2958 = vmatpush1.msra.mxu0 %v2850
    %2959 = vmatprep.subr.mxu0 %v2855
    %2960 = vmatpush1.msra.mxu0 %v2854
    %2961 = vmatprep.subr.mxu0 %v2859
    %2962 = vmatpush1.msra.mxu0 %v2858
    %2963 = vmatprep.subr.mxu0 0.0
    %2964 = vmatpush1.msra.mxu0 0.0
    %2965 = vmatprep.subr.mxu0 0.0
    %2966 = vmatpush1.msra.mxu0 0.0
    %2967 = vmatprep.subr.mxu0 0.0
    %2968 = vmatpush1.msra.mxu0 0.0
    %2969 = vmatprep.subr.mxu0 0.0
    %2970 = vmatpush1.msra.mxu0 0.0
    %2971 = vmatprep.subr.mxu0 0.0
    %2972 = vmatpush1.msra.mxu0 0.0
    %2973 = vmatprep.subr.mxu0 0.0
    %2974 = vmatpush1.msra.mxu0 0.0
    %2975 = vmatprep.subr.mxu0 0.0
    %2976 = vmatpush1.msra.mxu0 0.0
    %2977 = vmatprep.subr.mxu0 0.0
    %2978 = vmatpush1.msra.mxu0 0.0
    %2979 = vmatprep.subr.mxu0 0.0
    %2980 = vmatpush1.msra.mxu0 0.0
    %2981 = vmatprep.subr.mxu0 0.0
    %2982 = vmatpush1.msra.mxu0 0.0
    %2983 = vmatprep.subr.mxu0 0.0
    %2984 = vmatpush1.msra.mxu0 0.0
    %2985 = vmatprep.subr.mxu0 0.0
    %2986 = vmatpush1.msra.mxu0 0.0
    %2987 = vmatprep.subr.mxu0 0.0
    %2988 = vmatpush1.msra.mxu0 0.0
    %2989 = vmatprep.subr.mxu0 0.0
    %2990 = vmatpush1.msra.mxu0 0.0
    %2991 = vmatprep.subr.mxu0 0.0
    %2992 = vmatpush1.msra.mxu0 0.0
    %2993 = vmatprep.subr.mxu0 0.0
    %2994 = vmatpush1.msra.mxu0 0.0
    %2995 = vmatprep.mubr.f32.mxu0 0.0
    %2996 = vmatmul.mubr.f32.gmra.mrb[0].mxu0 %v2488
    %v2997 = vpop.f32.mrb[0].mxu0
    %v2998 = vadd.f32 0.0, %v2997
    %v2999 = vpop.f32.mrb[0].mxu0
    %v3000 = vadd.f32 0.0, %v2999
    %3001 = vdwg.mxu0
    %3002 = vmatprep.subr.mxu0 %v2733
    %3003 = vmatpush1.msra.mxu0 %v2732
    %3004 = vmatprep.subr.mxu0 %v2737
    %3005 = vmatpush1.msra.mxu0 %v2736
    %3006 = vmatprep.subr.mxu0 %v2741
    %3007 = vmatpush1.msra.mxu0 %v2740
    %3008 = vmatprep.subr.mxu0 %v2745
    %3009 = vmatpush1.msra.mxu0 %v2744
    %3010 = vmatprep.subr.mxu0 %v2749
    %3011 = vmatpush1.msra.mxu0 %v2748
    %3012 = vmatprep.subr.mxu0 %v2753
    %3013 = vmatpush1.msra.mxu0 %v2752
    %3014 = vmatprep.subr.mxu0 %v2757
    %3015 = vmatpush1.msra.mxu0 %v2756
    %3016 = vmatprep.subr.mxu0 %v2761
    %3017 = vmatpush1.msra.mxu0 %v2760
    %3018 = vmatprep.subr.mxu0 %v2765
    %3019 = vmatpush1.msra.mxu0 %v2764
    %3020 = vmatprep.subr.mxu0 %v2769
    %3021 = vmatpush1.msra.mxu0 %v2768
    %3022 = vmatprep.subr.mxu0 %v2773
    %3023 = vmatpush1.msra.mxu0 %v2772
    %3024 = vmatprep.subr.mxu0 %v2777
    %3025 = vmatpush1.msra.mxu0 %v2776
    %3026 = vmatprep.subr.mxu0 %v2781
    %3027 = vmatpush1.msra.mxu0 %v2780
    %3028 = vmatprep.subr.mxu0 %v2785
    %3029 = vmatpush1.msra.mxu0 %v2784
    %3030 = vmatprep.subr.mxu0 %v2789
    %3031 = vmatpush1.msra.mxu0 %v2788
    %3032 = vmatprep.subr.mxu0 %v2793
    %3033 = vmatpush1.msra.mxu0 %v2792
    %3034 = vmatprep.subr.mxu0 0.0
    %3035 = vmatpush1.msra.mxu0 0.0
    %3036 = vmatprep.subr.mxu0 0.0
    %3037 = vmatpush1.msra.mxu0 0.0
    %3038 = vmatprep.subr.mxu0 0.0
    %3039 = vmatpush1.msra.mxu0 0.0
    %3040 = vmatprep.subr.mxu0 0.0
    %3041 = vmatpush1.msra.mxu0 0.0
    %3042 = vmatprep.subr.mxu0 0.0
    %3043 = vmatpush1.msra.mxu0 0.0
    %3044 = vmatprep.subr.mxu0 0.0
    %3045 = vmatpush1.msra.mxu0 0.0
    %3046 = vmatprep.subr.mxu0 0.0
    %3047 = vmatpush1.msra.mxu0 0.0
    %3048 = vmatprep.subr.mxu0 0.0
    %3049 = vmatpush1.msra.mxu0 0.0
    %3050 = vmatprep.subr.mxu0 0.0
    %3051 = vmatpush1.msra.mxu0 0.0
    %3052 = vmatprep.subr.mxu0 0.0
    %3053 = vmatpush1.msra.mxu0 0.0
    %3054 = vmatprep.subr.mxu0 0.0
    %3055 = vmatpush1.msra.mxu0 0.0
    %3056 = vmatprep.subr.mxu0 0.0
    %3057 = vmatpush1.msra.mxu0 0.0
    %3058 = vmatprep.subr.mxu0 0.0
    %3059 = vmatpush1.msra.mxu0 0.0
    %3060 = vmatprep.subr.mxu0 0.0
    %3061 = vmatpush1.msra.mxu0 0.0
    %3062 = vmatprep.subr.mxu0 0.0
    %3063 = vmatpush1.msra.mxu0 0.0
    %3064 = vmatprep.subr.mxu0 0.0
    %3065 = vmatpush1.msra.mxu0 0.0
    %3066 = vmatprep.mubr.f32.mxu0 0.0
    %3067 = vmatmul.mubr.f32.gmra.mrb[0].mxu0 %v2731
    %v3068 = vpop.f32.mrb[0].mxu0
    %v3069 = vadd.f32 %v2927, %v3068
    %v3070 = vpop.f32.mrb[0].mxu0
    %v3071 = vadd.f32 %v2929, %v3070
    %3072 = vdwg.mxu0
    %3073 = vmatprep.subr.mxu0 %v2735
    %3074 = vmatpush1.msra.mxu0 %v2734
    %3075 = vmatprep.subr.mxu0 %v2739
    %3076 = vmatpush1.msra.mxu0 %v2738
    %3077 = vmatprep.subr.mxu0 %v2743
    %3078 = vmatpush1.msra.mxu0 %v2742
    %3079 = vmatprep.subr.mxu0 %v2747
    %3080 = vmatpush1.msra.mxu0 %v2746
    %3081 = vmatprep.subr.mxu0 %v2751
    %3082 = vmatpush1.msra.mxu0 %v2750
    %3083 = vmatprep.subr.mxu0 %v2755
    %3084 = vmatpush1.msra.mxu0 %v2754
    %3085 = vmatprep.subr.mxu0 %v2759
    %3086 = vmatpush1.msra.mxu0 %v2758
    %3087 = vmatprep.subr.mxu0 %v2763
    %3088 = vmatpush1.msra.mxu0 %v2762
    %3089 = vmatprep.subr.mxu0 %v2767
    %3090 = vmatpush1.msra.mxu0 %v2766
    %3091 = vmatprep.subr.mxu0 %v2771
    %3092 = vmatpush1.msra.mxu0 %v2770
    %3093 = vmatprep.subr.mxu0 %v2775
    %3094 = vmatpush1.msra.mxu0 %v2774
    %3095 = vmatprep.subr.mxu0 %v2779
    %3096 = vmatpush1.msra.mxu0 %v2778
    %3097 = vmatprep.subr.mxu0 %v2783
    %3098 = vmatpush1.msra.mxu0 %v2782
    %3099 = vmatprep.subr.mxu0 %v2787
    %3100 = vmatpush1.msra.mxu0 %v2786
    %3101 = vmatprep.subr.mxu0 %v2791
    %3102 = vmatpush1.msra.mxu0 %v2790
    %3103 = vmatprep.subr.mxu0 %v2795
    %3104 = vmatpush1.msra.mxu0 %v2794
    %3105 = vmatprep.subr.mxu0 0.0
    %3106 = vmatpush1.msra.mxu0 0.0
    %3107 = vmatprep.subr.mxu0 0.0
    %3108 = vmatpush1.msra.mxu0 0.0
    %3109 = vmatprep.subr.mxu0 0.0
    %3110 = vmatpush1.msra.mxu0 0.0
    %3111 = vmatprep.subr.mxu0 0.0
    %3112 = vmatpush1.msra.mxu0 0.0
    %3113 = vmatprep.subr.mxu0 0.0
    %3114 = vmatpush1.msra.mxu0 0.0
    %3115 = vmatprep.subr.mxu0 0.0
    %3116 = vmatpush1.msra.mxu0 0.0
    %3117 = vmatprep.subr.mxu0 0.0
    %3118 = vmatpush1.msra.mxu0 0.0
    %3119 = vmatprep.subr.mxu0 0.0
    %3120 = vmatpush1.msra.mxu0 0.0
    %3121 = vmatprep.subr.mxu0 0.0
    %3122 = vmatpush1.msra.mxu0 0.0
    %3123 = vmatprep.subr.mxu0 0.0
    %3124 = vmatpush1.msra.mxu0 0.0
    %3125 = vmatprep.subr.mxu0 0.0
    %3126 = vmatpush1.msra.mxu0 0.0
    %3127 = vmatprep.subr.mxu0 0.0
    %3128 = vmatpush1.msra.mxu0 0.0
    %3129 = vmatprep.subr.mxu0 0.0
    %3130 = vmatpush1.msra.mxu0 0.0
    %3131 = vmatprep.subr.mxu0 0.0
    %3132 = vmatpush1.msra.mxu0 0.0
    %3133 = vmatprep.subr.mxu0 0.0
    %3134 = vmatpush1.msra.mxu0 0.0
    %3135 = vmatprep.subr.mxu0 0.0
    %3136 = vmatpush1.msra.mxu0 0.0
    %3137 = vmatprep.mubr.f32.mxu0 0.0
    %3138 = vmatmul.mubr.f32.gmra.mrb[0].mxu0 %v2731
    %v3139 = vpop.f32.mrb[0].mxu0
    %v3140 = vadd.f32 %v2998, %v3139
    %v3141 = vpop.f32.mrb[0].mxu0
    %v3142 = vadd.f32 %v3000, %v3141
    %3143 = vdwg.mxu0
    %v3144 = vadd.f32 %v3069, %v422
    %v3145 = vadd.f32 %v3071, %v426
    %v3146 = vadd.f32 %v3140, %v430
    %v3147 = vadd.f32 %v3142, %v434
    %v3148 = vxor.u32 %v3144, 2147483648
    %v3149 = vmul.f32 %v3148, 1.442695
    %v3150 = vpow.pop %v3149
    %v3151 = vadd.f32 %v3150, 1.0
    %v3152 = vrcp.pop %v3151
    %v3153 = vmul.f32 1.0, %v3152
    %v3154 = vxor.u32 %v3145, 2147483648
    %v3155 = vmul.f32 %v3154, 1.442695
    %v3156 = vpow.pop %v3155
    %v3157 = vadd.f32 %v3156, 1.0
    %v3158 = vrcp.pop %v3157
    %v3159 = vmul.f32 1.0, %v3158
    %v3160 = vtanh.pop %v3146
    %v3161 = vxor.u32 %v3147, 2147483648
    %v3162 = vmul.f32 %v3161, 1.442695
    %v3163 = vpow.pop %v3162
    %v3164 = vadd.f32 %v3163, 1.0
    %v3165 = vrcp.pop %v3164
    %v3166 = vmul.f32 1.0, %v3165
    %v3167 = vmul.f32 %v3159, %v2486
    %v3168 = vmul.f32 %v3153, %v3160
    %v3169 = vadd.f32 %v3167, %v3168
    %v3170 = vtanh.pop %v3169
    %v3171 = vmul.f32 %v3166, %v3170
    %s3172 = scalar_lea.vmem [#allocation7], 24
    %3173 = vst [vmem:[%s3172] sm:$0xff] %v3171
    %s3174 = smul.u32 4, 4
    %s3175 = smul.addr %s3174, 8
    %s3176 = scalar_lea.vmem [#allocation6], %s3175
    %v3177 = vld [vmem:[%s3176] sm:$0xff]
    %v3178 = vld [vmem:[%s3176 + $0x8] sm:$0xff]
    %v3179 = vld [vmem:[%s3176 + $0x10] sm:$0xff]
    %v3180 = vld [vmem:[%s3176 + $0x18] sm:$0xff]
    %v3181 = vld [vmem:[#allocation8] sm:$0xff]
    %v3182 = vld [vmem:[#allocation8 + $0x8] sm:$0xff]
    %v3183 = vld [vmem:[#allocation8 + $0x10] sm:$0xff]
    %v3184 = vld [vmem:[#allocation8 + $0x18] sm:$0xff]
    %v3185 = vld [vmem:[#allocation8 + $0x20] sm:$0xff]
    %v3186 = vld [vmem:[#allocation8 + $0x28] sm:$0xff]
    %v3187 = vld [vmem:[#allocation8 + $0x30] sm:$0xff]
    %v3188 = vld [vmem:[#allocation8 + $0x38] sm:$0xff]
    %v3189 = vld [vmem:[#allocation8 + $0x40] sm:$0xff]
    %v3190 = vld [vmem:[#allocation8 + $0x48] sm:$0xff]
    %v3191 = vld [vmem:[#allocation8 + $0x50] sm:$0xff]
    %v3192 = vld [vmem:[#allocation8 + $0x58] sm:$0xff]
    %v3193 = vld [vmem:[#allocation8 + $0x60] sm:$0xff]
    %v3194 = vld [vmem:[#allocation8 + $0x68] sm:$0xff]
    %v3195 = vld [vmem:[#allocation8 + $0x70] sm:$0xff]
    %v3196 = vld [vmem:[#allocation8 + $0x78] sm:$0xff]
    %v3197 = vld [vmem:[#allocation8 + $0x80] sm:$0xff]
    %v3198 = vld [vmem:[#allocation8 + $0x88] sm:$0xff]
    %v3199 = vld [vmem:[#allocation8 + $0x90] sm:$0xff]
    %v3200 = vld [vmem:[#allocation8 + $0x98] sm:$0xff]
    %v3201 = vld [vmem:[#allocation8 + $0xa0] sm:$0xff]
    %v3202 = vld [vmem:[#allocation8 + $0xa8] sm:$0xff]
    %v3203 = vld [vmem:[#allocation8 + $0xb0] sm:$0xff]
    %v3204 = vld [vmem:[#allocation8 + $0xb8] sm:$0xff]
    %v3205 = vld [vmem:[#allocation8 + $0xc0] sm:$0xff]
    %v3206 = vld [vmem:[#allocation8 + $0xc8] sm:$0xff]
    %v3207 = vld [vmem:[#allocation8 + $0xd0] sm:$0xff]
    %v3208 = vld [vmem:[#allocation8 + $0xd8] sm:$0xff]
    %v3209 = vld [vmem:[#allocation8 + $0xe0] sm:$0xff]
    %v3210 = vld [vmem:[#allocation8 + $0xe8] sm:$0xff]
    %v3211 = vld [vmem:[#allocation8 + $0xf0] sm:$0xff]
    %v3212 = vld [vmem:[#allocation8 + $0xf8] sm:$0xff]
    %v3213 = vld [vmem:[#allocation8 + $0x100] sm:$0xff]
    %v3214 = vld [vmem:[#allocation8 + $0x108] sm:$0xff]
    %v3215 = vld [vmem:[#allocation8 + $0x110] sm:$0xff]
    %v3216 = vld [vmem:[#allocation8 + $0x118] sm:$0xff]
    %v3217 = vld [vmem:[#allocation8 + $0x120] sm:$0xff]
    %v3218 = vld [vmem:[#allocation8 + $0x128] sm:$0xff]
    %v3219 = vld [vmem:[#allocation8 + $0x130] sm:$0xff]
    %v3220 = vld [vmem:[#allocation8 + $0x138] sm:$0xff]
    %v3221 = vld [vmem:[#allocation8 + $0x140] sm:$0xff]
    %v3222 = vld [vmem:[#allocation8 + $0x148] sm:$0xff]
    %v3223 = vld [vmem:[#allocation8 + $0x150] sm:$0xff]
    %v3224 = vld [vmem:[#allocation8 + $0x158] sm:$0xff]
    %v3225 = vld [vmem:[#allocation8 + $0x160] sm:$0xff]
    %v3226 = vld [vmem:[#allocation8 + $0x168] sm:$0xff]
    %v3227 = vld [vmem:[#allocation8 + $0x170] sm:$0xff]
    %v3228 = vld [vmem:[#allocation8 + $0x178] sm:$0xff]
    %v3229 = vld [vmem:[#allocation8 + $0x180] sm:$0xff]
    %v3230 = vld [vmem:[#allocation8 + $0x188] sm:$0xff]
    %v3231 = vld [vmem:[#allocation8 + $0x190] sm:$0xff]
    %v3232 = vld [vmem:[#allocation8 + $0x198] sm:$0xff]
    %v3233 = vld [vmem:[#allocation8 + $0x1a0] sm:$0xff]
    %v3234 = vld [vmem:[#allocation8 + $0x1a8] sm:$0xff]
    %v3235 = vld [vmem:[#allocation8 + $0x1b0] sm:$0xff]
    %v3236 = vld [vmem:[#allocation8 + $0x1b8] sm:$0xff]
    %v3237 = vld [vmem:[#allocation8 + $0x1c0] sm:$0xff]
    %v3238 = vld [vmem:[#allocation8 + $0x1c8] sm:$0xff]
    %v3239 = vld [vmem:[#allocation8 + $0x1d0] sm:$0xff]
    %v3240 = vld [vmem:[#allocation8 + $0x1d8] sm:$0xff]
    %v3241 = vld [vmem:[#allocation8 + $0x1e0] sm:$0xff]
    %v3242 = vld [vmem:[#allocation8 + $0x1e8] sm:$0xff]
    %v3243 = vld [vmem:[#allocation8 + $0x1f0] sm:$0xff]
    %v3244 = vld [vmem:[#allocation8 + $0x1f8] sm:$0xff]
    %3245 = vmatprep.subr.mxu0 %v3182
    %3246 = vmatpush1.msra.mxu0 %v3181
    %3247 = vmatprep.subr.mxu0 %v3186
    %3248 = vmatpush1.msra.mxu0 %v3185
    %3249 = vmatprep.subr.mxu0 %v3190
    %3250 = vmatpush1.msra.mxu0 %v3189
    %3251 = vmatprep.subr.mxu0 %v3194
    %3252 = vmatpush1.msra.mxu0 %v3193
    %3253 = vmatprep.subr.mxu0 %v3198
    %3254 = vmatpush1.msra.mxu0 %v3197
    %3255 = vmatprep.subr.mxu0 %v3202
    %3256 = vmatpush1.msra.mxu0 %v3201
    %3257 = vmatprep.subr.mxu0 %v3206
    %3258 = vmatpush1.msra.mxu0 %v3205
    %3259 = vmatprep.subr.mxu0 %v3210
    %3260 = vmatpush1.msra.mxu0 %v3209
    %3261 = vmatprep.subr.mxu0 %v3214
    %3262 = vmatpush1.msra.mxu0 %v3213
    %3263 = vmatprep.subr.mxu0 %v3218
    %3264 = vmatpush1.msra.mxu0 %v3217
    %3265 = vmatprep.subr.mxu0 %v3222
    %3266 = vmatpush1.msra.mxu0 %v3221
    %3267 = vmatprep.subr.mxu0 %v3226
    %3268 = vmatpush1.msra.mxu0 %v3225
    %3269 = vmatprep.subr.mxu0 %v3230
    %3270 = vmatpush1.msra.mxu0 %v3229
    %3271 = vmatprep.subr.mxu0 %v3234
    %3272 = vmatpush1.msra.mxu0 %v3233
    %3273 = vmatprep.subr.mxu0 %v3238
    %3274 = vmatpush1.msra.mxu0 %v3237
    %3275 = vmatprep.subr.mxu0 %v3242
    %3276 = vmatpush1.msra.mxu0 %v3241
    %3277 = vmatprep.subr.mxu0 0.0
    %3278 = vmatpush1.msra.mxu0 0.0
    %3279 = vmatprep.subr.mxu0 0.0
    %3280 = vmatpush1.msra.mxu0 0.0
    %3281 = vmatprep.subr.mxu0 0.0
    %3282 = vmatpush1.msra.mxu0 0.0
    %3283 = vmatprep.subr.mxu0 0.0
    %3284 = vmatpush1.msra.mxu0 0.0
    %3285 = vmatprep.subr.mxu0 0.0
    %3286 = vmatpush1.msra.mxu0 0.0
    %3287 = vmatprep.subr.mxu0 0.0
    %3288 = vmatpush1.msra.mxu0 0.0
    %3289 = vmatprep.subr.mxu0 0.0
    %3290 = vmatpush1.msra.mxu0 0.0
    %3291 = vmatprep.subr.mxu0 0.0
    %3292 = vmatpush1.msra.mxu0 0.0
    %3293 = vmatprep.subr.mxu0 0.0
    %3294 = vmatpush1.msra.mxu0 0.0
    %3295 = vmatprep.subr.mxu0 0.0
    %3296 = vmatpush1.msra.mxu0 0.0
    %3297 = vmatprep.subr.mxu0 0.0
    %3298 = vmatpush1.msra.mxu0 0.0
    %3299 = vmatprep.subr.mxu0 0.0
    %3300 = vmatpush1.msra.mxu0 0.0
    %3301 = vmatprep.subr.mxu0 0.0
    %3302 = vmatpush1.msra.mxu0 0.0
    %3303 = vmatprep.subr.mxu0 0.0
    %3304 = vmatpush1.msra.mxu0 0.0
    %3305 = vmatprep.subr.mxu0 0.0
    %3306 = vmatpush1.msra.mxu0 0.0
    %3307 = vmatprep.subr.mxu0 0.0
    %3308 = vmatpush1.msra.mxu0 0.0
    %3309 = vmatprep.mubr.f32.mxu0 0.0
    %3310 = vmatmul.mubr.f32.gmra.mrb[0].mxu0 %v2731
    %v3311 = vpop.f32.mrb[0].mxu0
    %v3312 = vadd.f32 0.0, %v3311
    %v3313 = vpop.f32.mrb[0].mxu0
    %v3314 = vadd.f32 0.0, %v3313
    %3315 = vdwg.mxu0
    %3316 = vmatprep.subr.mxu0 %v3184
    %3317 = vmatpush1.msra.mxu0 %v3183
    %3318 = vmatprep.subr.mxu0 %v3188
    %3319 = vmatpush1.msra.mxu0 %v3187
    %3320 = vmatprep.subr.mxu0 %v3192
    %3321 = vmatpush1.msra.mxu0 %v3191
    %3322 = vmatprep.subr.mxu0 %v3196
    %3323 = vmatpush1.msra.mxu0 %v3195
    %3324 = vmatprep.subr.mxu0 %v3200
    %3325 = vmatpush1.msra.mxu0 %v3199
    %3326 = vmatprep.subr.mxu0 %v3204
    %3327 = vmatpush1.msra.mxu0 %v3203
    %3328 = vmatprep.subr.mxu0 %v3208
    %3329 = vmatpush1.msra.mxu0 %v3207
    %3330 = vmatprep.subr.mxu0 %v3212
    %3331 = vmatpush1.msra.mxu0 %v3211
    %3332 = vmatprep.subr.mxu0 %v3216
    %3333 = vmatpush1.msra.mxu0 %v3215
    %3334 = vmatprep.subr.mxu0 %v3220
    %3335 = vmatpush1.msra.mxu0 %v3219
    %3336 = vmatprep.subr.mxu0 %v3224
    %3337 = vmatpush1.msra.mxu0 %v3223
    %3338 = vmatprep.subr.mxu0 %v3228
    %3339 = vmatpush1.msra.mxu0 %v3227
    %3340 = vmatprep.subr.mxu0 %v3232
    %3341 = vmatpush1.msra.mxu0 %v3231
    %3342 = vmatprep.subr.mxu0 %v3236
    %3343 = vmatpush1.msra.mxu0 %v3235
    %3344 = vmatprep.subr.mxu0 %v3240
    %3345 = vmatpush1.msra.mxu0 %v3239
    %3346 = vmatprep.subr.mxu0 %v3244
    %3347 = vmatpush1.msra.mxu0 %v3243
    %3348 = vmatprep.subr.mxu0 0.0
    %3349 = vmatpush1.msra.mxu0 0.0
    %3350 = vmatprep.subr.mxu0 0.0
    %3351 = vmatpush1.msra.mxu0 0.0
    %3352 = vmatprep.subr.mxu0 0.0
    %3353 = vmatpush1.msra.mxu0 0.0
    %3354 = vmatprep.subr.mxu0 0.0
    %3355 = vmatpush1.msra.mxu0 0.0
    %3356 = vmatprep.subr.mxu0 0.0
    %3357 = vmatpush1.msra.mxu0 0.0
    %3358 = vmatprep.subr.mxu0 0.0
    %3359 = vmatpush1.msra.mxu0 0.0
    %3360 = vmatprep.subr.mxu0 0.0
    %3361 = vmatpush1.msra.mxu0 0.0
    %3362 = vmatprep.subr.mxu0 0.0
    %3363 = vmatpush1.msra.mxu0 0.0
    %3364 = vmatprep.subr.mxu0 0.0
    %3365 = vmatpush1.msra.mxu0 0.0
    %3366 = vmatprep.subr.mxu0 0.0
    %3367 = vmatpush1.msra.mxu0 0.0
    %3368 = vmatprep.subr.mxu0 0.0
    %3369 = vmatpush1.msra.mxu0 0.0
    %3370 = vmatprep.subr.mxu0 0.0
    %3371 = vmatpush1.msra.mxu0 0.0
    %3372 = vmatprep.subr.mxu0 0.0
    %3373 = vmatpush1.msra.mxu0 0.0
    %3374 = vmatprep.subr.mxu0 0.0
    %3375 = vmatpush1.msra.mxu0 0.0
    %3376 = vmatprep.subr.mxu0 0.0
    %3377 = vmatpush1.msra.mxu0 0.0
    %3378 = vmatprep.subr.mxu0 0.0
    %3379 = vmatpush1.msra.mxu0 0.0
    %3380 = vmatprep.mubr.f32.mxu0 0.0
    %3381 = vmatmul.mubr.f32.gmra.mrb[0].mxu0 %v2731
    %v3382 = vpop.f32.mrb[0].mxu0
    %v3383 = vadd.f32 0.0, %v3382
    %v3384 = vpop.f32.mrb[0].mxu0
    %v3385 = vadd.f32 0.0, %v3384
    %3386 = vdwg.mxu0
    %v3387 = vadd.f32 %v3177, %v3312
    %v3388 = vadd.f32 %v3178, %v3314
    %v3389 = vadd.f32 %v3179, %v3383
    %v3390 = vadd.f32 %v3180, %v3385
    %v3391 = vxor.u32 %v3387, 2147483648
    %v3392 = vmul.f32 %v3391, 1.442695
    %v3393 = vpow.pop %v3392
    %v3394 = vadd.f32 %v3393, 1.0
    %v3395 = vrcp.pop %v3394
    %v3396 = vmul.f32 1.0, %v3395
    %v3397 = vxor.u32 %v3388, 2147483648
    %v3398 = vmul.f32 %v3397, 1.442695
    %v3399 = vpow.pop %v3398
    %v3400 = vadd.f32 %v3399, 1.0
    %v3401 = vrcp.pop %v3400
    %v3402 = vmul.f32 1.0, %v3401
    %v3403 = vtanh.pop %v3389
    %v3404 = vxor.u32 %v3390, 2147483648
    %v3405 = vmul.f32 %v3404, 1.442695
    %v3406 = vpow.pop %v3405
    %v3407 = vadd.f32 %v3406, 1.0
    %v3408 = vrcp.pop %v3407
    %v3409 = vmul.f32 1.0, %v3408
    %v3410 = vmul.f32 %v3402, %v2729
    %v3411 = vmul.f32 %v3396, %v3403
    %v3412 = vadd.f32 %v3410, %v3411
    %v3413 = vtanh.pop %v3412
    %v3414 = vmul.f32 %v3409, %v3413
    %v3415 = vld [vmem:[#allocation11] sm:$0xff]
    %v3416 = vld [vmem:[#allocation11 + $0x8] sm:$0xff]
    %v3417 = vld [vmem:[#allocation11 + $0x10] sm:$0xff]
    %v3418 = vld [vmem:[#allocation11 + $0x18] sm:$0xff]
    %v3419 = vld [vmem:[#allocation11 + $0x20] sm:$0xff]
    %v3420 = vld [vmem:[#allocation11 + $0x28] sm:$0xff]
    %v3421 = vld [vmem:[#allocation11 + $0x30] sm:$0xff]
    %v3422 = vld [vmem:[#allocation11 + $0x38] sm:$0xff]
    %v3423 = vld [vmem:[#allocation11 + $0x40] sm:$0xff]
    %v3424 = vld [vmem:[#allocation11 + $0x48] sm:$0xff]
    %v3425 = vld [vmem:[#allocation11 + $0x50] sm:$0xff]
    %v3426 = vld [vmem:[#allocation11 + $0x58] sm:$0xff]
    %v3427 = vld [vmem:[#allocation11 + $0x60] sm:$0xff]
    %v3428 = vld [vmem:[#allocation11 + $0x68] sm:$0xff]
    %v3429 = vld [vmem:[#allocation11 + $0x70] sm:$0xff]
    %v3430 = vld [vmem:[#allocation11 + $0x78] sm:$0xff]
    %v3431 = vld [vmem:[#allocation11 + $0x80] sm:$0xff]
    %v3432 = vld [vmem:[#allocation11 + $0x88] sm:$0xff]
    %v3433 = vld [vmem:[#allocation11 + $0x90] sm:$0xff]
    %v3434 = vld [vmem:[#allocation11 + $0x98] sm:$0xff]
    %v3435 = vld [vmem:[#allocation11 + $0xa0] sm:$0xff]
    %v3436 = vld [vmem:[#allocation11 + $0xa8] sm:$0xff]
    %v3437 = vld [vmem:[#allocation11 + $0xb0] sm:$0xff]
    %v3438 = vld [vmem:[#allocation11 + $0xb8] sm:$0xff]
    %v3439 = vld [vmem:[#allocation11 + $0xc0] sm:$0xff]
    %v3440 = vld [vmem:[#allocation11 + $0xc8] sm:$0xff]
    %v3441 = vld [vmem:[#allocation11 + $0xd0] sm:$0xff]
    %v3442 = vld [vmem:[#allocation11 + $0xd8] sm:$0xff]
    %v3443 = vld [vmem:[#allocation11 + $0xe0] sm:$0xff]
    %v3444 = vld [vmem:[#allocation11 + $0xe8] sm:$0xff]
    %v3445 = vld [vmem:[#allocation11 + $0xf0] sm:$0xff]
    %v3446 = vld [vmem:[#allocation11 + $0xf8] sm:$0xff]
    %v3447 = vld [vmem:[#allocation11 + $0x100] sm:$0xff]
    %v3448 = vld [vmem:[#allocation11 + $0x108] sm:$0xff]
    %v3449 = vld [vmem:[#allocation11 + $0x110] sm:$0xff]
    %v3450 = vld [vmem:[#allocation11 + $0x118] sm:$0xff]
    %v3451 = vld [vmem:[#allocation11 + $0x120] sm:$0xff]
    %v3452 = vld [vmem:[#allocation11 + $0x128] sm:$0xff]
    %v3453 = vld [vmem:[#allocation11 + $0x130] sm:$0xff]
    %v3454 = vld [vmem:[#allocation11 + $0x138] sm:$0xff]
    %v3455 = vld [vmem:[#allocation11 + $0x140] sm:$0xff]
    %v3456 = vld [vmem:[#allocation11 + $0x148] sm:$0xff]
    %v3457 = vld [vmem:[#allocation11 + $0x150] sm:$0xff]
    %v3458 = vld [vmem:[#allocation11 + $0x158] sm:$0xff]
    %v3459 = vld [vmem:[#allocation11 + $0x160] sm:$0xff]
    %v3460 = vld [vmem:[#allocation11 + $0x168] sm:$0xff]
    %v3461 = vld [vmem:[#allocation11 + $0x170] sm:$0xff]
    %v3462 = vld [vmem:[#allocation11 + $0x178] sm:$0xff]
    %v3463 = vld [vmem:[#allocation11 + $0x180] sm:$0xff]
    %v3464 = vld [vmem:[#allocation11 + $0x188] sm:$0xff]
    %v3465 = vld [vmem:[#allocation11 + $0x190] sm:$0xff]
    %v3466 = vld [vmem:[#allocation11 + $0x198] sm:$0xff]
    %v3467 = vld [vmem:[#allocation11 + $0x1a0] sm:$0xff]
    %v3468 = vld [vmem:[#allocation11 + $0x1a8] sm:$0xff]
    %v3469 = vld [vmem:[#allocation11 + $0x1b0] sm:$0xff]
    %v3470 = vld [vmem:[#allocation11 + $0x1b8] sm:$0xff]
    %v3471 = vld [vmem:[#allocation11 + $0x1c0] sm:$0xff]
    %v3472 = vld [vmem:[#allocation11 + $0x1c8] sm:$0xff]
    %v3473 = vld [vmem:[#allocation11 + $0x1d0] sm:$0xff]
    %v3474 = vld [vmem:[#allocation11 + $0x1d8] sm:$0xff]
    %v3475 = vld [vmem:[#allocation11 + $0x1e0] sm:$0xff]
    %v3476 = vld [vmem:[#allocation11 + $0x1e8] sm:$0xff]
    %v3477 = vld [vmem:[#allocation11 + $0x1f0] sm:$0xff]
    %v3478 = vld [vmem:[#allocation11 + $0x1f8] sm:$0xff]
    %v3479 = vld [vmem:[#allocation13] sm:$0xff]
    %v3480 = vld [vmem:[#allocation13 + $0x8] sm:$0xff]
    %v3481 = vld [vmem:[#allocation13 + $0x10] sm:$0xff]
    %v3482 = vld [vmem:[#allocation13 + $0x18] sm:$0xff]
    %v3483 = vld [vmem:[#allocation13 + $0x20] sm:$0xff]
    %v3484 = vld [vmem:[#allocation13 + $0x28] sm:$0xff]
    %v3485 = vld [vmem:[#allocation13 + $0x30] sm:$0xff]
    %v3486 = vld [vmem:[#allocation13 + $0x38] sm:$0xff]
    %v3487 = vld [vmem:[#allocation13 + $0x40] sm:$0xff]
    %v3488 = vld [vmem:[#allocation13 + $0x48] sm:$0xff]
    %v3489 = vld [vmem:[#allocation13 + $0x50] sm:$0xff]
    %v3490 = vld [vmem:[#allocation13 + $0x58] sm:$0xff]
    %v3491 = vld [vmem:[#allocation13 + $0x60] sm:$0xff]
    %v3492 = vld [vmem:[#allocation13 + $0x68] sm:$0xff]
    %v3493 = vld [vmem:[#allocation13 + $0x70] sm:$0xff]
    %v3494 = vld [vmem:[#allocation13 + $0x78] sm:$0xff]
    %v3495 = vld [vmem:[#allocation13 + $0x80] sm:$0xff]
    %v3496 = vld [vmem:[#allocation13 + $0x88] sm:$0xff]
    %v3497 = vld [vmem:[#allocation13 + $0x90] sm:$0xff]
    %v3498 = vld [vmem:[#allocation13 + $0x98] sm:$0xff]
    %v3499 = vld [vmem:[#allocation13 + $0xa0] sm:$0xff]
    %v3500 = vld [vmem:[#allocation13 + $0xa8] sm:$0xff]
    %v3501 = vld [vmem:[#allocation13 + $0xb0] sm:$0xff]
    %v3502 = vld [vmem:[#allocation13 + $0xb8] sm:$0xff]
    %v3503 = vld [vmem:[#allocation13 + $0xc0] sm:$0xff]
    %v3504 = vld [vmem:[#allocation13 + $0xc8] sm:$0xff]
    %v3505 = vld [vmem:[#allocation13 + $0xd0] sm:$0xff]
    %v3506 = vld [vmem:[#allocation13 + $0xd8] sm:$0xff]
    %v3507 = vld [vmem:[#allocation13 + $0xe0] sm:$0xff]
    %v3508 = vld [vmem:[#allocation13 + $0xe8] sm:$0xff]
    %v3509 = vld [vmem:[#allocation13 + $0xf0] sm:$0xff]
    %v3510 = vld [vmem:[#allocation13 + $0xf8] sm:$0xff]
    %v3511 = vld [vmem:[#allocation13 + $0x100] sm:$0xff]
    %v3512 = vld [vmem:[#allocation13 + $0x108] sm:$0xff]
    %v3513 = vld [vmem:[#allocation13 + $0x110] sm:$0xff]
    %v3514 = vld [vmem:[#allocation13 + $0x118] sm:$0xff]
    %v3515 = vld [vmem:[#allocation13 + $0x120] sm:$0xff]
    %v3516 = vld [vmem:[#allocation13 + $0x128] sm:$0xff]
    %v3517 = vld [vmem:[#allocation13 + $0x130] sm:$0xff]
    %v3518 = vld [vmem:[#allocation13 + $0x138] sm:$0xff]
    %v3519 = vld [vmem:[#allocation13 + $0x140] sm:$0xff]
    %v3520 = vld [vmem:[#allocation13 + $0x148] sm:$0xff]
    %v3521 = vld [vmem:[#allocation13 + $0x150] sm:$0xff]
    %v3522 = vld [vmem:[#allocation13 + $0x158] sm:$0xff]
    %v3523 = vld [vmem:[#allocation13 + $0x160] sm:$0xff]
    %v3524 = vld [vmem:[#allocation13 + $0x168] sm:$0xff]
    %v3525 = vld [vmem:[#allocation13 + $0x170] sm:$0xff]
    %v3526 = vld [vmem:[#allocation13 + $0x178] sm:$0xff]
    %v3527 = vld [vmem:[#allocation13 + $0x180] sm:$0xff]
    %v3528 = vld [vmem:[#allocation13 + $0x188] sm:$0xff]
    %v3529 = vld [vmem:[#allocation13 + $0x190] sm:$0xff]
    %v3530 = vld [vmem:[#allocation13 + $0x198] sm:$0xff]
    %v3531 = vld [vmem:[#allocation13 + $0x1a0] sm:$0xff]
    %v3532 = vld [vmem:[#allocation13 + $0x1a8] sm:$0xff]
    %v3533 = vld [vmem:[#allocation13 + $0x1b0] sm:$0xff]
    %v3534 = vld [vmem:[#allocation13 + $0x1b8] sm:$0xff]
    %v3535 = vld [vmem:[#allocation13 + $0x1c0] sm:$0xff]
    %v3536 = vld [vmem:[#allocation13 + $0x1c8] sm:$0xff]
    %v3537 = vld [vmem:[#allocation13 + $0x1d0] sm:$0xff]
    %v3538 = vld [vmem:[#allocation13 + $0x1d8] sm:$0xff]
    %v3539 = vld [vmem:[#allocation13 + $0x1e0] sm:$0xff]
    %v3540 = vld [vmem:[#allocation13 + $0x1e8] sm:$0xff]
    %v3541 = vld [vmem:[#allocation13 + $0x1f0] sm:$0xff]
    %v3542 = vld [vmem:[#allocation13 + $0x1f8] sm:$0xff]
    %3543 = vmatprep.subr.mxu0 %v3480
    %3544 = vmatpush1.msra.mxu0 %v3479
    %3545 = vmatprep.subr.mxu0 %v3484
    %3546 = vmatpush1.msra.mxu0 %v3483
    %3547 = vmatprep.subr.mxu0 %v3488
    %3548 = vmatpush1.msra.mxu0 %v3487
    %3549 = vmatprep.subr.mxu0 %v3492
    %3550 = vmatpush1.msra.mxu0 %v3491
    %3551 = vmatprep.subr.mxu0 %v3496
    %3552 = vmatpush1.msra.mxu0 %v3495
    %3553 = vmatprep.subr.mxu0 %v3500
    %3554 = vmatpush1.msra.mxu0 %v3499
    %3555 = vmatprep.subr.mxu0 %v3504
    %3556 = vmatpush1.msra.mxu0 %v3503
    %3557 = vmatprep.subr.mxu0 %v3508
    %3558 = vmatpush1.msra.mxu0 %v3507
    %3559 = vmatprep.subr.mxu0 %v3512
    %3560 = vmatpush1.msra.mxu0 %v3511
    %3561 = vmatprep.subr.mxu0 %v3516
    %3562 = vmatpush1.msra.mxu0 %v3515
    %3563 = vmatprep.subr.mxu0 %v3520
    %3564 = vmatpush1.msra.mxu0 %v3519
    %3565 = vmatprep.subr.mxu0 %v3524
    %3566 = vmatpush1.msra.mxu0 %v3523
    %3567 = vmatprep.subr.mxu0 %v3528
    %3568 = vmatpush1.msra.mxu0 %v3527
    %3569 = vmatprep.subr.mxu0 %v3532
    %3570 = vmatpush1.msra.mxu0 %v3531
    %3571 = vmatprep.subr.mxu0 %v3536
    %3572 = vmatpush1.msra.mxu0 %v3535
    %3573 = vmatprep.subr.mxu0 %v3540
    %3574 = vmatpush1.msra.mxu0 %v3539
    %3575 = vmatprep.subr.mxu0 0.0
    %3576 = vmatpush1.msra.mxu0 0.0
    %3577 = vmatprep.subr.mxu0 0.0
    %3578 = vmatpush1.msra.mxu0 0.0
    %3579 = vmatprep.subr.mxu0 0.0
    %3580 = vmatpush1.msra.mxu0 0.0
    %3581 = vmatprep.subr.mxu0 0.0
    %3582 = vmatpush1.msra.mxu0 0.0
    %3583 = vmatprep.subr.mxu0 0.0
    %3584 = vmatpush1.msra.mxu0 0.0
    %3585 = vmatprep.subr.mxu0 0.0
    %3586 = vmatpush1.msra.mxu0 0.0
    %3587 = vmatprep.subr.mxu0 0.0
    %3588 = vmatpush1.msra.mxu0 0.0
    %3589 = vmatprep.subr.mxu0 0.0
    %3590 = vmatpush1.msra.mxu0 0.0
    %3591 = vmatprep.subr.mxu0 0.0
    %3592 = vmatpush1.msra.mxu0 0.0
    %3593 = vmatprep.subr.mxu0 0.0
    %3594 = vmatpush1.msra.mxu0 0.0
    %3595 = vmatprep.subr.mxu0 0.0
    %3596 = vmatpush1.msra.mxu0 0.0
    %3597 = vmatprep.subr.mxu0 0.0
    %3598 = vmatpush1.msra.mxu0 0.0
    %3599 = vmatprep.subr.mxu0 0.0
    %3600 = vmatpush1.msra.mxu0 0.0
    %3601 = vmatprep.subr.mxu0 0.0
    %3602 = vmatpush1.msra.mxu0 0.0
    %3603 = vmatprep.subr.mxu0 0.0
    %3604 = vmatpush1.msra.mxu0 0.0
    %3605 = vmatprep.subr.mxu0 0.0
    %3606 = vmatpush1.msra.mxu0 0.0
    %3607 = vmatprep.mubr.f32.mxu0 0.0
    %3608 = vmatmul.mubr.f32.gmra.mrb[0].mxu0 %v3171
    %v3609 = vpop.f32.mrb[0].mxu0
    %v3610 = vadd.f32 0.0, %v3609
    %v3611 = vpop.f32.mrb[0].mxu0
    %v3612 = vadd.f32 0.0, %v3611
    %3613 = vdwg.mxu0
    %3614 = vmatprep.subr.mxu0 %v3482
    %3615 = vmatpush1.msra.mxu0 %v3481
    %3616 = vmatprep.subr.mxu0 %v3486
    %3617 = vmatpush1.msra.mxu0 %v3485
    %3618 = vmatprep.subr.mxu0 %v3490
    %3619 = vmatpush1.msra.mxu0 %v3489
    %3620 = vmatprep.subr.mxu0 %v3494
    %3621 = vmatpush1.msra.mxu0 %v3493
    %3622 = vmatprep.subr.mxu0 %v3498
    %3623 = vmatpush1.msra.mxu0 %v3497
    %3624 = vmatprep.subr.mxu0 %v3502
    %3625 = vmatpush1.msra.mxu0 %v3501
    %3626 = vmatprep.subr.mxu0 %v3506
    %3627 = vmatpush1.msra.mxu0 %v3505
    %3628 = vmatprep.subr.mxu0 %v3510
    %3629 = vmatpush1.msra.mxu0 %v3509
    %3630 = vmatprep.subr.mxu0 %v3514
    %3631 = vmatpush1.msra.mxu0 %v3513
    %3632 = vmatprep.subr.mxu0 %v3518
    %3633 = vmatpush1.msra.mxu0 %v3517
    %3634 = vmatprep.subr.mxu0 %v3522
    %3635 = vmatpush1.msra.mxu0 %v3521
    %3636 = vmatprep.subr.mxu0 %v3526
    %3637 = vmatpush1.msra.mxu0 %v3525
    %3638 = vmatprep.subr.mxu0 %v3530
    %3639 = vmatpush1.msra.mxu0 %v3529
    %3640 = vmatprep.subr.mxu0 %v3534
    %3641 = vmatpush1.msra.mxu0 %v3533
    %3642 = vmatprep.subr.mxu0 %v3538
    %3643 = vmatpush1.msra.mxu0 %v3537
    %3644 = vmatprep.subr.mxu0 %v3542
    %3645 = vmatpush1.msra.mxu0 %v3541
    %3646 = vmatprep.subr.mxu0 0.0
    %3647 = vmatpush1.msra.mxu0 0.0
    %3648 = vmatprep.subr.mxu0 0.0
    %3649 = vmatpush1.msra.mxu0 0.0
    %3650 = vmatprep.subr.mxu0 0.0
    %3651 = vmatpush1.msra.mxu0 0.0
    %3652 = vmatprep.subr.mxu0 0.0
    %3653 = vmatpush1.msra.mxu0 0.0
    %3654 = vmatprep.subr.mxu0 0.0
    %3655 = vmatpush1.msra.mxu0 0.0
    %3656 = vmatprep.subr.mxu0 0.0
    %3657 = vmatpush1.msra.mxu0 0.0
    %3658 = vmatprep.subr.mxu0 0.0
    %3659 = vmatpush1.msra.mxu0 0.0
    %3660 = vmatprep.subr.mxu0 0.0
    %3661 = vmatpush1.msra.mxu0 0.0
    %3662 = vmatprep.subr.mxu0 0.0
    %3663 = vmatpush1.msra.mxu0 0.0
    %3664 = vmatprep.subr.mxu0 0.0
    %3665 = vmatpush1.msra.mxu0 0.0
    %3666 = vmatprep.subr.mxu0 0.0
    %3667 = vmatpush1.msra.mxu0 0.0
    %3668 = vmatprep.subr.mxu0 0.0
    %3669 = vmatpush1.msra.mxu0 0.0
    %3670 = vmatprep.subr.mxu0 0.0
    %3671 = vmatpush1.msra.mxu0 0.0
    %3672 = vmatprep.subr.mxu0 0.0
    %3673 = vmatpush1.msra.mxu0 0.0
    %3674 = vmatprep.subr.mxu0 0.0
    %3675 = vmatpush1.msra.mxu0 0.0
    %3676 = vmatprep.subr.mxu0 0.0
    %3677 = vmatpush1.msra.mxu0 0.0
    %3678 = vmatprep.mubr.f32.mxu0 0.0
    %3679 = vmatmul.mubr.f32.gmra.mrb[0].mxu0 %v3171
    %v3680 = vpop.f32.mrb[0].mxu0
    %v3681 = vadd.f32 0.0, %v3680
    %v3682 = vpop.f32.mrb[0].mxu0
    %v3683 = vadd.f32 0.0, %v3682
    %3684 = vdwg.mxu0
    %3685 = vmatprep.subr.mxu0 %v3416
    %3686 = vmatpush1.msra.mxu0 %v3415
    %3687 = vmatprep.subr.mxu0 %v3420
    %3688 = vmatpush1.msra.mxu0 %v3419
    %3689 = vmatprep.subr.mxu0 %v3424
    %3690 = vmatpush1.msra.mxu0 %v3423
    %3691 = vmatprep.subr.mxu0 %v3428
    %3692 = vmatpush1.msra.mxu0 %v3427
    %3693 = vmatprep.subr.mxu0 %v3432
    %3694 = vmatpush1.msra.mxu0 %v3431
    %3695 = vmatprep.subr.mxu0 %v3436
    %3696 = vmatpush1.msra.mxu0 %v3435
    %3697 = vmatprep.subr.mxu0 %v3440
    %3698 = vmatpush1.msra.mxu0 %v3439
    %3699 = vmatprep.subr.mxu0 %v3444
    %3700 = vmatpush1.msra.mxu0 %v3443
    %3701 = vmatprep.subr.mxu0 %v3448
    %3702 = vmatpush1.msra.mxu0 %v3447
    %3703 = vmatprep.subr.mxu0 %v3452
    %3704 = vmatpush1.msra.mxu0 %v3451
    %3705 = vmatprep.subr.mxu0 %v3456
    %3706 = vmatpush1.msra.mxu0 %v3455
    %3707 = vmatprep.subr.mxu0 %v3460
    %3708 = vmatpush1.msra.mxu0 %v3459
    %3709 = vmatprep.subr.mxu0 %v3464
    %3710 = vmatpush1.msra.mxu0 %v3463
    %3711 = vmatprep.subr.mxu0 %v3468
    %3712 = vmatpush1.msra.mxu0 %v3467
    %3713 = vmatprep.subr.mxu0 %v3472
    %3714 = vmatpush1.msra.mxu0 %v3471
    %3715 = vmatprep.subr.mxu0 %v3476
    %3716 = vmatpush1.msra.mxu0 %v3475
    %3717 = vmatprep.subr.mxu0 0.0
    %3718 = vmatpush1.msra.mxu0 0.0
    %3719 = vmatprep.subr.mxu0 0.0
    %3720 = vmatpush1.msra.mxu0 0.0
    %3721 = vmatprep.subr.mxu0 0.0
    %3722 = vmatpush1.msra.mxu0 0.0
    %3723 = vmatprep.subr.mxu0 0.0
    %3724 = vmatpush1.msra.mxu0 0.0
    %3725 = vmatprep.subr.mxu0 0.0
    %3726 = vmatpush1.msra.mxu0 0.0
    %3727 = vmatprep.subr.mxu0 0.0
    %3728 = vmatpush1.msra.mxu0 0.0
    %3729 = vmatprep.subr.mxu0 0.0
    %3730 = vmatpush1.msra.mxu0 0.0
    %3731 = vmatprep.subr.mxu0 0.0
    %3732 = vmatpush1.msra.mxu0 0.0
    %3733 = vmatprep.subr.mxu0 0.0
    %3734 = vmatpush1.msra.mxu0 0.0
    %3735 = vmatprep.subr.mxu0 0.0
    %3736 = vmatpush1.msra.mxu0 0.0
    %3737 = vmatprep.subr.mxu0 0.0
    %3738 = vmatpush1.msra.mxu0 0.0
    %3739 = vmatprep.subr.mxu0 0.0
    %3740 = vmatpush1.msra.mxu0 0.0
    %3741 = vmatprep.subr.mxu0 0.0
    %3742 = vmatpush1.msra.mxu0 0.0
    %3743 = vmatprep.subr.mxu0 0.0
    %3744 = vmatpush1.msra.mxu0 0.0
    %3745 = vmatprep.subr.mxu0 0.0
    %3746 = vmatpush1.msra.mxu0 0.0
    %3747 = vmatprep.subr.mxu0 0.0
    %3748 = vmatpush1.msra.mxu0 0.0
    %3749 = vmatprep.mubr.f32.mxu0 0.0
    %3750 = vmatmul.mubr.f32.gmra.mrb[0].mxu0 %v3414
    %v3751 = vpop.f32.mrb[0].mxu0
    %v3752 = vadd.f32 %v3610, %v3751
    %v3753 = vpop.f32.mrb[0].mxu0
    %v3754 = vadd.f32 %v3612, %v3753
    %3755 = vdwg.mxu0
    %3756 = vmatprep.subr.mxu0 %v3418
    %3757 = vmatpush1.msra.mxu0 %v3417
    %3758 = vmatprep.subr.mxu0 %v3422
    %3759 = vmatpush1.msra.mxu0 %v3421
    %3760 = vmatprep.subr.mxu0 %v3426
    %3761 = vmatpush1.msra.mxu0 %v3425
    %3762 = vmatprep.subr.mxu0 %v3430
    %3763 = vmatpush1.msra.mxu0 %v3429
    %3764 = vmatprep.subr.mxu0 %v3434
    %3765 = vmatpush1.msra.mxu0 %v3433
    %3766 = vmatprep.subr.mxu0 %v3438
    %3767 = vmatpush1.msra.mxu0 %v3437
    %3768 = vmatprep.subr.mxu0 %v3442
    %3769 = vmatpush1.msra.mxu0 %v3441
    %3770 = vmatprep.subr.mxu0 %v3446
    %3771 = vmatpush1.msra.mxu0 %v3445
    %3772 = vmatprep.subr.mxu0 %v3450
    %3773 = vmatpush1.msra.mxu0 %v3449
    %3774 = vmatprep.subr.mxu0 %v3454
    %3775 = vmatpush1.msra.mxu0 %v3453
    %3776 = vmatprep.subr.mxu0 %v3458
    %3777 = vmatpush1.msra.mxu0 %v3457
    %3778 = vmatprep.subr.mxu0 %v3462
    %3779 = vmatpush1.msra.mxu0 %v3461
    %3780 = vmatprep.subr.mxu0 %v3466
    %3781 = vmatpush1.msra.mxu0 %v3465
    %3782 = vmatprep.subr.mxu0 %v3470
    %3783 = vmatpush1.msra.mxu0 %v3469
    %3784 = vmatprep.subr.mxu0 %v3474
    %3785 = vmatpush1.msra.mxu0 %v3473
    %3786 = vmatprep.subr.mxu0 %v3478
    %3787 = vmatpush1.msra.mxu0 %v3477
    %3788 = vmatprep.subr.mxu0 0.0
    %3789 = vmatpush1.msra.mxu0 0.0
    %3790 = vmatprep.subr.mxu0 0.0
    %3791 = vmatpush1.msra.mxu0 0.0
    %3792 = vmatprep.subr.mxu0 0.0
    %3793 = vmatpush1.msra.mxu0 0.0
    %3794 = vmatprep.subr.mxu0 0.0
    %3795 = vmatpush1.msra.mxu0 0.0
    %3796 = vmatprep.subr.mxu0 0.0
    %3797 = vmatpush1.msra.mxu0 0.0
    %3798 = vmatprep.subr.mxu0 0.0
    %3799 = vmatpush1.msra.mxu0 0.0
    %3800 = vmatprep.subr.mxu0 0.0
    %3801 = vmatpush1.msra.mxu0 0.0
    %3802 = vmatprep.subr.mxu0 0.0
    %3803 = vmatpush1.msra.mxu0 0.0
    %3804 = vmatprep.subr.mxu0 0.0
    %3805 = vmatpush1.msra.mxu0 0.0
    %3806 = vmatprep.subr.mxu0 0.0
    %3807 = vmatpush1.msra.mxu0 0.0
    %3808 = vmatprep.subr.mxu0 0.0
    %3809 = vmatpush1.msra.mxu0 0.0
    %3810 = vmatprep.subr.mxu0 0.0
    %3811 = vmatpush1.msra.mxu0 0.0
    %3812 = vmatprep.subr.mxu0 0.0
    %3813 = vmatpush1.msra.mxu0 0.0
    %3814 = vmatprep.subr.mxu0 0.0
    %3815 = vmatpush1.msra.mxu0 0.0
    %3816 = vmatprep.subr.mxu0 0.0
    %3817 = vmatpush1.msra.mxu0 0.0
    %3818 = vmatprep.subr.mxu0 0.0
    %3819 = vmatpush1.msra.mxu0 0.0
    %3820 = vmatprep.mubr.f32.mxu0 0.0
    %3821 = vmatmul.mubr.f32.gmra.mrb[0].mxu0 %v3414
    %v3822 = vpop.f32.mrb[0].mxu0
    %v3823 = vadd.f32 %v3681, %v3822
    %v3824 = vpop.f32.mrb[0].mxu0
    %v3825 = vadd.f32 %v3683, %v3824
    %3826 = vdwg.mxu0
    %v3827 = vadd.f32 %v3752, %v422
    %v3828 = vadd.f32 %v3754, %v426
    %v3829 = vadd.f32 %v3823, %v430
    %v3830 = vadd.f32 %v3825, %v434
    %v3831 = vxor.u32 %v3827, 2147483648
    %v3832 = vmul.f32 %v3831, 1.442695
    %v3833 = vpow.pop %v3832
    %v3834 = vadd.f32 %v3833, 1.0
    %v3835 = vrcp.pop %v3834
    %v3836 = vmul.f32 1.0, %v3835
    %v3837 = vxor.u32 %v3828, 2147483648
    %v3838 = vmul.f32 %v3837, 1.442695
    %v3839 = vpow.pop %v3838
    %v3840 = vadd.f32 %v3839, 1.0
    %v3841 = vrcp.pop %v3840
    %v3842 = vmul.f32 1.0, %v3841
    %v3843 = vtanh.pop %v3829
    %v3844 = vxor.u32 %v3830, 2147483648
    %v3845 = vmul.f32 %v3844, 1.442695
    %v3846 = vpow.pop %v3845
    %v3847 = vadd.f32 %v3846, 1.0
    %v3848 = vrcp.pop %v3847
    %v3849 = vmul.f32 1.0, %v3848
    %v3850 = vmul.f32 %v3842, %v3169
    %v3851 = vmul.f32 %v3836, %v3843
    %v3852 = vadd.f32 %v3850, %v3851
    %v3853 = vtanh.pop %v3852
    %v3854 = vmul.f32 %v3849, %v3853
    %s3855 = scalar_lea.vmem [#allocation7], 32
    %3856 = vst [vmem:[%s3855] sm:$0xff] %v3854
    %s3857 = smul.u32 5, 4
    %s3858 = smul.addr %s3857, 8
    %s3859 = scalar_lea.vmem [#allocation6], %s3858
    %v3860 = vld [vmem:[%s3859] sm:$0xff]
    %v3861 = vld [vmem:[%s3859 + $0x8] sm:$0xff]
    %v3862 = vld [vmem:[%s3859 + $0x10] sm:$0xff]
    %v3863 = vld [vmem:[%s3859 + $0x18] sm:$0xff]
    %v3864 = vld [vmem:[#allocation8] sm:$0xff]
    %v3865 = vld [vmem:[#allocation8 + $0x8] sm:$0xff]
    %v3866 = vld [vmem:[#allocation8 + $0x10] sm:$0xff]
    %v3867 = vld [vmem:[#allocation8 + $0x18] sm:$0xff]
    %v3868 = vld [vmem:[#allocation8 + $0x20] sm:$0xff]
    %v3869 = vld [vmem:[#allocation8 + $0x28] sm:$0xff]
    %v3870 = vld [vmem:[#allocation8 + $0x30] sm:$0xff]
    %v3871 = vld [vmem:[#allocation8 + $0x38] sm:$0xff]
    %v3872 = vld [vmem:[#allocation8 + $0x40] sm:$0xff]
    %v3873 = vld [vmem:[#allocation8 + $0x48] sm:$0xff]
    %v3874 = vld [vmem:[#allocation8 + $0x50] sm:$0xff]
    %v3875 = vld [vmem:[#allocation8 + $0x58] sm:$0xff]
    %v3876 = vld [vmem:[#allocation8 + $0x60] sm:$0xff]
    %v3877 = vld [vmem:[#allocation8 + $0x68] sm:$0xff]
    %v3878 = vld [vmem:[#allocation8 + $0x70] sm:$0xff]
    %v3879 = vld [vmem:[#allocation8 + $0x78] sm:$0xff]
    %v3880 = vld [vmem:[#allocation8 + $0x80] sm:$0xff]
    %v3881 = vld [vmem:[#allocation8 + $0x88] sm:$0xff]
    %v3882 = vld [vmem:[#allocation8 + $0x90] sm:$0xff]
    %v3883 = vld [vmem:[#allocation8 + $0x98] sm:$0xff]
    %v3884 = vld [vmem:[#allocation8 + $0xa0] sm:$0xff]
    %v3885 = vld [vmem:[#allocation8 + $0xa8] sm:$0xff]
    %v3886 = vld [vmem:[#allocation8 + $0xb0] sm:$0xff]
    %v3887 = vld [vmem:[#allocation8 + $0xb8] sm:$0xff]
    %v3888 = vld [vmem:[#allocation8 + $0xc0] sm:$0xff]
    %v3889 = vld [vmem:[#allocation8 + $0xc8] sm:$0xff]
    %v3890 = vld [vmem:[#allocation8 + $0xd0] sm:$0xff]
    %v3891 = vld [vmem:[#allocation8 + $0xd8] sm:$0xff]
    %v3892 = vld [vmem:[#allocation8 + $0xe0] sm:$0xff]
    %v3893 = vld [vmem:[#allocation8 + $0xe8] sm:$0xff]
    %v3894 = vld [vmem:[#allocation8 + $0xf0] sm:$0xff]
    %v3895 = vld [vmem:[#allocation8 + $0xf8] sm:$0xff]
    %v3896 = vld [vmem:[#allocation8 + $0x100] sm:$0xff]
    %v3897 = vld [vmem:[#allocation8 + $0x108] sm:$0xff]
    %v3898 = vld [vmem:[#allocation8 + $0x110] sm:$0xff]
    %v3899 = vld [vmem:[#allocation8 + $0x118] sm:$0xff]
    %v3900 = vld [vmem:[#allocation8 + $0x120] sm:$0xff]
    %v3901 = vld [vmem:[#allocation8 + $0x128] sm:$0xff]
    %v3902 = vld [vmem:[#allocation8 + $0x130] sm:$0xff]
    %v3903 = vld [vmem:[#allocation8 + $0x138] sm:$0xff]
    %v3904 = vld [vmem:[#allocation8 + $0x140] sm:$0xff]
    %v3905 = vld [vmem:[#allocation8 + $0x148] sm:$0xff]
    %v3906 = vld [vmem:[#allocation8 + $0x150] sm:$0xff]
    %v3907 = vld [vmem:[#allocation8 + $0x158] sm:$0xff]
    %v3908 = vld [vmem:[#allocation8 + $0x160] sm:$0xff]
    %v3909 = vld [vmem:[#allocation8 + $0x168] sm:$0xff]
    %v3910 = vld [vmem:[#allocation8 + $0x170] sm:$0xff]
    %v3911 = vld [vmem:[#allocation8 + $0x178] sm:$0xff]
    %v3912 = vld [vmem:[#allocation8 + $0x180] sm:$0xff]
    %v3913 = vld [vmem:[#allocation8 + $0x188] sm:$0xff]
    %v3914 = vld [vmem:[#allocation8 + $0x190] sm:$0xff]
    %v3915 = vld [vmem:[#allocation8 + $0x198] sm:$0xff]
    %v3916 = vld [vmem:[#allocation8 + $0x1a0] sm:$0xff]
    %v3917 = vld [vmem:[#allocation8 + $0x1a8] sm:$0xff]
    %v3918 = vld [vmem:[#allocation8 + $0x1b0] sm:$0xff]
    %v3919 = vld [vmem:[#allocation8 + $0x1b8] sm:$0xff]
    %v3920 = vld [vmem:[#allocation8 + $0x1c0] sm:$0xff]
    %v3921 = vld [vmem:[#allocation8 + $0x1c8] sm:$0xff]
    %v3922 = vld [vmem:[#allocation8 + $0x1d0] sm:$0xff]
    %v3923 = vld [vmem:[#allocation8 + $0x1d8] sm:$0xff]
    %v3924 = vld [vmem:[#allocation8 + $0x1e0] sm:$0xff]
    %v3925 = vld [vmem:[#allocation8 + $0x1e8] sm:$0xff]
    %v3926 = vld [vmem:[#allocation8 + $0x1f0] sm:$0xff]
    %v3927 = vld [vmem:[#allocation8 + $0x1f8] sm:$0xff]
    %3928 = vmatprep.subr.mxu0 %v3865
    %3929 = vmatpush1.msra.mxu0 %v3864
    %3930 = vmatprep.subr.mxu0 %v3869
    %3931 = vmatpush1.msra.mxu0 %v3868
    %3932 = vmatprep.subr.mxu0 %v3873
    %3933 = vmatpush1.msra.mxu0 %v3872
    %3934 = vmatprep.subr.mxu0 %v3877
    %3935 = vmatpush1.msra.mxu0 %v3876
    %3936 = vmatprep.subr.mxu0 %v3881
    %3937 = vmatpush1.msra.mxu0 %v3880
    %3938 = vmatprep.subr.mxu0 %v3885
    %3939 = vmatpush1.msra.mxu0 %v3884
    %3940 = vmatprep.subr.mxu0 %v3889
    %3941 = vmatpush1.msra.mxu0 %v3888
    %3942 = vmatprep.subr.mxu0 %v3893
    %3943 = vmatpush1.msra.mxu0 %v3892
    %3944 = vmatprep.subr.mxu0 %v3897
    %3945 = vmatpush1.msra.mxu0 %v3896
    %3946 = vmatprep.subr.mxu0 %v3901
    %3947 = vmatpush1.msra.mxu0 %v3900
    %3948 = vmatprep.subr.mxu0 %v3905
    %3949 = vmatpush1.msra.mxu0 %v3904
    %3950 = vmatprep.subr.mxu0 %v3909
    %3951 = vmatpush1.msra.mxu0 %v3908
    %3952 = vmatprep.subr.mxu0 %v3913
    %3953 = vmatpush1.msra.mxu0 %v3912
    %3954 = vmatprep.subr.mxu0 %v3917
    %3955 = vmatpush1.msra.mxu0 %v3916
    %3956 = vmatprep.subr.mxu0 %v3921
    %3957 = vmatpush1.msra.mxu0 %v3920
    %3958 = vmatprep.subr.mxu0 %v3925
    %3959 = vmatpush1.msra.mxu0 %v3924
    %3960 = vmatprep.subr.mxu0 0.0
    %3961 = vmatpush1.msra.mxu0 0.0
    %3962 = vmatprep.subr.mxu0 0.0
    %3963 = vmatpush1.msra.mxu0 0.0
    %3964 = vmatprep.subr.mxu0 0.0
    %3965 = vmatpush1.msra.mxu0 0.0
    %3966 = vmatprep.subr.mxu0 0.0
    %3967 = vmatpush1.msra.mxu0 0.0
    %3968 = vmatprep.subr.mxu0 0.0
    %3969 = vmatpush1.msra.mxu0 0.0
    %3970 = vmatprep.subr.mxu0 0.0
    %3971 = vmatpush1.msra.mxu0 0.0
    %3972 = vmatprep.subr.mxu0 0.0
    %3973 = vmatpush1.msra.mxu0 0.0
    %3974 = vmatprep.subr.mxu0 0.0
    %3975 = vmatpush1.msra.mxu0 0.0
    %3976 = vmatprep.subr.mxu0 0.0
    %3977 = vmatpush1.msra.mxu0 0.0
    %3978 = vmatprep.subr.mxu0 0.0
    %3979 = vmatpush1.msra.mxu0 0.0
    %3980 = vmatprep.subr.mxu0 0.0
    %3981 = vmatpush1.msra.mxu0 0.0
    %3982 = vmatprep.subr.mxu0 0.0
    %3983 = vmatpush1.msra.mxu0 0.0
    %3984 = vmatprep.subr.mxu0 0.0
    %3985 = vmatpush1.msra.mxu0 0.0
    %3986 = vmatprep.subr.mxu0 0.0
    %3987 = vmatpush1.msra.mxu0 0.0
    %3988 = vmatprep.subr.mxu0 0.0
    %3989 = vmatpush1.msra.mxu0 0.0
    %3990 = vmatprep.subr.mxu0 0.0
    %3991 = vmatpush1.msra.mxu0 0.0
    %3992 = vmatprep.mubr.f32.mxu0 0.0
    %3993 = vmatmul.mubr.f32.gmra.mrb[0].mxu0 %v3414
    %v3994 = vpop.f32.mrb[0].mxu0
    %v3995 = vadd.f32 0.0, %v3994
    %v3996 = vpop.f32.mrb[0].mxu0
    %v3997 = vadd.f32 0.0, %v3996
    %3998 = vdwg.mxu0
    %3999 = vmatprep.subr.mxu0 %v3867
    %4000 = vmatpush1.msra.mxu0 %v3866
    %4001 = vmatprep.subr.mxu0 %v3871
    %4002 = vmatpush1.msra.mxu0 %v3870
    %4003 = vmatprep.subr.mxu0 %v3875
    %4004 = vmatpush1.msra.mxu0 %v3874
    %4005 = vmatprep.subr.mxu0 %v3879
    %4006 = vmatpush1.msra.mxu0 %v3878
    %4007 = vmatprep.subr.mxu0 %v3883
    %4008 = vmatpush1.msra.mxu0 %v3882
    %4009 = vmatprep.subr.mxu0 %v3887
    %4010 = vmatpush1.msra.mxu0 %v3886
    %4011 = vmatprep.subr.mxu0 %v3891
    %4012 = vmatpush1.msra.mxu0 %v3890
    %4013 = vmatprep.subr.mxu0 %v3895
    %4014 = vmatpush1.msra.mxu0 %v3894
    %4015 = vmatprep.subr.mxu0 %v3899
    %4016 = vmatpush1.msra.mxu0 %v3898
    %4017 = vmatprep.subr.mxu0 %v3903
    %4018 = vmatpush1.msra.mxu0 %v3902
    %4019 = vmatprep.subr.mxu0 %v3907
    %4020 = vmatpush1.msra.mxu0 %v3906
    %4021 = vmatprep.subr.mxu0 %v3911
    %4022 = vmatpush1.msra.mxu0 %v3910
    %4023 = vmatprep.subr.mxu0 %v3915
    %4024 = vmatpush1.msra.mxu0 %v3914
    %4025 = vmatprep.subr.mxu0 %v3919
    %4026 = vmatpush1.msra.mxu0 %v3918
    %4027 = vmatprep.subr.mxu0 %v3923
    %4028 = vmatpush1.msra.mxu0 %v3922
    %4029 = vmatprep.subr.mxu0 %v3927
    %4030 = vmatpush1.msra.mxu0 %v3926
    %4031 = vmatprep.subr.mxu0 0.0
    %4032 = vmatpush1.msra.mxu0 0.0
    %4033 = vmatprep.subr.mxu0 0.0
    %4034 = vmatpush1.msra.mxu0 0.0
    %4035 = vmatprep.subr.mxu0 0.0
    %4036 = vmatpush1.msra.mxu0 0.0
    %4037 = vmatprep.subr.mxu0 0.0
    %4038 = vmatpush1.msra.mxu0 0.0
    %4039 = vmatprep.subr.mxu0 0.0
    %4040 = vmatpush1.msra.mxu0 0.0
    %4041 = vmatprep.subr.mxu0 0.0
    %4042 = vmatpush1.msra.mxu0 0.0
    %4043 = vmatprep.subr.mxu0 0.0
    %4044 = vmatpush1.msra.mxu0 0.0
    %4045 = vmatprep.subr.mxu0 0.0
    %4046 = vmatpush1.msra.mxu0 0.0
    %4047 = vmatprep.subr.mxu0 0.0
    %4048 = vmatpush1.msra.mxu0 0.0
    %4049 = vmatprep.subr.mxu0 0.0
    %4050 = vmatpush1.msra.mxu0 0.0
    %4051 = vmatprep.subr.mxu0 0.0
    %4052 = vmatpush1.msra.mxu0 0.0
    %4053 = vmatprep.subr.mxu0 0.0
    %4054 = vmatpush1.msra.mxu0 0.0
    %4055 = vmatprep.subr.mxu0 0.0
    %4056 = vmatpush1.msra.mxu0 0.0
    %4057 = vmatprep.subr.mxu0 0.0
    %4058 = vmatpush1.msra.mxu0 0.0
    %4059 = vmatprep.subr.mxu0 0.0
    %4060 = vmatpush1.msra.mxu0 0.0
    %4061 = vmatprep.subr.mxu0 0.0
    %4062 = vmatpush1.msra.mxu0 0.0
    %4063 = vmatprep.mubr.f32.mxu0 0.0
    %4064 = vmatmul.mubr.f32.gmra.mrb[0].mxu0 %v3414
    %v4065 = vpop.f32.mrb[0].mxu0
    %v4066 = vadd.f32 0.0, %v4065
    %v4067 = vpop.f32.mrb[0].mxu0
    %v4068 = vadd.f32 0.0, %v4067
    %4069 = vdwg.mxu0
    %v4070 = vadd.f32 %v3860, %v3995
    %v4071 = vadd.f32 %v3861, %v3997
    %v4072 = vadd.f32 %v3862, %v4066
    %v4073 = vadd.f32 %v3863, %v4068
    %v4074 = vxor.u32 %v4070, 2147483648
    %v4075 = vmul.f32 %v4074, 1.442695
    %v4076 = vpow.pop %v4075
    %v4077 = vadd.f32 %v4076, 1.0
    %v4078 = vrcp.pop %v4077
    %v4079 = vmul.f32 1.0, %v4078
    %v4080 = vxor.u32 %v4071, 2147483648
    %v4081 = vmul.f32 %v4080, 1.442695
    %v4082 = vpow.pop %v4081
    %v4083 = vadd.f32 %v4082, 1.0
    %v4084 = vrcp.pop %v4083
    %v4085 = vmul.f32 1.0, %v4084
    %v4086 = vtanh.pop %v4072
    %v4087 = vxor.u32 %v4073, 2147483648
    %v4088 = vmul.f32 %v4087, 1.442695
    %v4089 = vpow.pop %v4088
    %v4090 = vadd.f32 %v4089, 1.0
    %v4091 = vrcp.pop %v4090
    %v4092 = vmul.f32 1.0, %v4091
    %v4093 = vmul.f32 %v4085, %v3412
    %v4094 = vmul.f32 %v4079, %v4086
    %v4095 = vadd.f32 %v4093, %v4094
    %v4096 = vtanh.pop %v4095
    %v4097 = vmul.f32 %v4092, %v4096
    %v4098 = vld [vmem:[#allocation11] sm:$0xff]
    %v4099 = vld [vmem:[#allocation11 + $0x8] sm:$0xff]
    %v4100 = vld [vmem:[#allocation11 + $0x10] sm:$0xff]
    %v4101 = vld [vmem:[#allocation11 + $0x18] sm:$0xff]
    %v4102 = vld [vmem:[#allocation11 + $0x20] sm:$0xff]
    %v4103 = vld [vmem:[#allocation11 + $0x28] sm:$0xff]
    %v4104 = vld [vmem:[#allocation11 + $0x30] sm:$0xff]
    %v4105 = vld [vmem:[#allocation11 + $0x38] sm:$0xff]
    %v4106 = vld [vmem:[#allocation11 + $0x40] sm:$0xff]
    %v4107 = vld [vmem:[#allocation11 + $0x48] sm:$0xff]
    %v4108 = vld [vmem:[#allocation11 + $0x50] sm:$0xff]
    %v4109 = vld [vmem:[#allocation11 + $0x58] sm:$0xff]
    %v4110 = vld [vmem:[#allocation11 + $0x60] sm:$0xff]
    %v4111 = vld [vmem:[#allocation11 + $0x68] sm:$0xff]
    %v4112 = vld [vmem:[#allocation11 + $0x70] sm:$0xff]
    %v4113 = vld [vmem:[#allocation11 + $0x78] sm:$0xff]
    %v4114 = vld [vmem:[#allocation11 + $0x80] sm:$0xff]
    %v4115 = vld [vmem:[#allocation11 + $0x88] sm:$0xff]
    %v4116 = vld [vmem:[#allocation11 + $0x90] sm:$0xff]
    %v4117 = vld [vmem:[#allocation11 + $0x98] sm:$0xff]
    %v4118 = vld [vmem:[#allocation11 + $0xa0] sm:$0xff]
    %v4119 = vld [vmem:[#allocation11 + $0xa8] sm:$0xff]
    %v4120 = vld [vmem:[#allocation11 + $0xb0] sm:$0xff]
    %v4121 = vld [vmem:[#allocation11 + $0xb8] sm:$0xff]
    %v4122 = vld [vmem:[#allocation11 + $0xc0] sm:$0xff]
    %v4123 = vld [vmem:[#allocation11 + $0xc8] sm:$0xff]
    %v4124 = vld [vmem:[#allocation11 + $0xd0] sm:$0xff]
    %v4125 = vld [vmem:[#allocation11 + $0xd8] sm:$0xff]
    %v4126 = vld [vmem:[#allocation11 + $0xe0] sm:$0xff]
    %v4127 = vld [vmem:[#allocation11 + $0xe8] sm:$0xff]
    %v4128 = vld [vmem:[#allocation11 + $0xf0] sm:$0xff]
    %v4129 = vld [vmem:[#allocation11 + $0xf8] sm:$0xff]
    %v4130 = vld [vmem:[#allocation11 + $0x100] sm:$0xff]
    %v4131 = vld [vmem:[#allocation11 + $0x108] sm:$0xff]
    %v4132 = vld [vmem:[#allocation11 + $0x110] sm:$0xff]
    %v4133 = vld [vmem:[#allocation11 + $0x118] sm:$0xff]
    %v4134 = vld [vmem:[#allocation11 + $0x120] sm:$0xff]
    %v4135 = vld [vmem:[#allocation11 + $0x128] sm:$0xff]
    %v4136 = vld [vmem:[#allocation11 + $0x130] sm:$0xff]
    %v4137 = vld [vmem:[#allocation11 + $0x138] sm:$0xff]
    %v4138 = vld [vmem:[#allocation11 + $0x140] sm:$0xff]
    %v4139 = vld [vmem:[#allocation11 + $0x148] sm:$0xff]
    %v4140 = vld [vmem:[#allocation11 + $0x150] sm:$0xff]
    %v4141 = vld [vmem:[#allocation11 + $0x158] sm:$0xff]
    %v4142 = vld [vmem:[#allocation11 + $0x160] sm:$0xff]
    %v4143 = vld [vmem:[#allocation11 + $0x168] sm:$0xff]
    %v4144 = vld [vmem:[#allocation11 + $0x170] sm:$0xff]
    %v4145 = vld [vmem:[#allocation11 + $0x178] sm:$0xff]
    %v4146 = vld [vmem:[#allocation11 + $0x180] sm:$0xff]
    %v4147 = vld [vmem:[#allocation11 + $0x188] sm:$0xff]
    %v4148 = vld [vmem:[#allocation11 + $0x190] sm:$0xff]
    %v4149 = vld [vmem:[#allocation11 + $0x198] sm:$0xff]
    %v4150 = vld [vmem:[#allocation11 + $0x1a0] sm:$0xff]
    %v4151 = vld [vmem:[#allocation11 + $0x1a8] sm:$0xff]
    %v4152 = vld [vmem:[#allocation11 + $0x1b0] sm:$0xff]
    %v4153 = vld [vmem:[#allocation11 + $0x1b8] sm:$0xff]
    %v4154 = vld [vmem:[#allocation11 + $0x1c0] sm:$0xff]
    %v4155 = vld [vmem:[#allocation11 + $0x1c8] sm:$0xff]
    %v4156 = vld [vmem:[#allocation11 + $0x1d0] sm:$0xff]
    %v4157 = vld [vmem:[#allocation11 + $0x1d8] sm:$0xff]
    %v4158 = vld [vmem:[#allocation11 + $0x1e0] sm:$0xff]
    %v4159 = vld [vmem:[#allocation11 + $0x1e8] sm:$0xff]
    %v4160 = vld [vmem:[#allocation11 + $0x1f0] sm:$0xff]
    %v4161 = vld [vmem:[#allocation11 + $0x1f8] sm:$0xff]
    %v4162 = vld [vmem:[#allocation13] sm:$0xff]
    %v4163 = vld [vmem:[#allocation13 + $0x8] sm:$0xff]
    %v4164 = vld [vmem:[#allocation13 + $0x10] sm:$0xff]
    %v4165 = vld [vmem:[#allocation13 + $0x18] sm:$0xff]
    %v4166 = vld [vmem:[#allocation13 + $0x20] sm:$0xff]
    %v4167 = vld [vmem:[#allocation13 + $0x28] sm:$0xff]
    %v4168 = vld [vmem:[#allocation13 + $0x30] sm:$0xff]
    %v4169 = vld [vmem:[#allocation13 + $0x38] sm:$0xff]
    %v4170 = vld [vmem:[#allocation13 + $0x40] sm:$0xff]
    %v4171 = vld [vmem:[#allocation13 + $0x48] sm:$0xff]
    %v4172 = vld [vmem:[#allocation13 + $0x50] sm:$0xff]
    %v4173 = vld [vmem:[#allocation13 + $0x58] sm:$0xff]
    %v4174 = vld [vmem:[#allocation13 + $0x60] sm:$0xff]
    %v4175 = vld [vmem:[#allocation13 + $0x68] sm:$0xff]
    %v4176 = vld [vmem:[#allocation13 + $0x70] sm:$0xff]
    %v4177 = vld [vmem:[#allocation13 + $0x78] sm:$0xff]
    %v4178 = vld [vmem:[#allocation13 + $0x80] sm:$0xff]
    %v4179 = vld [vmem:[#allocation13 + $0x88] sm:$0xff]
    %v4180 = vld [vmem:[#allocation13 + $0x90] sm:$0xff]
    %v4181 = vld [vmem:[#allocation13 + $0x98] sm:$0xff]
    %v4182 = vld [vmem:[#allocation13 + $0xa0] sm:$0xff]
    %v4183 = vld [vmem:[#allocation13 + $0xa8] sm:$0xff]
    %v4184 = vld [vmem:[#allocation13 + $0xb0] sm:$0xff]
    %v4185 = vld [vmem:[#allocation13 + $0xb8] sm:$0xff]
    %v4186 = vld [vmem:[#allocation13 + $0xc0] sm:$0xff]
    %v4187 = vld [vmem:[#allocation13 + $0xc8] sm:$0xff]
    %v4188 = vld [vmem:[#allocation13 + $0xd0] sm:$0xff]
    %v4189 = vld [vmem:[#allocation13 + $0xd8] sm:$0xff]
    %v4190 = vld [vmem:[#allocation13 + $0xe0] sm:$0xff]
    %v4191 = vld [vmem:[#allocation13 + $0xe8] sm:$0xff]
    %v4192 = vld [vmem:[#allocation13 + $0xf0] sm:$0xff]
    %v4193 = vld [vmem:[#allocation13 + $0xf8] sm:$0xff]
    %v4194 = vld [vmem:[#allocation13 + $0x100] sm:$0xff]
    %v4195 = vld [vmem:[#allocation13 + $0x108] sm:$0xff]
    %v4196 = vld [vmem:[#allocation13 + $0x110] sm:$0xff]
    %v4197 = vld [vmem:[#allocation13 + $0x118] sm:$0xff]
    %v4198 = vld [vmem:[#allocation13 + $0x120] sm:$0xff]
    %v4199 = vld [vmem:[#allocation13 + $0x128] sm:$0xff]
    %v4200 = vld [vmem:[#allocation13 + $0x130] sm:$0xff]
    %v4201 = vld [vmem:[#allocation13 + $0x138] sm:$0xff]
    %v4202 = vld [vmem:[#allocation13 + $0x140] sm:$0xff]
    %v4203 = vld [vmem:[#allocation13 + $0x148] sm:$0xff]
    %v4204 = vld [vmem:[#allocation13 + $0x150] sm:$0xff]
    %v4205 = vld [vmem:[#allocation13 + $0x158] sm:$0xff]
    %v4206 = vld [vmem:[#allocation13 + $0x160] sm:$0xff]
    %v4207 = vld [vmem:[#allocation13 + $0x168] sm:$0xff]
    %v4208 = vld [vmem:[#allocation13 + $0x170] sm:$0xff]
    %v4209 = vld [vmem:[#allocation13 + $0x178] sm:$0xff]
    %v4210 = vld [vmem:[#allocation13 + $0x180] sm:$0xff]
    %v4211 = vld [vmem:[#allocation13 + $0x188] sm:$0xff]
    %v4212 = vld [vmem:[#allocation13 + $0x190] sm:$0xff]
    %v4213 = vld [vmem:[#allocation13 + $0x198] sm:$0xff]
    %v4214 = vld [vmem:[#allocation13 + $0x1a0] sm:$0xff]
    %v4215 = vld [vmem:[#allocation13 + $0x1a8] sm:$0xff]
    %v4216 = vld [vmem:[#allocation13 + $0x1b0] sm:$0xff]
    %v4217 = vld [vmem:[#allocation13 + $0x1b8] sm:$0xff]
    %v4218 = vld [vmem:[#allocation13 + $0x1c0] sm:$0xff]
    %v4219 = vld [vmem:[#allocation13 + $0x1c8] sm:$0xff]
    %v4220 = vld [vmem:[#allocation13 + $0x1d0] sm:$0xff]
    %v4221 = vld [vmem:[#allocation13 + $0x1d8] sm:$0xff]
    %v4222 = vld [vmem:[#allocation13 + $0x1e0] sm:$0xff]
    %v4223 = vld [vmem:[#allocation13 + $0x1e8] sm:$0xff]
    %v4224 = vld [vmem:[#allocation13 + $0x1f0] sm:$0xff]
    %v4225 = vld [vmem:[#allocation13 + $0x1f8] sm:$0xff]
    %4226 = vmatprep.subr.mxu0 %v4163
    %4227 = vmatpush1.msra.mxu0 %v4162
    %4228 = vmatprep.subr.mxu0 %v4167
    %4229 = vmatpush1.msra.mxu0 %v4166
    %4230 = vmatprep.subr.mxu0 %v4171
    %4231 = vmatpush1.msra.mxu0 %v4170
    %4232 = vmatprep.subr.mxu0 %v4175
    %4233 = vmatpush1.msra.mxu0 %v4174
    %4234 = vmatprep.subr.mxu0 %v4179
    %4235 = vmatpush1.msra.mxu0 %v4178
    %4236 = vmatprep.subr.mxu0 %v4183
    %4237 = vmatpush1.msra.mxu0 %v4182
    %4238 = vmatprep.subr.mxu0 %v4187
    %4239 = vmatpush1.msra.mxu0 %v4186
    %4240 = vmatprep.subr.mxu0 %v4191
    %4241 = vmatpush1.msra.mxu0 %v4190
    %4242 = vmatprep.subr.mxu0 %v4195
    %4243 = vmatpush1.msra.mxu0 %v4194
    %4244 = vmatprep.subr.mxu0 %v4199
    %4245 = vmatpush1.msra.mxu0 %v4198
    %4246 = vmatprep.subr.mxu0 %v4203
    %4247 = vmatpush1.msra.mxu0 %v4202
    %4248 = vmatprep.subr.mxu0 %v4207
    %4249 = vmatpush1.msra.mxu0 %v4206
    %4250 = vmatprep.subr.mxu0 %v4211
    %4251 = vmatpush1.msra.mxu0 %v4210
    %4252 = vmatprep.subr.mxu0 %v4215
    %4253 = vmatpush1.msra.mxu0 %v4214
    %4254 = vmatprep.subr.mxu0 %v4219
    %4255 = vmatpush1.msra.mxu0 %v4218
    %4256 = vmatprep.subr.mxu0 %v4223
    %4257 = vmatpush1.msra.mxu0 %v4222
    %4258 = vmatprep.subr.mxu0 0.0
    %4259 = vmatpush1.msra.mxu0 0.0
    %4260 = vmatprep.subr.mxu0 0.0
    %4261 = vmatpush1.msra.mxu0 0.0
    %4262 = vmatprep.subr.mxu0 0.0
    %4263 = vmatpush1.msra.mxu0 0.0
    %4264 = vmatprep.subr.mxu0 0.0
    %4265 = vmatpush1.msra.mxu0 0.0
    %4266 = vmatprep.subr.mxu0 0.0
    %4267 = vmatpush1.msra.mxu0 0.0
    %4268 = vmatprep.subr.mxu0 0.0
    %4269 = vmatpush1.msra.mxu0 0.0
    %4270 = vmatprep.subr.mxu0 0.0
    %4271 = vmatpush1.msra.mxu0 0.0
    %4272 = vmatprep.subr.mxu0 0.0
    %4273 = vmatpush1.msra.mxu0 0.0
    %4274 = vmatprep.subr.mxu0 0.0
    %4275 = vmatpush1.msra.mxu0 0.0
    %4276 = vmatprep.subr.mxu0 0.0
    %4277 = vmatpush1.msra.mxu0 0.0
    %4278 = vmatprep.subr.mxu0 0.0
    %4279 = vmatpush1.msra.mxu0 0.0
    %4280 = vmatprep.subr.mxu0 0.0
    %4281 = vmatpush1.msra.mxu0 0.0
    %4282 = vmatprep.subr.mxu0 0.0
    %4283 = vmatpush1.msra.mxu0 0.0
    %4284 = vmatprep.subr.mxu0 0.0
    %4285 = vmatpush1.msra.mxu0 0.0
    %4286 = vmatprep.subr.mxu0 0.0
    %4287 = vmatpush1.msra.mxu0 0.0
    %4288 = vmatprep.subr.mxu0 0.0
    %4289 = vmatpush1.msra.mxu0 0.0
    %4290 = vmatprep.mubr.f32.mxu0 0.0
    %4291 = vmatmul.mubr.f32.gmra.mrb[0].mxu0 %v3854
    %v4292 = vpop.f32.mrb[0].mxu0
    %v4293 = vadd.f32 0.0, %v4292
    %v4294 = vpop.f32.mrb[0].mxu0
    %v4295 = vadd.f32 0.0, %v4294
    %4296 = vdwg.mxu0
    %4297 = vmatprep.subr.mxu0 %v4165
    %4298 = vmatpush1.msra.mxu0 %v4164
    %4299 = vmatprep.subr.mxu0 %v4169
    %4300 = vmatpush1.msra.mxu0 %v4168
    %4301 = vmatprep.subr.mxu0 %v4173
    %4302 = vmatpush1.msra.mxu0 %v4172
    %4303 = vmatprep.subr.mxu0 %v4177
    %4304 = vmatpush1.msra.mxu0 %v4176
    %4305 = vmatprep.subr.mxu0 %v4181
    %4306 = vmatpush1.msra.mxu0 %v4180
    %4307 = vmatprep.subr.mxu0 %v4185
    %4308 = vmatpush1.msra.mxu0 %v4184
    %4309 = vmatprep.subr.mxu0 %v4189
    %4310 = vmatpush1.msra.mxu0 %v4188
    %4311 = vmatprep.subr.mxu0 %v4193
    %4312 = vmatpush1.msra.mxu0 %v4192
    %4313 = vmatprep.subr.mxu0 %v4197
    %4314 = vmatpush1.msra.mxu0 %v4196
    %4315 = vmatprep.subr.mxu0 %v4201
    %4316 = vmatpush1.msra.mxu0 %v4200
    %4317 = vmatprep.subr.mxu0 %v4205
    %4318 = vmatpush1.msra.mxu0 %v4204
    %4319 = vmatprep.subr.mxu0 %v4209
    %4320 = vmatpush1.msra.mxu0 %v4208
    %4321 = vmatprep.subr.mxu0 %v4213
    %4322 = vmatpush1.msra.mxu0 %v4212
    %4323 = vmatprep.subr.mxu0 %v4217
    %4324 = vmatpush1.msra.mxu0 %v4216
    %4325 = vmatprep.subr.mxu0 %v4221
    %4326 = vmatpush1.msra.mxu0 %v4220
    %4327 = vmatprep.subr.mxu0 %v4225
    %4328 = vmatpush1.msra.mxu0 %v4224
    %4329 = vmatprep.subr.mxu0 0.0
    %4330 = vmatpush1.msra.mxu0 0.0
    %4331 = vmatprep.subr.mxu0 0.0
    %4332 = vmatpush1.msra.mxu0 0.0
    %4333 = vmatprep.subr.mxu0 0.0
    %4334 = vmatpush1.msra.mxu0 0.0
    %4335 = vmatprep.subr.mxu0 0.0
    %4336 = vmatpush1.msra.mxu0 0.0
    %4337 = vmatprep.subr.mxu0 0.0
    %4338 = vmatpush1.msra.mxu0 0.0
    %4339 = vmatprep.subr.mxu0 0.0
    %4340 = vmatpush1.msra.mxu0 0.0
    %4341 = vmatprep.subr.mxu0 0.0
    %4342 = vmatpush1.msra.mxu0 0.0
    %4343 = vmatprep.subr.mxu0 0.0
    %4344 = vmatpush1.msra.mxu0 0.0
    %4345 = vmatprep.subr.mxu0 0.0
    %4346 = vmatpush1.msra.mxu0 0.0
    %4347 = vmatprep.subr.mxu0 0.0
    %4348 = vmatpush1.msra.mxu0 0.0
    %4349 = vmatprep.subr.mxu0 0.0
    %4350 = vmatpush1.msra.mxu0 0.0
    %4351 = vmatprep.subr.mxu0 0.0
    %4352 = vmatpush1.msra.mxu0 0.0
    %4353 = vmatprep.subr.mxu0 0.0
    %4354 = vmatpush1.msra.mxu0 0.0
    %4355 = vmatprep.subr.mxu0 0.0
    %4356 = vmatpush1.msra.mxu0 0.0
    %4357 = vmatprep.subr.mxu0 0.0
    %4358 = vmatpush1.msra.mxu0 0.0
    %4359 = vmatprep.subr.mxu0 0.0
    %4360 = vmatpush1.msra.mxu0 0.0
    %4361 = vmatprep.mubr.f32.mxu0 0.0
    %4362 = vmatmul.mubr.f32.gmra.mrb[0].mxu0 %v3854
    %v4363 = vpop.f32.mrb[0].mxu0
    %v4364 = vadd.f32 0.0, %v4363
    %v4365 = vpop.f32.mrb[0].mxu0
    %v4366 = vadd.f32 0.0, %v4365
    %4367 = vdwg.mxu0
    %4368 = vmatprep.subr.mxu0 %v4099
    %4369 = vmatpush1.msra.mxu0 %v4098
    %4370 = vmatprep.subr.mxu0 %v4103
    %4371 = vmatpush1.msra.mxu0 %v4102
    %4372 = vmatprep.subr.mxu0 %v4107
    %4373 = vmatpush1.msra.mxu0 %v4106
    %4374 = vmatprep.subr.mxu0 %v4111
    %4375 = vmatpush1.msra.mxu0 %v4110
    %4376 = vmatprep.subr.mxu0 %v4115
    %4377 = vmatpush1.msra.mxu0 %v4114
    %4378 = vmatprep.subr.mxu0 %v4119
    %4379 = vmatpush1.msra.mxu0 %v4118
    %4380 = vmatprep.subr.mxu0 %v4123
    %4381 = vmatpush1.msra.mxu0 %v4122
    %4382 = vmatprep.subr.mxu0 %v4127
    %4383 = vmatpush1.msra.mxu0 %v4126
    %4384 = vmatprep.subr.mxu0 %v4131
    %4385 = vmatpush1.msra.mxu0 %v4130
    %4386 = vmatprep.subr.mxu0 %v4135
    %4387 = vmatpush1.msra.mxu0 %v4134
    %4388 = vmatprep.subr.mxu0 %v4139
    %4389 = vmatpush1.msra.mxu0 %v4138
    %4390 = vmatprep.subr.mxu0 %v4143
    %4391 = vmatpush1.msra.mxu0 %v4142
    %4392 = vmatprep.subr.mxu0 %v4147
    %4393 = vmatpush1.msra.mxu0 %v4146
    %4394 = vmatprep.subr.mxu0 %v4151
    %4395 = vmatpush1.msra.mxu0 %v4150
    %4396 = vmatprep.subr.mxu0 %v4155
    %4397 = vmatpush1.msra.mxu0 %v4154
    %4398 = vmatprep.subr.mxu0 %v4159
    %4399 = vmatpush1.msra.mxu0 %v4158
    %4400 = vmatprep.subr.mxu0 0.0
    %4401 = vmatpush1.msra.mxu0 0.0
    %4402 = vmatprep.subr.mxu0 0.0
    %4403 = vmatpush1.msra.mxu0 0.0
    %4404 = vmatprep.subr.mxu0 0.0
    %4405 = vmatpush1.msra.mxu0 0.0
    %4406 = vmatprep.subr.mxu0 0.0
    %4407 = vmatpush1.msra.mxu0 0.0
    %4408 = vmatprep.subr.mxu0 0.0
    %4409 = vmatpush1.msra.mxu0 0.0
    %4410 = vmatprep.subr.mxu0 0.0
    %4411 = vmatpush1.msra.mxu0 0.0
    %4412 = vmatprep.subr.mxu0 0.0
    %4413 = vmatpush1.msra.mxu0 0.0
    %4414 = vmatprep.subr.mxu0 0.0
    %4415 = vmatpush1.msra.mxu0 0.0
    %4416 = vmatprep.subr.mxu0 0.0
    %4417 = vmatpush1.msra.mxu0 0.0
    %4418 = vmatprep.subr.mxu0 0.0
    %4419 = vmatpush1.msra.mxu0 0.0
    %4420 = vmatprep.subr.mxu0 0.0
    %4421 = vmatpush1.msra.mxu0 0.0
    %4422 = vmatprep.subr.mxu0 0.0
    %4423 = vmatpush1.msra.mxu0 0.0
    %4424 = vmatprep.subr.mxu0 0.0
    %4425 = vmatpush1.msra.mxu0 0.0
    %4426 = vmatprep.subr.mxu0 0.0
    %4427 = vmatpush1.msra.mxu0 0.0
    %4428 = vmatprep.subr.mxu0 0.0
    %4429 = vmatpush1.msra.mxu0 0.0
    %4430 = vmatprep.subr.mxu0 0.0
    %4431 = vmatpush1.msra.mxu0 0.0
    %4432 = vmatprep.mubr.f32.mxu0 0.0
    %4433 = vmatmul.mubr.f32.gmra.mrb[0].mxu0 %v4097
    %v4434 = vpop.f32.mrb[0].mxu0
    %v4435 = vadd.f32 %v4293, %v4434
    %v4436 = vpop.f32.mrb[0].mxu0
    %v4437 = vadd.f32 %v4295, %v4436
    %4438 = vdwg.mxu0
    %4439 = vmatprep.subr.mxu0 %v4101
    %4440 = vmatpush1.msra.mxu0 %v4100
    %4441 = vmatprep.subr.mxu0 %v4105
    %4442 = vmatpush1.msra.mxu0 %v4104
    %4443 = vmatprep.subr.mxu0 %v4109
    %4444 = vmatpush1.msra.mxu0 %v4108
    %4445 = vmatprep.subr.mxu0 %v4113
    %4446 = vmatpush1.msra.mxu0 %v4112
    %4447 = vmatprep.subr.mxu0 %v4117
    %4448 = vmatpush1.msra.mxu0 %v4116
    %4449 = vmatprep.subr.mxu0 %v4121
    %4450 = vmatpush1.msra.mxu0 %v4120
    %4451 = vmatprep.subr.mxu0 %v4125
    %4452 = vmatpush1.msra.mxu0 %v4124
    %4453 = vmatprep.subr.mxu0 %v4129
    %4454 = vmatpush1.msra.mxu0 %v4128
    %4455 = vmatprep.subr.mxu0 %v4133
    %4456 = vmatpush1.msra.mxu0 %v4132
    %4457 = vmatprep.subr.mxu0 %v4137
    %4458 = vmatpush1.msra.mxu0 %v4136
    %4459 = vmatprep.subr.mxu0 %v4141
    %4460 = vmatpush1.msra.mxu0 %v4140
    %4461 = vmatprep.subr.mxu0 %v4145
    %4462 = vmatpush1.msra.mxu0 %v4144
    %4463 = vmatprep.subr.mxu0 %v4149
    %4464 = vmatpush1.msra.mxu0 %v4148
    %4465 = vmatprep.subr.mxu0 %v4153
    %4466 = vmatpush1.msra.mxu0 %v4152
    %4467 = vmatprep.subr.mxu0 %v4157
    %4468 = vmatpush1.msra.mxu0 %v4156
    %4469 = vmatprep.subr.mxu0 %v4161
    %4470 = vmatpush1.msra.mxu0 %v4160
    %4471 = vmatprep.subr.mxu0 0.0
    %4472 = vmatpush1.msra.mxu0 0.0
    %4473 = vmatprep.subr.mxu0 0.0
    %4474 = vmatpush1.msra.mxu0 0.0
    %4475 = vmatprep.subr.mxu0 0.0
    %4476 = vmatpush1.msra.mxu0 0.0
    %4477 = vmatprep.subr.mxu0 0.0
    %4478 = vmatpush1.msra.mxu0 0.0
    %4479 = vmatprep.subr.mxu0 0.0
    %4480 = vmatpush1.msra.mxu0 0.0
    %4481 = vmatprep.subr.mxu0 0.0
    %4482 = vmatpush1.msra.mxu0 0.0
    %4483 = vmatprep.subr.mxu0 0.0
    %4484 = vmatpush1.msra.mxu0 0.0
    %4485 = vmatprep.subr.mxu0 0.0
    %4486 = vmatpush1.msra.mxu0 0.0
    %4487 = vmatprep.subr.mxu0 0.0
    %4488 = vmatpush1.msra.mxu0 0.0
    %4489 = vmatprep.subr.mxu0 0.0
    %4490 = vmatpush1.msra.mxu0 0.0
    %4491 = vmatprep.subr.mxu0 0.0
    %4492 = vmatpush1.msra.mxu0 0.0
    %4493 = vmatprep.subr.mxu0 0.0
    %4494 = vmatpush1.msra.mxu0 0.0
    %4495 = vmatprep.subr.mxu0 0.0
    %4496 = vmatpush1.msra.mxu0 0.0
    %4497 = vmatprep.subr.mxu0 0.0
    %4498 = vmatpush1.msra.mxu0 0.0
    %4499 = vmatprep.subr.mxu0 0.0
    %4500 = vmatpush1.msra.mxu0 0.0
    %4501 = vmatprep.subr.mxu0 0.0
    %4502 = vmatpush1.msra.mxu0 0.0
    %4503 = vmatprep.mubr.f32.mxu0 0.0
    %4504 = vmatmul.mubr.f32.gmra.mrb[0].mxu0 %v4097
    %v4505 = vpop.f32.mrb[0].mxu0
    %v4506 = vadd.f32 %v4364, %v4505
    %v4507 = vpop.f32.mrb[0].mxu0
    %v4508 = vadd.f32 %v4366, %v4507
    %4509 = vdwg.mxu0
    %v4510 = vadd.f32 %v4435, %v422
    %v4511 = vadd.f32 %v4437, %v426
    %v4512 = vadd.f32 %v4506, %v430
    %v4513 = vadd.f32 %v4508, %v434
    %v4514 = vxor.u32 %v4510, 2147483648
    %v4515 = vmul.f32 %v4514, 1.442695
    %v4516 = vpow.pop %v4515
    %v4517 = vadd.f32 %v4516, 1.0
    %v4518 = vrcp.pop %v4517
    %v4519 = vmul.f32 1.0, %v4518
    %v4520 = vxor.u32 %v4511, 2147483648
    %v4521 = vmul.f32 %v4520, 1.442695
    %v4522 = vpow.pop %v4521
    %v4523 = vadd.f32 %v4522, 1.0
    %v4524 = vrcp.pop %v4523
    %v4525 = vmul.f32 1.0, %v4524
    %v4526 = vtanh.pop %v4512
    %v4527 = vxor.u32 %v4513, 2147483648
    %v4528 = vmul.f32 %v4527, 1.442695
    %v4529 = vpow.pop %v4528
    %v4530 = vadd.f32 %v4529, 1.0
    %v4531 = vrcp.pop %v4530
    %v4532 = vmul.f32 1.0, %v4531
    %v4533 = vmul.f32 %v4525, %v3852
    %v4534 = vmul.f32 %v4519, %v4526
    %v4535 = vadd.f32 %v4533, %v4534
    %v4536 = vtanh.pop %v4535
    %v4537 = vmul.f32 %v4532, %v4536
    %s4538 = scalar_lea.vmem [#allocation7], 40
    %4539 = vst [vmem:[%s4538] sm:$0xff] %v4537
    %s4540 = smul.u32 6, 4
    %s4541 = smul.addr %s4540, 8
    %s4542 = scalar_lea.vmem [#allocation6], %s4541
    %v4543 = vld [vmem:[%s4542] sm:$0xff]
    %v4544 = vld [vmem:[%s4542 + $0x8] sm:$0xff]
    %v4545 = vld [vmem:[%s4542 + $0x10] sm:$0xff]
    %v4546 = vld [vmem:[%s4542 + $0x18] sm:$0xff]
    %v4547 = vld [vmem:[#allocation8] sm:$0xff]
    %v4548 = vld [vmem:[#allocation8 + $0x8] sm:$0xff]
    %v4549 = vld [vmem:[#allocation8 + $0x10] sm:$0xff]
    %v4550 = vld [vmem:[#allocation8 + $0x18] sm:$0xff]
    %v4551 = vld [vmem:[#allocation8 + $0x20] sm:$0xff]
    %v4552 = vld [vmem:[#allocation8 + $0x28] sm:$0xff]
    %v4553 = vld [vmem:[#allocation8 + $0x30] sm:$0xff]
    %v4554 = vld [vmem:[#allocation8 + $0x38] sm:$0xff]
    %v4555 = vld [vmem:[#allocation8 + $0x40] sm:$0xff]
    %v4556 = vld [vmem:[#allocation8 + $0x48] sm:$0xff]
    %v4557 = vld [vmem:[#allocation8 + $0x50] sm:$0xff]
    %v4558 = vld [vmem:[#allocation8 + $0x58] sm:$0xff]
    %v4559 = vld [vmem:[#allocation8 + $0x60] sm:$0xff]
    %v4560 = vld [vmem:[#allocation8 + $0x68] sm:$0xff]
    %v4561 = vld [vmem:[#allocation8 + $0x70] sm:$0xff]
    %v4562 = vld [vmem:[#allocation8 + $0x78] sm:$0xff]
    %v4563 = vld [vmem:[#allocation8 + $0x80] sm:$0xff]
    %v4564 = vld [vmem:[#allocation8 + $0x88] sm:$0xff]
    %v4565 = vld [vmem:[#allocation8 + $0x90] sm:$0xff]
    %v4566 = vld [vmem:[#allocation8 + $0x98] sm:$0xff]
    %v4567 = vld [vmem:[#allocation8 + $0xa0] sm:$0xff]
    %v4568 = vld [vmem:[#allocation8 + $0xa8] sm:$0xff]
    %v4569 = vld [vmem:[#allocation8 + $0xb0] sm:$0xff]
    %v4570 = vld [vmem:[#allocation8 + $0xb8] sm:$0xff]
    %v4571 = vld [vmem:[#allocation8 + $0xc0] sm:$0xff]
    %v4572 = vld [vmem:[#allocation8 + $0xc8] sm:$0xff]
    %v4573 = vld [vmem:[#allocation8 + $0xd0] sm:$0xff]
    %v4574 = vld [vmem:[#allocation8 + $0xd8] sm:$0xff]
    %v4575 = vld [vmem:[#allocation8 + $0xe0] sm:$0xff]
    %v4576 = vld [vmem:[#allocation8 + $0xe8] sm:$0xff]
    %v4577 = vld [vmem:[#allocation8 + $0xf0] sm:$0xff]
    %v4578 = vld [vmem:[#allocation8 + $0xf8] sm:$0xff]
    %v4579 = vld [vmem:[#allocation8 + $0x100] sm:$0xff]
    %v4580 = vld [vmem:[#allocation8 + $0x108] sm:$0xff]
    %v4581 = vld [vmem:[#allocation8 + $0x110] sm:$0xff]
    %v4582 = vld [vmem:[#allocation8 + $0x118] sm:$0xff]
    %v4583 = vld [vmem:[#allocation8 + $0x120] sm:$0xff]
    %v4584 = vld [vmem:[#allocation8 + $0x128] sm:$0xff]
    %v4585 = vld [vmem:[#allocation8 + $0x130] sm:$0xff]
    %v4586 = vld [vmem:[#allocation8 + $0x138] sm:$0xff]
    %v4587 = vld [vmem:[#allocation8 + $0x140] sm:$0xff]
    %v4588 = vld [vmem:[#allocation8 + $0x148] sm:$0xff]
    %v4589 = vld [vmem:[#allocation8 + $0x150] sm:$0xff]
    %v4590 = vld [vmem:[#allocation8 + $0x158] sm:$0xff]
    %v4591 = vld [vmem:[#allocation8 + $0x160] sm:$0xff]
    %v4592 = vld [vmem:[#allocation8 + $0x168] sm:$0xff]
    %v4593 = vld [vmem:[#allocation8 + $0x170] sm:$0xff]
    %v4594 = vld [vmem:[#allocation8 + $0x178] sm:$0xff]
    %v4595 = vld [vmem:[#allocation8 + $0x180] sm:$0xff]
    %v4596 = vld [vmem:[#allocation8 + $0x188] sm:$0xff]
    %v4597 = vld [vmem:[#allocation8 + $0x190] sm:$0xff]
    %v4598 = vld [vmem:[#allocation8 + $0x198] sm:$0xff]
    %v4599 = vld [vmem:[#allocation8 + $0x1a0] sm:$0xff]
    %v4600 = vld [vmem:[#allocation8 + $0x1a8] sm:$0xff]
    %v4601 = vld [vmem:[#allocation8 + $0x1b0] sm:$0xff]
    %v4602 = vld [vmem:[#allocation8 + $0x1b8] sm:$0xff]
    %v4603 = vld [vmem:[#allocation8 + $0x1c0] sm:$0xff]
    %v4604 = vld [vmem:[#allocation8 + $0x1c8] sm:$0xff]
    %v4605 = vld [vmem:[#allocation8 + $0x1d0] sm:$0xff]
    %v4606 = vld [vmem:[#allocation8 + $0x1d8] sm:$0xff]
    %v4607 = vld [vmem:[#allocation8 + $0x1e0] sm:$0xff]
    %v4608 = vld [vmem:[#allocation8 + $0x1e8] sm:$0xff]
    %v4609 = vld [vmem:[#allocation8 + $0x1f0] sm:$0xff]
    %v4610 = vld [vmem:[#allocation8 + $0x1f8] sm:$0xff]
    %4611 = vmatprep.subr.mxu0 %v4548
    %4612 = vmatpush1.msra.mxu0 %v4547
    %4613 = vmatprep.subr.mxu0 %v4552
    %4614 = vmatpush1.msra.mxu0 %v4551
    %4615 = vmatprep.subr.mxu0 %v4556
    %4616 = vmatpush1.msra.mxu0 %v4555
    %4617 = vmatprep.subr.mxu0 %v4560
    %4618 = vmatpush1.msra.mxu0 %v4559
    %4619 = vmatprep.subr.mxu0 %v4564
    %4620 = vmatpush1.msra.mxu0 %v4563
    %4621 = vmatprep.subr.mxu0 %v4568
    %4622 = vmatpush1.msra.mxu0 %v4567
    %4623 = vmatprep.subr.mxu0 %v4572
    %4624 = vmatpush1.msra.mxu0 %v4571
    %4625 = vmatprep.subr.mxu0 %v4576
    %4626 = vmatpush1.msra.mxu0 %v4575
    %4627 = vmatprep.subr.mxu0 %v4580
    %4628 = vmatpush1.msra.mxu0 %v4579
    %4629 = vmatprep.subr.mxu0 %v4584
    %4630 = vmatpush1.msra.mxu0 %v4583
    %4631 = vmatprep.subr.mxu0 %v4588
    %4632 = vmatpush1.msra.mxu0 %v4587
    %4633 = vmatprep.subr.mxu0 %v4592
    %4634 = vmatpush1.msra.mxu0 %v4591
    %4635 = vmatprep.subr.mxu0 %v4596
    %4636 = vmatpush1.msra.mxu0 %v4595
    %4637 = vmatprep.subr.mxu0 %v4600
    %4638 = vmatpush1.msra.mxu0 %v4599
    %4639 = vmatprep.subr.mxu0 %v4604
    %4640 = vmatpush1.msra.mxu0 %v4603
    %4641 = vmatprep.subr.mxu0 %v4608
    %4642 = vmatpush1.msra.mxu0 %v4607
    %4643 = vmatprep.subr.mxu0 0.0
    %4644 = vmatpush1.msra.mxu0 0.0
    %4645 = vmatprep.subr.mxu0 0.0
    %4646 = vmatpush1.msra.mxu0 0.0
    %4647 = vmatprep.subr.mxu0 0.0
    %4648 = vmatpush1.msra.mxu0 0.0
    %4649 = vmatprep.subr.mxu0 0.0
    %4650 = vmatpush1.msra.mxu0 0.0
    %4651 = vmatprep.subr.mxu0 0.0
    %4652 = vmatpush1.msra.mxu0 0.0
    %4653 = vmatprep.subr.mxu0 0.0
    %4654 = vmatpush1.msra.mxu0 0.0
    %4655 = vmatprep.subr.mxu0 0.0
    %4656 = vmatpush1.msra.mxu0 0.0
    %4657 = vmatprep.subr.mxu0 0.0
    %4658 = vmatpush1.msra.mxu0 0.0
    %4659 = vmatprep.subr.mxu0 0.0
    %4660 = vmatpush1.msra.mxu0 0.0
    %4661 = vmatprep.subr.mxu0 0.0
    %4662 = vmatpush1.msra.mxu0 0.0
    %4663 = vmatprep.subr.mxu0 0.0
    %4664 = vmatpush1.msra.mxu0 0.0
    %4665 = vmatprep.subr.mxu0 0.0
    %4666 = vmatpush1.msra.mxu0 0.0
    %4667 = vmatprep.subr.mxu0 0.0
    %4668 = vmatpush1.msra.mxu0 0.0
    %4669 = vmatprep.subr.mxu0 0.0
    %4670 = vmatpush1.msra.mxu0 0.0
    %4671 = vmatprep.subr.mxu0 0.0
    %4672 = vmatpush1.msra.mxu0 0.0
    %4673 = vmatprep.subr.mxu0 0.0
    %4674 = vmatpush1.msra.mxu0 0.0
    %4675 = vmatprep.mubr.f32.mxu0 0.0
    %4676 = vmatmul.mubr.f32.gmra.mrb[0].mxu0 %v4097
    %v4677 = vpop.f32.mrb[0].mxu0
    %v4678 = vadd.f32 0.0, %v4677
    %v4679 = vpop.f32.mrb[0].mxu0
    %v4680 = vadd.f32 0.0, %v4679
    %4681 = vdwg.mxu0
    %4682 = vmatprep.subr.mxu0 %v4550
    %4683 = vmatpush1.msra.mxu0 %v4549
    %4684 = vmatprep.subr.mxu0 %v4554
    %4685 = vmatpush1.msra.mxu0 %v4553
    %4686 = vmatprep.subr.mxu0 %v4558
    %4687 = vmatpush1.msra.mxu0 %v4557
    %4688 = vmatprep.subr.mxu0 %v4562
    %4689 = vmatpush1.msra.mxu0 %v4561
    %4690 = vmatprep.subr.mxu0 %v4566
    %4691 = vmatpush1.msra.mxu0 %v4565
    %4692 = vmatprep.subr.mxu0 %v4570
    %4693 = vmatpush1.msra.mxu0 %v4569
    %4694 = vmatprep.subr.mxu0 %v4574
    %4695 = vmatpush1.msra.mxu0 %v4573
    %4696 = vmatprep.subr.mxu0 %v4578
    %4697 = vmatpush1.msra.mxu0 %v4577
    %4698 = vmatprep.subr.mxu0 %v4582
    %4699 = vmatpush1.msra.mxu0 %v4581
    %4700 = vmatprep.subr.mxu0 %v4586
    %4701 = vmatpush1.msra.mxu0 %v4585
    %4702 = vmatprep.subr.mxu0 %v4590
    %4703 = vmatpush1.msra.mxu0 %v4589
    %4704 = vmatprep.subr.mxu0 %v4594
    %4705 = vmatpush1.msra.mxu0 %v4593
    %4706 = vmatprep.subr.mxu0 %v4598
    %4707 = vmatpush1.msra.mxu0 %v4597
    %4708 = vmatprep.subr.mxu0 %v4602
    %4709 = vmatpush1.msra.mxu0 %v4601
    %4710 = vmatprep.subr.mxu0 %v4606
    %4711 = vmatpush1.msra.mxu0 %v4605
    %4712 = vmatprep.subr.mxu0 %v4610
    %4713 = vmatpush1.msra.mxu0 %v4609
    %4714 = vmatprep.subr.mxu0 0.0
    %4715 = vmatpush1.msra.mxu0 0.0
    %4716 = vmatprep.subr.mxu0 0.0
    %4717 = vmatpush1.msra.mxu0 0.0
    %4718 = vmatprep.subr.mxu0 0.0
    %4719 = vmatpush1.msra.mxu0 0.0
    %4720 = vmatprep.subr.mxu0 0.0
    %4721 = vmatpush1.msra.mxu0 0.0
    %4722 = vmatprep.subr.mxu0 0.0
    %4723 = vmatpush1.msra.mxu0 0.0
    %4724 = vmatprep.subr.mxu0 0.0
    %4725 = vmatpush1.msra.mxu0 0.0
    %4726 = vmatprep.subr.mxu0 0.0
    %4727 = vmatpush1.msra.mxu0 0.0
    %4728 = vmatprep.subr.mxu0 0.0
    %4729 = vmatpush1.msra.mxu0 0.0
    %4730 = vmatprep.subr.mxu0 0.0
    %4731 = vmatpush1.msra.mxu0 0.0
    %4732 = vmatprep.subr.mxu0 0.0
    %4733 = vmatpush1.msra.mxu0 0.0
    %4734 = vmatprep.subr.mxu0 0.0
    %4735 = vmatpush1.msra.mxu0 0.0
    %4736 = vmatprep.subr.mxu0 0.0
    %4737 = vmatpush1.msra.mxu0 0.0
    %4738 = vmatprep.subr.mxu0 0.0
    %4739 = vmatpush1.msra.mxu0 0.0
    %4740 = vmatprep.subr.mxu0 0.0
    %4741 = vmatpush1.msra.mxu0 0.0
    %4742 = vmatprep.subr.mxu0 0.0
    %4743 = vmatpush1.msra.mxu0 0.0
    %4744 = vmatprep.subr.mxu0 0.0
    %4745 = vmatpush1.msra.mxu0 0.0
    %4746 = vmatprep.mubr.f32.mxu0 0.0
    %4747 = vmatmul.mubr.f32.gmra.mrb[0].mxu0 %v4097
    %v4748 = vpop.f32.mrb[0].mxu0
    %v4749 = vadd.f32 0.0, %v4748
    %v4750 = vpop.f32.mrb[0].mxu0
    %v4751 = vadd.f32 0.0, %v4750
    %4752 = vdwg.mxu0
    %v4753 = vadd.f32 %v4543, %v4678
    %v4754 = vadd.f32 %v4544, %v4680
    %v4755 = vadd.f32 %v4545, %v4749
    %v4756 = vadd.f32 %v4546, %v4751
    %v4757 = vxor.u32 %v4753, 2147483648
    %v4758 = vmul.f32 %v4757, 1.442695
    %v4759 = vpow.pop %v4758
    %v4760 = vadd.f32 %v4759, 1.0
    %v4761 = vrcp.pop %v4760
    %v4762 = vmul.f32 1.0, %v4761
    %v4763 = vxor.u32 %v4754, 2147483648
    %v4764 = vmul.f32 %v4763, 1.442695
    %v4765 = vpow.pop %v4764
    %v4766 = vadd.f32 %v4765, 1.0
    %v4767 = vrcp.pop %v4766
    %v4768 = vmul.f32 1.0, %v4767
    %v4769 = vtanh.pop %v4755
    %v4770 = vxor.u32 %v4756, 2147483648
    %v4771 = vmul.f32 %v4770, 1.442695
    %v4772 = vpow.pop %v4771
    %v4773 = vadd.f32 %v4772, 1.0
    %v4774 = vrcp.pop %v4773
    %v4775 = vmul.f32 1.0, %v4774
    %v4776 = vmul.f32 %v4768, %v4095
    %v4777 = vmul.f32 %v4762, %v4769
    %v4778 = vadd.f32 %v4776, %v4777
    %v4779 = vtanh.pop %v4778
    %v4780 = vmul.f32 %v4775, %v4779
    %v4781 = vld [vmem:[#allocation11] sm:$0xff]
    %v4782 = vld [vmem:[#allocation11 + $0x8] sm:$0xff]
    %v4783 = vld [vmem:[#allocation11 + $0x10] sm:$0xff]
    %v4784 = vld [vmem:[#allocation11 + $0x18] sm:$0xff]
    %v4785 = vld [vmem:[#allocation11 + $0x20] sm:$0xff]
    %v4786 = vld [vmem:[#allocation11 + $0x28] sm:$0xff]
    %v4787 = vld [vmem:[#allocation11 + $0x30] sm:$0xff]
    %v4788 = vld [vmem:[#allocation11 + $0x38] sm:$0xff]
    %v4789 = vld [vmem:[#allocation11 + $0x40] sm:$0xff]
    %v4790 = vld [vmem:[#allocation11 + $0x48] sm:$0xff]
    %v4791 = vld [vmem:[#allocation11 + $0x50] sm:$0xff]
    %v4792 = vld [vmem:[#allocation11 + $0x58] sm:$0xff]
    %v4793 = vld [vmem:[#allocation11 + $0x60] sm:$0xff]
    %v4794 = vld [vmem:[#allocation11 + $0x68] sm:$0xff]
    %v4795 = vld [vmem:[#allocation11 + $0x70] sm:$0xff]
    %v4796 = vld [vmem:[#allocation11 + $0x78] sm:$0xff]
    %v4797 = vld [vmem:[#allocation11 + $0x80] sm:$0xff]
    %v4798 = vld [vmem:[#allocation11 + $0x88] sm:$0xff]
    %v4799 = vld [vmem:[#allocation11 + $0x90] sm:$0xff]
    %v4800 = vld [vmem:[#allocation11 + $0x98] sm:$0xff]
    %v4801 = vld [vmem:[#allocation11 + $0xa0] sm:$0xff]
    %v4802 = vld [vmem:[#allocation11 + $0xa8] sm:$0xff]
    %v4803 = vld [vmem:[#allocation11 + $0xb0] sm:$0xff]
    %v4804 = vld [vmem:[#allocation11 + $0xb8] sm:$0xff]
    %v4805 = vld [vmem:[#allocation11 + $0xc0] sm:$0xff]
    %v4806 = vld [vmem:[#allocation11 + $0xc8] sm:$0xff]
    %v4807 = vld [vmem:[#allocation11 + $0xd0] sm:$0xff]
    %v4808 = vld [vmem:[#allocation11 + $0xd8] sm:$0xff]
    %v4809 = vld [vmem:[#allocation11 + $0xe0] sm:$0xff]
    %v4810 = vld [vmem:[#allocation11 + $0xe8] sm:$0xff]
    %v4811 = vld [vmem:[#allocation11 + $0xf0] sm:$0xff]
    %v4812 = vld [vmem:[#allocation11 + $0xf8] sm:$0xff]
    %v4813 = vld [vmem:[#allocation11 + $0x100] sm:$0xff]
    %v4814 = vld [vmem:[#allocation11 + $0x108] sm:$0xff]
    %v4815 = vld [vmem:[#allocation11 + $0x110] sm:$0xff]
    %v4816 = vld [vmem:[#allocation11 + $0x118] sm:$0xff]
    %v4817 = vld [vmem:[#allocation11 + $0x120] sm:$0xff]
    %v4818 = vld [vmem:[#allocation11 + $0x128] sm:$0xff]
    %v4819 = vld [vmem:[#allocation11 + $0x130] sm:$0xff]
    %v4820 = vld [vmem:[#allocation11 + $0x138] sm:$0xff]
    %v4821 = vld [vmem:[#allocation11 + $0x140] sm:$0xff]
    %v4822 = vld [vmem:[#allocation11 + $0x148] sm:$0xff]
    %v4823 = vld [vmem:[#allocation11 + $0x150] sm:$0xff]
    %v4824 = vld [vmem:[#allocation11 + $0x158] sm:$0xff]
    %v4825 = vld [vmem:[#allocation11 + $0x160] sm:$0xff]
    %v4826 = vld [vmem:[#allocation11 + $0x168] sm:$0xff]
    %v4827 = vld [vmem:[#allocation11 + $0x170] sm:$0xff]
    %v4828 = vld [vmem:[#allocation11 + $0x178] sm:$0xff]
    %v4829 = vld [vmem:[#allocation11 + $0x180] sm:$0xff]
    %v4830 = vld [vmem:[#allocation11 + $0x188] sm:$0xff]
    %v4831 = vld [vmem:[#allocation11 + $0x190] sm:$0xff]
    %v4832 = vld [vmem:[#allocation11 + $0x198] sm:$0xff]
    %v4833 = vld [vmem:[#allocation11 + $0x1a0] sm:$0xff]
    %v4834 = vld [vmem:[#allocation11 + $0x1a8] sm:$0xff]
    %v4835 = vld [vmem:[#allocation11 + $0x1b0] sm:$0xff]
    %v4836 = vld [vmem:[#allocation11 + $0x1b8] sm:$0xff]
    %v4837 = vld [vmem:[#allocation11 + $0x1c0] sm:$0xff]
    %v4838 = vld [vmem:[#allocation11 + $0x1c8] sm:$0xff]
    %v4839 = vld [vmem:[#allocation11 + $0x1d0] sm:$0xff]
    %v4840 = vld [vmem:[#allocation11 + $0x1d8] sm:$0xff]
    %v4841 = vld [vmem:[#allocation11 + $0x1e0] sm:$0xff]
    %v4842 = vld [vmem:[#allocation11 + $0x1e8] sm:$0xff]
    %v4843 = vld [vmem:[#allocation11 + $0x1f0] sm:$0xff]
    %v4844 = vld [vmem:[#allocation11 + $0x1f8] sm:$0xff]
    %v4845 = vld [vmem:[#allocation13] sm:$0xff]
    %v4846 = vld [vmem:[#allocation13 + $0x8] sm:$0xff]
    %v4847 = vld [vmem:[#allocation13 + $0x10] sm:$0xff]
    %v4848 = vld [vmem:[#allocation13 + $0x18] sm:$0xff]
    %v4849 = vld [vmem:[#allocation13 + $0x20] sm:$0xff]
    %v4850 = vld [vmem:[#allocation13 + $0x28] sm:$0xff]
    %v4851 = vld [vmem:[#allocation13 + $0x30] sm:$0xff]
    %v4852 = vld [vmem:[#allocation13 + $0x38] sm:$0xff]
    %v4853 = vld [vmem:[#allocation13 + $0x40] sm:$0xff]
    %v4854 = vld [vmem:[#allocation13 + $0x48] sm:$0xff]
    %v4855 = vld [vmem:[#allocation13 + $0x50] sm:$0xff]
    %v4856 = vld [vmem:[#allocation13 + $0x58] sm:$0xff]
    %v4857 = vld [vmem:[#allocation13 + $0x60] sm:$0xff]
    %v4858 = vld [vmem:[#allocation13 + $0x68] sm:$0xff]
    %v4859 = vld [vmem:[#allocation13 + $0x70] sm:$0xff]
    %v4860 = vld [vmem:[#allocation13 + $0x78] sm:$0xff]
    %v4861 = vld [vmem:[#allocation13 + $0x80] sm:$0xff]
    %v4862 = vld [vmem:[#allocation13 + $0x88] sm:$0xff]
    %v4863 = vld [vmem:[#allocation13 + $0x90] sm:$0xff]
    %v4864 = vld [vmem:[#allocation13 + $0x98] sm:$0xff]
    %v4865 = vld [vmem:[#allocation13 + $0xa0] sm:$0xff]
    %v4866 = vld [vmem:[#allocation13 + $0xa8] sm:$0xff]
    %v4867 = vld [vmem:[#allocation13 + $0xb0] sm:$0xff]
    %v4868 = vld [vmem:[#allocation13 + $0xb8] sm:$0xff]
    %v4869 = vld [vmem:[#allocation13 + $0xc0] sm:$0xff]
    %v4870 = vld [vmem:[#allocation13 + $0xc8] sm:$0xff]
    %v4871 = vld [vmem:[#allocation13 + $0xd0] sm:$0xff]
    %v4872 = vld [vmem:[#allocation13 + $0xd8] sm:$0xff]
    %v4873 = vld [vmem:[#allocation13 + $0xe0] sm:$0xff]
    %v4874 = vld [vmem:[#allocation13 + $0xe8] sm:$0xff]
    %v4875 = vld [vmem:[#allocation13 + $0xf0] sm:$0xff]
    %v4876 = vld [vmem:[#allocation13 + $0xf8] sm:$0xff]
    %v4877 = vld [vmem:[#allocation13 + $0x100] sm:$0xff]
    %v4878 = vld [vmem:[#allocation13 + $0x108] sm:$0xff]
    %v4879 = vld [vmem:[#allocation13 + $0x110] sm:$0xff]
    %v4880 = vld [vmem:[#allocation13 + $0x118] sm:$0xff]
    %v4881 = vld [vmem:[#allocation13 + $0x120] sm:$0xff]
    %v4882 = vld [vmem:[#allocation13 + $0x128] sm:$0xff]
    %v4883 = vld [vmem:[#allocation13 + $0x130] sm:$0xff]
    %v4884 = vld [vmem:[#allocation13 + $0x138] sm:$0xff]
    %v4885 = vld [vmem:[#allocation13 + $0x140] sm:$0xff]
    %v4886 = vld [vmem:[#allocation13 + $0x148] sm:$0xff]
    %v4887 = vld [vmem:[#allocation13 + $0x150] sm:$0xff]
    %v4888 = vld [vmem:[#allocation13 + $0x158] sm:$0xff]
    %v4889 = vld [vmem:[#allocation13 + $0x160] sm:$0xff]
    %v4890 = vld [vmem:[#allocation13 + $0x168] sm:$0xff]
    %v4891 = vld [vmem:[#allocation13 + $0x170] sm:$0xff]
    %v4892 = vld [vmem:[#allocation13 + $0x178] sm:$0xff]
    %v4893 = vld [vmem:[#allocation13 + $0x180] sm:$0xff]
    %v4894 = vld [vmem:[#allocation13 + $0x188] sm:$0xff]
    %v4895 = vld [vmem:[#allocation13 + $0x190] sm:$0xff]
    %v4896 = vld [vmem:[#allocation13 + $0x198] sm:$0xff]
    %v4897 = vld [vmem:[#allocation13 + $0x1a0] sm:$0xff]
    %v4898 = vld [vmem:[#allocation13 + $0x1a8] sm:$0xff]
    %v4899 = vld [vmem:[#allocation13 + $0x1b0] sm:$0xff]
    %v4900 = vld [vmem:[#allocation13 + $0x1b8] sm:$0xff]
    %v4901 = vld [vmem:[#allocation13 + $0x1c0] sm:$0xff]
    %v4902 = vld [vmem:[#allocation13 + $0x1c8] sm:$0xff]
    %v4903 = vld [vmem:[#allocation13 + $0x1d0] sm:$0xff]
    %v4904 = vld [vmem:[#allocation13 + $0x1d8] sm:$0xff]
    %v4905 = vld [vmem:[#allocation13 + $0x1e0] sm:$0xff]
    %v4906 = vld [vmem:[#allocation13 + $0x1e8] sm:$0xff]
    %v4907 = vld [vmem:[#allocation13 + $0x1f0] sm:$0xff]
    %v4908 = vld [vmem:[#allocation13 + $0x1f8] sm:$0xff]
    %4909 = vmatprep.subr.mxu0 %v4846
    %4910 = vmatpush1.msra.mxu0 %v4845
    %4911 = vmatprep.subr.mxu0 %v4850
    %4912 = vmatpush1.msra.mxu0 %v4849
    %4913 = vmatprep.subr.mxu0 %v4854
    %4914 = vmatpush1.msra.mxu0 %v4853
    %4915 = vmatprep.subr.mxu0 %v4858
    %4916 = vmatpush1.msra.mxu0 %v4857
    %4917 = vmatprep.subr.mxu0 %v4862
    %4918 = vmatpush1.msra.mxu0 %v4861
    %4919 = vmatprep.subr.mxu0 %v4866
    %4920 = vmatpush1.msra.mxu0 %v4865
    %4921 = vmatprep.subr.mxu0 %v4870
    %4922 = vmatpush1.msra.mxu0 %v4869
    %4923 = vmatprep.subr.mxu0 %v4874
    %4924 = vmatpush1.msra.mxu0 %v4873
    %4925 = vmatprep.subr.mxu0 %v4878
    %4926 = vmatpush1.msra.mxu0 %v4877
    %4927 = vmatprep.subr.mxu0 %v4882
    %4928 = vmatpush1.msra.mxu0 %v4881
    %4929 = vmatprep.subr.mxu0 %v4886
    %4930 = vmatpush1.msra.mxu0 %v4885
    %4931 = vmatprep.subr.mxu0 %v4890
    %4932 = vmatpush1.msra.mxu0 %v4889
    %4933 = vmatprep.subr.mxu0 %v4894
    %4934 = vmatpush1.msra.mxu0 %v4893
    %4935 = vmatprep.subr.mxu0 %v4898
    %4936 = vmatpush1.msra.mxu0 %v4897
    %4937 = vmatprep.subr.mxu0 %v4902
    %4938 = vmatpush1.msra.mxu0 %v4901
    %4939 = vmatprep.subr.mxu0 %v4906
    %4940 = vmatpush1.msra.mxu0 %v4905
    %4941 = vmatprep.subr.mxu0 0.0
    %4942 = vmatpush1.msra.mxu0 0.0
    %4943 = vmatprep.subr.mxu0 0.0
    %4944 = vmatpush1.msra.mxu0 0.0
    %4945 = vmatprep.subr.mxu0 0.0
    %4946 = vmatpush1.msra.mxu0 0.0
    %4947 = vmatprep.subr.mxu0 0.0
    %4948 = vmatpush1.msra.mxu0 0.0
    %4949 = vmatprep.subr.mxu0 0.0
    %4950 = vmatpush1.msra.mxu0 0.0
    %4951 = vmatprep.subr.mxu0 0.0
    %4952 = vmatpush1.msra.mxu0 0.0
    %4953 = vmatprep.subr.mxu0 0.0
    %4954 = vmatpush1.msra.mxu0 0.0
    %4955 = vmatprep.subr.mxu0 0.0
    %4956 = vmatpush1.msra.mxu0 0.0
    %4957 = vmatprep.subr.mxu0 0.0
    %4958 = vmatpush1.msra.mxu0 0.0
    %4959 = vmatprep.subr.mxu0 0.0
    %4960 = vmatpush1.msra.mxu0 0.0
    %4961 = vmatprep.subr.mxu0 0.0
    %4962 = vmatpush1.msra.mxu0 0.0
    %4963 = vmatprep.subr.mxu0 0.0
    %4964 = vmatpush1.msra.mxu0 0.0
    %4965 = vmatprep.subr.mxu0 0.0
    %4966 = vmatpush1.msra.mxu0 0.0
    %4967 = vmatprep.subr.mxu0 0.0
    %4968 = vmatpush1.msra.mxu0 0.0
    %4969 = vmatprep.subr.mxu0 0.0
    %4970 = vmatpush1.msra.mxu0 0.0
    %4971 = vmatprep.subr.mxu0 0.0
    %4972 = vmatpush1.msra.mxu0 0.0
    %4973 = vmatprep.mubr.f32.mxu0 0.0
    %4974 = vmatmul.mubr.f32.gmra.mrb[0].mxu0 %v4537
    %v4975 = vpop.f32.mrb[0].mxu0
    %v4976 = vadd.f32 0.0, %v4975
    %v4977 = vpop.f32.mrb[0].mxu0
    %v4978 = vadd.f32 0.0, %v4977
    %4979 = vdwg.mxu0
    %4980 = vmatprep.subr.mxu0 %v4848
    %4981 = vmatpush1.msra.mxu0 %v4847
    %4982 = vmatprep.subr.mxu0 %v4852
    %4983 = vmatpush1.msra.mxu0 %v4851
    %4984 = vmatprep.subr.mxu0 %v4856
    %4985 = vmatpush1.msra.mxu0 %v4855
    %4986 = vmatprep.subr.mxu0 %v4860
    %4987 = vmatpush1.msra.mxu0 %v4859
    %4988 = vmatprep.subr.mxu0 %v4864
    %4989 = vmatpush1.msra.mxu0 %v4863
    %4990 = vmatprep.subr.mxu0 %v4868
    %4991 = vmatpush1.msra.mxu0 %v4867
    %4992 = vmatprep.subr.mxu0 %v4872
    %4993 = vmatpush1.msra.mxu0 %v4871
    %4994 = vmatprep.subr.mxu0 %v4876
    %4995 = vmatpush1.msra.mxu0 %v4875
    %4996 = vmatprep.subr.mxu0 %v4880
    %4997 = vmatpush1.msra.mxu0 %v4879
    %4998 = vmatprep.subr.mxu0 %v4884
    %4999 = vmatpush1.msra.mxu0 %v4883
    %5000 = vmatprep.subr.mxu0 %v4888
    %5001 = vmatpush1.msra.mxu0 %v4887
    %5002 = vmatprep.subr.mxu0 %v4892
    %5003 = vmatpush1.msra.mxu0 %v4891
    %5004 = vmatprep.subr.mxu0 %v4896
    %5005 = vmatpush1.msra.mxu0 %v4895
    %5006 = vmatprep.subr.mxu0 %v4900
    %5007 = vmatpush1.msra.mxu0 %v4899
    %5008 = vmatprep.subr.mxu0 %v4904
    %5009 = vmatpush1.msra.mxu0 %v4903
    %5010 = vmatprep.subr.mxu0 %v4908
    %5011 = vmatpush1.msra.mxu0 %v4907
    %5012 = vmatprep.subr.mxu0 0.0
    %5013 = vmatpush1.msra.mxu0 0.0
    %5014 = vmatprep.subr.mxu0 0.0
    %5015 = vmatpush1.msra.mxu0 0.0
    %5016 = vmatprep.subr.mxu0 0.0
    %5017 = vmatpush1.msra.mxu0 0.0
    %5018 = vmatprep.subr.mxu0 0.0
    %5019 = vmatpush1.msra.mxu0 0.0
    %5020 = vmatprep.subr.mxu0 0.0
    %5021 = vmatpush1.msra.mxu0 0.0
    %5022 = vmatprep.subr.mxu0 0.0
    %5023 = vmatpush1.msra.mxu0 0.0
    %5024 = vmatprep.subr.mxu0 0.0
    %5025 = vmatpush1.msra.mxu0 0.0
    %5026 = vmatprep.subr.mxu0 0.0
    %5027 = vmatpush1.msra.mxu0 0.0
    %5028 = vmatprep.subr.mxu0 0.0
    %5029 = vmatpush1.msra.mxu0 0.0
    %5030 = vmatprep.subr.mxu0 0.0
    %5031 = vmatpush1.msra.mxu0 0.0
    %5032 = vmatprep.subr.mxu0 0.0
    %5033 = vmatpush1.msra.mxu0 0.0
    %5034 = vmatprep.subr.mxu0 0.0
    %5035 = vmatpush1.msra.mxu0 0.0
    %5036 = vmatprep.subr.mxu0 0.0
    %5037 = vmatpush1.msra.mxu0 0.0
    %5038 = vmatprep.subr.mxu0 0.0
    %5039 = vmatpush1.msra.mxu0 0.0
    %5040 = vmatprep.subr.mxu0 0.0
    %5041 = vmatpush1.msra.mxu0 0.0
    %5042 = vmatprep.subr.mxu0 0.0
    %5043 = vmatpush1.msra.mxu0 0.0
    %5044 = vmatprep.mubr.f32.mxu0 0.0
    %5045 = vmatmul.mubr.f32.gmra.mrb[0].mxu0 %v4537
    %v5046 = vpop.f32.mrb[0].mxu0
    %v5047 = vadd.f32 0.0, %v5046
    %v5048 = vpop.f32.mrb[0].mxu0
    %v5049 = vadd.f32 0.0, %v5048
    %5050 = vdwg.mxu0
    %5051 = vmatprep.subr.mxu0 %v4782
    %5052 = vmatpush1.msra.mxu0 %v4781
    %5053 = vmatprep.subr.mxu0 %v4786
    %5054 = vmatpush1.msra.mxu0 %v4785
    %5055 = vmatprep.subr.mxu0 %v4790
    %5056 = vmatpush1.msra.mxu0 %v4789
    %5057 = vmatprep.subr.mxu0 %v4794
    %5058 = vmatpush1.msra.mxu0 %v4793
    %5059 = vmatprep.subr.mxu0 %v4798
    %5060 = vmatpush1.msra.mxu0 %v4797
    %5061 = vmatprep.subr.mxu0 %v4802
    %5062 = vmatpush1.msra.mxu0 %v4801
    %5063 = vmatprep.subr.mxu0 %v4806
    %5064 = vmatpush1.msra.mxu0 %v4805
    %5065 = vmatprep.subr.mxu0 %v4810
    %5066 = vmatpush1.msra.mxu0 %v4809
    %5067 = vmatprep.subr.mxu0 %v4814
    %5068 = vmatpush1.msra.mxu0 %v4813
    %5069 = vmatprep.subr.mxu0 %v4818
    %5070 = vmatpush1.msra.mxu0 %v4817
    %5071 = vmatprep.subr.mxu0 %v4822
    %5072 = vmatpush1.msra.mxu0 %v4821
    %5073 = vmatprep.subr.mxu0 %v4826
    %5074 = vmatpush1.msra.mxu0 %v4825
    %5075 = vmatprep.subr.mxu0 %v4830
    %5076 = vmatpush1.msra.mxu0 %v4829
    %5077 = vmatprep.subr.mxu0 %v4834
    %5078 = vmatpush1.msra.mxu0 %v4833
    %5079 = vmatprep.subr.mxu0 %v4838
    %5080 = vmatpush1.msra.mxu0 %v4837
    %5081 = vmatprep.subr.mxu0 %v4842
    %5082 = vmatpush1.msra.mxu0 %v4841
    %5083 = vmatprep.subr.mxu0 0.0
    %5084 = vmatpush1.msra.mxu0 0.0
    %5085 = vmatprep.subr.mxu0 0.0
    %5086 = vmatpush1.msra.mxu0 0.0
    %5087 = vmatprep.subr.mxu0 0.0
    %5088 = vmatpush1.msra.mxu0 0.0
    %5089 = vmatprep.subr.mxu0 0.0
    %5090 = vmatpush1.msra.mxu0 0.0
    %5091 = vmatprep.subr.mxu0 0.0
    %5092 = vmatpush1.msra.mxu0 0.0
    %5093 = vmatprep.subr.mxu0 0.0
    %5094 = vmatpush1.msra.mxu0 0.0
    %5095 = vmatprep.subr.mxu0 0.0
    %5096 = vmatpush1.msra.mxu0 0.0
    %5097 = vmatprep.subr.mxu0 0.0
    %5098 = vmatpush1.msra.mxu0 0.0
    %5099 = vmatprep.subr.mxu0 0.0
    %5100 = vmatpush1.msra.mxu0 0.0
    %5101 = vmatprep.subr.mxu0 0.0
    %5102 = vmatpush1.msra.mxu0 0.0
    %5103 = vmatprep.subr.mxu0 0.0
    %5104 = vmatpush1.msra.mxu0 0.0
    %5105 = vmatprep.subr.mxu0 0.0
    %5106 = vmatpush1.msra.mxu0 0.0
    %5107 = vmatprep.subr.mxu0 0.0
    %5108 = vmatpush1.msra.mxu0 0.0
    %5109 = vmatprep.subr.mxu0 0.0
    %5110 = vmatpush1.msra.mxu0 0.0
    %5111 = vmatprep.subr.mxu0 0.0
    %5112 = vmatpush1.msra.mxu0 0.0
    %5113 = vmatprep.subr.mxu0 0.0
    %5114 = vmatpush1.msra.mxu0 0.0
    %5115 = vmatprep.mubr.f32.mxu0 0.0
    %5116 = vmatmul.mubr.f32.gmra.mrb[0].mxu0 %v4780
    %v5117 = vpop.f32.mrb[0].mxu0
    %v5118 = vadd.f32 %v4976, %v5117
    %v5119 = vpop.f32.mrb[0].mxu0
    %v5120 = vadd.f32 %v4978, %v5119
    %5121 = vdwg.mxu0
    %5122 = vmatprep.subr.mxu0 %v4784
    %5123 = vmatpush1.msra.mxu0 %v4783
    %5124 = vmatprep.subr.mxu0 %v4788
    %5125 = vmatpush1.msra.mxu0 %v4787
    %5126 = vmatprep.subr.mxu0 %v4792
    %5127 = vmatpush1.msra.mxu0 %v4791
    %5128 = vmatprep.subr.mxu0 %v4796
    %5129 = vmatpush1.msra.mxu0 %v4795
    %5130 = vmatprep.subr.mxu0 %v4800
    %5131 = vmatpush1.msra.mxu0 %v4799
    %5132 = vmatprep.subr.mxu0 %v4804
    %5133 = vmatpush1.msra.mxu0 %v4803
    %5134 = vmatprep.subr.mxu0 %v4808
    %5135 = vmatpush1.msra.mxu0 %v4807
    %5136 = vmatprep.subr.mxu0 %v4812
    %5137 = vmatpush1.msra.mxu0 %v4811
    %5138 = vmatprep.subr.mxu0 %v4816
    %5139 = vmatpush1.msra.mxu0 %v4815
    %5140 = vmatprep.subr.mxu0 %v4820
    %5141 = vmatpush1.msra.mxu0 %v4819
    %5142 = vmatprep.subr.mxu0 %v4824
    %5143 = vmatpush1.msra.mxu0 %v4823
    %5144 = vmatprep.subr.mxu0 %v4828
    %5145 = vmatpush1.msra.mxu0 %v4827
    %5146 = vmatprep.subr.mxu0 %v4832
    %5147 = vmatpush1.msra.mxu0 %v4831
    %5148 = vmatprep.subr.mxu0 %v4836
    %5149 = vmatpush1.msra.mxu0 %v4835
    %5150 = vmatprep.subr.mxu0 %v4840
    %5151 = vmatpush1.msra.mxu0 %v4839
    %5152 = vmatprep.subr.mxu0 %v4844
    %5153 = vmatpush1.msra.mxu0 %v4843
    %5154 = vmatprep.subr.mxu0 0.0
    %5155 = vmatpush1.msra.mxu0 0.0
    %5156 = vmatprep.subr.mxu0 0.0
    %5157 = vmatpush1.msra.mxu0 0.0
    %5158 = vmatprep.subr.mxu0 0.0
    %5159 = vmatpush1.msra.mxu0 0.0
    %5160 = vmatprep.subr.mxu0 0.0
    %5161 = vmatpush1.msra.mxu0 0.0
    %5162 = vmatprep.subr.mxu0 0.0
    %5163 = vmatpush1.msra.mxu0 0.0
    %5164 = vmatprep.subr.mxu0 0.0
    %5165 = vmatpush1.msra.mxu0 0.0
    %5166 = vmatprep.subr.mxu0 0.0
    %5167 = vmatpush1.msra.mxu0 0.0
    %5168 = vmatprep.subr.mxu0 0.0
    %5169 = vmatpush1.msra.mxu0 0.0
    %5170 = vmatprep.subr.mxu0 0.0
    %5171 = vmatpush1.msra.mxu0 0.0
    %5172 = vmatprep.subr.mxu0 0.0
    %5173 = vmatpush1.msra.mxu0 0.0
    %5174 = vmatprep.subr.mxu0 0.0
    %5175 = vmatpush1.msra.mxu0 0.0
    %5176 = vmatprep.subr.mxu0 0.0
    %5177 = vmatpush1.msra.mxu0 0.0
    %5178 = vmatprep.subr.mxu0 0.0
    %5179 = vmatpush1.msra.mxu0 0.0
    %5180 = vmatprep.subr.mxu0 0.0
    %5181 = vmatpush1.msra.mxu0 0.0
    %5182 = vmatprep.subr.mxu0 0.0
    %5183 = vmatpush1.msra.mxu0 0.0
    %5184 = vmatprep.subr.mxu0 0.0
    %5185 = vmatpush1.msra.mxu0 0.0
    %5186 = vmatprep.mubr.f32.mxu0 0.0
    %5187 = vmatmul.mubr.f32.gmra.mrb[0].mxu0 %v4780
    %v5188 = vpop.f32.mrb[0].mxu0
    %v5189 = vadd.f32 %v5047, %v5188
    %v5190 = vpop.f32.mrb[0].mxu0
    %v5191 = vadd.f32 %v5049, %v5190
    %5192 = vdwg.mxu0
    %v5193 = vadd.f32 %v5118, %v422
    %v5194 = vadd.f32 %v5120, %v426
    %v5195 = vadd.f32 %v5189, %v430
    %v5196 = vadd.f32 %v5191, %v434
    %v5197 = vxor.u32 %v5193, 2147483648
    %v5198 = vmul.f32 %v5197, 1.442695
    %v5199 = vpow.pop %v5198
    %v5200 = vadd.f32 %v5199, 1.0
    %v5201 = vrcp.pop %v5200
    %v5202 = vmul.f32 1.0, %v5201
    %v5203 = vxor.u32 %v5194, 2147483648
    %v5204 = vmul.f32 %v5203, 1.442695
    %v5205 = vpow.pop %v5204
    %v5206 = vadd.f32 %v5205, 1.0
    %v5207 = vrcp.pop %v5206
    %v5208 = vmul.f32 1.0, %v5207
    %v5209 = vtanh.pop %v5195
    %v5210 = vxor.u32 %v5196, 2147483648
    %v5211 = vmul.f32 %v5210, 1.442695
    %v5212 = vpow.pop %v5211
    %v5213 = vadd.f32 %v5212, 1.0
    %v5214 = vrcp.pop %v5213
    %v5215 = vmul.f32 1.0, %v5214
    %v5216 = vmul.f32 %v5208, %v4535
    %v5217 = vmul.f32 %v5202, %v5209
    %v5218 = vadd.f32 %v5216, %v5217
    %v5219 = vtanh.pop %v5218
    %v5220 = vmul.f32 %v5215, %v5219
    %s5221 = scalar_lea.vmem [#allocation7], 48
    %5222 = vst [vmem:[%s5221] sm:$0xff] %v5220
    %s5223 = smul.u32 7, 4
    %s5224 = smul.addr %s5223, 8
    %s5225 = scalar_lea.vmem [#allocation6], %s5224
    %v5226 = vld [vmem:[%s5225] sm:$0xff]
    %v5227 = vld [vmem:[%s5225 + $0x8] sm:$0xff]
    %v5228 = vld [vmem:[%s5225 + $0x10] sm:$0xff]
    %v5229 = vld [vmem:[%s5225 + $0x18] sm:$0xff]
    %v5230 = vld [vmem:[#allocation8] sm:$0xff]
    %v5231 = vld [vmem:[#allocation8 + $0x8] sm:$0xff]
    %v5232 = vld [vmem:[#allocation8 + $0x10] sm:$0xff]
    %v5233 = vld [vmem:[#allocation8 + $0x18] sm:$0xff]
    %v5234 = vld [vmem:[#allocation8 + $0x20] sm:$0xff]
    %v5235 = vld [vmem:[#allocation8 + $0x28] sm:$0xff]
    %v5236 = vld [vmem:[#allocation8 + $0x30] sm:$0xff]
    %v5237 = vld [vmem:[#allocation8 + $0x38] sm:$0xff]
    %v5238 = vld [vmem:[#allocation8 + $0x40] sm:$0xff]
    %v5239 = vld [vmem:[#allocation8 + $0x48] sm:$0xff]
    %v5240 = vld [vmem:[#allocation8 + $0x50] sm:$0xff]
    %v5241 = vld [vmem:[#allocation8 + $0x58] sm:$0xff]
    %v5242 = vld [vmem:[#allocation8 + $0x60] sm:$0xff]
    %v5243 = vld [vmem:[#allocation8 + $0x68] sm:$0xff]
    %v5244 = vld [vmem:[#allocation8 + $0x70] sm:$0xff]
    %v5245 = vld [vmem:[#allocation8 + $0x78] sm:$0xff]
    %v5246 = vld [vmem:[#allocation8 + $0x80] sm:$0xff]
    %v5247 = vld [vmem:[#allocation8 + $0x88] sm:$0xff]
    %v5248 = vld [vmem:[#allocation8 + $0x90] sm:$0xff]
    %v5249 = vld [vmem:[#allocation8 + $0x98] sm:$0xff]
    %v5250 = vld [vmem:[#allocation8 + $0xa0] sm:$0xff]
    %v5251 = vld [vmem:[#allocation8 + $0xa8] sm:$0xff]
    %v5252 = vld [vmem:[#allocation8 + $0xb0] sm:$0xff]
    %v5253 = vld [vmem:[#allocation8 + $0xb8] sm:$0xff]
    %v5254 = vld [vmem:[#allocation8 + $0xc0] sm:$0xff]
    %v5255 = vld [vmem:[#allocation8 + $0xc8] sm:$0xff]
    %v5256 = vld [vmem:[#allocation8 + $0xd0] sm:$0xff]
    %v5257 = vld [vmem:[#allocation8 + $0xd8] sm:$0xff]
    %v5258 = vld [vmem:[#allocation8 + $0xe0] sm:$0xff]
    %v5259 = vld [vmem:[#allocation8 + $0xe8] sm:$0xff]
    %v5260 = vld [vmem:[#allocation8 + $0xf0] sm:$0xff]
    %v5261 = vld [vmem:[#allocation8 + $0xf8] sm:$0xff]
    %v5262 = vld [vmem:[#allocation8 + $0x100] sm:$0xff]
    %v5263 = vld [vmem:[#allocation8 + $0x108] sm:$0xff]
    %v5264 = vld [vmem:[#allocation8 + $0x110] sm:$0xff]
    %v5265 = vld [vmem:[#allocation8 + $0x118] sm:$0xff]
    %v5266 = vld [vmem:[#allocation8 + $0x120] sm:$0xff]
    %v5267 = vld [vmem:[#allocation8 + $0x128] sm:$0xff]
    %v5268 = vld [vmem:[#allocation8 + $0x130] sm:$0xff]
    %v5269 = vld [vmem:[#allocation8 + $0x138] sm:$0xff]
    %v5270 = vld [vmem:[#allocation8 + $0x140] sm:$0xff]
    %v5271 = vld [vmem:[#allocation8 + $0x148] sm:$0xff]
    %v5272 = vld [vmem:[#allocation8 + $0x150] sm:$0xff]
    %v5273 = vld [vmem:[#allocation8 + $0x158] sm:$0xff]
    %v5274 = vld [vmem:[#allocation8 + $0x160] sm:$0xff]
    %v5275 = vld [vmem:[#allocation8 + $0x168] sm:$0xff]
    %v5276 = vld [vmem:[#allocation8 + $0x170] sm:$0xff]
    %v5277 = vld [vmem:[#allocation8 + $0x178] sm:$0xff]
    %v5278 = vld [vmem:[#allocation8 + $0x180] sm:$0xff]
    %v5279 = vld [vmem:[#allocation8 + $0x188] sm:$0xff]
    %v5280 = vld [vmem:[#allocation8 + $0x190] sm:$0xff]
    %v5281 = vld [vmem:[#allocation8 + $0x198] sm:$0xff]
    %v5282 = vld [vmem:[#allocation8 + $0x1a0] sm:$0xff]
    %v5283 = vld [vmem:[#allocation8 + $0x1a8] sm:$0xff]
    %v5284 = vld [vmem:[#allocation8 + $0x1b0] sm:$0xff]
    %v5285 = vld [vmem:[#allocation8 + $0x1b8] sm:$0xff]
    %v5286 = vld [vmem:[#allocation8 + $0x1c0] sm:$0xff]
    %v5287 = vld [vmem:[#allocation8 + $0x1c8] sm:$0xff]
    %v5288 = vld [vmem:[#allocation8 + $0x1d0] sm:$0xff]
    %v5289 = vld [vmem:[#allocation8 + $0x1d8] sm:$0xff]
    %v5290 = vld [vmem:[#allocation8 + $0x1e0] sm:$0xff]
    %v5291 = vld [vmem:[#allocation8 + $0x1e8] sm:$0xff]
    %v5292 = vld [vmem:[#allocation8 + $0x1f0] sm:$0xff]
    %v5293 = vld [vmem:[#allocation8 + $0x1f8] sm:$0xff]
    %5294 = vmatprep.subr.mxu0 %v5231
    %5295 = vmatpush1.msra.mxu0 %v5230
    %5296 = vmatprep.subr.mxu0 %v5235
    %5297 = vmatpush1.msra.mxu0 %v5234
    %5298 = vmatprep.subr.mxu0 %v5239
    %5299 = vmatpush1.msra.mxu0 %v5238
    %5300 = vmatprep.subr.mxu0 %v5243
    %5301 = vmatpush1.msra.mxu0 %v5242
    %5302 = vmatprep.subr.mxu0 %v5247
    %5303 = vmatpush1.msra.mxu0 %v5246
    %5304 = vmatprep.subr.mxu0 %v5251
    %5305 = vmatpush1.msra.mxu0 %v5250
    %5306 = vmatprep.subr.mxu0 %v5255
    %5307 = vmatpush1.msra.mxu0 %v5254
    %5308 = vmatprep.subr.mxu0 %v5259
    %5309 = vmatpush1.msra.mxu0 %v5258
    %5310 = vmatprep.subr.mxu0 %v5263
    %5311 = vmatpush1.msra.mxu0 %v5262
    %5312 = vmatprep.subr.mxu0 %v5267
    %5313 = vmatpush1.msra.mxu0 %v5266
    %5314 = vmatprep.subr.mxu0 %v5271
    %5315 = vmatpush1.msra.mxu0 %v5270
    %5316 = vmatprep.subr.mxu0 %v5275
    %5317 = vmatpush1.msra.mxu0 %v5274
    %5318 = vmatprep.subr.mxu0 %v5279
    %5319 = vmatpush1.msra.mxu0 %v5278
    %5320 = vmatprep.subr.mxu0 %v5283
    %5321 = vmatpush1.msra.mxu0 %v5282
    %5322 = vmatprep.subr.mxu0 %v5287
    %5323 = vmatpush1.msra.mxu0 %v5286
    %5324 = vmatprep.subr.mxu0 %v5291
    %5325 = vmatpush1.msra.mxu0 %v5290
    %5326 = vmatprep.subr.mxu0 0.0
    %5327 = vmatpush1.msra.mxu0 0.0
    %5328 = vmatprep.subr.mxu0 0.0
    %5329 = vmatpush1.msra.mxu0 0.0
    %5330 = vmatprep.subr.mxu0 0.0
    %5331 = vmatpush1.msra.mxu0 0.0
    %5332 = vmatprep.subr.mxu0 0.0
    %5333 = vmatpush1.msra.mxu0 0.0
    %5334 = vmatprep.subr.mxu0 0.0
    %5335 = vmatpush1.msra.mxu0 0.0
    %5336 = vmatprep.subr.mxu0 0.0
    %5337 = vmatpush1.msra.mxu0 0.0
    %5338 = vmatprep.subr.mxu0 0.0
    %5339 = vmatpush1.msra.mxu0 0.0
    %5340 = vmatprep.subr.mxu0 0.0
    %5341 = vmatpush1.msra.mxu0 0.0
    %5342 = vmatprep.subr.mxu0 0.0
    %5343 = vmatpush1.msra.mxu0 0.0
    %5344 = vmatprep.subr.mxu0 0.0
    %5345 = vmatpush1.msra.mxu0 0.0
    %5346 = vmatprep.subr.mxu0 0.0
    %5347 = vmatpush1.msra.mxu0 0.0
    %5348 = vmatprep.subr.mxu0 0.0
    %5349 = vmatpush1.msra.mxu0 0.0
    %5350 = vmatprep.subr.mxu0 0.0
    %5351 = vmatpush1.msra.mxu0 0.0
    %5352 = vmatprep.subr.mxu0 0.0
    %5353 = vmatpush1.msra.mxu0 0.0
    %5354 = vmatprep.subr.mxu0 0.0
    %5355 = vmatpush1.msra.mxu0 0.0
    %5356 = vmatprep.subr.mxu0 0.0
    %5357 = vmatpush1.msra.mxu0 0.0
    %5358 = vmatprep.mubr.f32.mxu0 0.0
    %5359 = vmatmul.mubr.f32.gmra.mrb[0].mxu0 %v4780
    %v5360 = vpop.f32.mrb[0].mxu0
    %v5361 = vadd.f32 0.0, %v5360
    %v5362 = vpop.f32.mrb[0].mxu0
    %v5363 = vadd.f32 0.0, %v5362
    %5364 = vdwg.mxu0
    %5365 = vmatprep.subr.mxu0 %v5233
    %5366 = vmatpush1.msra.mxu0 %v5232
    %5367 = vmatprep.subr.mxu0 %v5237
    %5368 = vmatpush1.msra.mxu0 %v5236
    %5369 = vmatprep.subr.mxu0 %v5241
    %5370 = vmatpush1.msra.mxu0 %v5240
    %5371 = vmatprep.subr.mxu0 %v5245
    %5372 = vmatpush1.msra.mxu0 %v5244
    %5373 = vmatprep.subr.mxu0 %v5249
    %5374 = vmatpush1.msra.mxu0 %v5248
    %5375 = vmatprep.subr.mxu0 %v5253
    %5376 = vmatpush1.msra.mxu0 %v5252
    %5377 = vmatprep.subr.mxu0 %v5257
    %5378 = vmatpush1.msra.mxu0 %v5256
    %5379 = vmatprep.subr.mxu0 %v5261
    %5380 = vmatpush1.msra.mxu0 %v5260
    %5381 = vmatprep.subr.mxu0 %v5265
    %5382 = vmatpush1.msra.mxu0 %v5264
    %5383 = vmatprep.subr.mxu0 %v5269
    %5384 = vmatpush1.msra.mxu0 %v5268
    %5385 = vmatprep.subr.mxu0 %v5273
    %5386 = vmatpush1.msra.mxu0 %v5272
    %5387 = vmatprep.subr.mxu0 %v5277
    %5388 = vmatpush1.msra.mxu0 %v5276
    %5389 = vmatprep.subr.mxu0 %v5281
    %5390 = vmatpush1.msra.mxu0 %v5280
    %5391 = vmatprep.subr.mxu0 %v5285
    %5392 = vmatpush1.msra.mxu0 %v5284
    %5393 = vmatprep.subr.mxu0 %v5289
    %5394 = vmatpush1.msra.mxu0 %v5288
    %5395 = vmatprep.subr.mxu0 %v5293
    %5396 = vmatpush1.msra.mxu0 %v5292
    %5397 = vmatprep.subr.mxu0 0.0
    %5398 = vmatpush1.msra.mxu0 0.0
    %5399 = vmatprep.subr.mxu0 0.0
    %5400 = vmatpush1.msra.mxu0 0.0
    %5401 = vmatprep.subr.mxu0 0.0
    %5402 = vmatpush1.msra.mxu0 0.0
    %5403 = vmatprep.subr.mxu0 0.0
    %5404 = vmatpush1.msra.mxu0 0.0
    %5405 = vmatprep.subr.mxu0 0.0
    %5406 = vmatpush1.msra.mxu0 0.0
    %5407 = vmatprep.subr.mxu0 0.0
    %5408 = vmatpush1.msra.mxu0 0.0
    %5409 = vmatprep.subr.mxu0 0.0
    %5410 = vmatpush1.msra.mxu0 0.0
    %5411 = vmatprep.subr.mxu0 0.0
    %5412 = vmatpush1.msra.mxu0 0.0
    %5413 = vmatprep.subr.mxu0 0.0
    %5414 = vmatpush1.msra.mxu0 0.0
    %5415 = vmatprep.subr.mxu0 0.0
    %5416 = vmatpush1.msra.mxu0 0.0
    %5417 = vmatprep.subr.mxu0 0.0
    %5418 = vmatpush1.msra.mxu0 0.0
    %5419 = vmatprep.subr.mxu0 0.0
    %5420 = vmatpush1.msra.mxu0 0.0
    %5421 = vmatprep.subr.mxu0 0.0
    %5422 = vmatpush1.msra.mxu0 0.0
    %5423 = vmatprep.subr.mxu0 0.0
    %5424 = vmatpush1.msra.mxu0 0.0
    %5425 = vmatprep.subr.mxu0 0.0
    %5426 = vmatpush1.msra.mxu0 0.0
    %5427 = vmatprep.subr.mxu0 0.0
    %5428 = vmatpush1.msra.mxu0 0.0
    %5429 = vmatprep.mubr.f32.mxu0 0.0
    %5430 = vmatmul.mubr.f32.gmra.mrb[0].mxu0 %v4780
    %v5431 = vpop.f32.mrb[0].mxu0
    %v5432 = vadd.f32 0.0, %v5431
    %v5433 = vpop.f32.mrb[0].mxu0
    %v5434 = vadd.f32 0.0, %v5433
    %5435 = vdwg.mxu0
    %v5436 = vadd.f32 %v5226, %v5361
    %v5437 = vadd.f32 %v5227, %v5363
    %v5438 = vadd.f32 %v5228, %v5432
    %v5439 = vadd.f32 %v5229, %v5434
    %v5440 = vxor.u32 %v5436, 2147483648
    %v5441 = vmul.f32 %v5440, 1.442695
    %v5442 = vpow.pop %v5441
    %v5443 = vadd.f32 %v5442, 1.0
    %v5444 = vrcp.pop %v5443
    %v5445 = vmul.f32 1.0, %v5444
    %v5446 = vxor.u32 %v5437, 2147483648
    %v5447 = vmul.f32 %v5446, 1.442695
    %v5448 = vpow.pop %v5447
    %v5449 = vadd.f32 %v5448, 1.0
    %v5450 = vrcp.pop %v5449
    %v5451 = vmul.f32 1.0, %v5450
    %v5452 = vtanh.pop %v5438
    %v5453 = vxor.u32 %v5439, 2147483648
    %v5454 = vmul.f32 %v5453, 1.442695
    %v5455 = vpow.pop %v5454
    %v5456 = vadd.f32 %v5455, 1.0
    %v5457 = vrcp.pop %v5456
    %v5458 = vmul.f32 1.0, %v5457
    %v5459 = vmul.f32 %v5451, %v4778
    %v5460 = vmul.f32 %v5445, %v5452
    %v5461 = vadd.f32 %v5459, %v5460
    %v5462 = vtanh.pop %v5461
    %v5463 = vmul.f32 %v5458, %v5462
    %v5464 = vld [vmem:[#allocation11] sm:$0xff]
    %v5465 = vld [vmem:[#allocation11 + $0x8] sm:$0xff]
    %v5466 = vld [vmem:[#allocation11 + $0x10] sm:$0xff]
    %v5467 = vld [vmem:[#allocation11 + $0x18] sm:$0xff]
    %v5468 = vld [vmem:[#allocation11 + $0x20] sm:$0xff]
    %v5469 = vld [vmem:[#allocation11 + $0x28] sm:$0xff]
    %v5470 = vld [vmem:[#allocation11 + $0x30] sm:$0xff]
    %v5471 = vld [vmem:[#allocation11 + $0x38] sm:$0xff]
    %v5472 = vld [vmem:[#allocation11 + $0x40] sm:$0xff]
    %v5473 = vld [vmem:[#allocation11 + $0x48] sm:$0xff]
    %v5474 = vld [vmem:[#allocation11 + $0x50] sm:$0xff]
    %v5475 = vld [vmem:[#allocation11 + $0x58] sm:$0xff]
    %v5476 = vld [vmem:[#allocation11 + $0x60] sm:$0xff]
    %v5477 = vld [vmem:[#allocation11 + $0x68] sm:$0xff]
    %v5478 = vld [vmem:[#allocation11 + $0x70] sm:$0xff]
    %v5479 = vld [vmem:[#allocation11 + $0x78] sm:$0xff]
    %v5480 = vld [vmem:[#allocation11 + $0x80] sm:$0xff]
    %v5481 = vld [vmem:[#allocation11 + $0x88] sm:$0xff]
    %v5482 = vld [vmem:[#allocation11 + $0x90] sm:$0xff]
    %v5483 = vld [vmem:[#allocation11 + $0x98] sm:$0xff]
    %v5484 = vld [vmem:[#allocation11 + $0xa0] sm:$0xff]
    %v5485 = vld [vmem:[#allocation11 + $0xa8] sm:$0xff]
    %v5486 = vld [vmem:[#allocation11 + $0xb0] sm:$0xff]
    %v5487 = vld [vmem:[#allocation11 + $0xb8] sm:$0xff]
    %v5488 = vld [vmem:[#allocation11 + $0xc0] sm:$0xff]
    %v5489 = vld [vmem:[#allocation11 + $0xc8] sm:$0xff]
    %v5490 = vld [vmem:[#allocation11 + $0xd0] sm:$0xff]
    %v5491 = vld [vmem:[#allocation11 + $0xd8] sm:$0xff]
    %v5492 = vld [vmem:[#allocation11 + $0xe0] sm:$0xff]
    %v5493 = vld [vmem:[#allocation11 + $0xe8] sm:$0xff]
    %v5494 = vld [vmem:[#allocation11 + $0xf0] sm:$0xff]
    %v5495 = vld [vmem:[#allocation11 + $0xf8] sm:$0xff]
    %v5496 = vld [vmem:[#allocation11 + $0x100] sm:$0xff]
    %v5497 = vld [vmem:[#allocation11 + $0x108] sm:$0xff]
    %v5498 = vld [vmem:[#allocation11 + $0x110] sm:$0xff]
    %v5499 = vld [vmem:[#allocation11 + $0x118] sm:$0xff]
    %v5500 = vld [vmem:[#allocation11 + $0x120] sm:$0xff]
    %v5501 = vld [vmem:[#allocation11 + $0x128] sm:$0xff]
    %v5502 = vld [vmem:[#allocation11 + $0x130] sm:$0xff]
    %v5503 = vld [vmem:[#allocation11 + $0x138] sm:$0xff]
    %v5504 = vld [vmem:[#allocation11 + $0x140] sm:$0xff]
    %v5505 = vld [vmem:[#allocation11 + $0x148] sm:$0xff]
    %v5506 = vld [vmem:[#allocation11 + $0x150] sm:$0xff]
    %v5507 = vld [vmem:[#allocation11 + $0x158] sm:$0xff]
    %v5508 = vld [vmem:[#allocation11 + $0x160] sm:$0xff]
    %v5509 = vld [vmem:[#allocation11 + $0x168] sm:$0xff]
    %v5510 = vld [vmem:[#allocation11 + $0x170] sm:$0xff]
    %v5511 = vld [vmem:[#allocation11 + $0x178] sm:$0xff]
    %v5512 = vld [vmem:[#allocation11 + $0x180] sm:$0xff]
    %v5513 = vld [vmem:[#allocation11 + $0x188] sm:$0xff]
    %v5514 = vld [vmem:[#allocation11 + $0x190] sm:$0xff]
    %v5515 = vld [vmem:[#allocation11 + $0x198] sm:$0xff]
    %v5516 = vld [vmem:[#allocation11 + $0x1a0] sm:$0xff]
    %v5517 = vld [vmem:[#allocation11 + $0x1a8] sm:$0xff]
    %v5518 = vld [vmem:[#allocation11 + $0x1b0] sm:$0xff]
    %v5519 = vld [vmem:[#allocation11 + $0x1b8] sm:$0xff]
    %v5520 = vld [vmem:[#allocation11 + $0x1c0] sm:$0xff]
    %v5521 = vld [vmem:[#allocation11 + $0x1c8] sm:$0xff]
    %v5522 = vld [vmem:[#allocation11 + $0x1d0] sm:$0xff]
    %v5523 = vld [vmem:[#allocation11 + $0x1d8] sm:$0xff]
    %v5524 = vld [vmem:[#allocation11 + $0x1e0] sm:$0xff]
    %v5525 = vld [vmem:[#allocation11 + $0x1e8] sm:$0xff]
    %v5526 = vld [vmem:[#allocation11 + $0x1f0] sm:$0xff]
    %v5527 = vld [vmem:[#allocation11 + $0x1f8] sm:$0xff]
    %v5528 = vld [vmem:[#allocation13] sm:$0xff]
    %v5529 = vld [vmem:[#allocation13 + $0x8] sm:$0xff]
    %v5530 = vld [vmem:[#allocation13 + $0x10] sm:$0xff]
    %v5531 = vld [vmem:[#allocation13 + $0x18] sm:$0xff]
    %v5532 = vld [vmem:[#allocation13 + $0x20] sm:$0xff]
    %v5533 = vld [vmem:[#allocation13 + $0x28] sm:$0xff]
    %v5534 = vld [vmem:[#allocation13 + $0x30] sm:$0xff]
    %v5535 = vld [vmem:[#allocation13 + $0x38] sm:$0xff]
    %v5536 = vld [vmem:[#allocation13 + $0x40] sm:$0xff]
    %v5537 = vld [vmem:[#allocation13 + $0x48] sm:$0xff]
    %v5538 = vld [vmem:[#allocation13 + $0x50] sm:$0xff]
    %v5539 = vld [vmem:[#allocation13 + $0x58] sm:$0xff]
    %v5540 = vld [vmem:[#allocation13 + $0x60] sm:$0xff]
    %v5541 = vld [vmem:[#allocation13 + $0x68] sm:$0xff]
    %v5542 = vld [vmem:[#allocation13 + $0x70] sm:$0xff]
    %v5543 = vld [vmem:[#allocation13 + $0x78] sm:$0xff]
    %v5544 = vld [vmem:[#allocation13 + $0x80] sm:$0xff]
    %v5545 = vld [vmem:[#allocation13 + $0x88] sm:$0xff]
    %v5546 = vld [vmem:[#allocation13 + $0x90] sm:$0xff]
    %v5547 = vld [vmem:[#allocation13 + $0x98] sm:$0xff]
    %v5548 = vld [vmem:[#allocation13 + $0xa0] sm:$0xff]
    %v5549 = vld [vmem:[#allocation13 + $0xa8] sm:$0xff]
    %v5550 = vld [vmem:[#allocation13 + $0xb0] sm:$0xff]
    %v5551 = vld [vmem:[#allocation13 + $0xb8] sm:$0xff]
    %v5552 = vld [vmem:[#allocation13 + $0xc0] sm:$0xff]
    %v5553 = vld [vmem:[#allocation13 + $0xc8] sm:$0xff]
    %v5554 = vld [vmem:[#allocation13 + $0xd0] sm:$0xff]
    %v5555 = vld [vmem:[#allocation13 + $0xd8] sm:$0xff]
    %v5556 = vld [vmem:[#allocation13 + $0xe0] sm:$0xff]
    %v5557 = vld [vmem:[#allocation13 + $0xe8] sm:$0xff]
    %v5558 = vld [vmem:[#allocation13 + $0xf0] sm:$0xff]
    %v5559 = vld [vmem:[#allocation13 + $0xf8] sm:$0xff]
    %v5560 = vld [vmem:[#allocation13 + $0x100] sm:$0xff]
    %v5561 = vld [vmem:[#allocation13 + $0x108] sm:$0xff]
    %v5562 = vld [vmem:[#allocation13 + $0x110] sm:$0xff]
    %v5563 = vld [vmem:[#allocation13 + $0x118] sm:$0xff]
    %v5564 = vld [vmem:[#allocation13 + $0x120] sm:$0xff]
    %v5565 = vld [vmem:[#allocation13 + $0x128] sm:$0xff]
    %v5566 = vld [vmem:[#allocation13 + $0x130] sm:$0xff]
    %v5567 = vld [vmem:[#allocation13 + $0x138] sm:$0xff]
    %v5568 = vld [vmem:[#allocation13 + $0x140] sm:$0xff]
    %v5569 = vld [vmem:[#allocation13 + $0x148] sm:$0xff]
    %v5570 = vld [vmem:[#allocation13 + $0x150] sm:$0xff]
    %v5571 = vld [vmem:[#allocation13 + $0x158] sm:$0xff]
    %v5572 = vld [vmem:[#allocation13 + $0x160] sm:$0xff]
    %v5573 = vld [vmem:[#allocation13 + $0x168] sm:$0xff]
    %v5574 = vld [vmem:[#allocation13 + $0x170] sm:$0xff]
    %v5575 = vld [vmem:[#allocation13 + $0x178] sm:$0xff]
    %v5576 = vld [vmem:[#allocation13 + $0x180] sm:$0xff]
    %v5577 = vld [vmem:[#allocation13 + $0x188] sm:$0xff]
    %v5578 = vld [vmem:[#allocation13 + $0x190] sm:$0xff]
    %v5579 = vld [vmem:[#allocation13 + $0x198] sm:$0xff]
    %v5580 = vld [vmem:[#allocation13 + $0x1a0] sm:$0xff]
    %v5581 = vld [vmem:[#allocation13 + $0x1a8] sm:$0xff]
    %v5582 = vld [vmem:[#allocation13 + $0x1b0] sm:$0xff]
    %v5583 = vld [vmem:[#allocation13 + $0x1b8] sm:$0xff]
    %v5584 = vld [vmem:[#allocation13 + $0x1c0] sm:$0xff]
    %v5585 = vld [vmem:[#allocation13 + $0x1c8] sm:$0xff]
    %v5586 = vld [vmem:[#allocation13 + $0x1d0] sm:$0xff]
    %v5587 = vld [vmem:[#allocation13 + $0x1d8] sm:$0xff]
    %v5588 = vld [vmem:[#allocation13 + $0x1e0] sm:$0xff]
    %v5589 = vld [vmem:[#allocation13 + $0x1e8] sm:$0xff]
    %v5590 = vld [vmem:[#allocation13 + $0x1f0] sm:$0xff]
    %v5591 = vld [vmem:[#allocation13 + $0x1f8] sm:$0xff]
    %5592 = vmatprep.subr.mxu0 %v5529
    %5593 = vmatpush1.msra.mxu0 %v5528
    %5594 = vmatprep.subr.mxu0 %v5533
    %5595 = vmatpush1.msra.mxu0 %v5532
    %5596 = vmatprep.subr.mxu0 %v5537
    %5597 = vmatpush1.msra.mxu0 %v5536
    %5598 = vmatprep.subr.mxu0 %v5541
    %5599 = vmatpush1.msra.mxu0 %v5540
    %5600 = vmatprep.subr.mxu0 %v5545
    %5601 = vmatpush1.msra.mxu0 %v5544
    %5602 = vmatprep.subr.mxu0 %v5549
    %5603 = vmatpush1.msra.mxu0 %v5548
    %5604 = vmatprep.subr.mxu0 %v5553
    %5605 = vmatpush1.msra.mxu0 %v5552
    %5606 = vmatprep.subr.mxu0 %v5557
    %5607 = vmatpush1.msra.mxu0 %v5556
    %5608 = vmatprep.subr.mxu0 %v5561
    %5609 = vmatpush1.msra.mxu0 %v5560
    %5610 = vmatprep.subr.mxu0 %v5565
    %5611 = vmatpush1.msra.mxu0 %v5564
    %5612 = vmatprep.subr.mxu0 %v5569
    %5613 = vmatpush1.msra.mxu0 %v5568
    %5614 = vmatprep.subr.mxu0 %v5573
    %5615 = vmatpush1.msra.mxu0 %v5572
    %5616 = vmatprep.subr.mxu0 %v5577
    %5617 = vmatpush1.msra.mxu0 %v5576
    %5618 = vmatprep.subr.mxu0 %v5581
    %5619 = vmatpush1.msra.mxu0 %v5580
    %5620 = vmatprep.subr.mxu0 %v5585
    %5621 = vmatpush1.msra.mxu0 %v5584
    %5622 = vmatprep.subr.mxu0 %v5589
    %5623 = vmatpush1.msra.mxu0 %v5588
    %5624 = vmatprep.subr.mxu0 0.0
    %5625 = vmatpush1.msra.mxu0 0.0
    %5626 = vmatprep.subr.mxu0 0.0
    %5627 = vmatpush1.msra.mxu0 0.0
    %5628 = vmatprep.subr.mxu0 0.0
    %5629 = vmatpush1.msra.mxu0 0.0
    %5630 = vmatprep.subr.mxu0 0.0
    %5631 = vmatpush1.msra.mxu0 0.0
    %5632 = vmatprep.subr.mxu0 0.0
    %5633 = vmatpush1.msra.mxu0 0.0
    %5634 = vmatprep.subr.mxu0 0.0
    %5635 = vmatpush1.msra.mxu0 0.0
    %5636 = vmatprep.subr.mxu0 0.0
    %5637 = vmatpush1.msra.mxu0 0.0
    %5638 = vmatprep.subr.mxu0 0.0
    %5639 = vmatpush1.msra.mxu0 0.0
    %5640 = vmatprep.subr.mxu0 0.0
    %5641 = vmatpush1.msra.mxu0 0.0
    %5642 = vmatprep.subr.mxu0 0.0
    %5643 = vmatpush1.msra.mxu0 0.0
    %5644 = vmatprep.subr.mxu0 0.0
    %5645 = vmatpush1.msra.mxu0 0.0
    %5646 = vmatprep.subr.mxu0 0.0
    %5647 = vmatpush1.msra.mxu0 0.0
    %5648 = vmatprep.subr.mxu0 0.0
    %5649 = vmatpush1.msra.mxu0 0.0
    %5650 = vmatprep.subr.mxu0 0.0
    %5651 = vmatpush1.msra.mxu0 0.0
    %5652 = vmatprep.subr.mxu0 0.0
    %5653 = vmatpush1.msra.mxu0 0.0
    %5654 = vmatprep.subr.mxu0 0.0
    %5655 = vmatpush1.msra.mxu0 0.0
    %5656 = vmatprep.mubr.f32.mxu0 0.0
    %5657 = vmatmul.mubr.f32.gmra.mrb[0].mxu0 %v5220
    %v5658 = vpop.f32.mrb[0].mxu0
    %v5659 = vadd.f32 0.0, %v5658
    %v5660 = vpop.f32.mrb[0].mxu0
    %v5661 = vadd.f32 0.0, %v5660
    %5662 = vdwg.mxu0
    %5663 = vmatprep.subr.mxu0 %v5531
    %5664 = vmatpush1.msra.mxu0 %v5530
    %5665 = vmatprep.subr.mxu0 %v5535
    %5666 = vmatpush1.msra.mxu0 %v5534
    %5667 = vmatprep.subr.mxu0 %v5539
    %5668 = vmatpush1.msra.mxu0 %v5538
    %5669 = vmatprep.subr.mxu0 %v5543
    %5670 = vmatpush1.msra.mxu0 %v5542
    %5671 = vmatprep.subr.mxu0 %v5547
    %5672 = vmatpush1.msra.mxu0 %v5546
    %5673 = vmatprep.subr.mxu0 %v5551
    %5674 = vmatpush1.msra.mxu0 %v5550
    %5675 = vmatprep.subr.mxu0 %v5555
    %5676 = vmatpush1.msra.mxu0 %v5554
    %5677 = vmatprep.subr.mxu0 %v5559
    %5678 = vmatpush1.msra.mxu0 %v5558
    %5679 = vmatprep.subr.mxu0 %v5563
    %5680 = vmatpush1.msra.mxu0 %v5562
    %5681 = vmatprep.subr.mxu0 %v5567
    %5682 = vmatpush1.msra.mxu0 %v5566
    %5683 = vmatprep.subr.mxu0 %v5571
    %5684 = vmatpush1.msra.mxu0 %v5570
    %5685 = vmatprep.subr.mxu0 %v5575
    %5686 = vmatpush1.msra.mxu0 %v5574
    %5687 = vmatprep.subr.mxu0 %v5579
    %5688 = vmatpush1.msra.mxu0 %v5578
    %5689 = vmatprep.subr.mxu0 %v5583
    %5690 = vmatpush1.msra.mxu0 %v5582
    %5691 = vmatprep.subr.mxu0 %v5587
    %5692 = vmatpush1.msra.mxu0 %v5586
    %5693 = vmatprep.subr.mxu0 %v5591
    %5694 = vmatpush1.msra.mxu0 %v5590
    %5695 = vmatprep.subr.mxu0 0.0
    %5696 = vmatpush1.msra.mxu0 0.0
    %5697 = vmatprep.subr.mxu0 0.0
    %5698 = vmatpush1.msra.mxu0 0.0
    %5699 = vmatprep.subr.mxu0 0.0
    %5700 = vmatpush1.msra.mxu0 0.0
    %5701 = vmatprep.subr.mxu0 0.0
    %5702 = vmatpush1.msra.mxu0 0.0
    %5703 = vmatprep.subr.mxu0 0.0
    %5704 = vmatpush1.msra.mxu0 0.0
    %5705 = vmatprep.subr.mxu0 0.0
    %5706 = vmatpush1.msra.mxu0 0.0
    %5707 = vmatprep.subr.mxu0 0.0
    %5708 = vmatpush1.msra.mxu0 0.0
    %5709 = vmatprep.subr.mxu0 0.0
    %5710 = vmatpush1.msra.mxu0 0.0
    %5711 = vmatprep.subr.mxu0 0.0
    %5712 = vmatpush1.msra.mxu0 0.0
    %5713 = vmatprep.subr.mxu0 0.0
    %5714 = vmatpush1.msra.mxu0 0.0
    %5715 = vmatprep.subr.mxu0 0.0
    %5716 = vmatpush1.msra.mxu0 0.0
    %5717 = vmatprep.subr.mxu0 0.0
    %5718 = vmatpush1.msra.mxu0 0.0
    %5719 = vmatprep.subr.mxu0 0.0
    %5720 = vmatpush1.msra.mxu0 0.0
    %5721 = vmatprep.subr.mxu0 0.0
    %5722 = vmatpush1.msra.mxu0 0.0
    %5723 = vmatprep.subr.mxu0 0.0
    %5724 = vmatpush1.msra.mxu0 0.0
    %5725 = vmatprep.subr.mxu0 0.0
    %5726 = vmatpush1.msra.mxu0 0.0
    %5727 = vmatprep.mubr.f32.mxu0 0.0
    %5728 = vmatmul.mubr.f32.gmra.mrb[0].mxu0 %v5220
    %v5729 = vpop.f32.mrb[0].mxu0
    %v5730 = vadd.f32 0.0, %v5729
    %v5731 = vpop.f32.mrb[0].mxu0
    %v5732 = vadd.f32 0.0, %v5731
    %5733 = vdwg.mxu0
    %5734 = vmatprep.subr.mxu0 %v5465
    %5735 = vmatpush1.msra.mxu0 %v5464
    %5736 = vmatprep.subr.mxu0 %v5469
    %5737 = vmatpush1.msra.mxu0 %v5468
    %5738 = vmatprep.subr.mxu0 %v5473
    %5739 = vmatpush1.msra.mxu0 %v5472
    %5740 = vmatprep.subr.mxu0 %v5477
    %5741 = vmatpush1.msra.mxu0 %v5476
    %5742 = vmatprep.subr.mxu0 %v5481
    %5743 = vmatpush1.msra.mxu0 %v5480
    %5744 = vmatprep.subr.mxu0 %v5485
    %5745 = vmatpush1.msra.mxu0 %v5484
    %5746 = vmatprep.subr.mxu0 %v5489
    %5747 = vmatpush1.msra.mxu0 %v5488
    %5748 = vmatprep.subr.mxu0 %v5493
    %5749 = vmatpush1.msra.mxu0 %v5492
    %5750 = vmatprep.subr.mxu0 %v5497
    %5751 = vmatpush1.msra.mxu0 %v5496
    %5752 = vmatprep.subr.mxu0 %v5501
    %5753 = vmatpush1.msra.mxu0 %v5500
    %5754 = vmatprep.subr.mxu0 %v5505
    %5755 = vmatpush1.msra.mxu0 %v5504
    %5756 = vmatprep.subr.mxu0 %v5509
    %5757 = vmatpush1.msra.mxu0 %v5508
    %5758 = vmatprep.subr.mxu0 %v5513
    %5759 = vmatpush1.msra.mxu0 %v5512
    %5760 = vmatprep.subr.mxu0 %v5517
    %5761 = vmatpush1.msra.mxu0 %v5516
    %5762 = vmatprep.subr.mxu0 %v5521
    %5763 = vmatpush1.msra.mxu0 %v5520
    %5764 = vmatprep.subr.mxu0 %v5525
    %5765 = vmatpush1.msra.mxu0 %v5524
    %5766 = vmatprep.subr.mxu0 0.0
    %5767 = vmatpush1.msra.mxu0 0.0
    %5768 = vmatprep.subr.mxu0 0.0
    %5769 = vmatpush1.msra.mxu0 0.0
    %5770 = vmatprep.subr.mxu0 0.0
    %5771 = vmatpush1.msra.mxu0 0.0
    %5772 = vmatprep.subr.mxu0 0.0
    %5773 = vmatpush1.msra.mxu0 0.0
    %5774 = vmatprep.subr.mxu0 0.0
    %5775 = vmatpush1.msra.mxu0 0.0
    %5776 = vmatprep.subr.mxu0 0.0
    %5777 = vmatpush1.msra.mxu0 0.0
    %5778 = vmatprep.subr.mxu0 0.0
    %5779 = vmatpush1.msra.mxu0 0.0
    %5780 = vmatprep.subr.mxu0 0.0
    %5781 = vmatpush1.msra.mxu0 0.0
    %5782 = vmatprep.subr.mxu0 0.0
    %5783 = vmatpush1.msra.mxu0 0.0
    %5784 = vmatprep.subr.mxu0 0.0
    %5785 = vmatpush1.msra.mxu0 0.0
    %5786 = vmatprep.subr.mxu0 0.0
    %5787 = vmatpush1.msra.mxu0 0.0
    %5788 = vmatprep.subr.mxu0 0.0
    %5789 = vmatpush1.msra.mxu0 0.0
    %5790 = vmatprep.subr.mxu0 0.0
    %5791 = vmatpush1.msra.mxu0 0.0
    %5792 = vmatprep.subr.mxu0 0.0
    %5793 = vmatpush1.msra.mxu0 0.0
    %5794 = vmatprep.subr.mxu0 0.0
    %5795 = vmatpush1.msra.mxu0 0.0
    %5796 = vmatprep.subr.mxu0 0.0
    %5797 = vmatpush1.msra.mxu0 0.0
    %5798 = vmatprep.mubr.f32.mxu0 0.0
    %5799 = vmatmul.mubr.f32.gmra.mrb[0].mxu0 %v5463
    %v5800 = vpop.f32.mrb[0].mxu0
    %v5801 = vadd.f32 %v5659, %v5800
    %v5802 = vpop.f32.mrb[0].mxu0
    %v5803 = vadd.f32 %v5661, %v5802
    %5804 = vdwg.mxu0
    %5805 = vmatprep.subr.mxu0 %v5467
    %5806 = vmatpush1.msra.mxu0 %v5466
    %5807 = vmatprep.subr.mxu0 %v5471
    %5808 = vmatpush1.msra.mxu0 %v5470
    %5809 = vmatprep.subr.mxu0 %v5475
    %5810 = vmatpush1.msra.mxu0 %v5474
    %5811 = vmatprep.subr.mxu0 %v5479
    %5812 = vmatpush1.msra.mxu0 %v5478
    %5813 = vmatprep.subr.mxu0 %v5483
    %5814 = vmatpush1.msra.mxu0 %v5482
    %5815 = vmatprep.subr.mxu0 %v5487
    %5816 = vmatpush1.msra.mxu0 %v5486
    %5817 = vmatprep.subr.mxu0 %v5491
    %5818 = vmatpush1.msra.mxu0 %v5490
    %5819 = vmatprep.subr.mxu0 %v5495
    %5820 = vmatpush1.msra.mxu0 %v5494
    %5821 = vmatprep.subr.mxu0 %v5499
    %5822 = vmatpush1.msra.mxu0 %v5498
    %5823 = vmatprep.subr.mxu0 %v5503
    %5824 = vmatpush1.msra.mxu0 %v5502
    %5825 = vmatprep.subr.mxu0 %v5507
    %5826 = vmatpush1.msra.mxu0 %v5506
    %5827 = vmatprep.subr.mxu0 %v5511
    %5828 = vmatpush1.msra.mxu0 %v5510
    %5829 = vmatprep.subr.mxu0 %v5515
    %5830 = vmatpush1.msra.mxu0 %v5514
    %5831 = vmatprep.subr.mxu0 %v5519
    %5832 = vmatpush1.msra.mxu0 %v5518
    %5833 = vmatprep.subr.mxu0 %v5523
    %5834 = vmatpush1.msra.mxu0 %v5522
    %5835 = vmatprep.subr.mxu0 %v5527
    %5836 = vmatpush1.msra.mxu0 %v5526
    %5837 = vmatprep.subr.mxu0 0.0
    %5838 = vmatpush1.msra.mxu0 0.0
    %5839 = vmatprep.subr.mxu0 0.0
    %5840 = vmatpush1.msra.mxu0 0.0
    %5841 = vmatprep.subr.mxu0 0.0
    %5842 = vmatpush1.msra.mxu0 0.0
    %5843 = vmatprep.subr.mxu0 0.0
    %5844 = vmatpush1.msra.mxu0 0.0
    %5845 = vmatprep.subr.mxu0 0.0
    %5846 = vmatpush1.msra.mxu0 0.0
    %5847 = vmatprep.subr.mxu0 0.0
    %5848 = vmatpush1.msra.mxu0 0.0
    %5849 = vmatprep.subr.mxu0 0.0
    %5850 = vmatpush1.msra.mxu0 0.0
    %5851 = vmatprep.subr.mxu0 0.0
    %5852 = vmatpush1.msra.mxu0 0.0
    %5853 = vmatprep.subr.mxu0 0.0
    %5854 = vmatpush1.msra.mxu0 0.0
    %5855 = vmatprep.subr.mxu0 0.0
    %5856 = vmatpush1.msra.mxu0 0.0
    %5857 = vmatprep.subr.mxu0 0.0
    %5858 = vmatpush1.msra.mxu0 0.0
    %5859 = vmatprep.subr.mxu0 0.0
    %5860 = vmatpush1.msra.mxu0 0.0
    %5861 = vmatprep.subr.mxu0 0.0
    %5862 = vmatpush1.msra.mxu0 0.0
    %5863 = vmatprep.subr.mxu0 0.0
    %5864 = vmatpush1.msra.mxu0 0.0
    %5865 = vmatprep.subr.mxu0 0.0
    %5866 = vmatpush1.msra.mxu0 0.0
    %5867 = vmatprep.subr.mxu0 0.0
    %5868 = vmatpush1.msra.mxu0 0.0
    %5869 = vmatprep.mubr.f32.mxu0 0.0
    %5870 = vmatmul.mubr.f32.gmra.mrb[0].mxu0 %v5463
    %v5871 = vpop.f32.mrb[0].mxu0
    %v5872 = vadd.f32 %v5730, %v5871
    %v5873 = vpop.f32.mrb[0].mxu0
    %v5874 = vadd.f32 %v5732, %v5873
    %5875 = vdwg.mxu0
    %v5876 = vadd.f32 %v5801, %v422
    %v5877 = vadd.f32 %v5803, %v426
    %v5878 = vadd.f32 %v5872, %v430
    %v5879 = vadd.f32 %v5874, %v434
    %v5880 = vxor.u32 %v5876, 2147483648
    %v5881 = vmul.f32 %v5880, 1.442695
    %v5882 = vpow.pop %v5881
    %v5883 = vadd.f32 %v5882, 1.0
    %v5884 = vrcp.pop %v5883
    %v5885 = vmul.f32 1.0, %v5884
    %v5886 = vxor.u32 %v5877, 2147483648
    %v5887 = vmul.f32 %v5886, 1.442695
    %v5888 = vpow.pop %v5887
    %v5889 = vadd.f32 %v5888, 1.0
    %v5890 = vrcp.pop %v5889
    %v5891 = vmul.f32 1.0, %v5890
    %v5892 = vtanh.pop %v5878
    %v5893 = vxor.u32 %v5879, 2147483648
    %v5894 = vmul.f32 %v5893, 1.442695
    %v5895 = vpow.pop %v5894
    %v5896 = vadd.f32 %v5895, 1.0
    %v5897 = vrcp.pop %v5896
    %v5898 = vmul.f32 1.0, %v5897
    %v5899 = vmul.f32 %v5891, %v5218
    %v5900 = vmul.f32 %v5885, %v5892
    %v5901 = vadd.f32 %v5899, %v5900
    %v5902 = vtanh.pop %v5901
    %v5903 = vmul.f32 %v5898, %v5902
    %s5904 = scalar_lea.vmem [#allocation7], 56
    %5905 = vst [vmem:[%s5904] sm:$0xff] %v5903
    %5906 = vst [vmem:[#allocation2] sm:$0xff] %v5463
    %5907 = vst [vmem:[#allocation3] sm:$0xff] %v5461
    %5908 = vst [vmem:[#allocation4] sm:$0xff] %v5903
    %5909 = vst [vmem:[#allocation5] sm:$0xff] %v5901
    %v5910 = vld [vmem:[#allocation7] sm:$0xff]
    %v5911 = vld [vmem:[#allocation7 + $0x8] sm:$0xff]
    %v5912 = vld [vmem:[#allocation7 + $0x10] sm:$0xff]
    %v5913 = vld [vmem:[#allocation7 + $0x18] sm:$0xff]
    %v5914 = vld [vmem:[#allocation7 + $0x20] sm:$0xff]
    %v5915 = vld [vmem:[#allocation7 + $0x28] sm:$0xff]
    %v5916 = vld [vmem:[#allocation7 + $0x30] sm:$0xff]
    %v5917 = vld [vmem:[#allocation7 + $0x38] sm:$0xff]
    %v5918 = vld [vmem:[#allocation14] sm:$0xff]
    %v5919 = vld [vmem:[#allocation14 + $0x8] sm:$0xff]
    %v5920 = vld [vmem:[#allocation14 + $0x10] sm:$0xff]
    %v5921 = vld [vmem:[#allocation14 + $0x18] sm:$0xff]
    %v5922 = vld [vmem:[#allocation14 + $0x20] sm:$0xff]
    %v5923 = vld [vmem:[#allocation14 + $0x28] sm:$0xff]
    %v5924 = vld [vmem:[#allocation14 + $0x30] sm:$0xff]
    %v5925 = vld [vmem:[#allocation14 + $0x38] sm:$0xff]
    %v5926 = vld [vmem:[#allocation14 + $0x40] sm:$0xff]
    %v5927 = vld [vmem:[#allocation14 + $0x48] sm:$0xff]
    %v5928 = vld [vmem:[#allocation14 + $0x50] sm:$0xff]
    %v5929 = vld [vmem:[#allocation14 + $0x58] sm:$0xff]
    %v5930 = vld [vmem:[#allocation14 + $0x60] sm:$0xff]
    %v5931 = vld [vmem:[#allocation14 + $0x68] sm:$0xff]
    %v5932 = vld [vmem:[#allocation14 + $0x70] sm:$0xff]
    %v5933 = vld [vmem:[#allocation14 + $0x78] sm:$0xff]
    %v5934 = vld [vmem:[%s8] sm:$0x1]
    %v5936 = vlaneseq
    %v5937 = vshrl.u32 %v5936, 7
    %v5938 = vsub.s32 0, %v5937
    %v5939 = vrot.slane %v5934, %v5938
    %5941 = vmatprep.subr.mxu0 0.0
    %5942 = vmatpush1.msra.mxu0 %v5918
    %5943 = vmatprep.subr.mxu0 0.0
    %5944 = vmatpush1.msra.mxu0 %v5919
    %5945 = vmatprep.subr.mxu0 0.0
    %5946 = vmatpush1.msra.mxu0 %v5920
    %5947 = vmatprep.subr.mxu0 0.0
    %5948 = vmatpush1.msra.mxu0 %v5921
    %5949 = vmatprep.subr.mxu0 0.0
    %5950 = vmatpush1.msra.mxu0 %v5922
    %5951 = vmatprep.subr.mxu0 0.0
    %5952 = vmatpush1.msra.mxu0 %v5923
    %5953 = vmatprep.subr.mxu0 0.0
    %5954 = vmatpush1.msra.mxu0 %v5924
    %5955 = vmatprep.subr.mxu0 0.0
    %5956 = vmatpush1.msra.mxu0 %v5925
    %5957 = vmatprep.subr.mxu0 0.0
    %5958 = vmatpush1.msra.mxu0 %v5926
    %5959 = vmatprep.subr.mxu0 0.0
    %5960 = vmatpush1.msra.mxu0 %v5927
    %5961 = vmatprep.subr.mxu0 0.0
    %5962 = vmatpush1.msra.mxu0 %v5928
    %5963 = vmatprep.subr.mxu0 0.0
    %5964 = vmatpush1.msra.mxu0 %v5929
    %5965 = vmatprep.subr.mxu0 0.0
    %5966 = vmatpush1.msra.mxu0 %v5930
    %5967 = vmatprep.subr.mxu0 0.0
    %5968 = vmatpush1.msra.mxu0 %v5931
    %5969 = vmatprep.subr.mxu0 0.0
    %5970 = vmatpush1.msra.mxu0 %v5932
    %5971 = vmatprep.subr.mxu0 0.0
    %5972 = vmatpush1.msra.mxu0 %v5933
    %5973 = vmatprep.subr.mxu0 0.0
    %5974 = vmatpush1.msra.mxu0 0.0
    %5975 = vmatprep.subr.mxu0 0.0
    %5976 = vmatpush1.msra.mxu0 0.0
    %5977 = vmatprep.subr.mxu0 0.0
    %5978 = vmatpush1.msra.mxu0 0.0
    %5979 = vmatprep.subr.mxu0 0.0
    %5980 = vmatpush1.msra.mxu0 0.0
    %5981 = vmatprep.subr.mxu0 0.0
    %5982 = vmatpush1.msra.mxu0 0.0
    %5983 = vmatprep.subr.mxu0 0.0
    %5984 = vmatpush1.msra.mxu0 0.0
    %5985 = vmatprep.subr.mxu0 0.0
    %5986 = vmatpush1.msra.mxu0 0.0
    %5987 = vmatprep.subr.mxu0 0.0
    %5988 = vmatpush1.msra.mxu0 0.0
    %5989 = vmatprep.subr.mxu0 0.0
    %5990 = vmatpush1.msra.mxu0 0.0
    %5991 = vmatprep.subr.mxu0 0.0
    %5992 = vmatpush1.msra.mxu0 0.0
    %5993 = vmatprep.subr.mxu0 0.0
    %5994 = vmatpush1.msra.mxu0 0.0
    %5995 = vmatprep.subr.mxu0 0.0
    %5996 = vmatpush1.msra.mxu0 0.0
    %5997 = vmatprep.subr.mxu0 0.0
    %5998 = vmatpush1.msra.mxu0 0.0
    %5999 = vmatprep.subr.mxu0 0.0
    %6000 = vmatpush1.msra.mxu0 0.0
    %6001 = vmatprep.subr.mxu0 0.0
    %6002 = vmatpush1.msra.mxu0 0.0
    %6003 = vmatprep.subr.mxu0 0.0
    %6004 = vmatpush1.msra.mxu0 0.0
    %6005 = vmatprep.mubr.f32.mxu0 0.0
    %6006 = vmatmul.mubr.f32.gmra.mrb[0].mxu0 %v5910
    %v6007 = vpop.f32.mrb[0].mxu0
    %v6008 = vadd.f32 %v5939, %v6007
    %v6009 = vpop.f32.mrb[0].mxu0
    %6010 = vmatprep.mubr.f32.mxu0 0.0
    %6011 = vmatmul.mubr.f32.gmra.mrb[0].mxu0 %v5911
    %v6012 = vpop.f32.mrb[0].mxu0
    %v6013 = vadd.f32 %v5939, %v6012
    %v6014 = vpop.f32.mrb[0].mxu0
    %6015 = vmatprep.mubr.f32.mxu0 0.0
    %6016 = vmatmul.mubr.f32.gmra.mrb[0].mxu0 %v5912
    %v6017 = vpop.f32.mrb[0].mxu0
    %v6018 = vadd.f32 %v5939, %v6017
    %v6019 = vpop.f32.mrb[0].mxu0
    %6020 = vmatprep.mubr.f32.mxu0 0.0
    %6021 = vmatmul.mubr.f32.gmra.mrb[0].mxu0 %v5913
    %v6022 = vpop.f32.mrb[0].mxu0
    %v6023 = vadd.f32 %v5939, %v6022
    %v6024 = vpop.f32.mrb[0].mxu0
    %6025 = vmatprep.mubr.f32.mxu0 0.0
    %6026 = vmatmul.mubr.f32.gmra.mrb[0].mxu0 %v5914
    %v6027 = vpop.f32.mrb[0].mxu0
    %v6028 = vadd.f32 %v5939, %v6027
    %v6029 = vpop.f32.mrb[0].mxu0
    %6030 = vmatprep.mubr.f32.mxu0 0.0
    %6031 = vmatmul.mubr.f32.gmra.mrb[0].mxu0 %v5915
    %v6032 = vpop.f32.mrb[0].mxu0
    %v6033 = vadd.f32 %v5939, %v6032
    %v6034 = vpop.f32.mrb[0].mxu0
    %6035 = vmatprep.mubr.f32.mxu0 0.0
    %6036 = vmatmul.mubr.f32.gmra.mrb[0].mxu0 %v5916
    %v6037 = vpop.f32.mrb[0].mxu0
    %v6038 = vadd.f32 %v5939, %v6037
    %v6039 = vpop.f32.mrb[0].mxu0
    %6040 = vmatprep.mubr.f32.mxu0 0.0
    %6041 = vmatmul.mubr.f32.gmra.mrb[0].mxu0 %v5917
    %v6042 = vpop.f32.mrb[0].mxu0
    %v6043 = vadd.f32 %v5939, %v6042
    %v6044 = vpop.f32.mrb[0].mxu0
    %6045 = vdwg.mxu0
    %v6046 = vxor.u32 %v6008, 2147483648
    %v6047 = vxor.u32 %v6013, 2147483648
    %v6048 = vxor.u32 %v6018, 2147483648
    %v6049 = vxor.u32 %v6023, 2147483648
    %v6050 = vxor.u32 %v6028, 2147483648
    %v6051 = vxor.u32 %v6033, 2147483648
    %v6052 = vxor.u32 %v6038, 2147483648
    %v6053 = vxor.u32 %v6043, 2147483648
    %v6054 = vmul.f32 %v6046, 1.442695
    %v6055 = vpow.pop %v6054
    %v6056 = vmul.f32 %v6047, 1.442695
    %v6057 = vpow.pop %v6056
    %v6058 = vmul.f32 %v6048, 1.442695
    %v6059 = vpow.pop %v6058
    %v6060 = vmul.f32 %v6049, 1.442695
    %v6061 = vpow.pop %v6060
    %v6062 = vmul.f32 %v6050, 1.442695
    %v6063 = vpow.pop %v6062
    %v6064 = vmul.f32 %v6051, 1.442695
    %v6065 = vpow.pop %v6064
    %v6066 = vmul.f32 %v6052, 1.442695
    %v6067 = vpow.pop %v6066
    %v6068 = vmul.f32 %v6053, 1.442695
    %v6069 = vpow.pop %v6068
    %v6070 = vadd.f32 %v6055, 1.0
    %v6071 = vadd.f32 %v6057, 1.0
    %v6072 = vadd.f32 %v6059, 1.0
    %v6073 = vadd.f32 %v6061, 1.0
    %v6074 = vadd.f32 %v6063, 1.0
    %v6075 = vadd.f32 %v6065, 1.0
    %v6076 = vadd.f32 %v6067, 1.0
    %v6077 = vadd.f32 %v6069, 1.0
    %v6078 = vrcp.pop %v6070
    %v6079 = vmul.f32 1.0, %v6078
    %v6080 = vrcp.pop %v6071
    %v6081 = vmul.f32 1.0, %v6080
    %v6082 = vrcp.pop %v6072
    %v6083 = vmul.f32 1.0, %v6082
    %v6084 = vrcp.pop %v6073
    %v6085 = vmul.f32 1.0, %v6084
    %v6086 = vrcp.pop %v6074
    %v6087 = vmul.f32 1.0, %v6086
    %v6088 = vrcp.pop %v6075
    %v6089 = vmul.f32 1.0, %v6088
    %v6090 = vrcp.pop %v6076
    %v6091 = vmul.f32 1.0, %v6090
    %v6092 = vrcp.pop %v6077
    %v6093 = vmul.f32 1.0, %v6092
    %6094 = vst [vmem:[#allocation16] sm:$0xff] %v6079
    %6095 = vst [vmem:[#allocation16 + $0x8] sm:$0xff] %v6081
    %6096 = vst [vmem:[#allocation16 + $0x10] sm:$0xff] %v6083
    %6097 = vst [vmem:[#allocation16 + $0x18] sm:$0xff] %v6085
    %6098 = vst [vmem:[#allocation16 + $0x20] sm:$0xff] %v6087
    %6099 = vst [vmem:[#allocation16 + $0x28] sm:$0xff] %v6089
    %6100 = vst [vmem:[#allocation16 + $0x30] sm:$0xff] %v6091
    %6101 = vst [vmem:[#allocation16 + $0x38] sm:$0xff] %v6093
    // Predicated region
    $region58: #{tpu_custom_call.1} parent=1 // pred_check
      _
    $region59: #{tpu_custom_call.1} parent=1 // pred_check_branch
      %6103 = sbr.rel (0) target = $region61
    $region60: #{tpu_custom_call.1} parent=1 // pred_region
      %s6105 = ssub.s32 1024, 1024
      %6106 = vsyncadd [#allocation10], %s6105
      %s6107 = sshll.u32 [#allocation16], 4
      %s6108 = int_to_ptr.vmem [resolvable:$true] %s6107
      %6113 = dma.vmem_to_hbm [thread:$0]  %s6108, 1024, %s9, [#allocation10], 128, 128, 8
    $region61: #{tpu_custom_call.1} parent=1 // pred_fallthru
      _
    // Predicated region
    $region62: #{tpu_custom_call.1} parent=1 // pred_check
      _
    $region63: #{tpu_custom_call.1} parent=1 // pred_check_branch
      %6115 = sbr.rel (0) target = $region65
    $region64: #{tpu_custom_call.1} parent=1 // pred_region
      %6116 = dma.done [#allocation10], 1024
    $region65: #{tpu_custom_call.1} parent=1 // pred_fallthru
      _
    %6117 = vsyncpa [#allocation9], 1
    %6118 = vsyncpa [#allocation12], 1
    %6119 = vsyncpa [#allocation15], 1
    %6120 = vsyncpa [#allocation10], 1

</llo_original>
